<compile_context>
chip_gen: v7x
topology: tpu7x:2x2x1
jax: 0.10.0
libtpu: 0.0.40
codegen_flags: <defaults>
</compile_context>

<pallas_src>
import functools

import jax
import jax.numpy as jnp
from jax.experimental import pallas as pl
from jax.experimental.pallas import tpu as pltpu

PACK = 4  # pixels packed per matmul row -> 1x1-conv output rows are >=128 lanes


def _gelu(x):
    return jax.nn.gelu(x, approximate=True)


def _block_diag(w, n=PACK):
    """Per-pixel (K, N) weight -> n-way block-diagonal (n*K, n*N) packed weight."""
    K, N = w.shape
    out = jnp.zeros((n * K, n * N), w.dtype)
    for i in range(n):
        out = out.at[i * K:(i + 1) * K, i * N:(i + 1) * N].set(w)
    return out


def _out_pad(out_channels):
    # Per-pixel padded output width so PACK * out_pad is a multiple of 128 lanes.
    return ((out_channels + 31) // 32) * 32


# ----------------------------------------------------------------------------
# Tiling helpers
# ----------------------------------------------------------------------------
def _pick_tile(M, tile_m=2048):
    """Largest sublane-aligned divisor of M <= tile_m, preferring >=2 grid steps."""
    def best_divisor(cap):
        t = (min(cap, M) // 8) * 8
        while t >= 8:
            if M % t == 0:
                return t
            t -= 8
        return None

    t = best_divisor(min(tile_m, max(M // 2, 8)))   # >=2 steps if possible
    if t is not None:
        return t
    t = best_divisor(tile_m)                        # aligned single/few-step
    if t is not None:
        return t
    # TODO(synk): pad-and-mask path for awkward M; whole-M fallback for now.
    return M


def _pick_group(Mm, bytes_per_mode, vmem_budget=4 << 20):
    """Largest divisor of Mm with >=2 grid steps and weight block under budget."""
    cap = max(1, min(Mm // 2 if Mm >= 2 else 1,
                     vmem_budget // max(bytes_per_mode, 1)))
    for g in range(cap, 0, -1):
        if Mm % g == 0:
            return g
    return 1


# ----------------------------------------------------------------------------
# Pallas kernels (all weights arrive bf16; accumulation / bias / GELU in f32)
# ----------------------------------------------------------------------------
def _linear_kernel(x_ref, w_ref, b_ref, o_ref, *, activation):
    x = x_ref[...].astype(jnp.bfloat16)
    y = jnp.dot(x, w_ref[...], preferred_element_type=jnp.float32) + b_ref[...]
    if activation:
        y = _gelu(y)
    o_ref[...] = y.astype(o_ref.dtype)


def linear(x, w, b, *, activation=False, tile_m=2048):
    """Packed 1x1 conv: (M, K) @ (K, N) + b, optional GELU.  N is lane-dense."""
    M, K = x.shape
    N = w.shape[1]
    tm = _pick_tile(M, tile_m)
    return pl.pallas_call(
        functools.partial(_linear_kernel, activation=activation),
        out_shape=jax.ShapeDtypeStruct((M, N), x.dtype),
        grid_spec=pltpu.PrefetchScalarGridSpec(
            num_scalar_prefetch=0,
            grid=(M // tm,),
            in_specs=[
                pl.BlockSpec((tm, K), lambda i: (i, 0)),
                pl.BlockSpec((K, N), lambda i: (0, 0)),
                pl.BlockSpec((1, N), lambda i: (0, 0)),
            ],
            out_specs=pl.BlockSpec((tm, N), lambda i: (i, 0)),
        ),
        compiler_params=pltpu.CompilerParams(dimension_semantics=("parallel",)),
    )(x, w, b)


def _skip_add_act_kernel(x_ref, w_ref, b_ref, s_ref, o_ref, *, activation):
    # Fused: skip 1x1 conv + bias + add spectral branch + (optional) GELU.
    x = x_ref[...].astype(jnp.bfloat16)
    y = jnp.dot(x, w_ref[...], preferred_element_type=jnp.float32)
    y = y + b_ref[...] + s_ref[...]
    if activation:
        y = _gelu(y)
    o_ref[...] = y.astype(o_ref.dtype)


def skip_add_act(x, w, b, spec, *, activation, tile_m=2048):
    M, K = x.shape
    N = w.shape[1]
    tm = _pick_tile(M, tile_m)
    return pl.pallas_call(
        functools.partial(_skip_add_act_kernel, activation=activation),
        out_shape=jax.ShapeDtypeStruct((M, N), x.dtype),
        grid_spec=pltpu.PrefetchScalarGridSpec(
            num_scalar_prefetch=0,
            grid=(M // tm,),
            in_specs=[
                pl.BlockSpec((tm, K), lambda i: (i, 0)),
                pl.BlockSpec((K, N), lambda i: (0, 0)),
                pl.BlockSpec((1, N), lambda i: (0, 0)),
                pl.BlockSpec((tm, N), lambda i: (i, 0)),
            ],
            out_specs=pl.BlockSpec((tm, N), lambda i: (i, 0)),
        ),
        compiler_params=pltpu.CompilerParams(dimension_semantics=("parallel",)),
    )(x, w, b, spec)


def _projection_kernel(x_ref, w1_ref, b1_ref, w2_ref, b2_ref, o_ref):
    # Fused projection MLP: (x @ w1 + b1) -> GELU -> (@ w2 + b2).
    # The (tm, PACK*proj) intermediate never leaves VMEM/registers.
    x = x_ref[...].astype(jnp.bfloat16)
    h = jnp.dot(x, w1_ref[...], preferred_element_type=jnp.float32) + b1_ref[...]
    h = _gelu(h)
    y = jnp.dot(h.astype(jnp.bfloat16), w2_ref[...],
                preferred_element_type=jnp.float32) + b2_ref[...]
    o_ref[...] = y.astype(o_ref.dtype)


def projection(x, w1, b1, w2, b2, *, tile_m=2048):
    M, K = x.shape
    P = w1.shape[1]
    N = w2.shape[1]                       # PACK * out_pad (multiple of 128)
    tm = _pick_tile(M, tile_m)
    return pl.pallas_call(
        _projection_kernel,
        out_shape=jax.ShapeDtypeStruct((M, N), x.dtype),
        grid_spec=pltpu.PrefetchScalarGridSpec(
            num_scalar_prefetch=0,
            grid=(M // tm,),
            in_specs=[
                pl.BlockSpec((tm, K), lambda i: (i, 0)),
                pl.BlockSpec((K, P), lambda i: (0, 0)),
                pl.BlockSpec((1, P), lambda i: (0, 0)),
                pl.BlockSpec((P, N), lambda i: (0, 0)),
                pl.BlockSpec((1, N), lambda i: (0, 0)),
            ],
            out_specs=pl.BlockSpec((tm, N), lambda i: (i, 0)),
        ),
        compiler_params=pltpu.CompilerParams(dimension_semantics=("parallel",)),
    )(x, w1, b1, w2, b2)


def _spectral_mix_kernel(x_ref, w_ref, o_ref):
    # x: (G, B, 2C) f32 with lanes = [real(C) | imag(C)]
    # w: (G, 2C, 2C) bf16, real-formulated complex weight [[wr, wi], [-wi, wr]]
    # One batched matmul per mode group does the whole complex channel mixing;
    # batch dim g leads on both operands so no in-kernel transpose is needed.
    x = x_ref[...].astype(jnp.bfloat16)
    o_ref[...] = jnp.einsum(
        "gbc,gcd->gbd", x, w_ref[...],
        preferred_element_type=jnp.float32).astype(o_ref.dtype)


def spectral_mix(x_pack, w_spec):
    """x_pack: (Mm, B, 2C) f32; w_spec: (Mm, 2C, 2C) bf16 -> (Mm, B, 2C) f32."""
    Mm, B, C2 = x_pack.shape
    G = _pick_group(Mm, bytes_per_mode=C2 * C2 * 2)   # bf16 weight bytes/mode
    return pl.pallas_call(
        _spectral_mix_kernel,
        out_shape=jax.ShapeDtypeStruct((Mm, B, C2), jnp.float32),
        grid_spec=pltpu.PrefetchScalarGridSpec(
            num_scalar_prefetch=0,
            grid=(Mm // G,),
            in_specs=[
                pl.BlockSpec((G, B, C2), lambda g: (g, 0, 0)),
                pl.BlockSpec((G, C2, C2), lambda g: (g, 0, 0)),
            ],
            out_specs=pl.BlockSpec((G, B, C2), lambda g: (g, 0, 0)),
        ),
        compiler_params=pltpu.CompilerParams(dimension_semantics=("parallel",)),
    )(x_pack, w_spec)


# ----------------------------------------------------------------------------
# Spectral convolution (FFT in plain JAX, mode mixing in Pallas)
# ----------------------------------------------------------------------------
def spectral_conv2d(x, w_spec, m1, m2):
    """x: (H, W, B, C) f32; w_spec: (2*m1*m2, 2C, 2C) bf16 real-formulated."""
    H, W, B, C = x.shape
    Wf = W // 2 + 1
    assert 2 * m1 <= H and m2 <= Wf, (m1, m2, H, Wf)
    Mm = 2 * m1 * m2

    x_ft = jnp.fft.rfft2(x, axes=(0, 1))              # (H, Wf, B, C) complex64
    low = x_ft[:m1, :m2]                              # positive freqs
    high = x_ft[H - m1:, :m2]                         # negative freqs
    # Mode-major packing with NO transposes (contiguous reshapes only).
    blk = jnp.concatenate([low, high], axis=0).reshape(Mm, B, C)
    x_pack = jnp.concatenate([jnp.real(blk), jnp.imag(blk)], axis=-1)  # (Mm,B,2C)

    out_pack = spectral_mix(x_pack, w_spec)           # (Mm, B, 2C) f32

    blk_out = jax.lax.complex(out_pack[..., :C], out_pack[..., C:])
    blk_out = blk_out.reshape(2 * m1, m2, B, C)

    # Rebuild the full spectrum via zero-band concatenation (no scatter).
    zeros_w = jnp.zeros((2 * m1, Wf - m2, B, C), jnp.complex64)
    band = jnp.concatenate([blk_out, zeros_w], axis=1)          # (2m1, Wf, B, C)
    mid = jnp.zeros((H - 2 * m1, Wf, B, C), jnp.complex64)
    out_ft = jnp.concatenate([band[:m1], mid, band[m1:]], axis=0)

    y = jnp.fft.irfft2(out_ft, s=(H, W), axes=(0, 1))
    return y.astype(x.dtype)


# ----------------------------------------------------------------------------
# Parameter init + full forward
# ----------------------------------------------------------------------------
def init_tfno_params(key, n_modes, hidden_channels, in_channels, out_channels,
                     projection_channels, n_layers):
    m1, m2 = n_modes
    C = hidden_channels
    P = projection_channels
    Mm = 2 * m1 * m2
    opad = _out_pad(out_channels)
    keys = jax.random.split(key, 4 + 3 * n_layers)
    k = iter(keys)
    f32, bf16 = jnp.float32, jnp.bfloat16

    def unif(kk, shape, scale):
        return jax.random.uniform(kk, shape, f32, -1.0, 1.0) * scale

    lift_w = unif(next(k), (in_channels, C), 1.0 / in_channels)
    p1_w = unif(next(k), (C, P), 1.0 / C)
    p2_w = jnp.zeros((P, opad), f32)
    p2_w = p2_w.at[:, :out_channels].set(
        unif(next(k), (P, out_channels), 1.0 / P))

    p = {
        # 4-pixel-packed block-diagonal 1x1-conv weights, stored bf16.
        "lift_w": _block_diag(lift_w).astype(bf16),
        "lift_b": jnp.zeros((1, PACK * C), f32),
        "p1_w": _block_diag(p1_w).astype(bf16),
        "p1_b": jnp.zeros((1, PACK * P), f32),
        "p2_w": _block_diag(p2_w).astype(bf16),
        "p2_b": jnp.zeros((1, PACK * opad), f32),
        "layers": [],
    }

    # TODO(synk): dense (equivalent) complex weights instead of neuralop's
    #             Tucker-factorized parameterization.
    spec_scale = 1.0 / (C * C)
    for _ in range(n_layers):
        wr = unif(next(k), (Mm, C, C), spec_scale)
        wi = unif(next(k), (Mm, C, C), spec_scale)
        # Real-formulated complex weight: [xr|xi] @ [[wr, wi], [-wi, wr]]
        # = [xr@wr - xi@wi | xr@wi + xi@wr] -- built once here, stored bf16.
        w_spec = jnp.concatenate(
            [jnp.concatenate([wr, wi], axis=2),
             jnp.concatenate([-wi, wr], axis=2)], axis=1).astype(bf16)
        skip_w = unif(next(k), (C, C), 1.0 / C)
        p["layers"].append({
            "w_spec": w_spec,                              # (Mm, 2C, 2C) bf16
            "skip_w": _block_diag(skip_w).astype(bf16),    # (4C, 4C) bf16
            "skip_b": jnp.zeros((1, PACK * C), f32),
        })
    return p


def tfno_forward(params, x, *, m1, m2, hidden_channels, out_channels):
    """x: (B, Cin, H, W) NCHW -> (B, Cout, H, W) NCHW."""
    B, Cin, H, W = x.shape
    C = hidden_channels
    opad = _out_pad(out_channels)
    # Batch-third layout (H, W, B, C): the 1x1 convs do not care about row
    # ordering, and the spectral mode packing becomes transpose-free.
    h = jnp.transpose(x, (2, 3, 0, 1))                 # (H, W, B, Cin)
    M = H * W * B
    assert M % PACK == 0, (M, PACK)
    Mp = M // PACK

    flat = linear(h.reshape(Mp, PACK * Cin), params["lift_w"], params["lift_b"])
    h = flat.reshape(H, W, B, C)

    n_layers = len(params["layers"])
    for li, layer in enumerate(params["layers"]):
        spec = spectral_conv2d(h, layer["w_spec"], m1, m2)   # (H, W, B, C) f32
        flat = skip_add_act(
            h.reshape(Mp, PACK * C),
            layer["skip_w"], layer["skip_b"],
            spec.reshape(Mp, PACK * C),
            activation=(li < n_layers - 1),
        )
        h = flat.reshape(H, W, B, C)

    # Fused projection MLP (p1 + GELU + p2); packed lane-dense output.
    out_flat = projection(h.reshape(Mp, PACK * C), params["p1_w"], params["p1_b"],
                          params["p2_w"], params["p2_b"])    # (Mp, PACK*opad)
    out = out_flat.reshape(M, opad)[:, :out_channels]
    out = out.reshape(H, W, B, out_channels)
    return jnp.transpose(out, (2, 3, 0, 1))            # back to NCHW


if __name__ == "__main__":
    # Small shapes consistent with TensorizedFNO(n_modes=(8,8), hidden=32,
    # in=4, out=3, projection=32, n_layers=4)
    n_modes = (8, 8)
    hidden_channels = 32
    in_channels = 4
    out_channels = 3
    projection_channels = 32
    n_layers = 4
    B, H, W = 2, 16, 16

    key = jax.random.PRNGKey(0)
    pkey, xkey = jax.random.split(key)
    params = init_tfno_params(pkey, n_modes, hidden_channels, in_channels,
                              out_channels, projection_channels, n_layers)
    x = jax.random.normal(xkey, (B, in_channels, H, W), dtype=jnp.float32)

    fwd = jax.jit(functools.partial(
        tfno_forward, m1=n_modes[0], m2=n_modes[1],
        hidden_channels=hidden_channels, out_channels=out_channels))

    y = fwd(params, x)
    y = jax.block_until_ready(y)
    assert y.shape == (B, out_channels, H, W), y.shape
    assert bool(jnp.all(jnp.isfinite(y)))
    print("KERNEL_OK")
</pallas_src>

<mosaic_0001>
module attributes {stable_mosaic.version = 11 : i64} {
  func.func @_linear_kernel(%arg0: i32, %arg1: memref<64x16xf32, #tpu.memory_space<vmem>>, %arg2: memref<16x128xbf16, #tpu.memory_space<vmem>>, %arg3: memref<1x128xf32, #tpu.memory_space<vmem>>, %arg4: memref<64x128xf32, #tpu.memory_space<vmem>>) attributes {dimension_semantics = [#tpu.dimension_semantics<parallel>], iteration_bounds = array<i64: 2>, scalar_prefetch = 0 : i64, scratch_operands = 0 : i64, tpu.core_type = #tpu.core_type<tc>, window_params = [{transform_indices = @transform_0, window_bounds = array<i64: 64, 16>}, {pipeline_mode = #tpu.pipeline_mode<synchronous>, transform_indices = @transform_1, window_bounds = array<i64: 16, 128>}, {pipeline_mode = #tpu.pipeline_mode<synchronous>, transform_indices = @transform_2, window_bounds = array<i64: 1, 128>}, {transform_indices = @transform_3, window_bounds = array<i64: 64, 128>}]} {
    %c0 = arith.constant 0 : index
    %c0_0 = arith.constant 0 : index
    %0 = vector.load %arg1[%c0, %c0_0] : memref<64x16xf32, #tpu.memory_space<vmem>>, vector<64x16xf32>
    %1 = arith.truncf %0 : vector<64x16xf32> to vector<64x16xbf16>
    %c0_1 = arith.constant 0 : index
    %c0_2 = arith.constant 0 : index
    %2 = vector.load %arg2[%c0_1, %c0_2] : memref<16x128xbf16, #tpu.memory_space<vmem>>, vector<16x128xbf16>
    %cst = arith.constant dense<0.000000e+00> : vector<64x128xf32>
    %3 = tpu.matmul %1, %2, %cst {dimension_numbers = #tpu.dot_dimension_numbers<[1], [0], [0], [1], [0, 0, 1, 1], [], []>} : vector<64x16xbf16>, vector<16x128xbf16>, vector<64x128xf32> -> vector<64x128xf32>
    %c0_3 = arith.constant 0 : index
    %c0_4 = arith.constant 0 : index
    %4 = vector.load %arg3[%c0_3, %c0_4] : memref<1x128xf32, #tpu.memory_space<vmem>>, vector<1x128xf32>
    %5 = vector.broadcast %4 : vector<1x128xf32> to vector<64x128xf32>
    %6 = arith.addf %3, %5 : vector<64x128xf32>
    %c0_5 = arith.constant 0 : index
    %c0_6 = arith.constant 0 : index
    %7 = vector.load %arg4[%c0_5, %c0_6] : memref<64x128xf32, #tpu.memory_space<vmem>>, vector<64x128xf32>
    tpu.vector_store %arg4[%c0_5, %c0_6], %6 {strides = array<i32>} : memref<64x128xf32, #tpu.memory_space<vmem>>, vector<64x128xf32>,
    return
  }
  func.func @transform_0(%arg0: i32) -> (i32, i32) {
    %c0_i32 = arith.constant 0 : i32
    %c0_i32_0 = arith.constant 0 : i32
    return %arg0, %c0_i32 : i32, i32
  }
  func.func @transform_1(%arg0: i32) -> (i32, i32) {
    %c0_i32 = arith.constant 0 : i32
    %c0_i32_0 = arith.constant 0 : i32
    %c0_i32_1 = arith.constant 0 : i32
    return %c0_i32, %c0_i32_0 : i32, i32
  }
  func.func @transform_2(%arg0: i32) -> (i32, i32) {
    %c0_i32 = arith.constant 0 : i32
    %c0_i32_0 = arith.constant 0 : i32
    %c0_i32_1 = arith.constant 0 : i32
    return %c0_i32, %c0_i32_0 : i32, i32
  }
  func.func @transform_3(%arg0: i32) -> (i32, i32) {
    %c0_i32 = arith.constant 0 : i32
    %c0_i32_0 = arith.constant 0 : i32
    return %arg0, %c0_i32 : i32, i32
  }
}

module attributes {stable_mosaic.version = 11 : i64} {
  func.func @_spectral_mix_kernel(%arg0: i32, %arg1: memref<64x2x64xf32, #tpu.memory_space<vmem>>, %arg2: memref<64x64x64xbf16, #tpu.memory_space<vmem>>, %arg3: memref<64x2x64xf32, #tpu.memory_space<vmem>>) attributes {dimension_semantics = [#tpu.dimension_semantics<parallel>], iteration_bounds = array<i64: 2>, scalar_prefetch = 0 : i64, scratch_operands = 0 : i64, tpu.core_type = #tpu.core_type<tc>, window_params = [{transform_indices = @transform_0, window_bounds = array<i64: 64, 2, 64>}, {transform_indices = @transform_1, window_bounds = array<i64: 64, 64, 64>}, {transform_indices = @transform_2, window_bounds = array<i64: 64, 2, 64>}]} {
    %c0 = arith.constant 0 : index
    %c0_0 = arith.constant 0 : index
    %c0_1 = arith.constant 0 : index
    %0 = vector.load %arg1[%c0, %c0_0, %c0_1] : memref<64x2x64xf32, #tpu.memory_space<vmem>>, vector<64x2x64xf32>
    %1 = arith.truncf %0 : vector<64x2x64xf32> to vector<64x2x64xbf16>
    %c0_2 = arith.constant 0 : index
    %c0_3 = arith.constant 0 : index
    %c0_4 = arith.constant 0 : index
    %2 = vector.load %arg2[%c0_2, %c0_3, %c0_4] : memref<64x64x64xbf16, #tpu.memory_space<vmem>>, vector<64x64x64xbf16>
    "tpu.trace_start"() <{level = 10 : i32, message = "gbc,gcd->gbd"}> : () -> ()
    %cst = arith.constant dense<0.000000e+00> : vector<64x2x64xf32>
    %3 = tpu.matmul %1, %2, %cst {dimension_numbers = #tpu.dot_dimension_numbers<[2], [1], [1], [2], [0, 0, 0, 1, 1, 2], [0], [0]>} : vector<64x2x64xbf16>, vector<64x64x64xbf16>, vector<64x2x64xf32> -> vector<64x2x64xf32>
    "tpu.trace_stop"() : () -> ()
    %c0_5 = arith.constant 0 : index
    %c0_6 = arith.constant 0 : index
    %c0_7 = arith.constant 0 : index
    %4 = vector.load %arg3[%c0_5, %c0_6, %c0_7] : memref<64x2x64xf32, #tpu.memory_space<vmem>>, vector<64x2x64xf32>
    tpu.vector_store %arg3[%c0_5, %c0_6, %c0_7], %3 {strides = array<i32>} : memref<64x2x64xf32, #tpu.memory_space<vmem>>, vector<64x2x64xf32>,
    return
  }
  func.func @transform_0(%arg0: i32) -> (i32, i32, i32) {
    %c0_i32 = arith.constant 0 : i32
    %c0_i32_0 = arith.constant 0 : i32
    %c0_i32_1 = arith.constant 0 : i32
    return %arg0, %c0_i32, %c0_i32_0 : i32, i32, i32
  }
  func.func @transform_1(%arg0: i32) -> (i32, i32, i32) {
    %c0_i32 = arith.constant 0 : i32
    %c0_i32_0 = arith.constant 0 : i32
    %c0_i32_1 = arith.constant 0 : i32
    return %arg0, %c0_i32, %c0_i32_0 : i32, i32, i32
  }
  func.func @transform_2(%arg0: i32) -> (i32, i32, i32) {
    %c0_i32 = arith.constant 0 : i32
    %c0_i32_0 = arith.constant 0 : i32
    %c0_i32_1 = arith.constant 0 : i32
    return %arg0, %c0_i32, %c0_i32_0 : i32, i32, i32
  }
}

module attributes {stable_mosaic.version = 11 : i64} {
  func.func @_skip_add_act_kernel(%arg0: i32, %arg1: memref<64x128xf32, #tpu.memory_space<vmem>>, %arg2: memref<128x128xbf16, #tpu.memory_space<vmem>>, %arg3: memref<1x128xf32, #tpu.memory_space<vmem>>, %arg4: memref<64x128xf32, #tpu.memory_space<vmem>>, %arg5: memref<64x128xf32, #tpu.memory_space<vmem>>) attributes {dimension_semantics = [#tpu.dimension_semantics<parallel>], iteration_bounds = array<i64: 2>, scalar_prefetch = 0 : i64, scratch_operands = 0 : i64, tpu.core_type = #tpu.core_type<tc>, window_params = [{transform_indices = @transform_0, window_bounds = array<i64: 64, 128>}, {pipeline_mode = #tpu.pipeline_mode<synchronous>, transform_indices = @transform_1, window_bounds = array<i64: 128, 128>}, {pipeline_mode = #tpu.pipeline_mode<synchronous>, transform_indices = @transform_2, window_bounds = array<i64: 1, 128>}, {transform_indices = @transform_3, window_bounds = array<i64: 64, 128>}, {transform_indices = @transform_4, window_bounds = array<i64: 64, 128>}]} {
    %c0 = arith.constant 0 : index
    %c0_0 = arith.constant 0 : index
    %0 = vector.load %arg1[%c0, %c0_0] : memref<64x128xf32, #tpu.memory_space<vmem>>, vector<64x128xf32>
    %1 = arith.truncf %0 : vector<64x128xf32> to vector<64x128xbf16>
    %c0_1 = arith.constant 0 : index
    %c0_2 = arith.constant 0 : index
    %2 = vector.load %arg2[%c0_1, %c0_2] : memref<128x128xbf16, #tpu.memory_space<vmem>>, vector<128x128xbf16>
    %cst = arith.constant dense<0.000000e+00> : vector<64x128xf32>
    %3 = tpu.matmul %1, %2, %cst {dimension_numbers = #tpu.dot_dimension_numbers<[1], [0], [0], [1], [0, 0, 1, 1], [], []>} : vector<64x128xbf16>, vector<128x128xbf16>, vector<64x128xf32> -> vector<64x128xf32>
    %c0_3 = arith.constant 0 : index
    %c0_4 = arith.constant 0 : index
    %4 = vector.load %arg3[%c0_3, %c0_4] : memref<1x128xf32, #tpu.memory_space<vmem>>, vector<1x128xf32>
    %5 = vector.broadcast %4 : vector<1x128xf32> to vector<64x128xf32>
    %6 = arith.addf %3, %5 : vector<64x128xf32>
    %c0_5 = arith.constant 0 : index
    %c0_6 = arith.constant 0 : index
    %7 = vector.load %arg4[%c0_5, %c0_6] : memref<64x128xf32, #tpu.memory_space<vmem>>, vector<64x128xf32>
    %8 = arith.addf %6, %7 : vector<64x128xf32>
    %9 = arith.mulf %8, %8 : vector<64x128xf32>
    %10 = arith.mulf %8, %9 : vector<64x128xf32>
    %cst_7 = arith.constant 4.471500e-02 : f32
    %11 = vector.broadcast %cst_7 : f32 to vector<64x128xf32>
    %12 = arith.mulf %11, %10 : vector<64x128xf32>
    %13 = arith.addf %8, %12 : vector<64x128xf32>
    %cst_8 = arith.constant 0.797884583 : f32
    %14 = vector.broadcast %cst_8 : f32 to vector<64x128xf32>
    %15 = arith.mulf %14, %13 : vector<64x128xf32>
    %16 = math.tanh %15 : vector<64x128xf32>
    %cst_9 = arith.constant 1.000000e+00 : f32
    %17 = vector.broadcast %cst_9 : f32 to vector<64x128xf32>
    %18 = arith.addf %17, %16 : vector<64x128xf32>
    %cst_10 = arith.constant 5.000000e-01 : f32
    %19 = vector.broadcast %cst_10 : f32 to vector<64x128xf32>
    %20 = arith.mulf %19, %18 : vector<64x128xf32>
    %21 = arith.mulf %8, %20 : vector<64x128xf32>
    %c0_11 = arith.constant 0 : index
    %c0_12 = arith.constant 0 : index
    %22 = vector.load %arg5[%c0_11, %c0_12] : memref<64x128xf32, #tpu.memory_space<vmem>>, vector<64x128xf32>
    tpu.vector_store %arg5[%c0_11, %c0_12], %21 {strides = array<i32>} : memref<64x128xf32, #tpu.memory_space<vmem>>, vector<64x128xf32>,
    return
  }
  func.func @transform_0(%arg0: i32) -> (i32, i32) {
    %c0_i32 = arith.constant 0 : i32
    %c0_i32_0 = arith.constant 0 : i32
    return %arg0, %c0_i32 : i32, i32
  }
  func.func @transform_1(%arg0: i32) -> (i32, i32) {
    %c0_i32 = arith.constant 0 : i32
    %c0_i32_0 = arith.constant 0 : i32
    %c0_i32_1 = arith.constant 0 : i32
    return %c0_i32, %c0_i32_0 : i32, i32
  }
  func.func @transform_2(%arg0: i32) -> (i32, i32) {
    %c0_i32 = arith.constant 0 : i32
    %c0_i32_0 = arith.constant 0 : i32
    %c0_i32_1 = arith.constant 0 : i32
    return %c0_i32, %c0_i32_0 : i32, i32
  }
  func.func @transform_3(%arg0: i32) -> (i32, i32) {
    %c0_i32 = arith.constant 0 : i32
    %c0_i32_0 = arith.constant 0 : i32
    return %arg0, %c0_i32 : i32, i32
  }
  func.func @transform_4(%arg0: i32) -> (i32, i32) {
    %c0_i32 = arith.constant 0 : i32
    %c0_i32_0 = arith.constant 0 : i32
    return %arg0, %c0_i32 : i32, i32
  }
}

module attributes {stable_mosaic.version = 11 : i64} {
  func.func @_skip_add_act_kernel(%arg0: i32, %arg1: memref<64x128xf32, #tpu.memory_space<vmem>>, %arg2: memref<128x128xbf16, #tpu.memory_space<vmem>>, %arg3: memref<1x128xf32, #tpu.memory_space<vmem>>, %arg4: memref<64x128xf32, #tpu.memory_space<vmem>>, %arg5: memref<64x128xf32, #tpu.memory_space<vmem>>) attributes {dimension_semantics = [#tpu.dimension_semantics<parallel>], iteration_bounds = array<i64: 2>, scalar_prefetch = 0 : i64, scratch_operands = 0 : i64, tpu.core_type = #tpu.core_type<tc>, window_params = [{transform_indices = @transform_0, window_bounds = array<i64: 64, 128>}, {pipeline_mode = #tpu.pipeline_mode<synchronous>, transform_indices = @transform_1, window_bounds = array<i64: 128, 128>}, {pipeline_mode = #tpu.pipeline_mode<synchronous>, transform_indices = @transform_2, window_bounds = array<i64: 1, 128>}, {transform_indices = @transform_3, window_bounds = array<i64: 64, 128>}, {transform_indices = @transform_4, window_bounds = array<i64: 64, 128>}]} {
    %c0 = arith.constant 0 : index
    %c0_0 = arith.constant 0 : index
    %0 = vector.load %arg1[%c0, %c0_0] : memref<64x128xf32, #tpu.memory_space<vmem>>, vector<64x128xf32>
    %1 = arith.truncf %0 : vector<64x128xf32> to vector<64x128xbf16>
    %c0_1 = arith.constant 0 : index
    %c0_2 = arith.constant 0 : index
    %2 = vector.load %arg2[%c0_1, %c0_2] : memref<128x128xbf16, #tpu.memory_space<vmem>>, vector<128x128xbf16>
    %cst = arith.constant dense<0.000000e+00> : vector<64x128xf32>
    %3 = tpu.matmul %1, %2, %cst {dimension_numbers = #tpu.dot_dimension_numbers<[1], [0], [0], [1], [0, 0, 1, 1], [], []>} : vector<64x128xbf16>, vector<128x128xbf16>, vector<64x128xf32> -> vector<64x128xf32>
    %c0_3 = arith.constant 0 : index
    %c0_4 = arith.constant 0 : index
    %4 = vector.load %arg3[%c0_3, %c0_4] : memref<1x128xf32, #tpu.memory_space<vmem>>, vector<1x128xf32>
    %5 = vector.broadcast %4 : vector<1x128xf32> to vector<64x128xf32>
    %6 = arith.addf %3, %5 : vector<64x128xf32>
    %c0_5 = arith.constant 0 : index
    %c0_6 = arith.constant 0 : index
    %7 = vector.load %arg4[%c0_5, %c0_6] : memref<64x128xf32, #tpu.memory_space<vmem>>, vector<64x128xf32>
    %8 = arith.addf %6, %7 : vector<64x128xf32>
    %c0_7 = arith.constant 0 : index
    %c0_8 = arith.constant 0 : index
    %9 = vector.load %arg5[%c0_7, %c0_8] : memref<64x128xf32, #tpu.memory_space<vmem>>, vector<64x128xf32>
    tpu.vector_store %arg5[%c0_7, %c0_8], %8 {strides = array<i32>} : memref<64x128xf32, #tpu.memory_space<vmem>>, vector<64x128xf32>,
    return
  }
  func.func @transform_0(%arg0: i32) -> (i32, i32) {
    %c0_i32 = arith.constant 0 : i32
    %c0_i32_0 = arith.constant 0 : i32
    return %arg0, %c0_i32 : i32, i32
  }
  func.func @transform_1(%arg0: i32) -> (i32, i32) {
    %c0_i32 = arith.constant 0 : i32
    %c0_i32_0 = arith.constant 0 : i32
    %c0_i32_1 = arith.constant 0 : i32
    return %c0_i32, %c0_i32_0 : i32, i32
  }
  func.func @transform_2(%arg0: i32) -> (i32, i32) {
    %c0_i32 = arith.constant 0 : i32
    %c0_i32_0 = arith.constant 0 : i32
    %c0_i32_1 = arith.constant 0 : i32
    return %c0_i32, %c0_i32_0 : i32, i32
  }
  func.func @transform_3(%arg0: i32) -> (i32, i32) {
    %c0_i32 = arith.constant 0 : i32
    %c0_i32_0 = arith.constant 0 : i32
    return %arg0, %c0_i32 : i32, i32
  }
  func.func @transform_4(%arg0: i32) -> (i32, i32) {
    %c0_i32 = arith.constant 0 : i32
    %c0_i32_0 = arith.constant 0 : i32
    return %arg0, %c0_i32 : i32, i32
  }
}

module attributes {stable_mosaic.version = 11 : i64} {
  func.func @_projection_kernel(%arg0: i32, %arg1: memref<64x128xf32, #tpu.memory_space<vmem>>, %arg2: memref<128x128xbf16, #tpu.memory_space<vmem>>, %arg3: memref<1x128xf32, #tpu.memory_space<vmem>>, %arg4: memref<128x128xbf16, #tpu.memory_space<vmem>>, %arg5: memref<1x128xf32, #tpu.memory_space<vmem>>, %arg6: memref<64x128xf32, #tpu.memory_space<vmem>>) attributes {dimension_semantics = [#tpu.dimension_semantics<parallel>], iteration_bounds = array<i64: 2>, scalar_prefetch = 0 : i64, scratch_operands = 0 : i64, tpu.core_type = #tpu.core_type<tc>, window_params = [{transform_indices = @transform_0, window_bounds = array<i64: 64, 128>}, {pipeline_mode = #tpu.pipeline_mode<synchronous>, transform_indices = @transform_1, window_bounds = array<i64: 128, 128>}, {pipeline_mode = #tpu.pipeline_mode<synchronous>, transform_indices = @transform_2, window_bounds = array<i64: 1, 128>}, {pipeline_mode = #tpu.pipeline_mode<synchronous>, transform_indices = @transform_3, window_bounds = array<i64: 128, 128>}, {pipeline_mode = #tpu.pipeline_mode<synchronous>, transform_indices = @transform_4, window_bounds = array<i64: 1, 128>}, {transform_indices = @transform_5, window_bounds = array<i64: 64, 128>}]} {
    %c0 = arith.constant 0 : index
    %c0_0 = arith.constant 0 : index
    %0 = vector.load %arg1[%c0, %c0_0] : memref<64x128xf32, #tpu.memory_space<vmem>>, vector<64x128xf32>
    %1 = arith.truncf %0 : vector<64x128xf32> to vector<64x128xbf16>
    %c0_1 = arith.constant 0 : index
    %c0_2 = arith.constant 0 : index
    %2 = vector.load %arg2[%c0_1, %c0_2] : memref<128x128xbf16, #tpu.memory_space<vmem>>, vector<128x128xbf16>
    %cst = arith.constant dense<0.000000e+00> : vector<64x128xf32>
    %3 = tpu.matmul %1, %2, %cst {dimension_numbers = #tpu.dot_dimension_numbers<[1], [0], [0], [1], [0, 0, 1, 1], [], []>} : vector<64x128xbf16>, vector<128x128xbf16>, vector<64x128xf32> -> vector<64x128xf32>
    %c0_3 = arith.constant 0 : index
    %c0_4 = arith.constant 0 : index
    %4 = vector.load %arg3[%c0_3, %c0_4] : memref<1x128xf32, #tpu.memory_space<vmem>>, vector<1x128xf32>
    %5 = vector.broadcast %4 : vector<1x128xf32> to vector<64x128xf32>
    %6 = arith.addf %3, %5 : vector<64x128xf32>
    %7 = arith.mulf %6, %6 : vector<64x128xf32>
    %8 = arith.mulf %6, %7 : vector<64x128xf32>
    %cst_5 = arith.constant 4.471500e-02 : f32
    %9 = vector.broadcast %cst_5 : f32 to vector<64x128xf32>
    %10 = arith.mulf %9, %8 : vector<64x128xf32>
    %11 = arith.addf %6, %10 : vector<64x128xf32>
    %cst_6 = arith.constant 0.797884583 : f32
    %12 = vector.broadcast %cst_6 : f32 to vector<64x128xf32>
    %13 = arith.mulf %12, %11 : vector<64x128xf32>
    %14 = math.tanh %13 : vector<64x128xf32>
    %cst_7 = arith.constant 1.000000e+00 : f32
    %15 = vector.broadcast %cst_7 : f32 to vector<64x128xf32>
    %16 = arith.addf %15, %14 : vector<64x128xf32>
    %cst_8 = arith.constant 5.000000e-01 : f32
    %17 = vector.broadcast %cst_8 : f32 to vector<64x128xf32>
    %18 = arith.mulf %17, %16 : vector<64x128xf32>
    %19 = arith.mulf %6, %18 : vector<64x128xf32>
    %20 = arith.truncf %19 : vector<64x128xf32> to vector<64x128xbf16>
    %c0_9 = arith.constant 0 : index
    %c0_10 = arith.constant 0 : index
    %21 = vector.load %arg4[%c0_9, %c0_10] : memref<128x128xbf16, #tpu.memory_space<vmem>>, vector<128x128xbf16>
    %cst_11 = arith.constant dense<0.000000e+00> : vector<64x128xf32>
    %22 = tpu.matmul %20, %21, %cst_11 {dimension_numbers = #tpu.dot_dimension_numbers<[1], [0], [0], [1], [0, 0, 1, 1], [], []>} : vector<64x128xbf16>, vector<128x128xbf16>, vector<64x128xf32> -> vector<64x128xf32>
    %c0_12 = arith.constant 0 : index
    %c0_13 = arith.constant 0 : index
    %23 = vector.load %arg5[%c0_12, %c0_13] : memref<1x128xf32, #tpu.memory_space<vmem>>, vector<1x128xf32>
    %24 = vector.broadcast %23 : vector<1x128xf32> to vector<64x128xf32>
    %25 = arith.addf %22, %24 : vector<64x128xf32>
    %c0_14 = arith.constant 0 : index
    %c0_15 = arith.constant 0 : index
    %26 = vector.load %arg6[%c0_14, %c0_15] : memref<64x128xf32, #tpu.memory_space<vmem>>, vector<64x128xf32>
    tpu.vector_store %arg6[%c0_14, %c0_15], %25 {strides = array<i32>} : memref<64x128xf32, #tpu.memory_space<vmem>>, vector<64x128xf32>,
    return
  }
  func.func @transform_0(%arg0: i32) -> (i32, i32) {
    %c0_i32 = arith.constant 0 : i32
    %c0_i32_0 = arith.constant 0 : i32
    return %arg0, %c0_i32 : i32, i32
  }
  func.func @transform_1(%arg0: i32) -> (i32, i32) {
    %c0_i32 = arith.constant 0 : i32
    %c0_i32_0 = arith.constant 0 : i32
    %c0_i32_1 = arith.constant 0 : i32
    return %c0_i32, %c0_i32_0 : i32, i32
  }
  func.func @transform_2(%arg0: i32) -> (i32, i32) {
    %c0_i32 = arith.constant 0 : i32
    %c0_i32_0 = arith.constant 0 : i32
    %c0_i32_1 = arith.constant 0 : i32
    return %c0_i32, %c0_i32_0 : i32, i32
  }
  func.func @transform_3(%arg0: i32) -> (i32, i32) {
    %c0_i32 = arith.constant 0 : i32
    %c0_i32_0 = arith.constant 0 : i32
    %c0_i32_1 = arith.constant 0 : i32
    return %c0_i32, %c0_i32_0 : i32, i32
  }
  func.func @transform_4(%arg0: i32) -> (i32, i32) {
    %c0_i32 = arith.constant 0 : i32
    %c0_i32_0 = arith.constant 0 : i32
    %c0_i32_1 = arith.constant 0 : i32
    return %c0_i32, %c0_i32_0 : i32, i32
  }
  func.func @transform_5(%arg0: i32) -> (i32, i32) {
    %c0_i32 = arith.constant 0 : i32
    %c0_i32_0 = arith.constant 0 : i32
    return %arg0, %c0_i32 : i32, i32
  }
}

</mosaic_0001>

<llo_original>
// kernel: tfno_forward.10
$region0: #{tfno_forward.10}
  #allocation0 [shape = 'u32[]', space=smem, size = 0x4, offset = 0x4, fixed_abs, tag = 'smem constant byte address 0x4 - core index']
  #allocation1 [shape = 'u32[144,128]{1,0:T(1,128)}', space=vmem, size = 0x12000, scoped, tag = 'internal scratch']
  %s0 = inlined_call_operand.vmem [shape: f32[128,16], index: 0, kind: input, shape index: {}]
  %s1 = inlined_call_operand.hbm [shape: bf16[16,128], index: 1, kind: input, shape index: {}]
  %s2 = inlined_call_operand.hbm [shape: f32[1,128], index: 2, kind: input, shape index: {}]
  %s3 = inlined_call_operand.vmem [shape: f32[128,128], index: 3, kind: output, shape index: {}]
  %s4 = sld [smem:[#allocation0]]
  $region53: #{tfno_forward.10} parent=0
    _
  %s6 = ssub.s32 1, %s4
  %s7 = scalar_select 0, %s6, %s4
  $region1: #{tfno_forward.10} parent=0
    #allocation2 [shape = 'u8[4096]{0}', space=vmem, size = 0x1000, scoped, tag = 'input window, operand 1, single buffered']
    #allocation3 [shape = 's32[2]{0}', space=sflag, size = 0x8, scoped, tag = 'scoped memory for tfno_forward.10']
    #allocation4 [shape = 'u8[512]{0}', space=vmem, size = 0x400, scoped, tag = 'input window, operand 2, single buffered']
    #allocation5 [shape = 's32[1]{0}', space=sflag, size = 0x4, scoped, tag = 'scoped memory for tfno_forward.10']
    %8 = vsyncpa [#allocation3], 0
    %9 = vsyncpa [#allocation5], 0
    loop: start=0, step=1, limit=4
    $region2: #{tfno_forward.10} parent=1 // loop_pre_header
      _
    $region3: #{tfno_forward.10} parent=1 // loop_header
      %s11 = sphi 0, %s15
      %p12 = scmp.ge.s32.totalorder %s11, 4
      %s21 = sphi 0, %s23
      %s24 = sphi 0, %s21
      %s25 = sphi 0, %s24
      %s41 = sphi 0, %s25
      %s45 = sphi 0, %s45
      %s47 = sphi 0, %s45
      %s48 = sphi 0, %s47
      %s62 = sphi 0, %s48
      %s66 = sphi 0, %s66
      %s68 = sphi 0, %s66
      %s69 = sphi 0, %s68
      %s83 = sphi 0, %s69
      %s89 = sphi 0, %s91
      %s92 = sphi 0, %s89
      %s93 = sphi 0, %s92
      %s109 = sphi 0, %s93
    $region4: #{tfno_forward.10} parent=1 // loop_header_branch
      %14 = sbr.rel (%p12) target = $region8
    $region5: #{tfno_forward.10} parent=1 // loop_body
      %s16 = ssub.s32 %s11, 1
      %s17 = ssub.s32 %s11, 2
      %s18 = sadd.s32 %s11, 1
      %s19 = ssub.s32 %s11, %s18
      %p20 = scmp.eq.s32.totalorder %s19, 0
      %s22 = sadd.s32 %s21, 1
      %s23 = scalar_select %p20, %s21, %s22
      %p26 = pneg %p20
      %p27 = scmp.eq.s32.totalorder %s11, 1
      %p28 = por %p26, %p27
      %p29 = scmp.ne.s32.totalorder %s21, %s24
      %p30 = scmp.eq.s32.totalorder %s11, 0
      %p31 = por %p29, %p30
      %p32 = scmp.ne.s32.totalorder %s21, %s24
      %p33 = scmp.eq.s32.totalorder %s16, 1
      %p34 = por %p32, %p33
      %p35 = scmp.ne.s32.totalorder %s24, %s25
      %p36 = scmp.eq.s32.totalorder %s16, 0
      %p37 = por %p35, %p36
      %p38 = scmp.ne.s32.totalorder %s24, %s25
      %p39 = scmp.eq.s32.totalorder %s17, 1
      %p40 = por %p38, %p39
      %p42 = scmp.ne.s32.totalorder %s25, %s41
      %p43 = scmp.eq.s32.totalorder %s17, 0
      %p44 = por %p42, %p43
      %s46 = sadd.s32 %s45, 1
      %p49 = scmp.eq.s32.totalorder %s11, 1
      %p50 = scmp.ne.s32.totalorder %s45, %s47
      %p51 = scmp.eq.s32.totalorder %s11, 0
      %p52 = por %p50, %p51
      %p53 = scmp.ne.s32.totalorder %s45, %s47
      %p54 = scmp.eq.s32.totalorder %s16, 1
      %p55 = por %p53, %p54
      %p56 = scmp.ne.s32.totalorder %s47, %s48
      %p57 = scmp.eq.s32.totalorder %s16, 0
      %p58 = por %p56, %p57
      %p59 = scmp.ne.s32.totalorder %s47, %s48
      %p60 = scmp.eq.s32.totalorder %s17, 1
      %p61 = por %p59, %p60
      %p63 = scmp.ne.s32.totalorder %s48, %s62
      %p64 = scmp.eq.s32.totalorder %s17, 0
      %p65 = por %p63, %p64
      %s67 = sadd.s32 %s66, 1
      %p70 = scmp.eq.s32.totalorder %s11, 1
      %p71 = scmp.ne.s32.totalorder %s66, %s68
      %p72 = scmp.eq.s32.totalorder %s11, 0
      %p73 = por %p71, %p72
      %p74 = scmp.ne.s32.totalorder %s66, %s68
      %p75 = scmp.eq.s32.totalorder %s16, 1
      %p76 = por %p74, %p75
      %p77 = scmp.ne.s32.totalorder %s68, %s69
      %p78 = scmp.eq.s32.totalorder %s16, 0
      %p79 = por %p77, %p78
      %p80 = scmp.ne.s32.totalorder %s68, %s69
      %p81 = scmp.eq.s32.totalorder %s17, 1
      %p82 = por %p80, %p81
      %p84 = scmp.ne.s32.totalorder %s69, %s83
      %p85 = scmp.eq.s32.totalorder %s17, 0
      %p86 = por %p84, %p85
      %s87 = ssub.s32 %s11, %s18
      %p88 = scmp.eq.s32.totalorder %s87, 0
      %s90 = sadd.s32 %s89, 1
      %s91 = scalar_select %p88, %s89, %s90
      %p94 = pneg %p88
      %p95 = scmp.eq.s32.totalorder %s11, 1
      %p96 = por %p94, %p95
      %p97 = scmp.ne.s32.totalorder %s89, %s92
      %p98 = scmp.eq.s32.totalorder %s11, 0
      %p99 = por %p97, %p98
      %p100 = scmp.ne.s32.totalorder %s89, %s92
      %p101 = scmp.eq.s32.totalorder %s16, 1
      %p102 = por %p100, %p101
      %p103 = scmp.ne.s32.totalorder %s92, %s93
      %p104 = scmp.eq.s32.totalorder %s16, 0
      %p105 = por %p103, %p104
      %p106 = scmp.ne.s32.totalorder %s92, %s93
      %p107 = scmp.eq.s32.totalorder %s17, 1
      %p108 = por %p106, %p107
      %p110 = scmp.ne.s32.totalorder %s93, %s109
      %p111 = scmp.eq.s32.totalorder %s17, 0
      %p112 = por %p110, %p111
      %p113 = scmp.le.s32.totalorder 1, %s11
      %p114 = scmp.lt.s32.totalorder %s11, 3
      %p115 = pnand %p113, %p114
      %p116 = pneg %p115
      // Predicated region
      $region9: #{tfno_forward.10} parent=5 // pred_check
        _
      $region10: #{tfno_forward.10} parent=5 // pred_check_branch
        %118 = sbr.rel (%p115) target = $region12
      $region11: #{tfno_forward.10} parent=5 // pred_region
        %s119 = ssub.s32 %s11, 1
        // Predicated region
        $region13: #{tfno_forward.10} parent=11 // pred_check
          %p120 = pneg %p58
        $region14: #{tfno_forward.10} parent=11 // pred_check_branch
          %122 = sbr.rel (%p120) target = $region16
        $region15: #{tfno_forward.10} parent=11 // pred_region
          %s124 = ssub.s32 128, 128
          %125 = vsyncadd [#allocation3], %s124
          %s126 = sshll.u32 [#allocation2], 4
          %s127 = int_to_ptr.vmem [resolvable:$true] %s126
          %132 = dma.hbm_to_vmem [thread:$0]  %s1, 128, %s127, [#allocation3], 64, 64, 4
        $region16: #{tfno_forward.10} parent=11 // pred_fallthru
          _
        // Predicated region
        $region17: #{tfno_forward.10} parent=11 // pred_check
          %p133 = pneg %p79
        $region18: #{tfno_forward.10} parent=11 // pred_check_branch
          %135 = sbr.rel (%p133) target = $region20
        $region19: #{tfno_forward.10} parent=11 // pred_region
          %s137 = ssub.s32 16, 16
          %138 = vsyncadd [#allocation5], %s137
          %s140 = sshll.u32 [#allocation4], 4
          %s141 = int_to_ptr.vmem [resolvable:$true] %s140
          %143 = dma.hbm_to_vmem [thread:$0]  %s2, 16, %s141, [#allocation5]
        $region20: #{tfno_forward.10} parent=11 // pred_fallthru
          _
      $region12: #{tfno_forward.10} parent=5 // pred_fallthru
        _
      %p144 = scmp.lt.s32.totalorder %s11, 2
      // Predicated region
      $region21: #{tfno_forward.10} parent=5 // pred_check
        %p145 = pneg %p144
      $region22: #{tfno_forward.10} parent=5 // pred_check_branch
        %147 = sbr.rel (%p145) target = $region24
      $region23: #{tfno_forward.10} parent=5 // pred_region
        // Predicated region
        $region25: #{tfno_forward.10} parent=23 // pred_check
          %p148 = pneg %p31
        $region26: #{tfno_forward.10} parent=23 // pred_check_branch
          %150 = sbr.rel (%p148) target = $region28
        $region27: #{tfno_forward.10} parent=23 // pred_region
          %s151 = smul.u32 8, %s11
          %p152 = scmp.lt.s32.totalorder %s151, 15
          %s153 = scalar_select %p152, %s151, 15
          %s154 = smul.addr %s153, 8
          %s155 = scalar_lea.vmem %s0, %s154
          %s156 = smul.u32 8, %s11
        $region28: #{tfno_forward.10} parent=23 // pred_fallthru
          _
      $region24: #{tfno_forward.10} parent=5 // pred_fallthru
        _
      %p157 = scmp.le.s32.totalorder 1, %s11
      %p158 = scmp.lt.s32.totalorder %s11, 3
      %p159 = pnand %p157, %p158
      %p160 = pneg %p159
      // Predicated region
      $region29: #{tfno_forward.10} parent=5 // pred_check
        _
      $region30: #{tfno_forward.10} parent=5 // pred_check_branch
        %162 = sbr.rel (%p159) target = $region32
      $region31: #{tfno_forward.10} parent=5 // pred_region
        %s163 = ssub.s32 %s11, 1
        // Predicated region
        $region33: #{tfno_forward.10} parent=31 // pred_check
          %p164 = pneg %p58
        $region34: #{tfno_forward.10} parent=31 // pred_check_branch
          %166 = sbr.rel (%p164) target = $region36
        $region35: #{tfno_forward.10} parent=31 // pred_region
          %167 = dma.done [#allocation3], 128
        $region36: #{tfno_forward.10} parent=31 // pred_fallthru
          _
        // Predicated region
        $region37: #{tfno_forward.10} parent=31 // pred_check
          %p168 = pneg %p79
        $region38: #{tfno_forward.10} parent=31 // pred_check_branch
          %170 = sbr.rel (%p168) target = $region40
        $region39: #{tfno_forward.10} parent=31 // pred_region
          %171 = dma.done [#allocation5], 16
        $region40: #{tfno_forward.10} parent=31 // pred_fallthru
          _
        %s172 = smul.u32 8, %s16
        %p173 = scmp.lt.s32.totalorder %s172, 15
        %s174 = scalar_select %p173, %s172, 15
        %s175 = smul.addr %s174, 8
        %s176 = scalar_lea.vmem %s0, %s175
        %p177 = pneg %p37
        %p178 = pneg %p34
        %p179 = pneg %p58
        %p180 = pneg %p55
        %p181 = pneg %p79
        %p182 = pneg %p76
        %p183 = pneg %p105
        %p184 = pneg %p102
        %s185 = smul.u32 8, %s16
        %p186 = scmp.lt.s32.totalorder %s185, 15
        %s187 = scalar_select %p186, %s185, 15
        %s188 = smul.addr %s187, 8
        %s189 = scalar_lea.vmem %s3, %s188
        %s190 = smul.u32 8, %s16
        %p191 = scmp.lt.s32.totalorder %s190, 15
        %s192 = scalar_select %p191, %s190, 15
        %s193 = smul.addr %s192, 8
        %s194 = scalar_lea.vmem %s0, %s193
        %s195 = smul.u32 8, %s16
        %s196 = smul.u32 8, %s16
        %p197 = scmp.lt.s32.totalorder %s196, 15
        %s198 = scalar_select %p197, %s196, 15
        %s199 = smul.addr %s198, 8
        %s200 = scalar_lea.vmem %s3, %s199
        %s201 = smul.u32 8, %s16
        %v203 = vld [vmem:[%s194] sm:$0xff]
        %v204 = vld [vmem:[%s194 + $0x8] sm:$0xff]
        %v205 = vld [vmem:[%s194 + $0x10] sm:$0xff]
        %v206 = vld [vmem:[%s194 + $0x18] sm:$0xff]
        %v207 = vld [vmem:[%s194 + $0x20] sm:$0xff]
        %v208 = vld [vmem:[%s194 + $0x28] sm:$0xff]
        %v209 = vld [vmem:[%s194 + $0x30] sm:$0xff]
        %v210 = vld [vmem:[%s194 + $0x38] sm:$0xff]
        %v211 = vpack.c.bf16 %v204, %v203
        %v212 = vpack.c.bf16 %v206, %v205
        %v213 = vpack.c.bf16 %v208, %v207
        %v214 = vpack.c.bf16 %v210, %v209
        %v215 = vld [vmem:[#allocation2] sm:$0xf]
        %v216 = vld [vmem:[#allocation2 + $0x4] sm:$0xf]
        %v217 = vld [vmem:[#allocation4] sm:$0x1]
        %v219 = vlaneseq
        %v220 = vshrl.u32 %v219, 7
        %v221 = vsub.s32 0, %v220
        %v222 = vrot.slane %v217, %v221
        %v226 = vunpack.c.l.b16 %v215
        %v227 = vunpack.c.l.b16 %v216
        %v228 = vpack.c.b16 %v227, %v226
        %vm230 = vcmask 130048
        %v232 = vsel %vm230, %v211, 0
        %v235 = vsel %vm230, %v212, 0
        %v238 = vsel %vm230, %v213, 0
        %v241 = vsel %vm230, %v214, 0
        %243 = vmatprep.subr.bf16.mxu0 0
        %244 = vmatpush1.bf16.msra.mxu0 %v228
        %245 = vmatprep.subr.bf16.mxu0 0
        %246 = vmatpush1.bf16.msra.mxu0 0
        %247 = vmatprep.subr.bf16.mxu0 0
        %248 = vmatpush1.bf16.msra.mxu0 0
        %249 = vmatprep.subr.bf16.mxu0 0
        %250 = vmatpush1.bf16.msra.mxu0 0
        %251 = vmatprep.subr.bf16.mxu0 0
        %252 = vmatpush1.bf16.msra.mxu0 0
        %253 = vmatprep.subr.bf16.mxu0 0
        %254 = vmatpush1.bf16.msra.mxu0 0
        %255 = vmatprep.subr.bf16.mxu0 0
        %256 = vmatpush1.bf16.msra.mxu0 0
        %257 = vmatprep.subr.bf16.mxu0 0
        %258 = vmatpush1.bf16.msra.mxu0 0
        %259 = vmatprep.subr.bf16.mxu0 0
        %260 = vmatpush1.bf16.msra.mxu0 0
        %261 = vmatprep.subr.bf16.mxu0 0
        %262 = vmatpush1.bf16.msra.mxu0 0
        %263 = vmatprep.subr.bf16.mxu0 0
        %264 = vmatpush1.bf16.msra.mxu0 0
        %265 = vmatprep.subr.bf16.mxu0 0
        %266 = vmatpush1.bf16.msra.mxu0 0
        %267 = vmatprep.subr.bf16.mxu0 0
        %268 = vmatpush1.bf16.msra.mxu0 0
        %269 = vmatprep.subr.bf16.mxu0 0
        %270 = vmatpush1.bf16.msra.mxu0 0
        %271 = vmatprep.subr.bf16.mxu0 0
        %272 = vmatpush1.bf16.msra.mxu0 0
        %273 = vmatprep.subr.bf16.mxu0 0
        %274 = vmatpush1.bf16.msra.mxu0 0
        %275 = vmatprep.mubr.bf16.mxu0 0
        %276 = vmatmul.mubr.bf16.gmra.mrb[0].mxu0 %v232
        %v277 = vpop.f32.mrb[0].mxu0
        %v278 = vadd.f32 %v222, %v277
        %v279 = vpop.f32.mrb[0].mxu0
        %v280 = vpop.f32.mrb[0].mxu0
        %v281 = vadd.f32 %v222, %v280
        %v282 = vpop.f32.mrb[0].mxu0
        %283 = vmatprep.mubr.bf16.mxu0 0
        %284 = vmatmul.mubr.bf16.gmra.mrb[0].mxu0 %v235
        %v285 = vpop.f32.mrb[0].mxu0
        %v286 = vadd.f32 %v222, %v285
        %v287 = vpop.f32.mrb[0].mxu0
        %v288 = vpop.f32.mrb[0].mxu0
        %v289 = vadd.f32 %v222, %v288
        %v290 = vpop.f32.mrb[0].mxu0
        %291 = vmatprep.mubr.bf16.mxu0 0
        %292 = vmatmul.mubr.bf16.gmra.mrb[0].mxu0 %v238
        %v293 = vpop.f32.mrb[0].mxu0
        %v294 = vadd.f32 %v222, %v293
        %v295 = vpop.f32.mrb[0].mxu0
        %v296 = vpop.f32.mrb[0].mxu0
        %v297 = vadd.f32 %v222, %v296
        %v298 = vpop.f32.mrb[0].mxu0
        %299 = vmatprep.mubr.bf16.mxu0 0
        %300 = vmatmul.mubr.bf16.gmra.mrb[0].mxu0 %v241
        %v301 = vpop.f32.mrb[0].mxu0
        %v302 = vadd.f32 %v222, %v301
        %v303 = vpop.f32.mrb[0].mxu0
        %v304 = vpop.f32.mrb[0].mxu0
        %v305 = vadd.f32 %v222, %v304
        %v306 = vpop.f32.mrb[0].mxu0
        %307 = vdwg.mxu0
        %308 = vst [vmem:[%s200] sm:$0xff] %v278
        %309 = vst [vmem:[%s200 + $0x8] sm:$0xff] %v281
        %310 = vst [vmem:[%s200 + $0x10] sm:$0xff] %v286
        %311 = vst [vmem:[%s200 + $0x18] sm:$0xff] %v289
        %312 = vst [vmem:[%s200 + $0x20] sm:$0xff] %v294
        %313 = vst [vmem:[%s200 + $0x28] sm:$0xff] %v297
        %314 = vst [vmem:[%s200 + $0x30] sm:$0xff] %v302
        %315 = vst [vmem:[%s200 + $0x38] sm:$0xff] %v305
        %s316 = smul.u32 8, %s16
        %p317 = scmp.lt.s32.totalorder %s316, 15
        %s318 = scalar_select %p317, %s316, 15
        %s319 = smul.addr %s318, 8
        %s320 = scalar_lea.vmem %s3, %s319
        // Predicated region
        $region41: #{tfno_forward.10} parent=31 // pred_check
          %p321 = pneg %p102
        $region42: #{tfno_forward.10} parent=31 // pred_check_branch
          %323 = sbr.rel (%p321) target = $region44
        $region43: #{tfno_forward.10} parent=31 // pred_region
          %s324 = smul.u32 8, %s16
        $region44: #{tfno_forward.10} parent=31 // pred_fallthru
          _
      $region32: #{tfno_forward.10} parent=5 // pred_fallthru
        _
      %p325 = scmp.le.s32.totalorder 2, %s11
      // Predicated region
      $region45: #{tfno_forward.10} parent=5 // pred_check
        %p326 = pneg %p325
      $region46: #{tfno_forward.10} parent=5 // pred_check_branch
        %328 = sbr.rel (%p326) target = $region48
      $region47: #{tfno_forward.10} parent=5 // pred_region
        %s329 = ssub.s32 %s11, 2
        // Predicated region
        $region49: #{tfno_forward.10} parent=47 // pred_check
          %p330 = pneg %p108
        $region50: #{tfno_forward.10} parent=47 // pred_check_branch
          %332 = sbr.rel (%p330) target = $region52
        $region51: #{tfno_forward.10} parent=47 // pred_region
          %s333 = smul.u32 8, %s17
          %p334 = scmp.lt.s32.totalorder %s333, 15
          %s335 = scalar_select %p334, %s333, 15
          %s336 = smul.addr %s335, 8
          %s337 = scalar_lea.vmem %s3, %s336
        $region52: #{tfno_forward.10} parent=47 // pred_fallthru
          _
      $region48: #{tfno_forward.10} parent=5 // pred_fallthru
        _
    $region6: #{tfno_forward.10} parent=1 // loop_footer
      %s15 = sadd.s32 1, %s11
    $region7: #{tfno_forward.10} parent=1 // loop_footer_branch
      %10 = sbr.rel target = $region3
    $region8: #{tfno_forward.10} parent=1 // loop_exit
      _
    %338 = vsyncpa [#allocation3], 1
    %s339 = scalar_lea.sflag [#allocation3], 1
    %340 = vsyncpa %s339, 1
    %341 = vsyncpa [#allocation5], 1

// kernel: reverse.8
$region0: #{reverse.8}
  #allocation0 [shape = 's32[1]{0}', space=sflag, size = 0x4, scoped, tag = 'scoped memory for reverse.8']
  %s0 = inlined_call_operand.vmem [shape: f32[2,32,16,7], index: 0, kind: input, shape index: {}]
  %s1 = inlined_call_operand.vmem [shape: f32[2,32,16,7], index: 1, kind: output, shape index: {}]
  %s2 = scalar_lea.vmem %s0, 96
  %v3 = vld [vmem:[%s2] sm:$0xff]
  %4 = vst [vmem:[%s1] sm:$0xff] %v3
  %s5 = scalar_lea.vmem %s0, 208
  %v6 = vld [vmem:[%s5] sm:$0xff]
  %s7 = scalar_lea.vmem %s1, 112
  %8 = vst [vmem:[%s7] sm:$0xff] %v6
  %s9 = scalar_lea.vmem %s0, 80
  %v10 = vld [vmem:[%s9] sm:$0xff]
  %s11 = scalar_lea.vmem %s1, 16
  %12 = vst [vmem:[%s11] sm:$0xff] %v10
  %s13 = scalar_lea.vmem %s0, 192
  %v14 = vld [vmem:[%s13] sm:$0xff]
  %s15 = scalar_lea.vmem %s1, 128
  %16 = vst [vmem:[%s15] sm:$0xff] %v14
  %s17 = scalar_lea.vmem %s0, 64
  %v18 = vld [vmem:[%s17] sm:$0xff]
  %s19 = scalar_lea.vmem %s1, 32
  %20 = vst [vmem:[%s19] sm:$0xff] %v18
  %s21 = scalar_lea.vmem %s0, 176
  %v22 = vld [vmem:[%s21] sm:$0xff]
  %s23 = scalar_lea.vmem %s1, 144
  %24 = vst [vmem:[%s23] sm:$0xff] %v22
  %s25 = scalar_lea.vmem %s0, 48
  %v26 = vld [vmem:[%s25] sm:$0xff]
  %s27 = scalar_lea.vmem %s1, 48
  %28 = vst [vmem:[%s27] sm:$0xff] %v26
  %s29 = scalar_lea.vmem %s0, 160
  %v30 = vld [vmem:[%s29] sm:$0xff]
  %s31 = scalar_lea.vmem %s1, 160
  %32 = vst [vmem:[%s31] sm:$0xff] %v30
  %s33 = scalar_lea.vmem %s0, 32
  %v34 = vld [vmem:[%s33] sm:$0xff]
  %s35 = scalar_lea.vmem %s1, 64
  %36 = vst [vmem:[%s35] sm:$0xff] %v34
  %s37 = scalar_lea.vmem %s0, 144
  %v38 = vld [vmem:[%s37] sm:$0xff]
  %s39 = scalar_lea.vmem %s1, 176
  %40 = vst [vmem:[%s39] sm:$0xff] %v38
  %s41 = scalar_lea.vmem %s0, 16
  %v42 = vld [vmem:[%s41] sm:$0xff]
  %s43 = scalar_lea.vmem %s1, 80
  %44 = vst [vmem:[%s43] sm:$0xff] %v42
  %s45 = scalar_lea.vmem %s0, 128
  %v46 = vld [vmem:[%s45] sm:$0xff]
  %s47 = scalar_lea.vmem %s1, 192
  %48 = vst [vmem:[%s47] sm:$0xff] %v46
  %v49 = vld [vmem:[%s0] sm:$0xff]
  %s50 = scalar_lea.vmem %s1, 96
  %51 = vst [vmem:[%s50] sm:$0xff] %v49
  %s52 = scalar_lea.vmem %s0, 112
  %v53 = vld [vmem:[%s52] sm:$0xff]
  %s54 = scalar_lea.vmem %s1, 208
  %55 = vst [vmem:[%s54] sm:$0xff] %v53
  %s56 = scalar_lea.vmem %s0, 104
  %v57 = vld [vmem:[%s56] sm:$0xff]
  %s58 = scalar_lea.vmem %s1, 8
  %59 = vst [vmem:[%s58] sm:$0xff] %v57
  %s60 = scalar_lea.vmem %s0, 216
  %v61 = vld [vmem:[%s60] sm:$0xff]
  %s62 = scalar_lea.vmem %s1, 120
  %63 = vst [vmem:[%s62] sm:$0xff] %v61
  %s64 = scalar_lea.vmem %s0, 88
  %v65 = vld [vmem:[%s64] sm:$0xff]
  %s66 = scalar_lea.vmem %s1, 24
  %67 = vst [vmem:[%s66] sm:$0xff] %v65
  %s68 = scalar_lea.vmem %s0, 200
  %v69 = vld [vmem:[%s68] sm:$0xff]
  %s70 = scalar_lea.vmem %s1, 136
  %71 = vst [vmem:[%s70] sm:$0xff] %v69
  %s72 = scalar_lea.vmem %s0, 72
  %v73 = vld [vmem:[%s72] sm:$0xff]
  %s74 = scalar_lea.vmem %s1, 40
  %75 = vst [vmem:[%s74] sm:$0xff] %v73
  %s76 = scalar_lea.vmem %s0, 184
  %v77 = vld [vmem:[%s76] sm:$0xff]
  %s78 = scalar_lea.vmem %s1, 152
  %79 = vst [vmem:[%s78] sm:$0xff] %v77
  %s80 = scalar_lea.vmem %s0, 56
  %v81 = vld [vmem:[%s80] sm:$0xff]
  %s82 = scalar_lea.vmem %s1, 56
  %83 = vst [vmem:[%s82] sm:$0xff] %v81
  %s84 = scalar_lea.vmem %s0, 168
  %v85 = vld [vmem:[%s84] sm:$0xff]
  %s86 = scalar_lea.vmem %s1, 168
  %87 = vst [vmem:[%s86] sm:$0xff] %v85
  %s88 = scalar_lea.vmem %s0, 40
  %v89 = vld [vmem:[%s88] sm:$0xff]
  %s90 = scalar_lea.vmem %s1, 72
  %91 = vst [vmem:[%s90] sm:$0xff] %v89
  %s92 = scalar_lea.vmem %s0, 152
  %v93 = vld [vmem:[%s92] sm:$0xff]
  %s94 = scalar_lea.vmem %s1, 184
  %95 = vst [vmem:[%s94] sm:$0xff] %v93
  %s96 = scalar_lea.vmem %s0, 24
  %v97 = vld [vmem:[%s96] sm:$0xff]
  %s98 = scalar_lea.vmem %s1, 88
  %99 = vst [vmem:[%s98] sm:$0xff] %v97
  %s100 = scalar_lea.vmem %s0, 136
  %v101 = vld [vmem:[%s100] sm:$0xff]
  %s102 = scalar_lea.vmem %s1, 200
  %103 = vst [vmem:[%s102] sm:$0xff] %v101
  %s104 = scalar_lea.vmem %s0, 8
  %v105 = vld [vmem:[%s104] sm:$0xff]
  %s106 = scalar_lea.vmem %s1, 104
  %107 = vst [vmem:[%s106] sm:$0xff] %v105
  %s108 = scalar_lea.vmem %s0, 120
  %v109 = vld [vmem:[%s108] sm:$0xff]
  %s110 = scalar_lea.vmem %s1, 216
  %111 = vst [vmem:[%s110] sm:$0xff] %v109

// kernel: tfno_forward.11
$region0: #{tfno_forward.11}
  #allocation0 [shape = 'u32[]', space=smem, size = 0x4, offset = 0x4, fixed_abs, tag = 'smem constant byte address 0x4 - core index']
  #allocation1 [shape = 'u32[144,128]{1,0:T(1,128)}', space=vmem, size = 0x12000, scoped, tag = 'internal scratch']
  %s0 = inlined_call_operand.vmem [shape: f32[128,2,64], index: 0, kind: input, shape index: {}]
  %s1 = inlined_call_operand.vmem [shape: bf16[128,64,64], index: 1, kind: input, shape index: {}]
  %s2 = inlined_call_operand.vmem [shape: f32[128,2,64], index: 2, kind: output, shape index: {}]
  %s3 = sld [smem:[#allocation0]]
  $region41: #{tfno_forward.11} parent=0
    _
  %s5 = ssub.s32 1, %s3
  %s6 = scalar_select 0, %s5, %s3
  loop: start=0, step=1, limit=4
  $region2: #{tfno_forward.11} parent=0 // loop_pre_header
    _
  $region3: #{tfno_forward.11} parent=0 // loop_header
    %s8 = sphi 0, %s12
    %p9 = scmp.ge.s32.totalorder %s8, 4
    %s18 = sphi 0, %s20
    %s21 = sphi 0, %s18
    %s22 = sphi 0, %s21
    %s38 = sphi 0, %s22
    %s44 = sphi 0, %s46
    %s47 = sphi 0, %s44
    %s48 = sphi 0, %s47
    %s64 = sphi 0, %s48
    %s70 = sphi 0, %s72
    %s73 = sphi 0, %s70
    %s74 = sphi 0, %s73
    %s90 = sphi 0, %s74
  $region4: #{tfno_forward.11} parent=0 // loop_header_branch
    %11 = sbr.rel (%p9) target = $region8
  $region5: #{tfno_forward.11} parent=0 // loop_body
    %s13 = ssub.s32 %s8, 1
    %s14 = ssub.s32 %s8, 2
    %s15 = sadd.s32 %s8, 1
    %s16 = ssub.s32 %s8, %s15
    %p17 = scmp.eq.s32.totalorder %s16, 0
    %s19 = sadd.s32 %s18, 1
    %s20 = scalar_select %p17, %s18, %s19
    %p23 = pneg %p17
    %p24 = scmp.eq.s32.totalorder %s8, 1
    %p25 = por %p23, %p24
    %p26 = scmp.ne.s32.totalorder %s18, %s21
    %p27 = scmp.eq.s32.totalorder %s8, 0
    %p28 = por %p26, %p27
    %p29 = scmp.ne.s32.totalorder %s18, %s21
    %p30 = scmp.eq.s32.totalorder %s13, 1
    %p31 = por %p29, %p30
    %p32 = scmp.ne.s32.totalorder %s21, %s22
    %p33 = scmp.eq.s32.totalorder %s13, 0
    %p34 = por %p32, %p33
    %p35 = scmp.ne.s32.totalorder %s21, %s22
    %p36 = scmp.eq.s32.totalorder %s14, 1
    %p37 = por %p35, %p36
    %p39 = scmp.ne.s32.totalorder %s22, %s38
    %p40 = scmp.eq.s32.totalorder %s14, 0
    %p41 = por %p39, %p40
    %s42 = ssub.s32 %s8, %s15
    %p43 = scmp.eq.s32.totalorder %s42, 0
    %s45 = sadd.s32 %s44, 1
    %s46 = scalar_select %p43, %s44, %s45
    %p49 = pneg %p43
    %p50 = scmp.eq.s32.totalorder %s8, 1
    %p51 = por %p49, %p50
    %p52 = scmp.ne.s32.totalorder %s44, %s47
    %p53 = scmp.eq.s32.totalorder %s8, 0
    %p54 = por %p52, %p53
    %p55 = scmp.ne.s32.totalorder %s44, %s47
    %p56 = scmp.eq.s32.totalorder %s13, 1
    %p57 = por %p55, %p56
    %p58 = scmp.ne.s32.totalorder %s47, %s48
    %p59 = scmp.eq.s32.totalorder %s13, 0
    %p60 = por %p58, %p59
    %p61 = scmp.ne.s32.totalorder %s47, %s48
    %p62 = scmp.eq.s32.totalorder %s14, 1
    %p63 = por %p61, %p62
    %p65 = scmp.ne.s32.totalorder %s48, %s64
    %p66 = scmp.eq.s32.totalorder %s14, 0
    %p67 = por %p65, %p66
    %s68 = ssub.s32 %s8, %s15
    %p69 = scmp.eq.s32.totalorder %s68, 0
    %s71 = sadd.s32 %s70, 1
    %s72 = scalar_select %p69, %s70, %s71
    %p75 = pneg %p69
    %p76 = scmp.eq.s32.totalorder %s8, 1
    %p77 = por %p75, %p76
    %p78 = scmp.ne.s32.totalorder %s70, %s73
    %p79 = scmp.eq.s32.totalorder %s8, 0
    %p80 = por %p78, %p79
    %p81 = scmp.ne.s32.totalorder %s70, %s73
    %p82 = scmp.eq.s32.totalorder %s13, 1
    %p83 = por %p81, %p82
    %p84 = scmp.ne.s32.totalorder %s73, %s74
    %p85 = scmp.eq.s32.totalorder %s13, 0
    %p86 = por %p84, %p85
    %p87 = scmp.ne.s32.totalorder %s73, %s74
    %p88 = scmp.eq.s32.totalorder %s14, 1
    %p89 = por %p87, %p88
    %p91 = scmp.ne.s32.totalorder %s74, %s90
    %p92 = scmp.eq.s32.totalorder %s14, 0
    %p93 = por %p91, %p92
    %p94 = scmp.le.s32.totalorder 1, %s8
    %p95 = scmp.lt.s32.totalorder %s8, 3
    %p96 = pnand %p94, %p95
    %p97 = pneg %p96
    // Predicated region
    $region9: #{tfno_forward.11} parent=5 // pred_check
      _
    $region10: #{tfno_forward.11} parent=5 // pred_check_branch
      %99 = sbr.rel (%p96) target = $region12
    $region11: #{tfno_forward.11} parent=5 // pred_region
      %s100 = ssub.s32 %s8, 1
    $region12: #{tfno_forward.11} parent=5 // pred_fallthru
      _
    %p101 = scmp.lt.s32.totalorder %s8, 2
    // Predicated region
    $region13: #{tfno_forward.11} parent=5 // pred_check
      %p102 = pneg %p101
    $region14: #{tfno_forward.11} parent=5 // pred_check_branch
      %104 = sbr.rel (%p102) target = $region16
    $region15: #{tfno_forward.11} parent=5 // pred_region
      // Predicated region
      $region17: #{tfno_forward.11} parent=15 // pred_check
        %p105 = pneg %p28
      $region18: #{tfno_forward.11} parent=15 // pred_check_branch
        %107 = sbr.rel (%p105) target = $region20
      $region19: #{tfno_forward.11} parent=15 // pred_region
        %s108 = smul.u32 64, %s8
        %p109 = scmp.lt.s32.totalorder %s108, 127
        %s110 = scalar_select %p109, %s108, 127
        %s111 = smul.addr %s110, 2
        %s112 = scalar_lea.vmem %s0, %s111
        %s113 = smul.u32 64, %s8
      $region20: #{tfno_forward.11} parent=15 // pred_fallthru
        _
      // Predicated region
      $region21: #{tfno_forward.11} parent=15 // pred_check
        %p114 = pneg %p54
      $region22: #{tfno_forward.11} parent=15 // pred_check_branch
        %116 = sbr.rel (%p114) target = $region24
      $region23: #{tfno_forward.11} parent=15 // pred_region
        %s117 = smul.u32 64, %s8
        %p118 = scmp.lt.s32.totalorder %s117, 127
        %s119 = scalar_select %p118, %s117, 127
        %s120 = smul.addr %s119, 8
        %s121 = smul.addr %s120, 4
        %s122 = scalar_lea.vmem %s1, %s121
        %s123 = smul.u32 64, %s8
      $region24: #{tfno_forward.11} parent=15 // pred_fallthru
        _
    $region16: #{tfno_forward.11} parent=5 // pred_fallthru
      _
    %p124 = scmp.le.s32.totalorder 1, %s8
    %p125 = scmp.lt.s32.totalorder %s8, 3
    %p126 = pnand %p124, %p125
    %p127 = pneg %p126
    // Predicated region
    $region25: #{tfno_forward.11} parent=5 // pred_check
      _
    $region26: #{tfno_forward.11} parent=5 // pred_check_branch
      %129 = sbr.rel (%p126) target = $region28
    $region27: #{tfno_forward.11} parent=5 // pred_region
      %s130 = ssub.s32 %s8, 1
      %s131 = smul.u32 64, %s13
      %p132 = scmp.lt.s32.totalorder %s131, 127
      %s133 = scalar_select %p132, %s131, 127
      %s134 = smul.addr %s133, 2
      %s135 = scalar_lea.vmem %s0, %s134
      %p136 = pneg %p34
      %p137 = pneg %p31
      %s138 = smul.u32 64, %s13
      %p139 = scmp.lt.s32.totalorder %s138, 127
      %s140 = scalar_select %p139, %s138, 127
      %s141 = smul.addr %s140, 8
      %s142 = smul.addr %s141, 4
      %s143 = scalar_lea.vmem %s1, %s142
      %p144 = pneg %p60
      %p145 = pneg %p57
      %p146 = pneg %p86
      %p147 = pneg %p83
      %s148 = smul.u32 64, %s13
      %p149 = scmp.lt.s32.totalorder %s148, 127
      %s150 = scalar_select %p149, %s148, 127
      %s151 = smul.addr %s150, 2
      %s152 = scalar_lea.vmem %s2, %s151
      %s153 = smul.u32 64, %s13
      %p154 = scmp.lt.s32.totalorder %s153, 127
      %s155 = scalar_select %p154, %s153, 127
      %s156 = smul.addr %s155, 2
      %s157 = scalar_lea.vmem %s0, %s156
      %s158 = smul.u32 64, %s13
      %s159 = smul.u32 64, %s13
      %p160 = scmp.lt.s32.totalorder %s159, 127
      %s161 = scalar_select %p160, %s159, 127
      %s162 = smul.addr %s161, 8
      %s163 = smul.addr %s162, 4
      %s164 = scalar_lea.vmem %s1, %s163
      %s165 = smul.u32 64, %s13
      %s166 = smul.u32 64, %s13
      %p167 = scmp.lt.s32.totalorder %s166, 127
      %s168 = scalar_select %p167, %s166, 127
      %s169 = smul.addr %s168, 2
      %s170 = scalar_lea.vmem %s2, %s169
      %s171 = smul.u32 64, %s13
      %v173 = vld [vmem:[%s157] sm:$0x3]
      %v174 = vld [vmem:[%s157 + $0x2] sm:$0x3]
      %v175 = vld [vmem:[%s157 + $0x4] sm:$0x3]
      %v176 = vld [vmem:[%s157 + $0x6] sm:$0x3]
      %v177 = vld [vmem:[%s157 + $0x8] sm:$0x3]
      %v178 = vld [vmem:[%s157 + $0xa] sm:$0x3]
      %v179 = vld [vmem:[%s157 + $0xc] sm:$0x3]
      %v180 = vld [vmem:[%s157 + $0xe] sm:$0x3]
      %v181 = vld [vmem:[%s157 + $0x10] sm:$0x3]
      %v182 = vld [vmem:[%s157 + $0x12] sm:$0x3]
      %v183 = vld [vmem:[%s157 + $0x14] sm:$0x3]
      %v184 = vld [vmem:[%s157 + $0x16] sm:$0x3]
      %v185 = vld [vmem:[%s157 + $0x18] sm:$0x3]
      %v186 = vld [vmem:[%s157 + $0x1a] sm:$0x3]
      %v187 = vld [vmem:[%s157 + $0x1c] sm:$0x3]
      %v188 = vld [vmem:[%s157 + $0x1e] sm:$0x3]
      %v189 = vld [vmem:[%s157 + $0x20] sm:$0x3]
      %v190 = vld [vmem:[%s157 + $0x22] sm:$0x3]
      %v191 = vld [vmem:[%s157 + $0x24] sm:$0x3]
      %v192 = vld [vmem:[%s157 + $0x26] sm:$0x3]
      %v193 = vld [vmem:[%s157 + $0x28] sm:$0x3]
      %v194 = vld [vmem:[%s157 + $0x2a] sm:$0x3]
      %v195 = vld [vmem:[%s157 + $0x2c] sm:$0x3]
      %v196 = vld [vmem:[%s157 + $0x2e] sm:$0x3]
      %v197 = vld [vmem:[%s157 + $0x30] sm:$0x3]
      %v198 = vld [vmem:[%s157 + $0x32] sm:$0x3]
      %v199 = vld [vmem:[%s157 + $0x34] sm:$0x3]
      %v200 = vld [vmem:[%s157 + $0x36] sm:$0x3]
      %v201 = vld [vmem:[%s157 + $0x38] sm:$0x3]
      %v202 = vld [vmem:[%s157 + $0x3a] sm:$0x3]
      %v203 = vld [vmem:[%s157 + $0x3c] sm:$0x3]
      %v204 = vld [vmem:[%s157 + $0x3e] sm:$0x3]
      %v205 = vld [vmem:[%s157 + $0x40] sm:$0x3]
      %v206 = vld [vmem:[%s157 + $0x42] sm:$0x3]
      %v207 = vld [vmem:[%s157 + $0x44] sm:$0x3]
      %v208 = vld [vmem:[%s157 + $0x46] sm:$0x3]
      %v209 = vld [vmem:[%s157 + $0x48] sm:$0x3]
      %v210 = vld [vmem:[%s157 + $0x4a] sm:$0x3]
      %v211 = vld [vmem:[%s157 + $0x4c] sm:$0x3]
      %v212 = vld [vmem:[%s157 + $0x4e] sm:$0x3]
      %v213 = vld [vmem:[%s157 + $0x50] sm:$0x3]
      %v214 = vld [vmem:[%s157 + $0x52] sm:$0x3]
      %v215 = vld [vmem:[%s157 + $0x54] sm:$0x3]
      %v216 = vld [vmem:[%s157 + $0x56] sm:$0x3]
      %v217 = vld [vmem:[%s157 + $0x58] sm:$0x3]
      %v218 = vld [vmem:[%s157 + $0x5a] sm:$0x3]
      %v219 = vld [vmem:[%s157 + $0x5c] sm:$0x3]
      %v220 = vld [vmem:[%s157 + $0x5e] sm:$0x3]
      %v221 = vld [vmem:[%s157 + $0x60] sm:$0x3]
      %v222 = vld [vmem:[%s157 + $0x62] sm:$0x3]
      %v223 = vld [vmem:[%s157 + $0x64] sm:$0x3]
      %v224 = vld [vmem:[%s157 + $0x66] sm:$0x3]
      %v225 = vld [vmem:[%s157 + $0x68] sm:$0x3]
      %v226 = vld [vmem:[%s157 + $0x6a] sm:$0x3]
      %v227 = vld [vmem:[%s157 + $0x6c] sm:$0x3]
      %v228 = vld [vmem:[%s157 + $0x6e] sm:$0x3]
      %v229 = vld [vmem:[%s157 + $0x70] sm:$0x3]
      %v230 = vld [vmem:[%s157 + $0x72] sm:$0x3]
      %v231 = vld [vmem:[%s157 + $0x74] sm:$0x3]
      %v232 = vld [vmem:[%s157 + $0x76] sm:$0x3]
      %v233 = vld [vmem:[%s157 + $0x78] sm:$0x3]
      %v234 = vld [vmem:[%s157 + $0x7a] sm:$0x3]
      %v235 = vld [vmem:[%s157 + $0x7c] sm:$0x3]
      %v236 = vld [vmem:[%s157 + $0x7e] sm:$0x3]
      %v237 = vpack.c.bf16 %v173, %v173
      %v238 = vpack.c.bf16 %v174, %v174
      %v239 = vpack.c.bf16 %v175, %v175
      %v240 = vpack.c.bf16 %v176, %v176
      %v241 = vpack.c.bf16 %v177, %v177
      %v242 = vpack.c.bf16 %v178, %v178
      %v243 = vpack.c.bf16 %v179, %v179
      %v244 = vpack.c.bf16 %v180, %v180
      %v245 = vpack.c.bf16 %v181, %v181
      %v246 = vpack.c.bf16 %v182, %v182
      %v247 = vpack.c.bf16 %v183, %v183
      %v248 = vpack.c.bf16 %v184, %v184
      %v249 = vpack.c.bf16 %v185, %v185
      %v250 = vpack.c.bf16 %v186, %v186
      %v251 = vpack.c.bf16 %v187, %v187
      %v252 = vpack.c.bf16 %v188, %v188
      %v253 = vpack.c.bf16 %v189, %v189
      %v254 = vpack.c.bf16 %v190, %v190
      %v255 = vpack.c.bf16 %v191, %v191
      %v256 = vpack.c.bf16 %v192, %v192
      %v257 = vpack.c.bf16 %v193, %v193
      %v258 = vpack.c.bf16 %v194, %v194
      %v259 = vpack.c.bf16 %v195, %v195
      %v260 = vpack.c.bf16 %v196, %v196
      %v261 = vpack.c.bf16 %v197, %v197
      %v262 = vpack.c.bf16 %v198, %v198
      %v263 = vpack.c.bf16 %v199, %v199
      %v264 = vpack.c.bf16 %v200, %v200
      %v265 = vpack.c.bf16 %v201, %v201
      %v266 = vpack.c.bf16 %v202, %v202
      %v267 = vpack.c.bf16 %v203, %v203
      %v268 = vpack.c.bf16 %v204, %v204
      %v269 = vpack.c.bf16 %v205, %v205
      %v270 = vpack.c.bf16 %v206, %v206
      %v271 = vpack.c.bf16 %v207, %v207
      %v272 = vpack.c.bf16 %v208, %v208
      %v273 = vpack.c.bf16 %v209, %v209
      %v274 = vpack.c.bf16 %v210, %v210
      %v275 = vpack.c.bf16 %v211, %v211
      %v276 = vpack.c.bf16 %v212, %v212
      %v277 = vpack.c.bf16 %v213, %v213
      %v278 = vpack.c.bf16 %v214, %v214
      %v279 = vpack.c.bf16 %v215, %v215
      %v280 = vpack.c.bf16 %v216, %v216
      %v281 = vpack.c.bf16 %v217, %v217
      %v282 = vpack.c.bf16 %v218, %v218
      %v283 = vpack.c.bf16 %v219, %v219
      %v284 = vpack.c.bf16 %v220, %v220
      %v285 = vpack.c.bf16 %v221, %v221
      %v286 = vpack.c.bf16 %v222, %v222
      %v287 = vpack.c.bf16 %v223, %v223
      %v288 = vpack.c.bf16 %v224, %v224
      %v289 = vpack.c.bf16 %v225, %v225
      %v290 = vpack.c.bf16 %v226, %v226
      %v291 = vpack.c.bf16 %v227, %v227
      %v292 = vpack.c.bf16 %v228, %v228
      %v293 = vpack.c.bf16 %v229, %v229
      %v294 = vpack.c.bf16 %v230, %v230
      %v295 = vpack.c.bf16 %v231, %v231
      %v296 = vpack.c.bf16 %v232, %v232
      %v297 = vpack.c.bf16 %v233, %v233
      %v298 = vpack.c.bf16 %v234, %v234
      %v299 = vpack.c.bf16 %v235, %v235
      %v300 = vpack.c.bf16 %v236, %v236
      %v301 = vld [vmem:[%s164] sm:$0xf]
      %v302 = vld [vmem:[%s164 + $0x4] sm:$0xf]
      %v303 = vld [vmem:[%s164 + $0x8] sm:$0xf]
      %v304 = vld [vmem:[%s164 + $0xc] sm:$0xf]
      %v305 = vld [vmem:[%s164 + $0x10] sm:$0xf]
      %v306 = vld [vmem:[%s164 + $0x14] sm:$0xf]
      %v307 = vld [vmem:[%s164 + $0x18] sm:$0xf]
      %v308 = vld [vmem:[%s164 + $0x1c] sm:$0xf]
      %v309 = vld [vmem:[%s164 + $0x20] sm:$0xf]
      %v310 = vld [vmem:[%s164 + $0x24] sm:$0xf]
      %v311 = vld [vmem:[%s164 + $0x28] sm:$0xf]
      %v312 = vld [vmem:[%s164 + $0x2c] sm:$0xf]
      %v313 = vld [vmem:[%s164 + $0x30] sm:$0xf]
      %v314 = vld [vmem:[%s164 + $0x34] sm:$0xf]
      %v315 = vld [vmem:[%s164 + $0x38] sm:$0xf]
      %v316 = vld [vmem:[%s164 + $0x3c] sm:$0xf]
      %v317 = vld [vmem:[%s164 + $0x40] sm:$0xf]
      %v318 = vld [vmem:[%s164 + $0x44] sm:$0xf]
      %v319 = vld [vmem:[%s164 + $0x48] sm:$0xf]
      %v320 = vld [vmem:[%s164 + $0x4c] sm:$0xf]
      %v321 = vld [vmem:[%s164 + $0x50] sm:$0xf]
      %v322 = vld [vmem:[%s164 + $0x54] sm:$0xf]
      %v323 = vld [vmem:[%s164 + $0x58] sm:$0xf]
      %v324 = vld [vmem:[%s164 + $0x5c] sm:$0xf]
      %v325 = vld [vmem:[%s164 + $0x60] sm:$0xf]
      %v326 = vld [vmem:[%s164 + $0x64] sm:$0xf]
      %v327 = vld [vmem:[%s164 + $0x68] sm:$0xf]
      %v328 = vld [vmem:[%s164 + $0x6c] sm:$0xf]
      %v329 = vld [vmem:[%s164 + $0x70] sm:$0xf]
      %v330 = vld [vmem:[%s164 + $0x74] sm:$0xf]
      %v331 = vld [vmem:[%s164 + $0x78] sm:$0xf]
      %v332 = vld [vmem:[%s164 + $0x7c] sm:$0xf]
      %v333 = vld [vmem:[%s164 + $0x80] sm:$0xf]
      %v334 = vld [vmem:[%s164 + $0x84] sm:$0xf]
      %v335 = vld [vmem:[%s164 + $0x88] sm:$0xf]
      %v336 = vld [vmem:[%s164 + $0x8c] sm:$0xf]
      %v337 = vld [vmem:[%s164 + $0x90] sm:$0xf]
      %v338 = vld [vmem:[%s164 + $0x94] sm:$0xf]
      %v339 = vld [vmem:[%s164 + $0x98] sm:$0xf]
      %v340 = vld [vmem:[%s164 + $0x9c] sm:$0xf]
      %v341 = vld [vmem:[%s164 + $0xa0] sm:$0xf]
      %v342 = vld [vmem:[%s164 + $0xa4] sm:$0xf]
      %v343 = vld [vmem:[%s164 + $0xa8] sm:$0xf]
      %v344 = vld [vmem:[%s164 + $0xac] sm:$0xf]
      %v345 = vld [vmem:[%s164 + $0xb0] sm:$0xf]
      %v346 = vld [vmem:[%s164 + $0xb4] sm:$0xf]
      %v347 = vld [vmem:[%s164 + $0xb8] sm:$0xf]
      %v348 = vld [vmem:[%s164 + $0xbc] sm:$0xf]
      %v349 = vld [vmem:[%s164 + $0xc0] sm:$0xf]
      %v350 = vld [vmem:[%s164 + $0xc4] sm:$0xf]
      %v351 = vld [vmem:[%s164 + $0xc8] sm:$0xf]
      %v352 = vld [vmem:[%s164 + $0xcc] sm:$0xf]
      %v353 = vld [vmem:[%s164 + $0xd0] sm:$0xf]
      %v354 = vld [vmem:[%s164 + $0xd4] sm:$0xf]
      %v355 = vld [vmem:[%s164 + $0xd8] sm:$0xf]
      %v356 = vld [vmem:[%s164 + $0xdc] sm:$0xf]
      %v357 = vld [vmem:[%s164 + $0xe0] sm:$0xf]
      %v358 = vld [vmem:[%s164 + $0xe4] sm:$0xf]
      %v359 = vld [vmem:[%s164 + $0xe8] sm:$0xf]
      %v360 = vld [vmem:[%s164 + $0xec] sm:$0xf]
      %v361 = vld [vmem:[%s164 + $0xf0] sm:$0xf]
      %v362 = vld [vmem:[%s164 + $0xf4] sm:$0xf]
      %v363 = vld [vmem:[%s164 + $0xf8] sm:$0xf]
      %v364 = vld [vmem:[%s164 + $0xfc] sm:$0xf]
      %v365 = vld [vmem:[%s164 + $0x100] sm:$0xf]
      %v366 = vld [vmem:[%s164 + $0x104] sm:$0xf]
      %v367 = vld [vmem:[%s164 + $0x108] sm:$0xf]
      %v368 = vld [vmem:[%s164 + $0x10c] sm:$0xf]
      %v369 = vld [vmem:[%s164 + $0x110] sm:$0xf]
      %v370 = vld [vmem:[%s164 + $0x114] sm:$0xf]
      %v371 = vld [vmem:[%s164 + $0x118] sm:$0xf]
      %v372 = vld [vmem:[%s164 + $0x11c] sm:$0xf]
      %v373 = vld [vmem:[%s164 + $0x120] sm:$0xf]
      %v374 = vld [vmem:[%s164 + $0x124] sm:$0xf]
      %v375 = vld [vmem:[%s164 + $0x128] sm:$0xf]
      %v376 = vld [vmem:[%s164 + $0x12c] sm:$0xf]
      %v377 = vld [vmem:[%s164 + $0x130] sm:$0xf]
      %v378 = vld [vmem:[%s164 + $0x134] sm:$0xf]
      %v379 = vld [vmem:[%s164 + $0x138] sm:$0xf]
      %v380 = vld [vmem:[%s164 + $0x13c] sm:$0xf]
      %v381 = vld [vmem:[%s164 + $0x140] sm:$0xf]
      %v382 = vld [vmem:[%s164 + $0x144] sm:$0xf]
      %v383 = vld [vmem:[%s164 + $0x148] sm:$0xf]
      %v384 = vld [vmem:[%s164 + $0x14c] sm:$0xf]
      %v385 = vld [vmem:[%s164 + $0x150] sm:$0xf]
      %v386 = vld [vmem:[%s164 + $0x154] sm:$0xf]
      %v387 = vld [vmem:[%s164 + $0x158] sm:$0xf]
      %v388 = vld [vmem:[%s164 + $0x15c] sm:$0xf]
      %v389 = vld [vmem:[%s164 + $0x160] sm:$0xf]
      %v390 = vld [vmem:[%s164 + $0x164] sm:$0xf]
      %v391 = vld [vmem:[%s164 + $0x168] sm:$0xf]
      %v392 = vld [vmem:[%s164 + $0x16c] sm:$0xf]
      %v393 = vld [vmem:[%s164 + $0x170] sm:$0xf]
      %v394 = vld [vmem:[%s164 + $0x174] sm:$0xf]
      %v395 = vld [vmem:[%s164 + $0x178] sm:$0xf]
      %v396 = vld [vmem:[%s164 + $0x17c] sm:$0xf]
      %v397 = vld [vmem:[%s164 + $0x180] sm:$0xf]
      %v398 = vld [vmem:[%s164 + $0x184] sm:$0xf]
      %v399 = vld [vmem:[%s164 + $0x188] sm:$0xf]
      %v400 = vld [vmem:[%s164 + $0x18c] sm:$0xf]
      %v401 = vld [vmem:[%s164 + $0x190] sm:$0xf]
      %v402 = vld [vmem:[%s164 + $0x194] sm:$0xf]
      %v403 = vld [vmem:[%s164 + $0x198] sm:$0xf]
      %v404 = vld [vmem:[%s164 + $0x19c] sm:$0xf]
      %v405 = vld [vmem:[%s164 + $0x1a0] sm:$0xf]
      %v406 = vld [vmem:[%s164 + $0x1a4] sm:$0xf]
      %v407 = vld [vmem:[%s164 + $0x1a8] sm:$0xf]
      %v408 = vld [vmem:[%s164 + $0x1ac] sm:$0xf]
      %v409 = vld [vmem:[%s164 + $0x1b0] sm:$0xf]
      %v410 = vld [vmem:[%s164 + $0x1b4] sm:$0xf]
      %v411 = vld [vmem:[%s164 + $0x1b8] sm:$0xf]
      %v412 = vld [vmem:[%s164 + $0x1bc] sm:$0xf]
      %v413 = vld [vmem:[%s164 + $0x1c0] sm:$0xf]
      %v414 = vld [vmem:[%s164 + $0x1c4] sm:$0xf]
      %v415 = vld [vmem:[%s164 + $0x1c8] sm:$0xf]
      %v416 = vld [vmem:[%s164 + $0x1cc] sm:$0xf]
      %v417 = vld [vmem:[%s164 + $0x1d0] sm:$0xf]
      %v418 = vld [vmem:[%s164 + $0x1d4] sm:$0xf]
      %v419 = vld [vmem:[%s164 + $0x1d8] sm:$0xf]
      %v420 = vld [vmem:[%s164 + $0x1dc] sm:$0xf]
      %v421 = vld [vmem:[%s164 + $0x1e0] sm:$0xf]
      %v422 = vld [vmem:[%s164 + $0x1e4] sm:$0xf]
      %v423 = vld [vmem:[%s164 + $0x1e8] sm:$0xf]
      %v424 = vld [vmem:[%s164 + $0x1ec] sm:$0xf]
      %v425 = vld [vmem:[%s164 + $0x1f0] sm:$0xf]
      %v426 = vld [vmem:[%s164 + $0x1f4] sm:$0xf]
      %v427 = vld [vmem:[%s164 + $0x1f8] sm:$0xf]
      %v428 = vld [vmem:[%s164 + $0x1fc] sm:$0xf]
      %v429 = vld [vmem:[%s164 + $0x200] sm:$0xf]
      %v430 = vld [vmem:[%s164 + $0x204] sm:$0xf]
      %v431 = vld [vmem:[%s164 + $0x208] sm:$0xf]
      %v432 = vld [vmem:[%s164 + $0x20c] sm:$0xf]
      %v433 = vld [vmem:[%s164 + $0x210] sm:$0xf]
      %v434 = vld [vmem:[%s164 + $0x214] sm:$0xf]
      %v435 = vld [vmem:[%s164 + $0x218] sm:$0xf]
      %v436 = vld [vmem:[%s164 + $0x21c] sm:$0xf]
      %v437 = vld [vmem:[%s164 + $0x220] sm:$0xf]
      %v438 = vld [vmem:[%s164 + $0x224] sm:$0xf]
      %v439 = vld [vmem:[%s164 + $0x228] sm:$0xf]
      %v440 = vld [vmem:[%s164 + $0x22c] sm:$0xf]
      %v441 = vld [vmem:[%s164 + $0x230] sm:$0xf]
      %v442 = vld [vmem:[%s164 + $0x234] sm:$0xf]
      %v443 = vld [vmem:[%s164 + $0x238] sm:$0xf]
      %v444 = vld [vmem:[%s164 + $0x23c] sm:$0xf]
      %v445 = vld [vmem:[%s164 + $0x240] sm:$0xf]
      %v446 = vld [vmem:[%s164 + $0x244] sm:$0xf]
      %v447 = vld [vmem:[%s164 + $0x248] sm:$0xf]
      %v448 = vld [vmem:[%s164 + $0x24c] sm:$0xf]
      %v449 = vld [vmem:[%s164 + $0x250] sm:$0xf]
      %v450 = vld [vmem:[%s164 + $0x254] sm:$0xf]
      %v451 = vld [vmem:[%s164 + $0x258] sm:$0xf]
      %v452 = vld [vmem:[%s164 + $0x25c] sm:$0xf]
      %v453 = vld [vmem:[%s164 + $0x260] sm:$0xf]
      %v454 = vld [vmem:[%s164 + $0x264] sm:$0xf]
      %v455 = vld [vmem:[%s164 + $0x268] sm:$0xf]
      %v456 = vld [vmem:[%s164 + $0x26c] sm:$0xf]
      %v457 = vld [vmem:[%s164 + $0x270] sm:$0xf]
      %v458 = vld [vmem:[%s164 + $0x274] sm:$0xf]
      %v459 = vld [vmem:[%s164 + $0x278] sm:$0xf]
      %v460 = vld [vmem:[%s164 + $0x27c] sm:$0xf]
      %v461 = vld [vmem:[%s164 + $0x280] sm:$0xf]
      %v462 = vld [vmem:[%s164 + $0x284] sm:$0xf]
      %v463 = vld [vmem:[%s164 + $0x288] sm:$0xf]
      %v464 = vld [vmem:[%s164 + $0x28c] sm:$0xf]
      %v465 = vld [vmem:[%s164 + $0x290] sm:$0xf]
      %v466 = vld [vmem:[%s164 + $0x294] sm:$0xf]
      %v467 = vld [vmem:[%s164 + $0x298] sm:$0xf]
      %v468 = vld [vmem:[%s164 + $0x29c] sm:$0xf]
      %v469 = vld [vmem:[%s164 + $0x2a0] sm:$0xf]
      %v470 = vld [vmem:[%s164 + $0x2a4] sm:$0xf]
      %v471 = vld [vmem:[%s164 + $0x2a8] sm:$0xf]
      %v472 = vld [vmem:[%s164 + $0x2ac] sm:$0xf]
      %v473 = vld [vmem:[%s164 + $0x2b0] sm:$0xf]
      %v474 = vld [vmem:[%s164 + $0x2b4] sm:$0xf]
      %v475 = vld [vmem:[%s164 + $0x2b8] sm:$0xf]
      %v476 = vld [vmem:[%s164 + $0x2bc] sm:$0xf]
      %v477 = vld [vmem:[%s164 + $0x2c0] sm:$0xf]
      %v478 = vld [vmem:[%s164 + $0x2c4] sm:$0xf]
      %v479 = vld [vmem:[%s164 + $0x2c8] sm:$0xf]
      %v480 = vld [vmem:[%s164 + $0x2cc] sm:$0xf]
      %v481 = vld [vmem:[%s164 + $0x2d0] sm:$0xf]
      %v482 = vld [vmem:[%s164 + $0x2d4] sm:$0xf]
      %v483 = vld [vmem:[%s164 + $0x2d8] sm:$0xf]
      %v484 = vld [vmem:[%s164 + $0x2dc] sm:$0xf]
      %v485 = vld [vmem:[%s164 + $0x2e0] sm:$0xf]
      %v486 = vld [vmem:[%s164 + $0x2e4] sm:$0xf]
      %v487 = vld [vmem:[%s164 + $0x2e8] sm:$0xf]
      %v488 = vld [vmem:[%s164 + $0x2ec] sm:$0xf]
      %v489 = vld [vmem:[%s164 + $0x2f0] sm:$0xf]
      %v490 = vld [vmem:[%s164 + $0x2f4] sm:$0xf]
      %v491 = vld [vmem:[%s164 + $0x2f8] sm:$0xf]
      %v492 = vld [vmem:[%s164 + $0x2fc] sm:$0xf]
      %v493 = vld [vmem:[%s164 + $0x300] sm:$0xf]
      %v494 = vld [vmem:[%s164 + $0x304] sm:$0xf]
      %v495 = vld [vmem:[%s164 + $0x308] sm:$0xf]
      %v496 = vld [vmem:[%s164 + $0x30c] sm:$0xf]
      %v497 = vld [vmem:[%s164 + $0x310] sm:$0xf]
      %v498 = vld [vmem:[%s164 + $0x314] sm:$0xf]
      %v499 = vld [vmem:[%s164 + $0x318] sm:$0xf]
      %v500 = vld [vmem:[%s164 + $0x31c] sm:$0xf]
      %v501 = vld [vmem:[%s164 + $0x320] sm:$0xf]
      %v502 = vld [vmem:[%s164 + $0x324] sm:$0xf]
      %v503 = vld [vmem:[%s164 + $0x328] sm:$0xf]
      %v504 = vld [vmem:[%s164 + $0x32c] sm:$0xf]
      %v505 = vld [vmem:[%s164 + $0x330] sm:$0xf]
      %v506 = vld [vmem:[%s164 + $0x334] sm:$0xf]
      %v507 = vld [vmem:[%s164 + $0x338] sm:$0xf]
      %v508 = vld [vmem:[%s164 + $0x33c] sm:$0xf]
      %v509 = vld [vmem:[%s164 + $0x340] sm:$0xf]
      %v510 = vld [vmem:[%s164 + $0x344] sm:$0xf]
      %v511 = vld [vmem:[%s164 + $0x348] sm:$0xf]
      %v512 = vld [vmem:[%s164 + $0x34c] sm:$0xf]
      %v513 = vld [vmem:[%s164 + $0x350] sm:$0xf]
      %v514 = vld [vmem:[%s164 + $0x354] sm:$0xf]
      %v515 = vld [vmem:[%s164 + $0x358] sm:$0xf]
      %v516 = vld [vmem:[%s164 + $0x35c] sm:$0xf]
      %v517 = vld [vmem:[%s164 + $0x360] sm:$0xf]
      %v518 = vld [vmem:[%s164 + $0x364] sm:$0xf]
      %v519 = vld [vmem:[%s164 + $0x368] sm:$0xf]
      %v520 = vld [vmem:[%s164 + $0x36c] sm:$0xf]
      %v521 = vld [vmem:[%s164 + $0x370] sm:$0xf]
      %v522 = vld [vmem:[%s164 + $0x374] sm:$0xf]
      %v523 = vld [vmem:[%s164 + $0x378] sm:$0xf]
      %v524 = vld [vmem:[%s164 + $0x37c] sm:$0xf]
      %v525 = vld [vmem:[%s164 + $0x380] sm:$0xf]
      %v526 = vld [vmem:[%s164 + $0x384] sm:$0xf]
      %v527 = vld [vmem:[%s164 + $0x388] sm:$0xf]
      %v528 = vld [vmem:[%s164 + $0x38c] sm:$0xf]
      %v529 = vld [vmem:[%s164 + $0x390] sm:$0xf]
      %v530 = vld [vmem:[%s164 + $0x394] sm:$0xf]
      %v531 = vld [vmem:[%s164 + $0x398] sm:$0xf]
      %v532 = vld [vmem:[%s164 + $0x39c] sm:$0xf]
      %v533 = vld [vmem:[%s164 + $0x3a0] sm:$0xf]
      %v534 = vld [vmem:[%s164 + $0x3a4] sm:$0xf]
      %v535 = vld [vmem:[%s164 + $0x3a8] sm:$0xf]
      %v536 = vld [vmem:[%s164 + $0x3ac] sm:$0xf]
      %v537 = vld [vmem:[%s164 + $0x3b0] sm:$0xf]
      %v538 = vld [vmem:[%s164 + $0x3b4] sm:$0xf]
      %v539 = vld [vmem:[%s164 + $0x3b8] sm:$0xf]
      %v540 = vld [vmem:[%s164 + $0x3bc] sm:$0xf]
      %v541 = vld [vmem:[%s164 + $0x3c0] sm:$0xf]
      %v542 = vld [vmem:[%s164 + $0x3c4] sm:$0xf]
      %v543 = vld [vmem:[%s164 + $0x3c8] sm:$0xf]
      %v544 = vld [vmem:[%s164 + $0x3cc] sm:$0xf]
      %v545 = vld [vmem:[%s164 + $0x3d0] sm:$0xf]
      %v546 = vld [vmem:[%s164 + $0x3d4] sm:$0xf]
      %v547 = vld [vmem:[%s164 + $0x3d8] sm:$0xf]
      %v548 = vld [vmem:[%s164 + $0x3dc] sm:$0xf]
      %v549 = vld [vmem:[%s164 + $0x3e0] sm:$0xf]
      %v550 = vld [vmem:[%s164 + $0x3e4] sm:$0xf]
      %v551 = vld [vmem:[%s164 + $0x3e8] sm:$0xf]
      %v552 = vld [vmem:[%s164 + $0x3ec] sm:$0xf]
      %v553 = vld [vmem:[%s164 + $0x3f0] sm:$0xf]
      %v554 = vld [vmem:[%s164 + $0x3f4] sm:$0xf]
      %v555 = vld [vmem:[%s164 + $0x3f8] sm:$0xf]
      %v556 = vld [vmem:[%s164 + $0x3fc] sm:$0xf]
      %v557 = vld [vmem:[%s164 + $0x400] sm:$0xf]
      %v558 = vld [vmem:[%s164 + $0x404] sm:$0xf]
      %v559 = vld [vmem:[%s164 + $0x408] sm:$0xf]
      %v560 = vld [vmem:[%s164 + $0x40c] sm:$0xf]
      %v561 = vld [vmem:[%s164 + $0x410] sm:$0xf]
      %v562 = vld [vmem:[%s164 + $0x414] sm:$0xf]
      %v563 = vld [vmem:[%s164 + $0x418] sm:$0xf]
      %v564 = vld [vmem:[%s164 + $0x41c] sm:$0xf]
      %v565 = vld [vmem:[%s164 + $0x420] sm:$0xf]
      %v566 = vld [vmem:[%s164 + $0x424] sm:$0xf]
      %v567 = vld [vmem:[%s164 + $0x428] sm:$0xf]
      %v568 = vld [vmem:[%s164 + $0x42c] sm:$0xf]
      %v569 = vld [vmem:[%s164 + $0x430] sm:$0xf]
      %v570 = vld [vmem:[%s164 + $0x434] sm:$0xf]
      %v571 = vld [vmem:[%s164 + $0x438] sm:$0xf]
      %v572 = vld [vmem:[%s164 + $0x43c] sm:$0xf]
      %v573 = vld [vmem:[%s164 + $0x440] sm:$0xf]
      %v574 = vld [vmem:[%s164 + $0x444] sm:$0xf]
      %v575 = vld [vmem:[%s164 + $0x448] sm:$0xf]
      %v576 = vld [vmem:[%s164 + $0x44c] sm:$0xf]
      %v577 = vld [vmem:[%s164 + $0x450] sm:$0xf]
      %v578 = vld [vmem:[%s164 + $0x454] sm:$0xf]
      %v579 = vld [vmem:[%s164 + $0x458] sm:$0xf]
      %v580 = vld [vmem:[%s164 + $0x45c] sm:$0xf]
      %v581 = vld [vmem:[%s164 + $0x460] sm:$0xf]
      %v582 = vld [vmem:[%s164 + $0x464] sm:$0xf]
      %v583 = vld [vmem:[%s164 + $0x468] sm:$0xf]
      %v584 = vld [vmem:[%s164 + $0x46c] sm:$0xf]
      %v585 = vld [vmem:[%s164 + $0x470] sm:$0xf]
      %v586 = vld [vmem:[%s164 + $0x474] sm:$0xf]
      %v587 = vld [vmem:[%s164 + $0x478] sm:$0xf]
      %v588 = vld [vmem:[%s164 + $0x47c] sm:$0xf]
      %v589 = vld [vmem:[%s164 + $0x480] sm:$0xf]
      %v590 = vld [vmem:[%s164 + $0x484] sm:$0xf]
      %v591 = vld [vmem:[%s164 + $0x488] sm:$0xf]
      %v592 = vld [vmem:[%s164 + $0x48c] sm:$0xf]
      %v593 = vld [vmem:[%s164 + $0x490] sm:$0xf]
      %v594 = vld [vmem:[%s164 + $0x494] sm:$0xf]
      %v595 = vld [vmem:[%s164 + $0x498] sm:$0xf]
      %v596 = vld [vmem:[%s164 + $0x49c] sm:$0xf]
      %v597 = vld [vmem:[%s164 + $0x4a0] sm:$0xf]
      %v598 = vld [vmem:[%s164 + $0x4a4] sm:$0xf]
      %v599 = vld [vmem:[%s164 + $0x4a8] sm:$0xf]
      %v600 = vld [vmem:[%s164 + $0x4ac] sm:$0xf]
      %v601 = vld [vmem:[%s164 + $0x4b0] sm:$0xf]
      %v602 = vld [vmem:[%s164 + $0x4b4] sm:$0xf]
      %v603 = vld [vmem:[%s164 + $0x4b8] sm:$0xf]
      %v604 = vld [vmem:[%s164 + $0x4bc] sm:$0xf]
      %v605 = vld [vmem:[%s164 + $0x4c0] sm:$0xf]
      %v606 = vld [vmem:[%s164 + $0x4c4] sm:$0xf]
      %v607 = vld [vmem:[%s164 + $0x4c8] sm:$0xf]
      %v608 = vld [vmem:[%s164 + $0x4cc] sm:$0xf]
      %v609 = vld [vmem:[%s164 + $0x4d0] sm:$0xf]
      %v610 = vld [vmem:[%s164 + $0x4d4] sm:$0xf]
      %v611 = vld [vmem:[%s164 + $0x4d8] sm:$0xf]
      %v612 = vld [vmem:[%s164 + $0x4dc] sm:$0xf]
      %v613 = vld [vmem:[%s164 + $0x4e0] sm:$0xf]
      %v614 = vld [vmem:[%s164 + $0x4e4] sm:$0xf]
      %v615 = vld [vmem:[%s164 + $0x4e8] sm:$0xf]
      %v616 = vld [vmem:[%s164 + $0x4ec] sm:$0xf]
      %v617 = vld [vmem:[%s164 + $0x4f0] sm:$0xf]
      %v618 = vld [vmem:[%s164 + $0x4f4] sm:$0xf]
      %v619 = vld [vmem:[%s164 + $0x4f8] sm:$0xf]
      %v620 = vld [vmem:[%s164 + $0x4fc] sm:$0xf]
      %v621 = vld [vmem:[%s164 + $0x500] sm:$0xf]
      %v622 = vld [vmem:[%s164 + $0x504] sm:$0xf]
      %v623 = vld [vmem:[%s164 + $0x508] sm:$0xf]
      %v624 = vld [vmem:[%s164 + $0x50c] sm:$0xf]
      %v625 = vld [vmem:[%s164 + $0x510] sm:$0xf]
      %v626 = vld [vmem:[%s164 + $0x514] sm:$0xf]
      %v627 = vld [vmem:[%s164 + $0x518] sm:$0xf]
      %v628 = vld [vmem:[%s164 + $0x51c] sm:$0xf]
      %v629 = vld [vmem:[%s164 + $0x520] sm:$0xf]
      %v630 = vld [vmem:[%s164 + $0x524] sm:$0xf]
      %v631 = vld [vmem:[%s164 + $0x528] sm:$0xf]
      %v632 = vld [vmem:[%s164 + $0x52c] sm:$0xf]
      %v633 = vld [vmem:[%s164 + $0x530] sm:$0xf]
      %v634 = vld [vmem:[%s164 + $0x534] sm:$0xf]
      %v635 = vld [vmem:[%s164 + $0x538] sm:$0xf]
      %v636 = vld [vmem:[%s164 + $0x53c] sm:$0xf]
      %v637 = vld [vmem:[%s164 + $0x540] sm:$0xf]
      %v638 = vld [vmem:[%s164 + $0x544] sm:$0xf]
      %v639 = vld [vmem:[%s164 + $0x548] sm:$0xf]
      %v640 = vld [vmem:[%s164 + $0x54c] sm:$0xf]
      %v641 = vld [vmem:[%s164 + $0x550] sm:$0xf]
      %v642 = vld [vmem:[%s164 + $0x554] sm:$0xf]
      %v643 = vld [vmem:[%s164 + $0x558] sm:$0xf]
      %v644 = vld [vmem:[%s164 + $0x55c] sm:$0xf]
      %v645 = vld [vmem:[%s164 + $0x560] sm:$0xf]
      %v646 = vld [vmem:[%s164 + $0x564] sm:$0xf]
      %v647 = vld [vmem:[%s164 + $0x568] sm:$0xf]
      %v648 = vld [vmem:[%s164 + $0x56c] sm:$0xf]
      %v649 = vld [vmem:[%s164 + $0x570] sm:$0xf]
      %v650 = vld [vmem:[%s164 + $0x574] sm:$0xf]
      %v651 = vld [vmem:[%s164 + $0x578] sm:$0xf]
      %v652 = vld [vmem:[%s164 + $0x57c] sm:$0xf]
      %v653 = vld [vmem:[%s164 + $0x580] sm:$0xf]
      %v654 = vld [vmem:[%s164 + $0x584] sm:$0xf]
      %v655 = vld [vmem:[%s164 + $0x588] sm:$0xf]
      %v656 = vld [vmem:[%s164 + $0x58c] sm:$0xf]
      %v657 = vld [vmem:[%s164 + $0x590] sm:$0xf]
      %v658 = vld [vmem:[%s164 + $0x594] sm:$0xf]
      %v659 = vld [vmem:[%s164 + $0x598] sm:$0xf]
      %v660 = vld [vmem:[%s164 + $0x59c] sm:$0xf]
      %v661 = vld [vmem:[%s164 + $0x5a0] sm:$0xf]
      %v662 = vld [vmem:[%s164 + $0x5a4] sm:$0xf]
      %v663 = vld [vmem:[%s164 + $0x5a8] sm:$0xf]
      %v664 = vld [vmem:[%s164 + $0x5ac] sm:$0xf]
      %v665 = vld [vmem:[%s164 + $0x5b0] sm:$0xf]
      %v666 = vld [vmem:[%s164 + $0x5b4] sm:$0xf]
      %v667 = vld [vmem:[%s164 + $0x5b8] sm:$0xf]
      %v668 = vld [vmem:[%s164 + $0x5bc] sm:$0xf]
      %v669 = vld [vmem:[%s164 + $0x5c0] sm:$0xf]
      %v670 = vld [vmem:[%s164 + $0x5c4] sm:$0xf]
      %v671 = vld [vmem:[%s164 + $0x5c8] sm:$0xf]
      %v672 = vld [vmem:[%s164 + $0x5cc] sm:$0xf]
      %v673 = vld [vmem:[%s164 + $0x5d0] sm:$0xf]
      %v674 = vld [vmem:[%s164 + $0x5d4] sm:$0xf]
      %v675 = vld [vmem:[%s164 + $0x5d8] sm:$0xf]
      %v676 = vld [vmem:[%s164 + $0x5dc] sm:$0xf]
      %v677 = vld [vmem:[%s164 + $0x5e0] sm:$0xf]
      %v678 = vld [vmem:[%s164 + $0x5e4] sm:$0xf]
      %v679 = vld [vmem:[%s164 + $0x5e8] sm:$0xf]
      %v680 = vld [vmem:[%s164 + $0x5ec] sm:$0xf]
      %v681 = vld [vmem:[%s164 + $0x5f0] sm:$0xf]
      %v682 = vld [vmem:[%s164 + $0x5f4] sm:$0xf]
      %v683 = vld [vmem:[%s164 + $0x5f8] sm:$0xf]
      %v684 = vld [vmem:[%s164 + $0x5fc] sm:$0xf]
      %v685 = vld [vmem:[%s164 + $0x600] sm:$0xf]
      %v686 = vld [vmem:[%s164 + $0x604] sm:$0xf]
      %v687 = vld [vmem:[%s164 + $0x608] sm:$0xf]
      %v688 = vld [vmem:[%s164 + $0x60c] sm:$0xf]
      %v689 = vld [vmem:[%s164 + $0x610] sm:$0xf]
      %v690 = vld [vmem:[%s164 + $0x614] sm:$0xf]
      %v691 = vld [vmem:[%s164 + $0x618] sm:$0xf]
      %v692 = vld [vmem:[%s164 + $0x61c] sm:$0xf]
      %v693 = vld [vmem:[%s164 + $0x620] sm:$0xf]
      %v694 = vld [vmem:[%s164 + $0x624] sm:$0xf]
      %v695 = vld [vmem:[%s164 + $0x628] sm:$0xf]
      %v696 = vld [vmem:[%s164 + $0x62c] sm:$0xf]
      %v697 = vld [vmem:[%s164 + $0x630] sm:$0xf]
      %v698 = vld [vmem:[%s164 + $0x634] sm:$0xf]
      %v699 = vld [vmem:[%s164 + $0x638] sm:$0xf]
      %v700 = vld [vmem:[%s164 + $0x63c] sm:$0xf]
      %v701 = vld [vmem:[%s164 + $0x640] sm:$0xf]
      %v702 = vld [vmem:[%s164 + $0x644] sm:$0xf]
      %v703 = vld [vmem:[%s164 + $0x648] sm:$0xf]
      %v704 = vld [vmem:[%s164 + $0x64c] sm:$0xf]
      %v705 = vld [vmem:[%s164 + $0x650] sm:$0xf]
      %v706 = vld [vmem:[%s164 + $0x654] sm:$0xf]
      %v707 = vld [vmem:[%s164 + $0x658] sm:$0xf]
      %v708 = vld [vmem:[%s164 + $0x65c] sm:$0xf]
      %v709 = vld [vmem:[%s164 + $0x660] sm:$0xf]
      %v710 = vld [vmem:[%s164 + $0x664] sm:$0xf]
      %v711 = vld [vmem:[%s164 + $0x668] sm:$0xf]
      %v712 = vld [vmem:[%s164 + $0x66c] sm:$0xf]
      %v713 = vld [vmem:[%s164 + $0x670] sm:$0xf]
      %v714 = vld [vmem:[%s164 + $0x674] sm:$0xf]
      %v715 = vld [vmem:[%s164 + $0x678] sm:$0xf]
      %v716 = vld [vmem:[%s164 + $0x67c] sm:$0xf]
      %v717 = vld [vmem:[%s164 + $0x680] sm:$0xf]
      %v718 = vld [vmem:[%s164 + $0x684] sm:$0xf]
      %v719 = vld [vmem:[%s164 + $0x688] sm:$0xf]
      %v720 = vld [vmem:[%s164 + $0x68c] sm:$0xf]
      %v721 = vld [vmem:[%s164 + $0x690] sm:$0xf]
      %v722 = vld [vmem:[%s164 + $0x694] sm:$0xf]
      %v723 = vld [vmem:[%s164 + $0x698] sm:$0xf]
      %v724 = vld [vmem:[%s164 + $0x69c] sm:$0xf]
      %v725 = vld [vmem:[%s164 + $0x6a0] sm:$0xf]
      %v726 = vld [vmem:[%s164 + $0x6a4] sm:$0xf]
      %v727 = vld [vmem:[%s164 + $0x6a8] sm:$0xf]
      %v728 = vld [vmem:[%s164 + $0x6ac] sm:$0xf]
      %v729 = vld [vmem:[%s164 + $0x6b0] sm:$0xf]
      %v730 = vld [vmem:[%s164 + $0x6b4] sm:$0xf]
      %v731 = vld [vmem:[%s164 + $0x6b8] sm:$0xf]
      %v732 = vld [vmem:[%s164 + $0x6bc] sm:$0xf]
      %v733 = vld [vmem:[%s164 + $0x6c0] sm:$0xf]
      %v734 = vld [vmem:[%s164 + $0x6c4] sm:$0xf]
      %v735 = vld [vmem:[%s164 + $0x6c8] sm:$0xf]
      %v736 = vld [vmem:[%s164 + $0x6cc] sm:$0xf]
      %v737 = vld [vmem:[%s164 + $0x6d0] sm:$0xf]
      %v738 = vld [vmem:[%s164 + $0x6d4] sm:$0xf]
      %v739 = vld [vmem:[%s164 + $0x6d8] sm:$0xf]
      %v740 = vld [vmem:[%s164 + $0x6dc] sm:$0xf]
      %v741 = vld [vmem:[%s164 + $0x6e0] sm:$0xf]
      %v742 = vld [vmem:[%s164 + $0x6e4] sm:$0xf]
      %v743 = vld [vmem:[%s164 + $0x6e8] sm:$0xf]
      %v744 = vld [vmem:[%s164 + $0x6ec] sm:$0xf]
      %v745 = vld [vmem:[%s164 + $0x6f0] sm:$0xf]
      %v746 = vld [vmem:[%s164 + $0x6f4] sm:$0xf]
      %v747 = vld [vmem:[%s164 + $0x6f8] sm:$0xf]
      %v748 = vld [vmem:[%s164 + $0x6fc] sm:$0xf]
      %v749 = vld [vmem:[%s164 + $0x700] sm:$0xf]
      %v750 = vld [vmem:[%s164 + $0x704] sm:$0xf]
      %v751 = vld [vmem:[%s164 + $0x708] sm:$0xf]
      %v752 = vld [vmem:[%s164 + $0x70c] sm:$0xf]
      %v753 = vld [vmem:[%s164 + $0x710] sm:$0xf]
      %v754 = vld [vmem:[%s164 + $0x714] sm:$0xf]
      %v755 = vld [vmem:[%s164 + $0x718] sm:$0xf]
      %v756 = vld [vmem:[%s164 + $0x71c] sm:$0xf]
      %v757 = vld [vmem:[%s164 + $0x720] sm:$0xf]
      %v758 = vld [vmem:[%s164 + $0x724] sm:$0xf]
      %v759 = vld [vmem:[%s164 + $0x728] sm:$0xf]
      %v760 = vld [vmem:[%s164 + $0x72c] sm:$0xf]
      %v761 = vld [vmem:[%s164 + $0x730] sm:$0xf]
      %v762 = vld [vmem:[%s164 + $0x734] sm:$0xf]
      %v763 = vld [vmem:[%s164 + $0x738] sm:$0xf]
      %v764 = vld [vmem:[%s164 + $0x73c] sm:$0xf]
      %v765 = vld [vmem:[%s164 + $0x740] sm:$0xf]
      %v766 = vld [vmem:[%s164 + $0x744] sm:$0xf]
      %v767 = vld [vmem:[%s164 + $0x748] sm:$0xf]
      %v768 = vld [vmem:[%s164 + $0x74c] sm:$0xf]
      %v769 = vld [vmem:[%s164 + $0x750] sm:$0xf]
      %v770 = vld [vmem:[%s164 + $0x754] sm:$0xf]
      %v771 = vld [vmem:[%s164 + $0x758] sm:$0xf]
      %v772 = vld [vmem:[%s164 + $0x75c] sm:$0xf]
      %v773 = vld [vmem:[%s164 + $0x760] sm:$0xf]
      %v774 = vld [vmem:[%s164 + $0x764] sm:$0xf]
      %v775 = vld [vmem:[%s164 + $0x768] sm:$0xf]
      %v776 = vld [vmem:[%s164 + $0x76c] sm:$0xf]
      %v777 = vld [vmem:[%s164 + $0x770] sm:$0xf]
      %v778 = vld [vmem:[%s164 + $0x774] sm:$0xf]
      %v779 = vld [vmem:[%s164 + $0x778] sm:$0xf]
      %v780 = vld [vmem:[%s164 + $0x77c] sm:$0xf]
      %v781 = vld [vmem:[%s164 + $0x780] sm:$0xf]
      %v782 = vld [vmem:[%s164 + $0x784] sm:$0xf]
      %v783 = vld [vmem:[%s164 + $0x788] sm:$0xf]
      %v784 = vld [vmem:[%s164 + $0x78c] sm:$0xf]
      %v785 = vld [vmem:[%s164 + $0x790] sm:$0xf]
      %v786 = vld [vmem:[%s164 + $0x794] sm:$0xf]
      %v787 = vld [vmem:[%s164 + $0x798] sm:$0xf]
      %v788 = vld [vmem:[%s164 + $0x79c] sm:$0xf]
      %v789 = vld [vmem:[%s164 + $0x7a0] sm:$0xf]
      %v790 = vld [vmem:[%s164 + $0x7a4] sm:$0xf]
      %v791 = vld [vmem:[%s164 + $0x7a8] sm:$0xf]
      %v792 = vld [vmem:[%s164 + $0x7ac] sm:$0xf]
      %v793 = vld [vmem:[%s164 + $0x7b0] sm:$0xf]
      %v794 = vld [vmem:[%s164 + $0x7b4] sm:$0xf]
      %v795 = vld [vmem:[%s164 + $0x7b8] sm:$0xf]
      %v796 = vld [vmem:[%s164 + $0x7bc] sm:$0xf]
      %v797 = vld [vmem:[%s164 + $0x7c0] sm:$0xf]
      %v798 = vld [vmem:[%s164 + $0x7c4] sm:$0xf]
      %v799 = vld [vmem:[%s164 + $0x7c8] sm:$0xf]
      %v800 = vld [vmem:[%s164 + $0x7cc] sm:$0xf]
      %v801 = vld [vmem:[%s164 + $0x7d0] sm:$0xf]
      %v802 = vld [vmem:[%s164 + $0x7d4] sm:$0xf]
      %v803 = vld [vmem:[%s164 + $0x7d8] sm:$0xf]
      %v804 = vld [vmem:[%s164 + $0x7dc] sm:$0xf]
      %v805 = vld [vmem:[%s164 + $0x7e0] sm:$0xf]
      %v806 = vld [vmem:[%s164 + $0x7e4] sm:$0xf]
      %v807 = vld [vmem:[%s164 + $0x7e8] sm:$0xf]
      %v808 = vld [vmem:[%s164 + $0x7ec] sm:$0xf]
      %v809 = vld [vmem:[%s164 + $0x7f0] sm:$0xf]
      %v810 = vld [vmem:[%s164 + $0x7f4] sm:$0xf]
      %v811 = vld [vmem:[%s164 + $0x7f8] sm:$0xf]
      %v812 = vld [vmem:[%s164 + $0x7fc] sm:$0xf]
      %v821 = vunpack.c.l.b16 %v301
      %v822 = vunpack.c.l.b16 %v302
      %v823 = vunpack.c.l.b16 %v303
      %v824 = vunpack.c.l.b16 %v304
      %v825 = vunpack.c.l.b16 %v305
      %v826 = vunpack.c.l.b16 %v306
      %v827 = vunpack.c.l.b16 %v307
      %v828 = vunpack.c.l.b16 %v308
      %v829 = vpack.c.b16 %v822, %v821
      %v830 = vpack.c.b16 %v824, %v823
      %v831 = vpack.c.b16 %v826, %v825
      %v832 = vpack.c.b16 %v828, %v827
      %vm837 = vcmask 523264
      %v839 = vsel %vm837, %v237, 0
      %841 = vmatprep.subr.bf16.mxu0 0
      %842 = vmatpush1.bf16.msra.mxu0 %v829
      %843 = vmatprep.subr.bf16.mxu0 0
      %844 = vmatpush1.bf16.msra.mxu0 %v830
      %845 = vmatprep.subr.bf16.mxu0 0
      %846 = vmatpush1.bf16.msra.mxu0 %v831
      %847 = vmatprep.subr.bf16.mxu0 0
      %848 = vmatpush1.bf16.msra.mxu0 %v832
      %849 = vmatprep.subr.bf16.mxu0 0
      %850 = vmatpush1.bf16.msra.mxu0 0
      %851 = vmatprep.subr.bf16.mxu0 0
      %852 = vmatpush1.bf16.msra.mxu0 0
      %853 = vmatprep.subr.bf16.mxu0 0
      %854 = vmatpush1.bf16.msra.mxu0 0
      %855 = vmatprep.subr.bf16.mxu0 0
      %856 = vmatpush1.bf16.msra.mxu0 0
      %857 = vmatprep.subr.bf16.mxu0 0
      %858 = vmatpush1.bf16.msra.mxu0 0
      %859 = vmatprep.subr.bf16.mxu0 0
      %860 = vmatpush1.bf16.msra.mxu0 0
      %861 = vmatprep.subr.bf16.mxu0 0
      %862 = vmatpush1.bf16.msra.mxu0 0
      %863 = vmatprep.subr.bf16.mxu0 0
      %864 = vmatpush1.bf16.msra.mxu0 0
      %865 = vmatprep.subr.bf16.mxu0 0
      %866 = vmatpush1.bf16.msra.mxu0 0
      %867 = vmatprep.subr.bf16.mxu0 0
      %868 = vmatpush1.bf16.msra.mxu0 0
      %869 = vmatprep.subr.bf16.mxu0 0
      %870 = vmatpush1.bf16.msra.mxu0 0
      %871 = vmatprep.subr.bf16.mxu0 0
      %872 = vmatpush1.bf16.msra.mxu0 0
      %873 = vmatprep.mubr.bf16.mxu0 0
      %874 = vmatmul.mubr.bf16.gmra.mrb[0].mxu0 %v839
      %v875 = vpop.f32.mrb[0].mxu0
      %v876 = vadd.f32 0.0, %v875
      %v877 = vpop.f32.mrb[0].mxu0
      %v878 = vpop.f32.mrb[0].mxu0
      %v879 = vpop.f32.mrb[0].mxu0
      %880 = vdwg.mxu0
      %v889 = vunpack.c.l.b16 %v309
      %v890 = vunpack.c.l.b16 %v310
      %v891 = vunpack.c.l.b16 %v311
      %v892 = vunpack.c.l.b16 %v312
      %v893 = vunpack.c.l.b16 %v313
      %v894 = vunpack.c.l.b16 %v314
      %v895 = vunpack.c.l.b16 %v315
      %v896 = vunpack.c.l.b16 %v316
      %v897 = vpack.c.b16 %v890, %v889
      %v898 = vpack.c.b16 %v892, %v891
      %v899 = vpack.c.b16 %v894, %v893
      %v900 = vpack.c.b16 %v896, %v895
      %v906 = vsel %vm837, %v238, 0
      %908 = vmatprep.subr.bf16.mxu0 0
      %909 = vmatpush1.bf16.msra.mxu0 %v897
      %910 = vmatprep.subr.bf16.mxu0 0
      %911 = vmatpush1.bf16.msra.mxu0 %v898
      %912 = vmatprep.subr.bf16.mxu0 0
      %913 = vmatpush1.bf16.msra.mxu0 %v899
      %914 = vmatprep.subr.bf16.mxu0 0
      %915 = vmatpush1.bf16.msra.mxu0 %v900
      %916 = vmatprep.subr.bf16.mxu0 0
      %917 = vmatpush1.bf16.msra.mxu0 0
      %918 = vmatprep.subr.bf16.mxu0 0
      %919 = vmatpush1.bf16.msra.mxu0 0
      %920 = vmatprep.subr.bf16.mxu0 0
      %921 = vmatpush1.bf16.msra.mxu0 0
      %922 = vmatprep.subr.bf16.mxu0 0
      %923 = vmatpush1.bf16.msra.mxu0 0
      %924 = vmatprep.subr.bf16.mxu0 0
      %925 = vmatpush1.bf16.msra.mxu0 0
      %926 = vmatprep.subr.bf16.mxu0 0
      %927 = vmatpush1.bf16.msra.mxu0 0
      %928 = vmatprep.subr.bf16.mxu0 0
      %929 = vmatpush1.bf16.msra.mxu0 0
      %930 = vmatprep.subr.bf16.mxu0 0
      %931 = vmatpush1.bf16.msra.mxu0 0
      %932 = vmatprep.subr.bf16.mxu0 0
      %933 = vmatpush1.bf16.msra.mxu0 0
      %934 = vmatprep.subr.bf16.mxu0 0
      %935 = vmatpush1.bf16.msra.mxu0 0
      %936 = vmatprep.subr.bf16.mxu0 0
      %937 = vmatpush1.bf16.msra.mxu0 0
      %938 = vmatprep.subr.bf16.mxu0 0
      %939 = vmatpush1.bf16.msra.mxu0 0
      %940 = vmatprep.mubr.bf16.mxu0 0
      %941 = vmatmul.mubr.bf16.gmra.mrb[0].mxu0 %v906
      %v942 = vpop.f32.mrb[0].mxu0
      %v943 = vadd.f32 0.0, %v942
      %v944 = vpop.f32.mrb[0].mxu0
      %v945 = vpop.f32.mrb[0].mxu0
      %v946 = vpop.f32.mrb[0].mxu0
      %947 = vdwg.mxu0
      %v956 = vunpack.c.l.b16 %v317
      %v957 = vunpack.c.l.b16 %v318
      %v958 = vunpack.c.l.b16 %v319
      %v959 = vunpack.c.l.b16 %v320
      %v960 = vunpack.c.l.b16 %v321
      %v961 = vunpack.c.l.b16 %v322
      %v962 = vunpack.c.l.b16 %v323
      %v963 = vunpack.c.l.b16 %v324
      %v964 = vpack.c.b16 %v957, %v956
      %v965 = vpack.c.b16 %v959, %v958
      %v966 = vpack.c.b16 %v961, %v960
      %v967 = vpack.c.b16 %v963, %v962
      %v973 = vsel %vm837, %v239, 0
      %975 = vmatprep.subr.bf16.mxu0 0
      %976 = vmatpush1.bf16.msra.mxu0 %v964
      %977 = vmatprep.subr.bf16.mxu0 0
      %978 = vmatpush1.bf16.msra.mxu0 %v965
      %979 = vmatprep.subr.bf16.mxu0 0
      %980 = vmatpush1.bf16.msra.mxu0 %v966
      %981 = vmatprep.subr.bf16.mxu0 0
      %982 = vmatpush1.bf16.msra.mxu0 %v967
      %983 = vmatprep.subr.bf16.mxu0 0
      %984 = vmatpush1.bf16.msra.mxu0 0
      %985 = vmatprep.subr.bf16.mxu0 0
      %986 = vmatpush1.bf16.msra.mxu0 0
      %987 = vmatprep.subr.bf16.mxu0 0
      %988 = vmatpush1.bf16.msra.mxu0 0
      %989 = vmatprep.subr.bf16.mxu0 0
      %990 = vmatpush1.bf16.msra.mxu0 0
      %991 = vmatprep.subr.bf16.mxu0 0
      %992 = vmatpush1.bf16.msra.mxu0 0
      %993 = vmatprep.subr.bf16.mxu0 0
      %994 = vmatpush1.bf16.msra.mxu0 0
      %995 = vmatprep.subr.bf16.mxu0 0
      %996 = vmatpush1.bf16.msra.mxu0 0
      %997 = vmatprep.subr.bf16.mxu0 0
      %998 = vmatpush1.bf16.msra.mxu0 0
      %999 = vmatprep.subr.bf16.mxu0 0
      %1000 = vmatpush1.bf16.msra.mxu0 0
      %1001 = vmatprep.subr.bf16.mxu0 0
      %1002 = vmatpush1.bf16.msra.mxu0 0
      %1003 = vmatprep.subr.bf16.mxu0 0
      %1004 = vmatpush1.bf16.msra.mxu0 0
      %1005 = vmatprep.subr.bf16.mxu0 0
      %1006 = vmatpush1.bf16.msra.mxu0 0
      %1007 = vmatprep.mubr.bf16.mxu0 0
      %1008 = vmatmul.mubr.bf16.gmra.mrb[0].mxu0 %v973
      %v1009 = vpop.f32.mrb[0].mxu0
      %v1010 = vadd.f32 0.0, %v1009
      %v1011 = vpop.f32.mrb[0].mxu0
      %v1012 = vpop.f32.mrb[0].mxu0
      %v1013 = vpop.f32.mrb[0].mxu0
      %1014 = vdwg.mxu0
      %v1023 = vunpack.c.l.b16 %v325
      %v1024 = vunpack.c.l.b16 %v326
      %v1025 = vunpack.c.l.b16 %v327
      %v1026 = vunpack.c.l.b16 %v328
      %v1027 = vunpack.c.l.b16 %v329
      %v1028 = vunpack.c.l.b16 %v330
      %v1029 = vunpack.c.l.b16 %v331
      %v1030 = vunpack.c.l.b16 %v332
      %v1031 = vpack.c.b16 %v1024, %v1023
      %v1032 = vpack.c.b16 %v1026, %v1025
      %v1033 = vpack.c.b16 %v1028, %v1027
      %v1034 = vpack.c.b16 %v1030, %v1029
      %v1040 = vsel %vm837, %v240, 0
      %1042 = vmatprep.subr.bf16.mxu0 0
      %1043 = vmatpush1.bf16.msra.mxu0 %v1031
      %1044 = vmatprep.subr.bf16.mxu0 0
      %1045 = vmatpush1.bf16.msra.mxu0 %v1032
      %1046 = vmatprep.subr.bf16.mxu0 0
      %1047 = vmatpush1.bf16.msra.mxu0 %v1033
      %1048 = vmatprep.subr.bf16.mxu0 0
      %1049 = vmatpush1.bf16.msra.mxu0 %v1034
      %1050 = vmatprep.subr.bf16.mxu0 0
      %1051 = vmatpush1.bf16.msra.mxu0 0
      %1052 = vmatprep.subr.bf16.mxu0 0
      %1053 = vmatpush1.bf16.msra.mxu0 0
      %1054 = vmatprep.subr.bf16.mxu0 0
      %1055 = vmatpush1.bf16.msra.mxu0 0
      %1056 = vmatprep.subr.bf16.mxu0 0
      %1057 = vmatpush1.bf16.msra.mxu0 0
      %1058 = vmatprep.subr.bf16.mxu0 0
      %1059 = vmatpush1.bf16.msra.mxu0 0
      %1060 = vmatprep.subr.bf16.mxu0 0
      %1061 = vmatpush1.bf16.msra.mxu0 0
      %1062 = vmatprep.subr.bf16.mxu0 0
      %1063 = vmatpush1.bf16.msra.mxu0 0
      %1064 = vmatprep.subr.bf16.mxu0 0
      %1065 = vmatpush1.bf16.msra.mxu0 0
      %1066 = vmatprep.subr.bf16.mxu0 0
      %1067 = vmatpush1.bf16.msra.mxu0 0
      %1068 = vmatprep.subr.bf16.mxu0 0
      %1069 = vmatpush1.bf16.msra.mxu0 0
      %1070 = vmatprep.subr.bf16.mxu0 0
      %1071 = vmatpush1.bf16.msra.mxu0 0
      %1072 = vmatprep.subr.bf16.mxu0 0
      %1073 = vmatpush1.bf16.msra.mxu0 0
      %1074 = vmatprep.mubr.bf16.mxu0 0
      %1075 = vmatmul.mubr.bf16.gmra.mrb[0].mxu0 %v1040
      %v1076 = vpop.f32.mrb[0].mxu0
      %v1077 = vadd.f32 0.0, %v1076
      %v1078 = vpop.f32.mrb[0].mxu0
      %v1079 = vpop.f32.mrb[0].mxu0
      %v1080 = vpop.f32.mrb[0].mxu0
      %1081 = vdwg.mxu0
      %v1090 = vunpack.c.l.b16 %v333
      %v1091 = vunpack.c.l.b16 %v334
      %v1092 = vunpack.c.l.b16 %v335
      %v1093 = vunpack.c.l.b16 %v336
      %v1094 = vunpack.c.l.b16 %v337
      %v1095 = vunpack.c.l.b16 %v338
      %v1096 = vunpack.c.l.b16 %v339
      %v1097 = vunpack.c.l.b16 %v340
      %v1098 = vpack.c.b16 %v1091, %v1090
      %v1099 = vpack.c.b16 %v1093, %v1092
      %v1100 = vpack.c.b16 %v1095, %v1094
      %v1101 = vpack.c.b16 %v1097, %v1096
      %v1107 = vsel %vm837, %v241, 0
      %1109 = vmatprep.subr.bf16.mxu0 0
      %1110 = vmatpush1.bf16.msra.mxu0 %v1098
      %1111 = vmatprep.subr.bf16.mxu0 0
      %1112 = vmatpush1.bf16.msra.mxu0 %v1099
      %1113 = vmatprep.subr.bf16.mxu0 0
      %1114 = vmatpush1.bf16.msra.mxu0 %v1100
      %1115 = vmatprep.subr.bf16.mxu0 0
      %1116 = vmatpush1.bf16.msra.mxu0 %v1101
      %1117 = vmatprep.subr.bf16.mxu0 0
      %1118 = vmatpush1.bf16.msra.mxu0 0
      %1119 = vmatprep.subr.bf16.mxu0 0
      %1120 = vmatpush1.bf16.msra.mxu0 0
      %1121 = vmatprep.subr.bf16.mxu0 0
      %1122 = vmatpush1.bf16.msra.mxu0 0
      %1123 = vmatprep.subr.bf16.mxu0 0
      %1124 = vmatpush1.bf16.msra.mxu0 0
      %1125 = vmatprep.subr.bf16.mxu0 0
      %1126 = vmatpush1.bf16.msra.mxu0 0
      %1127 = vmatprep.subr.bf16.mxu0 0
      %1128 = vmatpush1.bf16.msra.mxu0 0
      %1129 = vmatprep.subr.bf16.mxu0 0
      %1130 = vmatpush1.bf16.msra.mxu0 0
      %1131 = vmatprep.subr.bf16.mxu0 0
      %1132 = vmatpush1.bf16.msra.mxu0 0
      %1133 = vmatprep.subr.bf16.mxu0 0
      %1134 = vmatpush1.bf16.msra.mxu0 0
      %1135 = vmatprep.subr.bf16.mxu0 0
      %1136 = vmatpush1.bf16.msra.mxu0 0
      %1137 = vmatprep.subr.bf16.mxu0 0
      %1138 = vmatpush1.bf16.msra.mxu0 0
      %1139 = vmatprep.subr.bf16.mxu0 0
      %1140 = vmatpush1.bf16.msra.mxu0 0
      %1141 = vmatprep.mubr.bf16.mxu0 0
      %1142 = vmatmul.mubr.bf16.gmra.mrb[0].mxu0 %v1107
      %v1143 = vpop.f32.mrb[0].mxu0
      %v1144 = vadd.f32 0.0, %v1143
      %v1145 = vpop.f32.mrb[0].mxu0
      %v1146 = vpop.f32.mrb[0].mxu0
      %v1147 = vpop.f32.mrb[0].mxu0
      %1148 = vdwg.mxu0
      %v1157 = vunpack.c.l.b16 %v341
      %v1158 = vunpack.c.l.b16 %v342
      %v1159 = vunpack.c.l.b16 %v343
      %v1160 = vunpack.c.l.b16 %v344
      %v1161 = vunpack.c.l.b16 %v345
      %v1162 = vunpack.c.l.b16 %v346
      %v1163 = vunpack.c.l.b16 %v347
      %v1164 = vunpack.c.l.b16 %v348
      %v1165 = vpack.c.b16 %v1158, %v1157
      %v1166 = vpack.c.b16 %v1160, %v1159
      %v1167 = vpack.c.b16 %v1162, %v1161
      %v1168 = vpack.c.b16 %v1164, %v1163
      %v1174 = vsel %vm837, %v242, 0
      %1176 = vmatprep.subr.bf16.mxu0 0
      %1177 = vmatpush1.bf16.msra.mxu0 %v1165
      %1178 = vmatprep.subr.bf16.mxu0 0
      %1179 = vmatpush1.bf16.msra.mxu0 %v1166
      %1180 = vmatprep.subr.bf16.mxu0 0
      %1181 = vmatpush1.bf16.msra.mxu0 %v1167
      %1182 = vmatprep.subr.bf16.mxu0 0
      %1183 = vmatpush1.bf16.msra.mxu0 %v1168
      %1184 = vmatprep.subr.bf16.mxu0 0
      %1185 = vmatpush1.bf16.msra.mxu0 0
      %1186 = vmatprep.subr.bf16.mxu0 0
      %1187 = vmatpush1.bf16.msra.mxu0 0
      %1188 = vmatprep.subr.bf16.mxu0 0
      %1189 = vmatpush1.bf16.msra.mxu0 0
      %1190 = vmatprep.subr.bf16.mxu0 0
      %1191 = vmatpush1.bf16.msra.mxu0 0
      %1192 = vmatprep.subr.bf16.mxu0 0
      %1193 = vmatpush1.bf16.msra.mxu0 0
      %1194 = vmatprep.subr.bf16.mxu0 0
      %1195 = vmatpush1.bf16.msra.mxu0 0
      %1196 = vmatprep.subr.bf16.mxu0 0
      %1197 = vmatpush1.bf16.msra.mxu0 0
      %1198 = vmatprep.subr.bf16.mxu0 0
      %1199 = vmatpush1.bf16.msra.mxu0 0
      %1200 = vmatprep.subr.bf16.mxu0 0
      %1201 = vmatpush1.bf16.msra.mxu0 0
      %1202 = vmatprep.subr.bf16.mxu0 0
      %1203 = vmatpush1.bf16.msra.mxu0 0
      %1204 = vmatprep.subr.bf16.mxu0 0
      %1205 = vmatpush1.bf16.msra.mxu0 0
      %1206 = vmatprep.subr.bf16.mxu0 0
      %1207 = vmatpush1.bf16.msra.mxu0 0
      %1208 = vmatprep.mubr.bf16.mxu0 0
      %1209 = vmatmul.mubr.bf16.gmra.mrb[0].mxu0 %v1174
      %v1210 = vpop.f32.mrb[0].mxu0
      %v1211 = vadd.f32 0.0, %v1210
      %v1212 = vpop.f32.mrb[0].mxu0
      %v1213 = vpop.f32.mrb[0].mxu0
      %v1214 = vpop.f32.mrb[0].mxu0
      %1215 = vdwg.mxu0
      %v1224 = vunpack.c.l.b16 %v349
      %v1225 = vunpack.c.l.b16 %v350
      %v1226 = vunpack.c.l.b16 %v351
      %v1227 = vunpack.c.l.b16 %v352
      %v1228 = vunpack.c.l.b16 %v353
      %v1229 = vunpack.c.l.b16 %v354
      %v1230 = vunpack.c.l.b16 %v355
      %v1231 = vunpack.c.l.b16 %v356
      %v1232 = vpack.c.b16 %v1225, %v1224
      %v1233 = vpack.c.b16 %v1227, %v1226
      %v1234 = vpack.c.b16 %v1229, %v1228
      %v1235 = vpack.c.b16 %v1231, %v1230
      %v1241 = vsel %vm837, %v243, 0
      %1243 = vmatprep.subr.bf16.mxu0 0
      %1244 = vmatpush1.bf16.msra.mxu0 %v1232
      %1245 = vmatprep.subr.bf16.mxu0 0
      %1246 = vmatpush1.bf16.msra.mxu0 %v1233
      %1247 = vmatprep.subr.bf16.mxu0 0
      %1248 = vmatpush1.bf16.msra.mxu0 %v1234
      %1249 = vmatprep.subr.bf16.mxu0 0
      %1250 = vmatpush1.bf16.msra.mxu0 %v1235
      %1251 = vmatprep.subr.bf16.mxu0 0
      %1252 = vmatpush1.bf16.msra.mxu0 0
      %1253 = vmatprep.subr.bf16.mxu0 0
      %1254 = vmatpush1.bf16.msra.mxu0 0
      %1255 = vmatprep.subr.bf16.mxu0 0
      %1256 = vmatpush1.bf16.msra.mxu0 0
      %1257 = vmatprep.subr.bf16.mxu0 0
      %1258 = vmatpush1.bf16.msra.mxu0 0
      %1259 = vmatprep.subr.bf16.mxu0 0
      %1260 = vmatpush1.bf16.msra.mxu0 0
      %1261 = vmatprep.subr.bf16.mxu0 0
      %1262 = vmatpush1.bf16.msra.mxu0 0
      %1263 = vmatprep.subr.bf16.mxu0 0
      %1264 = vmatpush1.bf16.msra.mxu0 0
      %1265 = vmatprep.subr.bf16.mxu0 0
      %1266 = vmatpush1.bf16.msra.mxu0 0
      %1267 = vmatprep.subr.bf16.mxu0 0
      %1268 = vmatpush1.bf16.msra.mxu0 0
      %1269 = vmatprep.subr.bf16.mxu0 0
      %1270 = vmatpush1.bf16.msra.mxu0 0
      %1271 = vmatprep.subr.bf16.mxu0 0
      %1272 = vmatpush1.bf16.msra.mxu0 0
      %1273 = vmatprep.subr.bf16.mxu0 0
      %1274 = vmatpush1.bf16.msra.mxu0 0
      %1275 = vmatprep.mubr.bf16.mxu0 0
      %1276 = vmatmul.mubr.bf16.gmra.mrb[0].mxu0 %v1241
      %v1277 = vpop.f32.mrb[0].mxu0
      %v1278 = vadd.f32 0.0, %v1277
      %v1279 = vpop.f32.mrb[0].mxu0
      %v1280 = vpop.f32.mrb[0].mxu0
      %v1281 = vpop.f32.mrb[0].mxu0
      %1282 = vdwg.mxu0
      %v1291 = vunpack.c.l.b16 %v357
      %v1292 = vunpack.c.l.b16 %v358
      %v1293 = vunpack.c.l.b16 %v359
      %v1294 = vunpack.c.l.b16 %v360
      %v1295 = vunpack.c.l.b16 %v361
      %v1296 = vunpack.c.l.b16 %v362
      %v1297 = vunpack.c.l.b16 %v363
      %v1298 = vunpack.c.l.b16 %v364
      %v1299 = vpack.c.b16 %v1292, %v1291
      %v1300 = vpack.c.b16 %v1294, %v1293
      %v1301 = vpack.c.b16 %v1296, %v1295
      %v1302 = vpack.c.b16 %v1298, %v1297
      %v1308 = vsel %vm837, %v244, 0
      %1310 = vmatprep.subr.bf16.mxu0 0
      %1311 = vmatpush1.bf16.msra.mxu0 %v1299
      %1312 = vmatprep.subr.bf16.mxu0 0
      %1313 = vmatpush1.bf16.msra.mxu0 %v1300
      %1314 = vmatprep.subr.bf16.mxu0 0
      %1315 = vmatpush1.bf16.msra.mxu0 %v1301
      %1316 = vmatprep.subr.bf16.mxu0 0
      %1317 = vmatpush1.bf16.msra.mxu0 %v1302
      %1318 = vmatprep.subr.bf16.mxu0 0
      %1319 = vmatpush1.bf16.msra.mxu0 0
      %1320 = vmatprep.subr.bf16.mxu0 0
      %1321 = vmatpush1.bf16.msra.mxu0 0
      %1322 = vmatprep.subr.bf16.mxu0 0
      %1323 = vmatpush1.bf16.msra.mxu0 0
      %1324 = vmatprep.subr.bf16.mxu0 0
      %1325 = vmatpush1.bf16.msra.mxu0 0
      %1326 = vmatprep.subr.bf16.mxu0 0
      %1327 = vmatpush1.bf16.msra.mxu0 0
      %1328 = vmatprep.subr.bf16.mxu0 0
      %1329 = vmatpush1.bf16.msra.mxu0 0
      %1330 = vmatprep.subr.bf16.mxu0 0
      %1331 = vmatpush1.bf16.msra.mxu0 0
      %1332 = vmatprep.subr.bf16.mxu0 0
      %1333 = vmatpush1.bf16.msra.mxu0 0
      %1334 = vmatprep.subr.bf16.mxu0 0
      %1335 = vmatpush1.bf16.msra.mxu0 0
      %1336 = vmatprep.subr.bf16.mxu0 0
      %1337 = vmatpush1.bf16.msra.mxu0 0
      %1338 = vmatprep.subr.bf16.mxu0 0
      %1339 = vmatpush1.bf16.msra.mxu0 0
      %1340 = vmatprep.subr.bf16.mxu0 0
      %1341 = vmatpush1.bf16.msra.mxu0 0
      %1342 = vmatprep.mubr.bf16.mxu0 0
      %1343 = vmatmul.mubr.bf16.gmra.mrb[0].mxu0 %v1308
      %v1344 = vpop.f32.mrb[0].mxu0
      %v1345 = vadd.f32 0.0, %v1344
      %v1346 = vpop.f32.mrb[0].mxu0
      %v1347 = vpop.f32.mrb[0].mxu0
      %v1348 = vpop.f32.mrb[0].mxu0
      %1349 = vdwg.mxu0
      %v1358 = vunpack.c.l.b16 %v365
      %v1359 = vunpack.c.l.b16 %v366
      %v1360 = vunpack.c.l.b16 %v367
      %v1361 = vunpack.c.l.b16 %v368
      %v1362 = vunpack.c.l.b16 %v369
      %v1363 = vunpack.c.l.b16 %v370
      %v1364 = vunpack.c.l.b16 %v371
      %v1365 = vunpack.c.l.b16 %v372
      %v1366 = vpack.c.b16 %v1359, %v1358
      %v1367 = vpack.c.b16 %v1361, %v1360
      %v1368 = vpack.c.b16 %v1363, %v1362
      %v1369 = vpack.c.b16 %v1365, %v1364
      %v1375 = vsel %vm837, %v245, 0
      %1377 = vmatprep.subr.bf16.mxu0 0
      %1378 = vmatpush1.bf16.msra.mxu0 %v1366
      %1379 = vmatprep.subr.bf16.mxu0 0
      %1380 = vmatpush1.bf16.msra.mxu0 %v1367
      %1381 = vmatprep.subr.bf16.mxu0 0
      %1382 = vmatpush1.bf16.msra.mxu0 %v1368
      %1383 = vmatprep.subr.bf16.mxu0 0
      %1384 = vmatpush1.bf16.msra.mxu0 %v1369
      %1385 = vmatprep.subr.bf16.mxu0 0
      %1386 = vmatpush1.bf16.msra.mxu0 0
      %1387 = vmatprep.subr.bf16.mxu0 0
      %1388 = vmatpush1.bf16.msra.mxu0 0
      %1389 = vmatprep.subr.bf16.mxu0 0
      %1390 = vmatpush1.bf16.msra.mxu0 0
      %1391 = vmatprep.subr.bf16.mxu0 0
      %1392 = vmatpush1.bf16.msra.mxu0 0
      %1393 = vmatprep.subr.bf16.mxu0 0
      %1394 = vmatpush1.bf16.msra.mxu0 0
      %1395 = vmatprep.subr.bf16.mxu0 0
      %1396 = vmatpush1.bf16.msra.mxu0 0
      %1397 = vmatprep.subr.bf16.mxu0 0
      %1398 = vmatpush1.bf16.msra.mxu0 0
      %1399 = vmatprep.subr.bf16.mxu0 0
      %1400 = vmatpush1.bf16.msra.mxu0 0
      %1401 = vmatprep.subr.bf16.mxu0 0
      %1402 = vmatpush1.bf16.msra.mxu0 0
      %1403 = vmatprep.subr.bf16.mxu0 0
      %1404 = vmatpush1.bf16.msra.mxu0 0
      %1405 = vmatprep.subr.bf16.mxu0 0
      %1406 = vmatpush1.bf16.msra.mxu0 0
      %1407 = vmatprep.subr.bf16.mxu0 0
      %1408 = vmatpush1.bf16.msra.mxu0 0
      %1409 = vmatprep.mubr.bf16.mxu0 0
      %1410 = vmatmul.mubr.bf16.gmra.mrb[0].mxu0 %v1375
      %v1411 = vpop.f32.mrb[0].mxu0
      %v1412 = vadd.f32 0.0, %v1411
      %v1413 = vpop.f32.mrb[0].mxu0
      %v1414 = vpop.f32.mrb[0].mxu0
      %v1415 = vpop.f32.mrb[0].mxu0
      %1416 = vdwg.mxu0
      %v1425 = vunpack.c.l.b16 %v373
      %v1426 = vunpack.c.l.b16 %v374
      %v1427 = vunpack.c.l.b16 %v375
      %v1428 = vunpack.c.l.b16 %v376
      %v1429 = vunpack.c.l.b16 %v377
      %v1430 = vunpack.c.l.b16 %v378
      %v1431 = vunpack.c.l.b16 %v379
      %v1432 = vunpack.c.l.b16 %v380
      %v1433 = vpack.c.b16 %v1426, %v1425
      %v1434 = vpack.c.b16 %v1428, %v1427
      %v1435 = vpack.c.b16 %v1430, %v1429
      %v1436 = vpack.c.b16 %v1432, %v1431
      %v1442 = vsel %vm837, %v246, 0
      %1444 = vmatprep.subr.bf16.mxu0 0
      %1445 = vmatpush1.bf16.msra.mxu0 %v1433
      %1446 = vmatprep.subr.bf16.mxu0 0
      %1447 = vmatpush1.bf16.msra.mxu0 %v1434
      %1448 = vmatprep.subr.bf16.mxu0 0
      %1449 = vmatpush1.bf16.msra.mxu0 %v1435
      %1450 = vmatprep.subr.bf16.mxu0 0
      %1451 = vmatpush1.bf16.msra.mxu0 %v1436
      %1452 = vmatprep.subr.bf16.mxu0 0
      %1453 = vmatpush1.bf16.msra.mxu0 0
      %1454 = vmatprep.subr.bf16.mxu0 0
      %1455 = vmatpush1.bf16.msra.mxu0 0
      %1456 = vmatprep.subr.bf16.mxu0 0
      %1457 = vmatpush1.bf16.msra.mxu0 0
      %1458 = vmatprep.subr.bf16.mxu0 0
      %1459 = vmatpush1.bf16.msra.mxu0 0
      %1460 = vmatprep.subr.bf16.mxu0 0
      %1461 = vmatpush1.bf16.msra.mxu0 0
      %1462 = vmatprep.subr.bf16.mxu0 0
      %1463 = vmatpush1.bf16.msra.mxu0 0
      %1464 = vmatprep.subr.bf16.mxu0 0
      %1465 = vmatpush1.bf16.msra.mxu0 0
      %1466 = vmatprep.subr.bf16.mxu0 0
      %1467 = vmatpush1.bf16.msra.mxu0 0
      %1468 = vmatprep.subr.bf16.mxu0 0
      %1469 = vmatpush1.bf16.msra.mxu0 0
      %1470 = vmatprep.subr.bf16.mxu0 0
      %1471 = vmatpush1.bf16.msra.mxu0 0
      %1472 = vmatprep.subr.bf16.mxu0 0
      %1473 = vmatpush1.bf16.msra.mxu0 0
      %1474 = vmatprep.subr.bf16.mxu0 0
      %1475 = vmatpush1.bf16.msra.mxu0 0
      %1476 = vmatprep.mubr.bf16.mxu0 0
      %1477 = vmatmul.mubr.bf16.gmra.mrb[0].mxu0 %v1442
      %v1478 = vpop.f32.mrb[0].mxu0
      %v1479 = vadd.f32 0.0, %v1478
      %v1480 = vpop.f32.mrb[0].mxu0
      %v1481 = vpop.f32.mrb[0].mxu0
      %v1482 = vpop.f32.mrb[0].mxu0
      %1483 = vdwg.mxu0
      %v1492 = vunpack.c.l.b16 %v381
      %v1493 = vunpack.c.l.b16 %v382
      %v1494 = vunpack.c.l.b16 %v383
      %v1495 = vunpack.c.l.b16 %v384
      %v1496 = vunpack.c.l.b16 %v385
      %v1497 = vunpack.c.l.b16 %v386
      %v1498 = vunpack.c.l.b16 %v387
      %v1499 = vunpack.c.l.b16 %v388
      %v1500 = vpack.c.b16 %v1493, %v1492
      %v1501 = vpack.c.b16 %v1495, %v1494
      %v1502 = vpack.c.b16 %v1497, %v1496
      %v1503 = vpack.c.b16 %v1499, %v1498
      %v1509 = vsel %vm837, %v247, 0
      %1511 = vmatprep.subr.bf16.mxu0 0
      %1512 = vmatpush1.bf16.msra.mxu0 %v1500
      %1513 = vmatprep.subr.bf16.mxu0 0
      %1514 = vmatpush1.bf16.msra.mxu0 %v1501
      %1515 = vmatprep.subr.bf16.mxu0 0
      %1516 = vmatpush1.bf16.msra.mxu0 %v1502
      %1517 = vmatprep.subr.bf16.mxu0 0
      %1518 = vmatpush1.bf16.msra.mxu0 %v1503
      %1519 = vmatprep.subr.bf16.mxu0 0
      %1520 = vmatpush1.bf16.msra.mxu0 0
      %1521 = vmatprep.subr.bf16.mxu0 0
      %1522 = vmatpush1.bf16.msra.mxu0 0
      %1523 = vmatprep.subr.bf16.mxu0 0
      %1524 = vmatpush1.bf16.msra.mxu0 0
      %1525 = vmatprep.subr.bf16.mxu0 0
      %1526 = vmatpush1.bf16.msra.mxu0 0
      %1527 = vmatprep.subr.bf16.mxu0 0
      %1528 = vmatpush1.bf16.msra.mxu0 0
      %1529 = vmatprep.subr.bf16.mxu0 0
      %1530 = vmatpush1.bf16.msra.mxu0 0
      %1531 = vmatprep.subr.bf16.mxu0 0
      %1532 = vmatpush1.bf16.msra.mxu0 0
      %1533 = vmatprep.subr.bf16.mxu0 0
      %1534 = vmatpush1.bf16.msra.mxu0 0
      %1535 = vmatprep.subr.bf16.mxu0 0
      %1536 = vmatpush1.bf16.msra.mxu0 0
      %1537 = vmatprep.subr.bf16.mxu0 0
      %1538 = vmatpush1.bf16.msra.mxu0 0
      %1539 = vmatprep.subr.bf16.mxu0 0
      %1540 = vmatpush1.bf16.msra.mxu0 0
      %1541 = vmatprep.subr.bf16.mxu0 0
      %1542 = vmatpush1.bf16.msra.mxu0 0
      %1543 = vmatprep.mubr.bf16.mxu0 0
      %1544 = vmatmul.mubr.bf16.gmra.mrb[0].mxu0 %v1509
      %v1545 = vpop.f32.mrb[0].mxu0
      %v1546 = vadd.f32 0.0, %v1545
      %v1547 = vpop.f32.mrb[0].mxu0
      %v1548 = vpop.f32.mrb[0].mxu0
      %v1549 = vpop.f32.mrb[0].mxu0
      %1550 = vdwg.mxu0
      %v1559 = vunpack.c.l.b16 %v389
      %v1560 = vunpack.c.l.b16 %v390
      %v1561 = vunpack.c.l.b16 %v391
      %v1562 = vunpack.c.l.b16 %v392
      %v1563 = vunpack.c.l.b16 %v393
      %v1564 = vunpack.c.l.b16 %v394
      %v1565 = vunpack.c.l.b16 %v395
      %v1566 = vunpack.c.l.b16 %v396
      %v1567 = vpack.c.b16 %v1560, %v1559
      %v1568 = vpack.c.b16 %v1562, %v1561
      %v1569 = vpack.c.b16 %v1564, %v1563
      %v1570 = vpack.c.b16 %v1566, %v1565
      %v1576 = vsel %vm837, %v248, 0
      %1578 = vmatprep.subr.bf16.mxu0 0
      %1579 = vmatpush1.bf16.msra.mxu0 %v1567
      %1580 = vmatprep.subr.bf16.mxu0 0
      %1581 = vmatpush1.bf16.msra.mxu0 %v1568
      %1582 = vmatprep.subr.bf16.mxu0 0
      %1583 = vmatpush1.bf16.msra.mxu0 %v1569
      %1584 = vmatprep.subr.bf16.mxu0 0
      %1585 = vmatpush1.bf16.msra.mxu0 %v1570
      %1586 = vmatprep.subr.bf16.mxu0 0
      %1587 = vmatpush1.bf16.msra.mxu0 0
      %1588 = vmatprep.subr.bf16.mxu0 0
      %1589 = vmatpush1.bf16.msra.mxu0 0
      %1590 = vmatprep.subr.bf16.mxu0 0
      %1591 = vmatpush1.bf16.msra.mxu0 0
      %1592 = vmatprep.subr.bf16.mxu0 0
      %1593 = vmatpush1.bf16.msra.mxu0 0
      %1594 = vmatprep.subr.bf16.mxu0 0
      %1595 = vmatpush1.bf16.msra.mxu0 0
      %1596 = vmatprep.subr.bf16.mxu0 0
      %1597 = vmatpush1.bf16.msra.mxu0 0
      %1598 = vmatprep.subr.bf16.mxu0 0
      %1599 = vmatpush1.bf16.msra.mxu0 0
      %1600 = vmatprep.subr.bf16.mxu0 0
      %1601 = vmatpush1.bf16.msra.mxu0 0
      %1602 = vmatprep.subr.bf16.mxu0 0
      %1603 = vmatpush1.bf16.msra.mxu0 0
      %1604 = vmatprep.subr.bf16.mxu0 0
      %1605 = vmatpush1.bf16.msra.mxu0 0
      %1606 = vmatprep.subr.bf16.mxu0 0
      %1607 = vmatpush1.bf16.msra.mxu0 0
      %1608 = vmatprep.subr.bf16.mxu0 0
      %1609 = vmatpush1.bf16.msra.mxu0 0
      %1610 = vmatprep.mubr.bf16.mxu0 0
      %1611 = vmatmul.mubr.bf16.gmra.mrb[0].mxu0 %v1576
      %v1612 = vpop.f32.mrb[0].mxu0
      %v1613 = vadd.f32 0.0, %v1612
      %v1614 = vpop.f32.mrb[0].mxu0
      %v1615 = vpop.f32.mrb[0].mxu0
      %v1616 = vpop.f32.mrb[0].mxu0
      %1617 = vdwg.mxu0
      %v1626 = vunpack.c.l.b16 %v397
      %v1627 = vunpack.c.l.b16 %v398
      %v1628 = vunpack.c.l.b16 %v399
      %v1629 = vunpack.c.l.b16 %v400
      %v1630 = vunpack.c.l.b16 %v401
      %v1631 = vunpack.c.l.b16 %v402
      %v1632 = vunpack.c.l.b16 %v403
      %v1633 = vunpack.c.l.b16 %v404
      %v1634 = vpack.c.b16 %v1627, %v1626
      %v1635 = vpack.c.b16 %v1629, %v1628
      %v1636 = vpack.c.b16 %v1631, %v1630
      %v1637 = vpack.c.b16 %v1633, %v1632
      %v1643 = vsel %vm837, %v249, 0
      %1645 = vmatprep.subr.bf16.mxu0 0
      %1646 = vmatpush1.bf16.msra.mxu0 %v1634
      %1647 = vmatprep.subr.bf16.mxu0 0
      %1648 = vmatpush1.bf16.msra.mxu0 %v1635
      %1649 = vmatprep.subr.bf16.mxu0 0
      %1650 = vmatpush1.bf16.msra.mxu0 %v1636
      %1651 = vmatprep.subr.bf16.mxu0 0
      %1652 = vmatpush1.bf16.msra.mxu0 %v1637
      %1653 = vmatprep.subr.bf16.mxu0 0
      %1654 = vmatpush1.bf16.msra.mxu0 0
      %1655 = vmatprep.subr.bf16.mxu0 0
      %1656 = vmatpush1.bf16.msra.mxu0 0
      %1657 = vmatprep.subr.bf16.mxu0 0
      %1658 = vmatpush1.bf16.msra.mxu0 0
      %1659 = vmatprep.subr.bf16.mxu0 0
      %1660 = vmatpush1.bf16.msra.mxu0 0
      %1661 = vmatprep.subr.bf16.mxu0 0
      %1662 = vmatpush1.bf16.msra.mxu0 0
      %1663 = vmatprep.subr.bf16.mxu0 0
      %1664 = vmatpush1.bf16.msra.mxu0 0
      %1665 = vmatprep.subr.bf16.mxu0 0
      %1666 = vmatpush1.bf16.msra.mxu0 0
      %1667 = vmatprep.subr.bf16.mxu0 0
      %1668 = vmatpush1.bf16.msra.mxu0 0
      %1669 = vmatprep.subr.bf16.mxu0 0
      %1670 = vmatpush1.bf16.msra.mxu0 0
      %1671 = vmatprep.subr.bf16.mxu0 0
      %1672 = vmatpush1.bf16.msra.mxu0 0
      %1673 = vmatprep.subr.bf16.mxu0 0
      %1674 = vmatpush1.bf16.msra.mxu0 0
      %1675 = vmatprep.subr.bf16.mxu0 0
      %1676 = vmatpush1.bf16.msra.mxu0 0
      %1677 = vmatprep.mubr.bf16.mxu0 0
      %1678 = vmatmul.mubr.bf16.gmra.mrb[0].mxu0 %v1643
      %v1679 = vpop.f32.mrb[0].mxu0
      %v1680 = vadd.f32 0.0, %v1679
      %v1681 = vpop.f32.mrb[0].mxu0
      %v1682 = vpop.f32.mrb[0].mxu0
      %v1683 = vpop.f32.mrb[0].mxu0
      %1684 = vdwg.mxu0
      %v1693 = vunpack.c.l.b16 %v405
      %v1694 = vunpack.c.l.b16 %v406
      %v1695 = vunpack.c.l.b16 %v407
      %v1696 = vunpack.c.l.b16 %v408
      %v1697 = vunpack.c.l.b16 %v409
      %v1698 = vunpack.c.l.b16 %v410
      %v1699 = vunpack.c.l.b16 %v411
      %v1700 = vunpack.c.l.b16 %v412
      %v1701 = vpack.c.b16 %v1694, %v1693
      %v1702 = vpack.c.b16 %v1696, %v1695
      %v1703 = vpack.c.b16 %v1698, %v1697
      %v1704 = vpack.c.b16 %v1700, %v1699
      %v1710 = vsel %vm837, %v250, 0
      %1712 = vmatprep.subr.bf16.mxu0 0
      %1713 = vmatpush1.bf16.msra.mxu0 %v1701
      %1714 = vmatprep.subr.bf16.mxu0 0
      %1715 = vmatpush1.bf16.msra.mxu0 %v1702
      %1716 = vmatprep.subr.bf16.mxu0 0
      %1717 = vmatpush1.bf16.msra.mxu0 %v1703
      %1718 = vmatprep.subr.bf16.mxu0 0
      %1719 = vmatpush1.bf16.msra.mxu0 %v1704
      %1720 = vmatprep.subr.bf16.mxu0 0
      %1721 = vmatpush1.bf16.msra.mxu0 0
      %1722 = vmatprep.subr.bf16.mxu0 0
      %1723 = vmatpush1.bf16.msra.mxu0 0
      %1724 = vmatprep.subr.bf16.mxu0 0
      %1725 = vmatpush1.bf16.msra.mxu0 0
      %1726 = vmatprep.subr.bf16.mxu0 0
      %1727 = vmatpush1.bf16.msra.mxu0 0
      %1728 = vmatprep.subr.bf16.mxu0 0
      %1729 = vmatpush1.bf16.msra.mxu0 0
      %1730 = vmatprep.subr.bf16.mxu0 0
      %1731 = vmatpush1.bf16.msra.mxu0 0
      %1732 = vmatprep.subr.bf16.mxu0 0
      %1733 = vmatpush1.bf16.msra.mxu0 0
      %1734 = vmatprep.subr.bf16.mxu0 0
      %1735 = vmatpush1.bf16.msra.mxu0 0
      %1736 = vmatprep.subr.bf16.mxu0 0
      %1737 = vmatpush1.bf16.msra.mxu0 0
      %1738 = vmatprep.subr.bf16.mxu0 0
      %1739 = vmatpush1.bf16.msra.mxu0 0
      %1740 = vmatprep.subr.bf16.mxu0 0
      %1741 = vmatpush1.bf16.msra.mxu0 0
      %1742 = vmatprep.subr.bf16.mxu0 0
      %1743 = vmatpush1.bf16.msra.mxu0 0
      %1744 = vmatprep.mubr.bf16.mxu0 0
      %1745 = vmatmul.mubr.bf16.gmra.mrb[0].mxu0 %v1710
      %v1746 = vpop.f32.mrb[0].mxu0
      %v1747 = vadd.f32 0.0, %v1746
      %v1748 = vpop.f32.mrb[0].mxu0
      %v1749 = vpop.f32.mrb[0].mxu0
      %v1750 = vpop.f32.mrb[0].mxu0
      %1751 = vdwg.mxu0
      %v1760 = vunpack.c.l.b16 %v413
      %v1761 = vunpack.c.l.b16 %v414
      %v1762 = vunpack.c.l.b16 %v415
      %v1763 = vunpack.c.l.b16 %v416
      %v1764 = vunpack.c.l.b16 %v417
      %v1765 = vunpack.c.l.b16 %v418
      %v1766 = vunpack.c.l.b16 %v419
      %v1767 = vunpack.c.l.b16 %v420
      %v1768 = vpack.c.b16 %v1761, %v1760
      %v1769 = vpack.c.b16 %v1763, %v1762
      %v1770 = vpack.c.b16 %v1765, %v1764
      %v1771 = vpack.c.b16 %v1767, %v1766
      %v1777 = vsel %vm837, %v251, 0
      %1779 = vmatprep.subr.bf16.mxu0 0
      %1780 = vmatpush1.bf16.msra.mxu0 %v1768
      %1781 = vmatprep.subr.bf16.mxu0 0
      %1782 = vmatpush1.bf16.msra.mxu0 %v1769
      %1783 = vmatprep.subr.bf16.mxu0 0
      %1784 = vmatpush1.bf16.msra.mxu0 %v1770
      %1785 = vmatprep.subr.bf16.mxu0 0
      %1786 = vmatpush1.bf16.msra.mxu0 %v1771
      %1787 = vmatprep.subr.bf16.mxu0 0
      %1788 = vmatpush1.bf16.msra.mxu0 0
      %1789 = vmatprep.subr.bf16.mxu0 0
      %1790 = vmatpush1.bf16.msra.mxu0 0
      %1791 = vmatprep.subr.bf16.mxu0 0
      %1792 = vmatpush1.bf16.msra.mxu0 0
      %1793 = vmatprep.subr.bf16.mxu0 0
      %1794 = vmatpush1.bf16.msra.mxu0 0
      %1795 = vmatprep.subr.bf16.mxu0 0
      %1796 = vmatpush1.bf16.msra.mxu0 0
      %1797 = vmatprep.subr.bf16.mxu0 0
      %1798 = vmatpush1.bf16.msra.mxu0 0
      %1799 = vmatprep.subr.bf16.mxu0 0
      %1800 = vmatpush1.bf16.msra.mxu0 0
      %1801 = vmatprep.subr.bf16.mxu0 0
      %1802 = vmatpush1.bf16.msra.mxu0 0
      %1803 = vmatprep.subr.bf16.mxu0 0
      %1804 = vmatpush1.bf16.msra.mxu0 0
      %1805 = vmatprep.subr.bf16.mxu0 0
      %1806 = vmatpush1.bf16.msra.mxu0 0
      %1807 = vmatprep.subr.bf16.mxu0 0
      %1808 = vmatpush1.bf16.msra.mxu0 0
      %1809 = vmatprep.subr.bf16.mxu0 0
      %1810 = vmatpush1.bf16.msra.mxu0 0
      %1811 = vmatprep.mubr.bf16.mxu0 0
      %1812 = vmatmul.mubr.bf16.gmra.mrb[0].mxu0 %v1777
      %v1813 = vpop.f32.mrb[0].mxu0
      %v1814 = vadd.f32 0.0, %v1813
      %v1815 = vpop.f32.mrb[0].mxu0
      %v1816 = vpop.f32.mrb[0].mxu0
      %v1817 = vpop.f32.mrb[0].mxu0
      %1818 = vdwg.mxu0
      %v1827 = vunpack.c.l.b16 %v421
      %v1828 = vunpack.c.l.b16 %v422
      %v1829 = vunpack.c.l.b16 %v423
      %v1830 = vunpack.c.l.b16 %v424
      %v1831 = vunpack.c.l.b16 %v425
      %v1832 = vunpack.c.l.b16 %v426
      %v1833 = vunpack.c.l.b16 %v427
      %v1834 = vunpack.c.l.b16 %v428
      %v1835 = vpack.c.b16 %v1828, %v1827
      %v1836 = vpack.c.b16 %v1830, %v1829
      %v1837 = vpack.c.b16 %v1832, %v1831
      %v1838 = vpack.c.b16 %v1834, %v1833
      %v1844 = vsel %vm837, %v252, 0
      %1846 = vmatprep.subr.bf16.mxu0 0
      %1847 = vmatpush1.bf16.msra.mxu0 %v1835
      %1848 = vmatprep.subr.bf16.mxu0 0
      %1849 = vmatpush1.bf16.msra.mxu0 %v1836
      %1850 = vmatprep.subr.bf16.mxu0 0
      %1851 = vmatpush1.bf16.msra.mxu0 %v1837
      %1852 = vmatprep.subr.bf16.mxu0 0
      %1853 = vmatpush1.bf16.msra.mxu0 %v1838
      %1854 = vmatprep.subr.bf16.mxu0 0
      %1855 = vmatpush1.bf16.msra.mxu0 0
      %1856 = vmatprep.subr.bf16.mxu0 0
      %1857 = vmatpush1.bf16.msra.mxu0 0
      %1858 = vmatprep.subr.bf16.mxu0 0
      %1859 = vmatpush1.bf16.msra.mxu0 0
      %1860 = vmatprep.subr.bf16.mxu0 0
      %1861 = vmatpush1.bf16.msra.mxu0 0
      %1862 = vmatprep.subr.bf16.mxu0 0
      %1863 = vmatpush1.bf16.msra.mxu0 0
      %1864 = vmatprep.subr.bf16.mxu0 0
      %1865 = vmatpush1.bf16.msra.mxu0 0
      %1866 = vmatprep.subr.bf16.mxu0 0
      %1867 = vmatpush1.bf16.msra.mxu0 0
      %1868 = vmatprep.subr.bf16.mxu0 0
      %1869 = vmatpush1.bf16.msra.mxu0 0
      %1870 = vmatprep.subr.bf16.mxu0 0
      %1871 = vmatpush1.bf16.msra.mxu0 0
      %1872 = vmatprep.subr.bf16.mxu0 0
      %1873 = vmatpush1.bf16.msra.mxu0 0
      %1874 = vmatprep.subr.bf16.mxu0 0
      %1875 = vmatpush1.bf16.msra.mxu0 0
      %1876 = vmatprep.subr.bf16.mxu0 0
      %1877 = vmatpush1.bf16.msra.mxu0 0
      %1878 = vmatprep.mubr.bf16.mxu0 0
      %1879 = vmatmul.mubr.bf16.gmra.mrb[0].mxu0 %v1844
      %v1880 = vpop.f32.mrb[0].mxu0
      %v1881 = vadd.f32 0.0, %v1880
      %v1882 = vpop.f32.mrb[0].mxu0
      %v1883 = vpop.f32.mrb[0].mxu0
      %v1884 = vpop.f32.mrb[0].mxu0
      %1885 = vdwg.mxu0
      %v1894 = vunpack.c.l.b16 %v429
      %v1895 = vunpack.c.l.b16 %v430
      %v1896 = vunpack.c.l.b16 %v431
      %v1897 = vunpack.c.l.b16 %v432
      %v1898 = vunpack.c.l.b16 %v433
      %v1899 = vunpack.c.l.b16 %v434
      %v1900 = vunpack.c.l.b16 %v435
      %v1901 = vunpack.c.l.b16 %v436
      %v1902 = vpack.c.b16 %v1895, %v1894
      %v1903 = vpack.c.b16 %v1897, %v1896
      %v1904 = vpack.c.b16 %v1899, %v1898
      %v1905 = vpack.c.b16 %v1901, %v1900
      %v1911 = vsel %vm837, %v253, 0
      %1913 = vmatprep.subr.bf16.mxu0 0
      %1914 = vmatpush1.bf16.msra.mxu0 %v1902
      %1915 = vmatprep.subr.bf16.mxu0 0
      %1916 = vmatpush1.bf16.msra.mxu0 %v1903
      %1917 = vmatprep.subr.bf16.mxu0 0
      %1918 = vmatpush1.bf16.msra.mxu0 %v1904
      %1919 = vmatprep.subr.bf16.mxu0 0
      %1920 = vmatpush1.bf16.msra.mxu0 %v1905
      %1921 = vmatprep.subr.bf16.mxu0 0
      %1922 = vmatpush1.bf16.msra.mxu0 0
      %1923 = vmatprep.subr.bf16.mxu0 0
      %1924 = vmatpush1.bf16.msra.mxu0 0
      %1925 = vmatprep.subr.bf16.mxu0 0
      %1926 = vmatpush1.bf16.msra.mxu0 0
      %1927 = vmatprep.subr.bf16.mxu0 0
      %1928 = vmatpush1.bf16.msra.mxu0 0
      %1929 = vmatprep.subr.bf16.mxu0 0
      %1930 = vmatpush1.bf16.msra.mxu0 0
      %1931 = vmatprep.subr.bf16.mxu0 0
      %1932 = vmatpush1.bf16.msra.mxu0 0
      %1933 = vmatprep.subr.bf16.mxu0 0
      %1934 = vmatpush1.bf16.msra.mxu0 0
      %1935 = vmatprep.subr.bf16.mxu0 0
      %1936 = vmatpush1.bf16.msra.mxu0 0
      %1937 = vmatprep.subr.bf16.mxu0 0
      %1938 = vmatpush1.bf16.msra.mxu0 0
      %1939 = vmatprep.subr.bf16.mxu0 0
      %1940 = vmatpush1.bf16.msra.mxu0 0
      %1941 = vmatprep.subr.bf16.mxu0 0
      %1942 = vmatpush1.bf16.msra.mxu0 0
      %1943 = vmatprep.subr.bf16.mxu0 0
      %1944 = vmatpush1.bf16.msra.mxu0 0
      %1945 = vmatprep.mubr.bf16.mxu0 0
      %1946 = vmatmul.mubr.bf16.gmra.mrb[0].mxu0 %v1911
      %v1947 = vpop.f32.mrb[0].mxu0
      %v1948 = vadd.f32 0.0, %v1947
      %v1949 = vpop.f32.mrb[0].mxu0
      %v1950 = vpop.f32.mrb[0].mxu0
      %v1951 = vpop.f32.mrb[0].mxu0
      %1952 = vdwg.mxu0
      %v1961 = vunpack.c.l.b16 %v437
      %v1962 = vunpack.c.l.b16 %v438
      %v1963 = vunpack.c.l.b16 %v439
      %v1964 = vunpack.c.l.b16 %v440
      %v1965 = vunpack.c.l.b16 %v441
      %v1966 = vunpack.c.l.b16 %v442
      %v1967 = vunpack.c.l.b16 %v443
      %v1968 = vunpack.c.l.b16 %v444
      %v1969 = vpack.c.b16 %v1962, %v1961
      %v1970 = vpack.c.b16 %v1964, %v1963
      %v1971 = vpack.c.b16 %v1966, %v1965
      %v1972 = vpack.c.b16 %v1968, %v1967
      %v1978 = vsel %vm837, %v254, 0
      %1980 = vmatprep.subr.bf16.mxu0 0
      %1981 = vmatpush1.bf16.msra.mxu0 %v1969
      %1982 = vmatprep.subr.bf16.mxu0 0
      %1983 = vmatpush1.bf16.msra.mxu0 %v1970
      %1984 = vmatprep.subr.bf16.mxu0 0
      %1985 = vmatpush1.bf16.msra.mxu0 %v1971
      %1986 = vmatprep.subr.bf16.mxu0 0
      %1987 = vmatpush1.bf16.msra.mxu0 %v1972
      %1988 = vmatprep.subr.bf16.mxu0 0
      %1989 = vmatpush1.bf16.msra.mxu0 0
      %1990 = vmatprep.subr.bf16.mxu0 0
      %1991 = vmatpush1.bf16.msra.mxu0 0
      %1992 = vmatprep.subr.bf16.mxu0 0
      %1993 = vmatpush1.bf16.msra.mxu0 0
      %1994 = vmatprep.subr.bf16.mxu0 0
      %1995 = vmatpush1.bf16.msra.mxu0 0
      %1996 = vmatprep.subr.bf16.mxu0 0
      %1997 = vmatpush1.bf16.msra.mxu0 0
      %1998 = vmatprep.subr.bf16.mxu0 0
      %1999 = vmatpush1.bf16.msra.mxu0 0
      %2000 = vmatprep.subr.bf16.mxu0 0
      %2001 = vmatpush1.bf16.msra.mxu0 0
      %2002 = vmatprep.subr.bf16.mxu0 0
      %2003 = vmatpush1.bf16.msra.mxu0 0
      %2004 = vmatprep.subr.bf16.mxu0 0
      %2005 = vmatpush1.bf16.msra.mxu0 0
      %2006 = vmatprep.subr.bf16.mxu0 0
      %2007 = vmatpush1.bf16.msra.mxu0 0
      %2008 = vmatprep.subr.bf16.mxu0 0
      %2009 = vmatpush1.bf16.msra.mxu0 0
      %2010 = vmatprep.subr.bf16.mxu0 0
      %2011 = vmatpush1.bf16.msra.mxu0 0
      %2012 = vmatprep.mubr.bf16.mxu0 0
      %2013 = vmatmul.mubr.bf16.gmra.mrb[0].mxu0 %v1978
      %v2014 = vpop.f32.mrb[0].mxu0
      %v2015 = vadd.f32 0.0, %v2014
      %v2016 = vpop.f32.mrb[0].mxu0
      %v2017 = vpop.f32.mrb[0].mxu0
      %v2018 = vpop.f32.mrb[0].mxu0
      %2019 = vdwg.mxu0
      %v2028 = vunpack.c.l.b16 %v445
      %v2029 = vunpack.c.l.b16 %v446
      %v2030 = vunpack.c.l.b16 %v447
      %v2031 = vunpack.c.l.b16 %v448
      %v2032 = vunpack.c.l.b16 %v449
      %v2033 = vunpack.c.l.b16 %v450
      %v2034 = vunpack.c.l.b16 %v451
      %v2035 = vunpack.c.l.b16 %v452
      %v2036 = vpack.c.b16 %v2029, %v2028
      %v2037 = vpack.c.b16 %v2031, %v2030
      %v2038 = vpack.c.b16 %v2033, %v2032
      %v2039 = vpack.c.b16 %v2035, %v2034
      %v2045 = vsel %vm837, %v255, 0
      %2047 = vmatprep.subr.bf16.mxu0 0
      %2048 = vmatpush1.bf16.msra.mxu0 %v2036
      %2049 = vmatprep.subr.bf16.mxu0 0
      %2050 = vmatpush1.bf16.msra.mxu0 %v2037
      %2051 = vmatprep.subr.bf16.mxu0 0
      %2052 = vmatpush1.bf16.msra.mxu0 %v2038
      %2053 = vmatprep.subr.bf16.mxu0 0
      %2054 = vmatpush1.bf16.msra.mxu0 %v2039
      %2055 = vmatprep.subr.bf16.mxu0 0
      %2056 = vmatpush1.bf16.msra.mxu0 0
      %2057 = vmatprep.subr.bf16.mxu0 0
      %2058 = vmatpush1.bf16.msra.mxu0 0
      %2059 = vmatprep.subr.bf16.mxu0 0
      %2060 = vmatpush1.bf16.msra.mxu0 0
      %2061 = vmatprep.subr.bf16.mxu0 0
      %2062 = vmatpush1.bf16.msra.mxu0 0
      %2063 = vmatprep.subr.bf16.mxu0 0
      %2064 = vmatpush1.bf16.msra.mxu0 0
      %2065 = vmatprep.subr.bf16.mxu0 0
      %2066 = vmatpush1.bf16.msra.mxu0 0
      %2067 = vmatprep.subr.bf16.mxu0 0
      %2068 = vmatpush1.bf16.msra.mxu0 0
      %2069 = vmatprep.subr.bf16.mxu0 0
      %2070 = vmatpush1.bf16.msra.mxu0 0
      %2071 = vmatprep.subr.bf16.mxu0 0
      %2072 = vmatpush1.bf16.msra.mxu0 0
      %2073 = vmatprep.subr.bf16.mxu0 0
      %2074 = vmatpush1.bf16.msra.mxu0 0
      %2075 = vmatprep.subr.bf16.mxu0 0
      %2076 = vmatpush1.bf16.msra.mxu0 0
      %2077 = vmatprep.subr.bf16.mxu0 0
      %2078 = vmatpush1.bf16.msra.mxu0 0
      %2079 = vmatprep.mubr.bf16.mxu0 0
      %2080 = vmatmul.mubr.bf16.gmra.mrb[0].mxu0 %v2045
      %v2081 = vpop.f32.mrb[0].mxu0
      %v2082 = vadd.f32 0.0, %v2081
      %v2083 = vpop.f32.mrb[0].mxu0
      %v2084 = vpop.f32.mrb[0].mxu0
      %v2085 = vpop.f32.mrb[0].mxu0
      %2086 = vdwg.mxu0
      %v2095 = vunpack.c.l.b16 %v453
      %v2096 = vunpack.c.l.b16 %v454
      %v2097 = vunpack.c.l.b16 %v455
      %v2098 = vunpack.c.l.b16 %v456
      %v2099 = vunpack.c.l.b16 %v457
      %v2100 = vunpack.c.l.b16 %v458
      %v2101 = vunpack.c.l.b16 %v459
      %v2102 = vunpack.c.l.b16 %v460
      %v2103 = vpack.c.b16 %v2096, %v2095
      %v2104 = vpack.c.b16 %v2098, %v2097
      %v2105 = vpack.c.b16 %v2100, %v2099
      %v2106 = vpack.c.b16 %v2102, %v2101
      %v2112 = vsel %vm837, %v256, 0
      %2114 = vmatprep.subr.bf16.mxu0 0
      %2115 = vmatpush1.bf16.msra.mxu0 %v2103
      %2116 = vmatprep.subr.bf16.mxu0 0
      %2117 = vmatpush1.bf16.msra.mxu0 %v2104
      %2118 = vmatprep.subr.bf16.mxu0 0
      %2119 = vmatpush1.bf16.msra.mxu0 %v2105
      %2120 = vmatprep.subr.bf16.mxu0 0
      %2121 = vmatpush1.bf16.msra.mxu0 %v2106
      %2122 = vmatprep.subr.bf16.mxu0 0
      %2123 = vmatpush1.bf16.msra.mxu0 0
      %2124 = vmatprep.subr.bf16.mxu0 0
      %2125 = vmatpush1.bf16.msra.mxu0 0
      %2126 = vmatprep.subr.bf16.mxu0 0
      %2127 = vmatpush1.bf16.msra.mxu0 0
      %2128 = vmatprep.subr.bf16.mxu0 0
      %2129 = vmatpush1.bf16.msra.mxu0 0
      %2130 = vmatprep.subr.bf16.mxu0 0
      %2131 = vmatpush1.bf16.msra.mxu0 0
      %2132 = vmatprep.subr.bf16.mxu0 0
      %2133 = vmatpush1.bf16.msra.mxu0 0
      %2134 = vmatprep.subr.bf16.mxu0 0
      %2135 = vmatpush1.bf16.msra.mxu0 0
      %2136 = vmatprep.subr.bf16.mxu0 0
      %2137 = vmatpush1.bf16.msra.mxu0 0
      %2138 = vmatprep.subr.bf16.mxu0 0
      %2139 = vmatpush1.bf16.msra.mxu0 0
      %2140 = vmatprep.subr.bf16.mxu0 0
      %2141 = vmatpush1.bf16.msra.mxu0 0
      %2142 = vmatprep.subr.bf16.mxu0 0
      %2143 = vmatpush1.bf16.msra.mxu0 0
      %2144 = vmatprep.subr.bf16.mxu0 0
      %2145 = vmatpush1.bf16.msra.mxu0 0
      %2146 = vmatprep.mubr.bf16.mxu0 0
      %2147 = vmatmul.mubr.bf16.gmra.mrb[0].mxu0 %v2112
      %v2148 = vpop.f32.mrb[0].mxu0
      %v2149 = vadd.f32 0.0, %v2148
      %v2150 = vpop.f32.mrb[0].mxu0
      %v2151 = vpop.f32.mrb[0].mxu0
      %v2152 = vpop.f32.mrb[0].mxu0
      %2153 = vdwg.mxu0
      %v2162 = vunpack.c.l.b16 %v461
      %v2163 = vunpack.c.l.b16 %v462
      %v2164 = vunpack.c.l.b16 %v463
      %v2165 = vunpack.c.l.b16 %v464
      %v2166 = vunpack.c.l.b16 %v465
      %v2167 = vunpack.c.l.b16 %v466
      %v2168 = vunpack.c.l.b16 %v467
      %v2169 = vunpack.c.l.b16 %v468
      %v2170 = vpack.c.b16 %v2163, %v2162
      %v2171 = vpack.c.b16 %v2165, %v2164
      %v2172 = vpack.c.b16 %v2167, %v2166
      %v2173 = vpack.c.b16 %v2169, %v2168
      %v2179 = vsel %vm837, %v257, 0
      %2181 = vmatprep.subr.bf16.mxu0 0
      %2182 = vmatpush1.bf16.msra.mxu0 %v2170
      %2183 = vmatprep.subr.bf16.mxu0 0
      %2184 = vmatpush1.bf16.msra.mxu0 %v2171
      %2185 = vmatprep.subr.bf16.mxu0 0
      %2186 = vmatpush1.bf16.msra.mxu0 %v2172
      %2187 = vmatprep.subr.bf16.mxu0 0
      %2188 = vmatpush1.bf16.msra.mxu0 %v2173
      %2189 = vmatprep.subr.bf16.mxu0 0
      %2190 = vmatpush1.bf16.msra.mxu0 0
      %2191 = vmatprep.subr.bf16.mxu0 0
      %2192 = vmatpush1.bf16.msra.mxu0 0
      %2193 = vmatprep.subr.bf16.mxu0 0
      %2194 = vmatpush1.bf16.msra.mxu0 0
      %2195 = vmatprep.subr.bf16.mxu0 0
      %2196 = vmatpush1.bf16.msra.mxu0 0
      %2197 = vmatprep.subr.bf16.mxu0 0
      %2198 = vmatpush1.bf16.msra.mxu0 0
      %2199 = vmatprep.subr.bf16.mxu0 0
      %2200 = vmatpush1.bf16.msra.mxu0 0
      %2201 = vmatprep.subr.bf16.mxu0 0
      %2202 = vmatpush1.bf16.msra.mxu0 0
      %2203 = vmatprep.subr.bf16.mxu0 0
      %2204 = vmatpush1.bf16.msra.mxu0 0
      %2205 = vmatprep.subr.bf16.mxu0 0
      %2206 = vmatpush1.bf16.msra.mxu0 0
      %2207 = vmatprep.subr.bf16.mxu0 0
      %2208 = vmatpush1.bf16.msra.mxu0 0
      %2209 = vmatprep.subr.bf16.mxu0 0
      %2210 = vmatpush1.bf16.msra.mxu0 0
      %2211 = vmatprep.subr.bf16.mxu0 0
      %2212 = vmatpush1.bf16.msra.mxu0 0
      %2213 = vmatprep.mubr.bf16.mxu0 0
      %2214 = vmatmul.mubr.bf16.gmra.mrb[0].mxu0 %v2179
      %v2215 = vpop.f32.mrb[0].mxu0
      %v2216 = vadd.f32 0.0, %v2215
      %v2217 = vpop.f32.mrb[0].mxu0
      %v2218 = vpop.f32.mrb[0].mxu0
      %v2219 = vpop.f32.mrb[0].mxu0
      %2220 = vdwg.mxu0
      %v2229 = vunpack.c.l.b16 %v469
      %v2230 = vunpack.c.l.b16 %v470
      %v2231 = vunpack.c.l.b16 %v471
      %v2232 = vunpack.c.l.b16 %v472
      %v2233 = vunpack.c.l.b16 %v473
      %v2234 = vunpack.c.l.b16 %v474
      %v2235 = vunpack.c.l.b16 %v475
      %v2236 = vunpack.c.l.b16 %v476
      %v2237 = vpack.c.b16 %v2230, %v2229
      %v2238 = vpack.c.b16 %v2232, %v2231
      %v2239 = vpack.c.b16 %v2234, %v2233
      %v2240 = vpack.c.b16 %v2236, %v2235
      %v2246 = vsel %vm837, %v258, 0
      %2248 = vmatprep.subr.bf16.mxu0 0
      %2249 = vmatpush1.bf16.msra.mxu0 %v2237
      %2250 = vmatprep.subr.bf16.mxu0 0
      %2251 = vmatpush1.bf16.msra.mxu0 %v2238
      %2252 = vmatprep.subr.bf16.mxu0 0
      %2253 = vmatpush1.bf16.msra.mxu0 %v2239
      %2254 = vmatprep.subr.bf16.mxu0 0
      %2255 = vmatpush1.bf16.msra.mxu0 %v2240
      %2256 = vmatprep.subr.bf16.mxu0 0
      %2257 = vmatpush1.bf16.msra.mxu0 0
      %2258 = vmatprep.subr.bf16.mxu0 0
      %2259 = vmatpush1.bf16.msra.mxu0 0
      %2260 = vmatprep.subr.bf16.mxu0 0
      %2261 = vmatpush1.bf16.msra.mxu0 0
      %2262 = vmatprep.subr.bf16.mxu0 0
      %2263 = vmatpush1.bf16.msra.mxu0 0
      %2264 = vmatprep.subr.bf16.mxu0 0
      %2265 = vmatpush1.bf16.msra.mxu0 0
      %2266 = vmatprep.subr.bf16.mxu0 0
      %2267 = vmatpush1.bf16.msra.mxu0 0
      %2268 = vmatprep.subr.bf16.mxu0 0
      %2269 = vmatpush1.bf16.msra.mxu0 0
      %2270 = vmatprep.subr.bf16.mxu0 0
      %2271 = vmatpush1.bf16.msra.mxu0 0
      %2272 = vmatprep.subr.bf16.mxu0 0
      %2273 = vmatpush1.bf16.msra.mxu0 0
      %2274 = vmatprep.subr.bf16.mxu0 0
      %2275 = vmatpush1.bf16.msra.mxu0 0
      %2276 = vmatprep.subr.bf16.mxu0 0
      %2277 = vmatpush1.bf16.msra.mxu0 0
      %2278 = vmatprep.subr.bf16.mxu0 0
      %2279 = vmatpush1.bf16.msra.mxu0 0
      %2280 = vmatprep.mubr.bf16.mxu0 0
      %2281 = vmatmul.mubr.bf16.gmra.mrb[0].mxu0 %v2246
      %v2282 = vpop.f32.mrb[0].mxu0
      %v2283 = vadd.f32 0.0, %v2282
      %v2284 = vpop.f32.mrb[0].mxu0
      %v2285 = vpop.f32.mrb[0].mxu0
      %v2286 = vpop.f32.mrb[0].mxu0
      %2287 = vdwg.mxu0
      %v2296 = vunpack.c.l.b16 %v477
      %v2297 = vunpack.c.l.b16 %v478
      %v2298 = vunpack.c.l.b16 %v479
      %v2299 = vunpack.c.l.b16 %v480
      %v2300 = vunpack.c.l.b16 %v481
      %v2301 = vunpack.c.l.b16 %v482
      %v2302 = vunpack.c.l.b16 %v483
      %v2303 = vunpack.c.l.b16 %v484
      %v2304 = vpack.c.b16 %v2297, %v2296
      %v2305 = vpack.c.b16 %v2299, %v2298
      %v2306 = vpack.c.b16 %v2301, %v2300
      %v2307 = vpack.c.b16 %v2303, %v2302
      %v2313 = vsel %vm837, %v259, 0
      %2315 = vmatprep.subr.bf16.mxu0 0
      %2316 = vmatpush1.bf16.msra.mxu0 %v2304
      %2317 = vmatprep.subr.bf16.mxu0 0
      %2318 = vmatpush1.bf16.msra.mxu0 %v2305
      %2319 = vmatprep.subr.bf16.mxu0 0
      %2320 = vmatpush1.bf16.msra.mxu0 %v2306
      %2321 = vmatprep.subr.bf16.mxu0 0
      %2322 = vmatpush1.bf16.msra.mxu0 %v2307
      %2323 = vmatprep.subr.bf16.mxu0 0
      %2324 = vmatpush1.bf16.msra.mxu0 0
      %2325 = vmatprep.subr.bf16.mxu0 0
      %2326 = vmatpush1.bf16.msra.mxu0 0
      %2327 = vmatprep.subr.bf16.mxu0 0
      %2328 = vmatpush1.bf16.msra.mxu0 0
      %2329 = vmatprep.subr.bf16.mxu0 0
      %2330 = vmatpush1.bf16.msra.mxu0 0
      %2331 = vmatprep.subr.bf16.mxu0 0
      %2332 = vmatpush1.bf16.msra.mxu0 0
      %2333 = vmatprep.subr.bf16.mxu0 0
      %2334 = vmatpush1.bf16.msra.mxu0 0
      %2335 = vmatprep.subr.bf16.mxu0 0
      %2336 = vmatpush1.bf16.msra.mxu0 0
      %2337 = vmatprep.subr.bf16.mxu0 0
      %2338 = vmatpush1.bf16.msra.mxu0 0
      %2339 = vmatprep.subr.bf16.mxu0 0
      %2340 = vmatpush1.bf16.msra.mxu0 0
      %2341 = vmatprep.subr.bf16.mxu0 0
      %2342 = vmatpush1.bf16.msra.mxu0 0
      %2343 = vmatprep.subr.bf16.mxu0 0
      %2344 = vmatpush1.bf16.msra.mxu0 0
      %2345 = vmatprep.subr.bf16.mxu0 0
      %2346 = vmatpush1.bf16.msra.mxu0 0
      %2347 = vmatprep.mubr.bf16.mxu0 0
      %2348 = vmatmul.mubr.bf16.gmra.mrb[0].mxu0 %v2313
      %v2349 = vpop.f32.mrb[0].mxu0
      %v2350 = vadd.f32 0.0, %v2349
      %v2351 = vpop.f32.mrb[0].mxu0
      %v2352 = vpop.f32.mrb[0].mxu0
      %v2353 = vpop.f32.mrb[0].mxu0
      %2354 = vdwg.mxu0
      %v2363 = vunpack.c.l.b16 %v485
      %v2364 = vunpack.c.l.b16 %v486
      %v2365 = vunpack.c.l.b16 %v487
      %v2366 = vunpack.c.l.b16 %v488
      %v2367 = vunpack.c.l.b16 %v489
      %v2368 = vunpack.c.l.b16 %v490
      %v2369 = vunpack.c.l.b16 %v491
      %v2370 = vunpack.c.l.b16 %v492
      %v2371 = vpack.c.b16 %v2364, %v2363
      %v2372 = vpack.c.b16 %v2366, %v2365
      %v2373 = vpack.c.b16 %v2368, %v2367
      %v2374 = vpack.c.b16 %v2370, %v2369
      %v2380 = vsel %vm837, %v260, 0
      %2382 = vmatprep.subr.bf16.mxu0 0
      %2383 = vmatpush1.bf16.msra.mxu0 %v2371
      %2384 = vmatprep.subr.bf16.mxu0 0
      %2385 = vmatpush1.bf16.msra.mxu0 %v2372
      %2386 = vmatprep.subr.bf16.mxu0 0
      %2387 = vmatpush1.bf16.msra.mxu0 %v2373
      %2388 = vmatprep.subr.bf16.mxu0 0
      %2389 = vmatpush1.bf16.msra.mxu0 %v2374
      %2390 = vmatprep.subr.bf16.mxu0 0
      %2391 = vmatpush1.bf16.msra.mxu0 0
      %2392 = vmatprep.subr.bf16.mxu0 0
      %2393 = vmatpush1.bf16.msra.mxu0 0
      %2394 = vmatprep.subr.bf16.mxu0 0
      %2395 = vmatpush1.bf16.msra.mxu0 0
      %2396 = vmatprep.subr.bf16.mxu0 0
      %2397 = vmatpush1.bf16.msra.mxu0 0
      %2398 = vmatprep.subr.bf16.mxu0 0
      %2399 = vmatpush1.bf16.msra.mxu0 0
      %2400 = vmatprep.subr.bf16.mxu0 0
      %2401 = vmatpush1.bf16.msra.mxu0 0
      %2402 = vmatprep.subr.bf16.mxu0 0
      %2403 = vmatpush1.bf16.msra.mxu0 0
      %2404 = vmatprep.subr.bf16.mxu0 0
      %2405 = vmatpush1.bf16.msra.mxu0 0
      %2406 = vmatprep.subr.bf16.mxu0 0
      %2407 = vmatpush1.bf16.msra.mxu0 0
      %2408 = vmatprep.subr.bf16.mxu0 0
      %2409 = vmatpush1.bf16.msra.mxu0 0
      %2410 = vmatprep.subr.bf16.mxu0 0
      %2411 = vmatpush1.bf16.msra.mxu0 0
      %2412 = vmatprep.subr.bf16.mxu0 0
      %2413 = vmatpush1.bf16.msra.mxu0 0
      %2414 = vmatprep.mubr.bf16.mxu0 0
      %2415 = vmatmul.mubr.bf16.gmra.mrb[0].mxu0 %v2380
      %v2416 = vpop.f32.mrb[0].mxu0
      %v2417 = vadd.f32 0.0, %v2416
      %v2418 = vpop.f32.mrb[0].mxu0
      %v2419 = vpop.f32.mrb[0].mxu0
      %v2420 = vpop.f32.mrb[0].mxu0
      %2421 = vdwg.mxu0
      %v2430 = vunpack.c.l.b16 %v493
      %v2431 = vunpack.c.l.b16 %v494
      %v2432 = vunpack.c.l.b16 %v495
      %v2433 = vunpack.c.l.b16 %v496
      %v2434 = vunpack.c.l.b16 %v497
      %v2435 = vunpack.c.l.b16 %v498
      %v2436 = vunpack.c.l.b16 %v499
      %v2437 = vunpack.c.l.b16 %v500
      %v2438 = vpack.c.b16 %v2431, %v2430
      %v2439 = vpack.c.b16 %v2433, %v2432
      %v2440 = vpack.c.b16 %v2435, %v2434
      %v2441 = vpack.c.b16 %v2437, %v2436
      %v2447 = vsel %vm837, %v261, 0
      %2449 = vmatprep.subr.bf16.mxu0 0
      %2450 = vmatpush1.bf16.msra.mxu0 %v2438
      %2451 = vmatprep.subr.bf16.mxu0 0
      %2452 = vmatpush1.bf16.msra.mxu0 %v2439
      %2453 = vmatprep.subr.bf16.mxu0 0
      %2454 = vmatpush1.bf16.msra.mxu0 %v2440
      %2455 = vmatprep.subr.bf16.mxu0 0
      %2456 = vmatpush1.bf16.msra.mxu0 %v2441
      %2457 = vmatprep.subr.bf16.mxu0 0
      %2458 = vmatpush1.bf16.msra.mxu0 0
      %2459 = vmatprep.subr.bf16.mxu0 0
      %2460 = vmatpush1.bf16.msra.mxu0 0
      %2461 = vmatprep.subr.bf16.mxu0 0
      %2462 = vmatpush1.bf16.msra.mxu0 0
      %2463 = vmatprep.subr.bf16.mxu0 0
      %2464 = vmatpush1.bf16.msra.mxu0 0
      %2465 = vmatprep.subr.bf16.mxu0 0
      %2466 = vmatpush1.bf16.msra.mxu0 0
      %2467 = vmatprep.subr.bf16.mxu0 0
      %2468 = vmatpush1.bf16.msra.mxu0 0
      %2469 = vmatprep.subr.bf16.mxu0 0
      %2470 = vmatpush1.bf16.msra.mxu0 0
      %2471 = vmatprep.subr.bf16.mxu0 0
      %2472 = vmatpush1.bf16.msra.mxu0 0
      %2473 = vmatprep.subr.bf16.mxu0 0
      %2474 = vmatpush1.bf16.msra.mxu0 0
      %2475 = vmatprep.subr.bf16.mxu0 0
      %2476 = vmatpush1.bf16.msra.mxu0 0
      %2477 = vmatprep.subr.bf16.mxu0 0
      %2478 = vmatpush1.bf16.msra.mxu0 0
      %2479 = vmatprep.subr.bf16.mxu0 0
      %2480 = vmatpush1.bf16.msra.mxu0 0
      %2481 = vmatprep.mubr.bf16.mxu0 0
      %2482 = vmatmul.mubr.bf16.gmra.mrb[0].mxu0 %v2447
      %v2483 = vpop.f32.mrb[0].mxu0
      %v2484 = vadd.f32 0.0, %v2483
      %v2485 = vpop.f32.mrb[0].mxu0
      %v2486 = vpop.f32.mrb[0].mxu0
      %v2487 = vpop.f32.mrb[0].mxu0
      %2488 = vdwg.mxu0
      %v2497 = vunpack.c.l.b16 %v501
      %v2498 = vunpack.c.l.b16 %v502
      %v2499 = vunpack.c.l.b16 %v503
      %v2500 = vunpack.c.l.b16 %v504
      %v2501 = vunpack.c.l.b16 %v505
      %v2502 = vunpack.c.l.b16 %v506
      %v2503 = vunpack.c.l.b16 %v507
      %v2504 = vunpack.c.l.b16 %v508
      %v2505 = vpack.c.b16 %v2498, %v2497
      %v2506 = vpack.c.b16 %v2500, %v2499
      %v2507 = vpack.c.b16 %v2502, %v2501
      %v2508 = vpack.c.b16 %v2504, %v2503
      %v2514 = vsel %vm837, %v262, 0
      %2516 = vmatprep.subr.bf16.mxu0 0
      %2517 = vmatpush1.bf16.msra.mxu0 %v2505
      %2518 = vmatprep.subr.bf16.mxu0 0
      %2519 = vmatpush1.bf16.msra.mxu0 %v2506
      %2520 = vmatprep.subr.bf16.mxu0 0
      %2521 = vmatpush1.bf16.msra.mxu0 %v2507
      %2522 = vmatprep.subr.bf16.mxu0 0
      %2523 = vmatpush1.bf16.msra.mxu0 %v2508
      %2524 = vmatprep.subr.bf16.mxu0 0
      %2525 = vmatpush1.bf16.msra.mxu0 0
      %2526 = vmatprep.subr.bf16.mxu0 0
      %2527 = vmatpush1.bf16.msra.mxu0 0
      %2528 = vmatprep.subr.bf16.mxu0 0
      %2529 = vmatpush1.bf16.msra.mxu0 0
      %2530 = vmatprep.subr.bf16.mxu0 0
      %2531 = vmatpush1.bf16.msra.mxu0 0
      %2532 = vmatprep.subr.bf16.mxu0 0
      %2533 = vmatpush1.bf16.msra.mxu0 0
      %2534 = vmatprep.subr.bf16.mxu0 0
      %2535 = vmatpush1.bf16.msra.mxu0 0
      %2536 = vmatprep.subr.bf16.mxu0 0
      %2537 = vmatpush1.bf16.msra.mxu0 0
      %2538 = vmatprep.subr.bf16.mxu0 0
      %2539 = vmatpush1.bf16.msra.mxu0 0
      %2540 = vmatprep.subr.bf16.mxu0 0
      %2541 = vmatpush1.bf16.msra.mxu0 0
      %2542 = vmatprep.subr.bf16.mxu0 0
      %2543 = vmatpush1.bf16.msra.mxu0 0
      %2544 = vmatprep.subr.bf16.mxu0 0
      %2545 = vmatpush1.bf16.msra.mxu0 0
      %2546 = vmatprep.subr.bf16.mxu0 0
      %2547 = vmatpush1.bf16.msra.mxu0 0
      %2548 = vmatprep.mubr.bf16.mxu0 0
      %2549 = vmatmul.mubr.bf16.gmra.mrb[0].mxu0 %v2514
      %v2550 = vpop.f32.mrb[0].mxu0
      %v2551 = vadd.f32 0.0, %v2550
      %v2552 = vpop.f32.mrb[0].mxu0
      %v2553 = vpop.f32.mrb[0].mxu0
      %v2554 = vpop.f32.mrb[0].mxu0
      %2555 = vdwg.mxu0
      %v2564 = vunpack.c.l.b16 %v509
      %v2565 = vunpack.c.l.b16 %v510
      %v2566 = vunpack.c.l.b16 %v511
      %v2567 = vunpack.c.l.b16 %v512
      %v2568 = vunpack.c.l.b16 %v513
      %v2569 = vunpack.c.l.b16 %v514
      %v2570 = vunpack.c.l.b16 %v515
      %v2571 = vunpack.c.l.b16 %v516
      %v2572 = vpack.c.b16 %v2565, %v2564
      %v2573 = vpack.c.b16 %v2567, %v2566
      %v2574 = vpack.c.b16 %v2569, %v2568
      %v2575 = vpack.c.b16 %v2571, %v2570
      %v2581 = vsel %vm837, %v263, 0
      %2583 = vmatprep.subr.bf16.mxu0 0
      %2584 = vmatpush1.bf16.msra.mxu0 %v2572
      %2585 = vmatprep.subr.bf16.mxu0 0
      %2586 = vmatpush1.bf16.msra.mxu0 %v2573
      %2587 = vmatprep.subr.bf16.mxu0 0
      %2588 = vmatpush1.bf16.msra.mxu0 %v2574
      %2589 = vmatprep.subr.bf16.mxu0 0
      %2590 = vmatpush1.bf16.msra.mxu0 %v2575
      %2591 = vmatprep.subr.bf16.mxu0 0
      %2592 = vmatpush1.bf16.msra.mxu0 0
      %2593 = vmatprep.subr.bf16.mxu0 0
      %2594 = vmatpush1.bf16.msra.mxu0 0
      %2595 = vmatprep.subr.bf16.mxu0 0
      %2596 = vmatpush1.bf16.msra.mxu0 0
      %2597 = vmatprep.subr.bf16.mxu0 0
      %2598 = vmatpush1.bf16.msra.mxu0 0
      %2599 = vmatprep.subr.bf16.mxu0 0
      %2600 = vmatpush1.bf16.msra.mxu0 0
      %2601 = vmatprep.subr.bf16.mxu0 0
      %2602 = vmatpush1.bf16.msra.mxu0 0
      %2603 = vmatprep.subr.bf16.mxu0 0
      %2604 = vmatpush1.bf16.msra.mxu0 0
      %2605 = vmatprep.subr.bf16.mxu0 0
      %2606 = vmatpush1.bf16.msra.mxu0 0
      %2607 = vmatprep.subr.bf16.mxu0 0
      %2608 = vmatpush1.bf16.msra.mxu0 0
      %2609 = vmatprep.subr.bf16.mxu0 0
      %2610 = vmatpush1.bf16.msra.mxu0 0
      %2611 = vmatprep.subr.bf16.mxu0 0
      %2612 = vmatpush1.bf16.msra.mxu0 0
      %2613 = vmatprep.subr.bf16.mxu0 0
      %2614 = vmatpush1.bf16.msra.mxu0 0
      %2615 = vmatprep.mubr.bf16.mxu0 0
      %2616 = vmatmul.mubr.bf16.gmra.mrb[0].mxu0 %v2581
      %v2617 = vpop.f32.mrb[0].mxu0
      %v2618 = vadd.f32 0.0, %v2617
      %v2619 = vpop.f32.mrb[0].mxu0
      %v2620 = vpop.f32.mrb[0].mxu0
      %v2621 = vpop.f32.mrb[0].mxu0
      %2622 = vdwg.mxu0
      %v2631 = vunpack.c.l.b16 %v517
      %v2632 = vunpack.c.l.b16 %v518
      %v2633 = vunpack.c.l.b16 %v519
      %v2634 = vunpack.c.l.b16 %v520
      %v2635 = vunpack.c.l.b16 %v521
      %v2636 = vunpack.c.l.b16 %v522
      %v2637 = vunpack.c.l.b16 %v523
      %v2638 = vunpack.c.l.b16 %v524
      %v2639 = vpack.c.b16 %v2632, %v2631
      %v2640 = vpack.c.b16 %v2634, %v2633
      %v2641 = vpack.c.b16 %v2636, %v2635
      %v2642 = vpack.c.b16 %v2638, %v2637
      %v2648 = vsel %vm837, %v264, 0
      %2650 = vmatprep.subr.bf16.mxu0 0
      %2651 = vmatpush1.bf16.msra.mxu0 %v2639
      %2652 = vmatprep.subr.bf16.mxu0 0
      %2653 = vmatpush1.bf16.msra.mxu0 %v2640
      %2654 = vmatprep.subr.bf16.mxu0 0
      %2655 = vmatpush1.bf16.msra.mxu0 %v2641
      %2656 = vmatprep.subr.bf16.mxu0 0
      %2657 = vmatpush1.bf16.msra.mxu0 %v2642
      %2658 = vmatprep.subr.bf16.mxu0 0
      %2659 = vmatpush1.bf16.msra.mxu0 0
      %2660 = vmatprep.subr.bf16.mxu0 0
      %2661 = vmatpush1.bf16.msra.mxu0 0
      %2662 = vmatprep.subr.bf16.mxu0 0
      %2663 = vmatpush1.bf16.msra.mxu0 0
      %2664 = vmatprep.subr.bf16.mxu0 0
      %2665 = vmatpush1.bf16.msra.mxu0 0
      %2666 = vmatprep.subr.bf16.mxu0 0
      %2667 = vmatpush1.bf16.msra.mxu0 0
      %2668 = vmatprep.subr.bf16.mxu0 0
      %2669 = vmatpush1.bf16.msra.mxu0 0
      %2670 = vmatprep.subr.bf16.mxu0 0
      %2671 = vmatpush1.bf16.msra.mxu0 0
      %2672 = vmatprep.subr.bf16.mxu0 0
      %2673 = vmatpush1.bf16.msra.mxu0 0
      %2674 = vmatprep.subr.bf16.mxu0 0
      %2675 = vmatpush1.bf16.msra.mxu0 0
      %2676 = vmatprep.subr.bf16.mxu0 0
      %2677 = vmatpush1.bf16.msra.mxu0 0
      %2678 = vmatprep.subr.bf16.mxu0 0
      %2679 = vmatpush1.bf16.msra.mxu0 0
      %2680 = vmatprep.subr.bf16.mxu0 0
      %2681 = vmatpush1.bf16.msra.mxu0 0
      %2682 = vmatprep.mubr.bf16.mxu0 0
      %2683 = vmatmul.mubr.bf16.gmra.mrb[0].mxu0 %v2648
      %v2684 = vpop.f32.mrb[0].mxu0
      %v2685 = vadd.f32 0.0, %v2684
      %v2686 = vpop.f32.mrb[0].mxu0
      %v2687 = vpop.f32.mrb[0].mxu0
      %v2688 = vpop.f32.mrb[0].mxu0
      %2689 = vdwg.mxu0
      %v2698 = vunpack.c.l.b16 %v525
      %v2699 = vunpack.c.l.b16 %v526
      %v2700 = vunpack.c.l.b16 %v527
      %v2701 = vunpack.c.l.b16 %v528
      %v2702 = vunpack.c.l.b16 %v529
      %v2703 = vunpack.c.l.b16 %v530
      %v2704 = vunpack.c.l.b16 %v531
      %v2705 = vunpack.c.l.b16 %v532
      %v2706 = vpack.c.b16 %v2699, %v2698
      %v2707 = vpack.c.b16 %v2701, %v2700
      %v2708 = vpack.c.b16 %v2703, %v2702
      %v2709 = vpack.c.b16 %v2705, %v2704
      %v2715 = vsel %vm837, %v265, 0
      %2717 = vmatprep.subr.bf16.mxu0 0
      %2718 = vmatpush1.bf16.msra.mxu0 %v2706
      %2719 = vmatprep.subr.bf16.mxu0 0
      %2720 = vmatpush1.bf16.msra.mxu0 %v2707
      %2721 = vmatprep.subr.bf16.mxu0 0
      %2722 = vmatpush1.bf16.msra.mxu0 %v2708
      %2723 = vmatprep.subr.bf16.mxu0 0
      %2724 = vmatpush1.bf16.msra.mxu0 %v2709
      %2725 = vmatprep.subr.bf16.mxu0 0
      %2726 = vmatpush1.bf16.msra.mxu0 0
      %2727 = vmatprep.subr.bf16.mxu0 0
      %2728 = vmatpush1.bf16.msra.mxu0 0
      %2729 = vmatprep.subr.bf16.mxu0 0
      %2730 = vmatpush1.bf16.msra.mxu0 0
      %2731 = vmatprep.subr.bf16.mxu0 0
      %2732 = vmatpush1.bf16.msra.mxu0 0
      %2733 = vmatprep.subr.bf16.mxu0 0
      %2734 = vmatpush1.bf16.msra.mxu0 0
      %2735 = vmatprep.subr.bf16.mxu0 0
      %2736 = vmatpush1.bf16.msra.mxu0 0
      %2737 = vmatprep.subr.bf16.mxu0 0
      %2738 = vmatpush1.bf16.msra.mxu0 0
      %2739 = vmatprep.subr.bf16.mxu0 0
      %2740 = vmatpush1.bf16.msra.mxu0 0
      %2741 = vmatprep.subr.bf16.mxu0 0
      %2742 = vmatpush1.bf16.msra.mxu0 0
      %2743 = vmatprep.subr.bf16.mxu0 0
      %2744 = vmatpush1.bf16.msra.mxu0 0
      %2745 = vmatprep.subr.bf16.mxu0 0
      %2746 = vmatpush1.bf16.msra.mxu0 0
      %2747 = vmatprep.subr.bf16.mxu0 0
      %2748 = vmatpush1.bf16.msra.mxu0 0
      %2749 = vmatprep.mubr.bf16.mxu0 0
      %2750 = vmatmul.mubr.bf16.gmra.mrb[0].mxu0 %v2715
      %v2751 = vpop.f32.mrb[0].mxu0
      %v2752 = vadd.f32 0.0, %v2751
      %v2753 = vpop.f32.mrb[0].mxu0
      %v2754 = vpop.f32.mrb[0].mxu0
      %v2755 = vpop.f32.mrb[0].mxu0
      %2756 = vdwg.mxu0
      %v2765 = vunpack.c.l.b16 %v533
      %v2766 = vunpack.c.l.b16 %v534
      %v2767 = vunpack.c.l.b16 %v535
      %v2768 = vunpack.c.l.b16 %v536
      %v2769 = vunpack.c.l.b16 %v537
      %v2770 = vunpack.c.l.b16 %v538
      %v2771 = vunpack.c.l.b16 %v539
      %v2772 = vunpack.c.l.b16 %v540
      %v2773 = vpack.c.b16 %v2766, %v2765
      %v2774 = vpack.c.b16 %v2768, %v2767
      %v2775 = vpack.c.b16 %v2770, %v2769
      %v2776 = vpack.c.b16 %v2772, %v2771
      %v2782 = vsel %vm837, %v266, 0
      %2784 = vmatprep.subr.bf16.mxu0 0
      %2785 = vmatpush1.bf16.msra.mxu0 %v2773
      %2786 = vmatprep.subr.bf16.mxu0 0
      %2787 = vmatpush1.bf16.msra.mxu0 %v2774
      %2788 = vmatprep.subr.bf16.mxu0 0
      %2789 = vmatpush1.bf16.msra.mxu0 %v2775
      %2790 = vmatprep.subr.bf16.mxu0 0
      %2791 = vmatpush1.bf16.msra.mxu0 %v2776
      %2792 = vmatprep.subr.bf16.mxu0 0
      %2793 = vmatpush1.bf16.msra.mxu0 0
      %2794 = vmatprep.subr.bf16.mxu0 0
      %2795 = vmatpush1.bf16.msra.mxu0 0
      %2796 = vmatprep.subr.bf16.mxu0 0
      %2797 = vmatpush1.bf16.msra.mxu0 0
      %2798 = vmatprep.subr.bf16.mxu0 0
      %2799 = vmatpush1.bf16.msra.mxu0 0
      %2800 = vmatprep.subr.bf16.mxu0 0
      %2801 = vmatpush1.bf16.msra.mxu0 0
      %2802 = vmatprep.subr.bf16.mxu0 0
      %2803 = vmatpush1.bf16.msra.mxu0 0
      %2804 = vmatprep.subr.bf16.mxu0 0
      %2805 = vmatpush1.bf16.msra.mxu0 0
      %2806 = vmatprep.subr.bf16.mxu0 0
      %2807 = vmatpush1.bf16.msra.mxu0 0
      %2808 = vmatprep.subr.bf16.mxu0 0
      %2809 = vmatpush1.bf16.msra.mxu0 0
      %2810 = vmatprep.subr.bf16.mxu0 0
      %2811 = vmatpush1.bf16.msra.mxu0 0
      %2812 = vmatprep.subr.bf16.mxu0 0
      %2813 = vmatpush1.bf16.msra.mxu0 0
      %2814 = vmatprep.subr.bf16.mxu0 0
      %2815 = vmatpush1.bf16.msra.mxu0 0
      %2816 = vmatprep.mubr.bf16.mxu0 0
      %2817 = vmatmul.mubr.bf16.gmra.mrb[0].mxu0 %v2782
      %v2818 = vpop.f32.mrb[0].mxu0
      %v2819 = vadd.f32 0.0, %v2818
      %v2820 = vpop.f32.mrb[0].mxu0
      %v2821 = vpop.f32.mrb[0].mxu0
      %v2822 = vpop.f32.mrb[0].mxu0
      %2823 = vdwg.mxu0
      %v2832 = vunpack.c.l.b16 %v541
      %v2833 = vunpack.c.l.b16 %v542
      %v2834 = vunpack.c.l.b16 %v543
      %v2835 = vunpack.c.l.b16 %v544
      %v2836 = vunpack.c.l.b16 %v545
      %v2837 = vunpack.c.l.b16 %v546
      %v2838 = vunpack.c.l.b16 %v547
      %v2839 = vunpack.c.l.b16 %v548
      %v2840 = vpack.c.b16 %v2833, %v2832
      %v2841 = vpack.c.b16 %v2835, %v2834
      %v2842 = vpack.c.b16 %v2837, %v2836
      %v2843 = vpack.c.b16 %v2839, %v2838
      %v2849 = vsel %vm837, %v267, 0
      %2851 = vmatprep.subr.bf16.mxu0 0
      %2852 = vmatpush1.bf16.msra.mxu0 %v2840
      %2853 = vmatprep.subr.bf16.mxu0 0
      %2854 = vmatpush1.bf16.msra.mxu0 %v2841
      %2855 = vmatprep.subr.bf16.mxu0 0
      %2856 = vmatpush1.bf16.msra.mxu0 %v2842
      %2857 = vmatprep.subr.bf16.mxu0 0
      %2858 = vmatpush1.bf16.msra.mxu0 %v2843
      %2859 = vmatprep.subr.bf16.mxu0 0
      %2860 = vmatpush1.bf16.msra.mxu0 0
      %2861 = vmatprep.subr.bf16.mxu0 0
      %2862 = vmatpush1.bf16.msra.mxu0 0
      %2863 = vmatprep.subr.bf16.mxu0 0
      %2864 = vmatpush1.bf16.msra.mxu0 0
      %2865 = vmatprep.subr.bf16.mxu0 0
      %2866 = vmatpush1.bf16.msra.mxu0 0
      %2867 = vmatprep.subr.bf16.mxu0 0
      %2868 = vmatpush1.bf16.msra.mxu0 0
      %2869 = vmatprep.subr.bf16.mxu0 0
      %2870 = vmatpush1.bf16.msra.mxu0 0
      %2871 = vmatprep.subr.bf16.mxu0 0
      %2872 = vmatpush1.bf16.msra.mxu0 0
      %2873 = vmatprep.subr.bf16.mxu0 0
      %2874 = vmatpush1.bf16.msra.mxu0 0
      %2875 = vmatprep.subr.bf16.mxu0 0
      %2876 = vmatpush1.bf16.msra.mxu0 0
      %2877 = vmatprep.subr.bf16.mxu0 0
      %2878 = vmatpush1.bf16.msra.mxu0 0
      %2879 = vmatprep.subr.bf16.mxu0 0
      %2880 = vmatpush1.bf16.msra.mxu0 0
      %2881 = vmatprep.subr.bf16.mxu0 0
      %2882 = vmatpush1.bf16.msra.mxu0 0
      %2883 = vmatprep.mubr.bf16.mxu0 0
      %2884 = vmatmul.mubr.bf16.gmra.mrb[0].mxu0 %v2849
      %v2885 = vpop.f32.mrb[0].mxu0
      %v2886 = vadd.f32 0.0, %v2885
      %v2887 = vpop.f32.mrb[0].mxu0
      %v2888 = vpop.f32.mrb[0].mxu0
      %v2889 = vpop.f32.mrb[0].mxu0
      %2890 = vdwg.mxu0
      %v2899 = vunpack.c.l.b16 %v549
      %v2900 = vunpack.c.l.b16 %v550
      %v2901 = vunpack.c.l.b16 %v551
      %v2902 = vunpack.c.l.b16 %v552
      %v2903 = vunpack.c.l.b16 %v553
      %v2904 = vunpack.c.l.b16 %v554
      %v2905 = vunpack.c.l.b16 %v555
      %v2906 = vunpack.c.l.b16 %v556
      %v2907 = vpack.c.b16 %v2900, %v2899
      %v2908 = vpack.c.b16 %v2902, %v2901
      %v2909 = vpack.c.b16 %v2904, %v2903
      %v2910 = vpack.c.b16 %v2906, %v2905
      %v2916 = vsel %vm837, %v268, 0
      %2918 = vmatprep.subr.bf16.mxu0 0
      %2919 = vmatpush1.bf16.msra.mxu0 %v2907
      %2920 = vmatprep.subr.bf16.mxu0 0
      %2921 = vmatpush1.bf16.msra.mxu0 %v2908
      %2922 = vmatprep.subr.bf16.mxu0 0
      %2923 = vmatpush1.bf16.msra.mxu0 %v2909
      %2924 = vmatprep.subr.bf16.mxu0 0
      %2925 = vmatpush1.bf16.msra.mxu0 %v2910
      %2926 = vmatprep.subr.bf16.mxu0 0
      %2927 = vmatpush1.bf16.msra.mxu0 0
      %2928 = vmatprep.subr.bf16.mxu0 0
      %2929 = vmatpush1.bf16.msra.mxu0 0
      %2930 = vmatprep.subr.bf16.mxu0 0
      %2931 = vmatpush1.bf16.msra.mxu0 0
      %2932 = vmatprep.subr.bf16.mxu0 0
      %2933 = vmatpush1.bf16.msra.mxu0 0
      %2934 = vmatprep.subr.bf16.mxu0 0
      %2935 = vmatpush1.bf16.msra.mxu0 0
      %2936 = vmatprep.subr.bf16.mxu0 0
      %2937 = vmatpush1.bf16.msra.mxu0 0
      %2938 = vmatprep.subr.bf16.mxu0 0
      %2939 = vmatpush1.bf16.msra.mxu0 0
      %2940 = vmatprep.subr.bf16.mxu0 0
      %2941 = vmatpush1.bf16.msra.mxu0 0
      %2942 = vmatprep.subr.bf16.mxu0 0
      %2943 = vmatpush1.bf16.msra.mxu0 0
      %2944 = vmatprep.subr.bf16.mxu0 0
      %2945 = vmatpush1.bf16.msra.mxu0 0
      %2946 = vmatprep.subr.bf16.mxu0 0
      %2947 = vmatpush1.bf16.msra.mxu0 0
      %2948 = vmatprep.subr.bf16.mxu0 0
      %2949 = vmatpush1.bf16.msra.mxu0 0
      %2950 = vmatprep.mubr.bf16.mxu0 0
      %2951 = vmatmul.mubr.bf16.gmra.mrb[0].mxu0 %v2916
      %v2952 = vpop.f32.mrb[0].mxu0
      %v2953 = vadd.f32 0.0, %v2952
      %v2954 = vpop.f32.mrb[0].mxu0
      %v2955 = vpop.f32.mrb[0].mxu0
      %v2956 = vpop.f32.mrb[0].mxu0
      %2957 = vdwg.mxu0
      %v2966 = vunpack.c.l.b16 %v557
      %v2967 = vunpack.c.l.b16 %v558
      %v2968 = vunpack.c.l.b16 %v559
      %v2969 = vunpack.c.l.b16 %v560
      %v2970 = vunpack.c.l.b16 %v561
      %v2971 = vunpack.c.l.b16 %v562
      %v2972 = vunpack.c.l.b16 %v563
      %v2973 = vunpack.c.l.b16 %v564
      %v2974 = vpack.c.b16 %v2967, %v2966
      %v2975 = vpack.c.b16 %v2969, %v2968
      %v2976 = vpack.c.b16 %v2971, %v2970
      %v2977 = vpack.c.b16 %v2973, %v2972
      %v2983 = vsel %vm837, %v269, 0
      %2985 = vmatprep.subr.bf16.mxu0 0
      %2986 = vmatpush1.bf16.msra.mxu0 %v2974
      %2987 = vmatprep.subr.bf16.mxu0 0
      %2988 = vmatpush1.bf16.msra.mxu0 %v2975
      %2989 = vmatprep.subr.bf16.mxu0 0
      %2990 = vmatpush1.bf16.msra.mxu0 %v2976
      %2991 = vmatprep.subr.bf16.mxu0 0
      %2992 = vmatpush1.bf16.msra.mxu0 %v2977
      %2993 = vmatprep.subr.bf16.mxu0 0
      %2994 = vmatpush1.bf16.msra.mxu0 0
      %2995 = vmatprep.subr.bf16.mxu0 0
      %2996 = vmatpush1.bf16.msra.mxu0 0
      %2997 = vmatprep.subr.bf16.mxu0 0
      %2998 = vmatpush1.bf16.msra.mxu0 0
      %2999 = vmatprep.subr.bf16.mxu0 0
      %3000 = vmatpush1.bf16.msra.mxu0 0
      %3001 = vmatprep.subr.bf16.mxu0 0
      %3002 = vmatpush1.bf16.msra.mxu0 0
      %3003 = vmatprep.subr.bf16.mxu0 0
      %3004 = vmatpush1.bf16.msra.mxu0 0
      %3005 = vmatprep.subr.bf16.mxu0 0
      %3006 = vmatpush1.bf16.msra.mxu0 0
      %3007 = vmatprep.subr.bf16.mxu0 0
      %3008 = vmatpush1.bf16.msra.mxu0 0
      %3009 = vmatprep.subr.bf16.mxu0 0
      %3010 = vmatpush1.bf16.msra.mxu0 0
      %3011 = vmatprep.subr.bf16.mxu0 0
      %3012 = vmatpush1.bf16.msra.mxu0 0
      %3013 = vmatprep.subr.bf16.mxu0 0
      %3014 = vmatpush1.bf16.msra.mxu0 0
      %3015 = vmatprep.subr.bf16.mxu0 0
      %3016 = vmatpush1.bf16.msra.mxu0 0
      %3017 = vmatprep.mubr.bf16.mxu0 0
      %3018 = vmatmul.mubr.bf16.gmra.mrb[0].mxu0 %v2983
      %v3019 = vpop.f32.mrb[0].mxu0
      %v3020 = vadd.f32 0.0, %v3019
      %v3021 = vpop.f32.mrb[0].mxu0
      %v3022 = vpop.f32.mrb[0].mxu0
      %v3023 = vpop.f32.mrb[0].mxu0
      %3024 = vdwg.mxu0
      %v3033 = vunpack.c.l.b16 %v565
      %v3034 = vunpack.c.l.b16 %v566
      %v3035 = vunpack.c.l.b16 %v567
      %v3036 = vunpack.c.l.b16 %v568
      %v3037 = vunpack.c.l.b16 %v569
      %v3038 = vunpack.c.l.b16 %v570
      %v3039 = vunpack.c.l.b16 %v571
      %v3040 = vunpack.c.l.b16 %v572
      %v3041 = vpack.c.b16 %v3034, %v3033
      %v3042 = vpack.c.b16 %v3036, %v3035
      %v3043 = vpack.c.b16 %v3038, %v3037
      %v3044 = vpack.c.b16 %v3040, %v3039
      %v3050 = vsel %vm837, %v270, 0
      %3052 = vmatprep.subr.bf16.mxu0 0
      %3053 = vmatpush1.bf16.msra.mxu0 %v3041
      %3054 = vmatprep.subr.bf16.mxu0 0
      %3055 = vmatpush1.bf16.msra.mxu0 %v3042
      %3056 = vmatprep.subr.bf16.mxu0 0
      %3057 = vmatpush1.bf16.msra.mxu0 %v3043
      %3058 = vmatprep.subr.bf16.mxu0 0
      %3059 = vmatpush1.bf16.msra.mxu0 %v3044
      %3060 = vmatprep.subr.bf16.mxu0 0
      %3061 = vmatpush1.bf16.msra.mxu0 0
      %3062 = vmatprep.subr.bf16.mxu0 0
      %3063 = vmatpush1.bf16.msra.mxu0 0
      %3064 = vmatprep.subr.bf16.mxu0 0
      %3065 = vmatpush1.bf16.msra.mxu0 0
      %3066 = vmatprep.subr.bf16.mxu0 0
      %3067 = vmatpush1.bf16.msra.mxu0 0
      %3068 = vmatprep.subr.bf16.mxu0 0
      %3069 = vmatpush1.bf16.msra.mxu0 0
      %3070 = vmatprep.subr.bf16.mxu0 0
      %3071 = vmatpush1.bf16.msra.mxu0 0
      %3072 = vmatprep.subr.bf16.mxu0 0
      %3073 = vmatpush1.bf16.msra.mxu0 0
      %3074 = vmatprep.subr.bf16.mxu0 0
      %3075 = vmatpush1.bf16.msra.mxu0 0
      %3076 = vmatprep.subr.bf16.mxu0 0
      %3077 = vmatpush1.bf16.msra.mxu0 0
      %3078 = vmatprep.subr.bf16.mxu0 0
      %3079 = vmatpush1.bf16.msra.mxu0 0
      %3080 = vmatprep.subr.bf16.mxu0 0
      %3081 = vmatpush1.bf16.msra.mxu0 0
      %3082 = vmatprep.subr.bf16.mxu0 0
      %3083 = vmatpush1.bf16.msra.mxu0 0
      %3084 = vmatprep.mubr.bf16.mxu0 0
      %3085 = vmatmul.mubr.bf16.gmra.mrb[0].mxu0 %v3050
      %v3086 = vpop.f32.mrb[0].mxu0
      %v3087 = vadd.f32 0.0, %v3086
      %v3088 = vpop.f32.mrb[0].mxu0
      %v3089 = vpop.f32.mrb[0].mxu0
      %v3090 = vpop.f32.mrb[0].mxu0
      %3091 = vdwg.mxu0
      %v3100 = vunpack.c.l.b16 %v573
      %v3101 = vunpack.c.l.b16 %v574
      %v3102 = vunpack.c.l.b16 %v575
      %v3103 = vunpack.c.l.b16 %v576
      %v3104 = vunpack.c.l.b16 %v577
      %v3105 = vunpack.c.l.b16 %v578
      %v3106 = vunpack.c.l.b16 %v579
      %v3107 = vunpack.c.l.b16 %v580
      %v3108 = vpack.c.b16 %v3101, %v3100
      %v3109 = vpack.c.b16 %v3103, %v3102
      %v3110 = vpack.c.b16 %v3105, %v3104
      %v3111 = vpack.c.b16 %v3107, %v3106
      %v3117 = vsel %vm837, %v271, 0
      %3119 = vmatprep.subr.bf16.mxu0 0
      %3120 = vmatpush1.bf16.msra.mxu0 %v3108
      %3121 = vmatprep.subr.bf16.mxu0 0
      %3122 = vmatpush1.bf16.msra.mxu0 %v3109
      %3123 = vmatprep.subr.bf16.mxu0 0
      %3124 = vmatpush1.bf16.msra.mxu0 %v3110
      %3125 = vmatprep.subr.bf16.mxu0 0
      %3126 = vmatpush1.bf16.msra.mxu0 %v3111
      %3127 = vmatprep.subr.bf16.mxu0 0
      %3128 = vmatpush1.bf16.msra.mxu0 0
      %3129 = vmatprep.subr.bf16.mxu0 0
      %3130 = vmatpush1.bf16.msra.mxu0 0
      %3131 = vmatprep.subr.bf16.mxu0 0
      %3132 = vmatpush1.bf16.msra.mxu0 0
      %3133 = vmatprep.subr.bf16.mxu0 0
      %3134 = vmatpush1.bf16.msra.mxu0 0
      %3135 = vmatprep.subr.bf16.mxu0 0
      %3136 = vmatpush1.bf16.msra.mxu0 0
      %3137 = vmatprep.subr.bf16.mxu0 0
      %3138 = vmatpush1.bf16.msra.mxu0 0
      %3139 = vmatprep.subr.bf16.mxu0 0
      %3140 = vmatpush1.bf16.msra.mxu0 0
      %3141 = vmatprep.subr.bf16.mxu0 0
      %3142 = vmatpush1.bf16.msra.mxu0 0
      %3143 = vmatprep.subr.bf16.mxu0 0
      %3144 = vmatpush1.bf16.msra.mxu0 0
      %3145 = vmatprep.subr.bf16.mxu0 0
      %3146 = vmatpush1.bf16.msra.mxu0 0
      %3147 = vmatprep.subr.bf16.mxu0 0
      %3148 = vmatpush1.bf16.msra.mxu0 0
      %3149 = vmatprep.subr.bf16.mxu0 0
      %3150 = vmatpush1.bf16.msra.mxu0 0
      %3151 = vmatprep.mubr.bf16.mxu0 0
      %3152 = vmatmul.mubr.bf16.gmra.mrb[0].mxu0 %v3117
      %v3153 = vpop.f32.mrb[0].mxu0
      %v3154 = vadd.f32 0.0, %v3153
      %v3155 = vpop.f32.mrb[0].mxu0
      %v3156 = vpop.f32.mrb[0].mxu0
      %v3157 = vpop.f32.mrb[0].mxu0
      %3158 = vdwg.mxu0
      %v3167 = vunpack.c.l.b16 %v581
      %v3168 = vunpack.c.l.b16 %v582
      %v3169 = vunpack.c.l.b16 %v583
      %v3170 = vunpack.c.l.b16 %v584
      %v3171 = vunpack.c.l.b16 %v585
      %v3172 = vunpack.c.l.b16 %v586
      %v3173 = vunpack.c.l.b16 %v587
      %v3174 = vunpack.c.l.b16 %v588
      %v3175 = vpack.c.b16 %v3168, %v3167
      %v3176 = vpack.c.b16 %v3170, %v3169
      %v3177 = vpack.c.b16 %v3172, %v3171
      %v3178 = vpack.c.b16 %v3174, %v3173
      %v3184 = vsel %vm837, %v272, 0
      %3186 = vmatprep.subr.bf16.mxu0 0
      %3187 = vmatpush1.bf16.msra.mxu0 %v3175
      %3188 = vmatprep.subr.bf16.mxu0 0
      %3189 = vmatpush1.bf16.msra.mxu0 %v3176
      %3190 = vmatprep.subr.bf16.mxu0 0
      %3191 = vmatpush1.bf16.msra.mxu0 %v3177
      %3192 = vmatprep.subr.bf16.mxu0 0
      %3193 = vmatpush1.bf16.msra.mxu0 %v3178
      %3194 = vmatprep.subr.bf16.mxu0 0
      %3195 = vmatpush1.bf16.msra.mxu0 0
      %3196 = vmatprep.subr.bf16.mxu0 0
      %3197 = vmatpush1.bf16.msra.mxu0 0
      %3198 = vmatprep.subr.bf16.mxu0 0
      %3199 = vmatpush1.bf16.msra.mxu0 0
      %3200 = vmatprep.subr.bf16.mxu0 0
      %3201 = vmatpush1.bf16.msra.mxu0 0
      %3202 = vmatprep.subr.bf16.mxu0 0
      %3203 = vmatpush1.bf16.msra.mxu0 0
      %3204 = vmatprep.subr.bf16.mxu0 0
      %3205 = vmatpush1.bf16.msra.mxu0 0
      %3206 = vmatprep.subr.bf16.mxu0 0
      %3207 = vmatpush1.bf16.msra.mxu0 0
      %3208 = vmatprep.subr.bf16.mxu0 0
      %3209 = vmatpush1.bf16.msra.mxu0 0
      %3210 = vmatprep.subr.bf16.mxu0 0
      %3211 = vmatpush1.bf16.msra.mxu0 0
      %3212 = vmatprep.subr.bf16.mxu0 0
      %3213 = vmatpush1.bf16.msra.mxu0 0
      %3214 = vmatprep.subr.bf16.mxu0 0
      %3215 = vmatpush1.bf16.msra.mxu0 0
      %3216 = vmatprep.subr.bf16.mxu0 0
      %3217 = vmatpush1.bf16.msra.mxu0 0
      %3218 = vmatprep.mubr.bf16.mxu0 0
      %3219 = vmatmul.mubr.bf16.gmra.mrb[0].mxu0 %v3184
      %v3220 = vpop.f32.mrb[0].mxu0
      %v3221 = vadd.f32 0.0, %v3220
      %v3222 = vpop.f32.mrb[0].mxu0
      %v3223 = vpop.f32.mrb[0].mxu0
      %v3224 = vpop.f32.mrb[0].mxu0
      %3225 = vdwg.mxu0
      %v3234 = vunpack.c.l.b16 %v589
      %v3235 = vunpack.c.l.b16 %v590
      %v3236 = vunpack.c.l.b16 %v591
      %v3237 = vunpack.c.l.b16 %v592
      %v3238 = vunpack.c.l.b16 %v593
      %v3239 = vunpack.c.l.b16 %v594
      %v3240 = vunpack.c.l.b16 %v595
      %v3241 = vunpack.c.l.b16 %v596
      %v3242 = vpack.c.b16 %v3235, %v3234
      %v3243 = vpack.c.b16 %v3237, %v3236
      %v3244 = vpack.c.b16 %v3239, %v3238
      %v3245 = vpack.c.b16 %v3241, %v3240
      %v3251 = vsel %vm837, %v273, 0
      %3253 = vmatprep.subr.bf16.mxu0 0
      %3254 = vmatpush1.bf16.msra.mxu0 %v3242
      %3255 = vmatprep.subr.bf16.mxu0 0
      %3256 = vmatpush1.bf16.msra.mxu0 %v3243
      %3257 = vmatprep.subr.bf16.mxu0 0
      %3258 = vmatpush1.bf16.msra.mxu0 %v3244
      %3259 = vmatprep.subr.bf16.mxu0 0
      %3260 = vmatpush1.bf16.msra.mxu0 %v3245
      %3261 = vmatprep.subr.bf16.mxu0 0
      %3262 = vmatpush1.bf16.msra.mxu0 0
      %3263 = vmatprep.subr.bf16.mxu0 0
      %3264 = vmatpush1.bf16.msra.mxu0 0
      %3265 = vmatprep.subr.bf16.mxu0 0
      %3266 = vmatpush1.bf16.msra.mxu0 0
      %3267 = vmatprep.subr.bf16.mxu0 0
      %3268 = vmatpush1.bf16.msra.mxu0 0
      %3269 = vmatprep.subr.bf16.mxu0 0
      %3270 = vmatpush1.bf16.msra.mxu0 0
      %3271 = vmatprep.subr.bf16.mxu0 0
      %3272 = vmatpush1.bf16.msra.mxu0 0
      %3273 = vmatprep.subr.bf16.mxu0 0
      %3274 = vmatpush1.bf16.msra.mxu0 0
      %3275 = vmatprep.subr.bf16.mxu0 0
      %3276 = vmatpush1.bf16.msra.mxu0 0
      %3277 = vmatprep.subr.bf16.mxu0 0
      %3278 = vmatpush1.bf16.msra.mxu0 0
      %3279 = vmatprep.subr.bf16.mxu0 0
      %3280 = vmatpush1.bf16.msra.mxu0 0
      %3281 = vmatprep.subr.bf16.mxu0 0
      %3282 = vmatpush1.bf16.msra.mxu0 0
      %3283 = vmatprep.subr.bf16.mxu0 0
      %3284 = vmatpush1.bf16.msra.mxu0 0
      %3285 = vmatprep.mubr.bf16.mxu0 0
      %3286 = vmatmul.mubr.bf16.gmra.mrb[0].mxu0 %v3251
      %v3287 = vpop.f32.mrb[0].mxu0
      %v3288 = vadd.f32 0.0, %v3287
      %v3289 = vpop.f32.mrb[0].mxu0
      %v3290 = vpop.f32.mrb[0].mxu0
      %v3291 = vpop.f32.mrb[0].mxu0
      %3292 = vdwg.mxu0
      %v3301 = vunpack.c.l.b16 %v597
      %v3302 = vunpack.c.l.b16 %v598
      %v3303 = vunpack.c.l.b16 %v599
      %v3304 = vunpack.c.l.b16 %v600
      %v3305 = vunpack.c.l.b16 %v601
      %v3306 = vunpack.c.l.b16 %v602
      %v3307 = vunpack.c.l.b16 %v603
      %v3308 = vunpack.c.l.b16 %v604
      %v3309 = vpack.c.b16 %v3302, %v3301
      %v3310 = vpack.c.b16 %v3304, %v3303
      %v3311 = vpack.c.b16 %v3306, %v3305
      %v3312 = vpack.c.b16 %v3308, %v3307
      %v3318 = vsel %vm837, %v274, 0
      %3320 = vmatprep.subr.bf16.mxu0 0
      %3321 = vmatpush1.bf16.msra.mxu0 %v3309
      %3322 = vmatprep.subr.bf16.mxu0 0
      %3323 = vmatpush1.bf16.msra.mxu0 %v3310
      %3324 = vmatprep.subr.bf16.mxu0 0
      %3325 = vmatpush1.bf16.msra.mxu0 %v3311
      %3326 = vmatprep.subr.bf16.mxu0 0
      %3327 = vmatpush1.bf16.msra.mxu0 %v3312
      %3328 = vmatprep.subr.bf16.mxu0 0
      %3329 = vmatpush1.bf16.msra.mxu0 0
      %3330 = vmatprep.subr.bf16.mxu0 0
      %3331 = vmatpush1.bf16.msra.mxu0 0
      %3332 = vmatprep.subr.bf16.mxu0 0
      %3333 = vmatpush1.bf16.msra.mxu0 0
      %3334 = vmatprep.subr.bf16.mxu0 0
      %3335 = vmatpush1.bf16.msra.mxu0 0
      %3336 = vmatprep.subr.bf16.mxu0 0
      %3337 = vmatpush1.bf16.msra.mxu0 0
      %3338 = vmatprep.subr.bf16.mxu0 0
      %3339 = vmatpush1.bf16.msra.mxu0 0
      %3340 = vmatprep.subr.bf16.mxu0 0
      %3341 = vmatpush1.bf16.msra.mxu0 0
      %3342 = vmatprep.subr.bf16.mxu0 0
      %3343 = vmatpush1.bf16.msra.mxu0 0
      %3344 = vmatprep.subr.bf16.mxu0 0
      %3345 = vmatpush1.bf16.msra.mxu0 0
      %3346 = vmatprep.subr.bf16.mxu0 0
      %3347 = vmatpush1.bf16.msra.mxu0 0
      %3348 = vmatprep.subr.bf16.mxu0 0
      %3349 = vmatpush1.bf16.msra.mxu0 0
      %3350 = vmatprep.subr.bf16.mxu0 0
      %3351 = vmatpush1.bf16.msra.mxu0 0
      %3352 = vmatprep.mubr.bf16.mxu0 0
      %3353 = vmatmul.mubr.bf16.gmra.mrb[0].mxu0 %v3318
      %v3354 = vpop.f32.mrb[0].mxu0
      %v3355 = vadd.f32 0.0, %v3354
      %v3356 = vpop.f32.mrb[0].mxu0
      %v3357 = vpop.f32.mrb[0].mxu0
      %v3358 = vpop.f32.mrb[0].mxu0
      %3359 = vdwg.mxu0
      %v3368 = vunpack.c.l.b16 %v605
      %v3369 = vunpack.c.l.b16 %v606
      %v3370 = vunpack.c.l.b16 %v607
      %v3371 = vunpack.c.l.b16 %v608
      %v3372 = vunpack.c.l.b16 %v609
      %v3373 = vunpack.c.l.b16 %v610
      %v3374 = vunpack.c.l.b16 %v611
      %v3375 = vunpack.c.l.b16 %v612
      %v3376 = vpack.c.b16 %v3369, %v3368
      %v3377 = vpack.c.b16 %v3371, %v3370
      %v3378 = vpack.c.b16 %v3373, %v3372
      %v3379 = vpack.c.b16 %v3375, %v3374
      %v3385 = vsel %vm837, %v275, 0
      %3387 = vmatprep.subr.bf16.mxu0 0
      %3388 = vmatpush1.bf16.msra.mxu0 %v3376
      %3389 = vmatprep.subr.bf16.mxu0 0
      %3390 = vmatpush1.bf16.msra.mxu0 %v3377
      %3391 = vmatprep.subr.bf16.mxu0 0
      %3392 = vmatpush1.bf16.msra.mxu0 %v3378
      %3393 = vmatprep.subr.bf16.mxu0 0
      %3394 = vmatpush1.bf16.msra.mxu0 %v3379
      %3395 = vmatprep.subr.bf16.mxu0 0
      %3396 = vmatpush1.bf16.msra.mxu0 0
      %3397 = vmatprep.subr.bf16.mxu0 0
      %3398 = vmatpush1.bf16.msra.mxu0 0
      %3399 = vmatprep.subr.bf16.mxu0 0
      %3400 = vmatpush1.bf16.msra.mxu0 0
      %3401 = vmatprep.subr.bf16.mxu0 0
      %3402 = vmatpush1.bf16.msra.mxu0 0
      %3403 = vmatprep.subr.bf16.mxu0 0
      %3404 = vmatpush1.bf16.msra.mxu0 0
      %3405 = vmatprep.subr.bf16.mxu0 0
      %3406 = vmatpush1.bf16.msra.mxu0 0
      %3407 = vmatprep.subr.bf16.mxu0 0
      %3408 = vmatpush1.bf16.msra.mxu0 0
      %3409 = vmatprep.subr.bf16.mxu0 0
      %3410 = vmatpush1.bf16.msra.mxu0 0
      %3411 = vmatprep.subr.bf16.mxu0 0
      %3412 = vmatpush1.bf16.msra.mxu0 0
      %3413 = vmatprep.subr.bf16.mxu0 0
      %3414 = vmatpush1.bf16.msra.mxu0 0
      %3415 = vmatprep.subr.bf16.mxu0 0
      %3416 = vmatpush1.bf16.msra.mxu0 0
      %3417 = vmatprep.subr.bf16.mxu0 0
      %3418 = vmatpush1.bf16.msra.mxu0 0
      %3419 = vmatprep.mubr.bf16.mxu0 0
      %3420 = vmatmul.mubr.bf16.gmra.mrb[0].mxu0 %v3385
      %v3421 = vpop.f32.mrb[0].mxu0
      %v3422 = vadd.f32 0.0, %v3421
      %v3423 = vpop.f32.mrb[0].mxu0
      %v3424 = vpop.f32.mrb[0].mxu0
      %v3425 = vpop.f32.mrb[0].mxu0
      %3426 = vdwg.mxu0
      %v3435 = vunpack.c.l.b16 %v613
      %v3436 = vunpack.c.l.b16 %v614
      %v3437 = vunpack.c.l.b16 %v615
      %v3438 = vunpack.c.l.b16 %v616
      %v3439 = vunpack.c.l.b16 %v617
      %v3440 = vunpack.c.l.b16 %v618
      %v3441 = vunpack.c.l.b16 %v619
      %v3442 = vunpack.c.l.b16 %v620
      %v3443 = vpack.c.b16 %v3436, %v3435
      %v3444 = vpack.c.b16 %v3438, %v3437
      %v3445 = vpack.c.b16 %v3440, %v3439
      %v3446 = vpack.c.b16 %v3442, %v3441
      %v3452 = vsel %vm837, %v276, 0
      %3454 = vmatprep.subr.bf16.mxu0 0
      %3455 = vmatpush1.bf16.msra.mxu0 %v3443
      %3456 = vmatprep.subr.bf16.mxu0 0
      %3457 = vmatpush1.bf16.msra.mxu0 %v3444
      %3458 = vmatprep.subr.bf16.mxu0 0
      %3459 = vmatpush1.bf16.msra.mxu0 %v3445
      %3460 = vmatprep.subr.bf16.mxu0 0
      %3461 = vmatpush1.bf16.msra.mxu0 %v3446
      %3462 = vmatprep.subr.bf16.mxu0 0
      %3463 = vmatpush1.bf16.msra.mxu0 0
      %3464 = vmatprep.subr.bf16.mxu0 0
      %3465 = vmatpush1.bf16.msra.mxu0 0
      %3466 = vmatprep.subr.bf16.mxu0 0
      %3467 = vmatpush1.bf16.msra.mxu0 0
      %3468 = vmatprep.subr.bf16.mxu0 0
      %3469 = vmatpush1.bf16.msra.mxu0 0
      %3470 = vmatprep.subr.bf16.mxu0 0
      %3471 = vmatpush1.bf16.msra.mxu0 0
      %3472 = vmatprep.subr.bf16.mxu0 0
      %3473 = vmatpush1.bf16.msra.mxu0 0
      %3474 = vmatprep.subr.bf16.mxu0 0
      %3475 = vmatpush1.bf16.msra.mxu0 0
      %3476 = vmatprep.subr.bf16.mxu0 0
      %3477 = vmatpush1.bf16.msra.mxu0 0
      %3478 = vmatprep.subr.bf16.mxu0 0
      %3479 = vmatpush1.bf16.msra.mxu0 0
      %3480 = vmatprep.subr.bf16.mxu0 0
      %3481 = vmatpush1.bf16.msra.mxu0 0
      %3482 = vmatprep.subr.bf16.mxu0 0
      %3483 = vmatpush1.bf16.msra.mxu0 0
      %3484 = vmatprep.subr.bf16.mxu0 0
      %3485 = vmatpush1.bf16.msra.mxu0 0
      %3486 = vmatprep.mubr.bf16.mxu0 0
      %3487 = vmatmul.mubr.bf16.gmra.mrb[0].mxu0 %v3452
      %v3488 = vpop.f32.mrb[0].mxu0
      %v3489 = vadd.f32 0.0, %v3488
      %v3490 = vpop.f32.mrb[0].mxu0
      %v3491 = vpop.f32.mrb[0].mxu0
      %v3492 = vpop.f32.mrb[0].mxu0
      %3493 = vdwg.mxu0
      %v3502 = vunpack.c.l.b16 %v621
      %v3503 = vunpack.c.l.b16 %v622
      %v3504 = vunpack.c.l.b16 %v623
      %v3505 = vunpack.c.l.b16 %v624
      %v3506 = vunpack.c.l.b16 %v625
      %v3507 = vunpack.c.l.b16 %v626
      %v3508 = vunpack.c.l.b16 %v627
      %v3509 = vunpack.c.l.b16 %v628
      %v3510 = vpack.c.b16 %v3503, %v3502
      %v3511 = vpack.c.b16 %v3505, %v3504
      %v3512 = vpack.c.b16 %v3507, %v3506
      %v3513 = vpack.c.b16 %v3509, %v3508
      %v3519 = vsel %vm837, %v277, 0
      %3521 = vmatprep.subr.bf16.mxu0 0
      %3522 = vmatpush1.bf16.msra.mxu0 %v3510
      %3523 = vmatprep.subr.bf16.mxu0 0
      %3524 = vmatpush1.bf16.msra.mxu0 %v3511
      %3525 = vmatprep.subr.bf16.mxu0 0
      %3526 = vmatpush1.bf16.msra.mxu0 %v3512
      %3527 = vmatprep.subr.bf16.mxu0 0
      %3528 = vmatpush1.bf16.msra.mxu0 %v3513
      %3529 = vmatprep.subr.bf16.mxu0 0
      %3530 = vmatpush1.bf16.msra.mxu0 0
      %3531 = vmatprep.subr.bf16.mxu0 0
      %3532 = vmatpush1.bf16.msra.mxu0 0
      %3533 = vmatprep.subr.bf16.mxu0 0
      %3534 = vmatpush1.bf16.msra.mxu0 0
      %3535 = vmatprep.subr.bf16.mxu0 0
      %3536 = vmatpush1.bf16.msra.mxu0 0
      %3537 = vmatprep.subr.bf16.mxu0 0
      %3538 = vmatpush1.bf16.msra.mxu0 0
      %3539 = vmatprep.subr.bf16.mxu0 0
      %3540 = vmatpush1.bf16.msra.mxu0 0
      %3541 = vmatprep.subr.bf16.mxu0 0
      %3542 = vmatpush1.bf16.msra.mxu0 0
      %3543 = vmatprep.subr.bf16.mxu0 0
      %3544 = vmatpush1.bf16.msra.mxu0 0
      %3545 = vmatprep.subr.bf16.mxu0 0
      %3546 = vmatpush1.bf16.msra.mxu0 0
      %3547 = vmatprep.subr.bf16.mxu0 0
      %3548 = vmatpush1.bf16.msra.mxu0 0
      %3549 = vmatprep.subr.bf16.mxu0 0
      %3550 = vmatpush1.bf16.msra.mxu0 0
      %3551 = vmatprep.subr.bf16.mxu0 0
      %3552 = vmatpush1.bf16.msra.mxu0 0
      %3553 = vmatprep.mubr.bf16.mxu0 0
      %3554 = vmatmul.mubr.bf16.gmra.mrb[0].mxu0 %v3519
      %v3555 = vpop.f32.mrb[0].mxu0
      %v3556 = vadd.f32 0.0, %v3555
      %v3557 = vpop.f32.mrb[0].mxu0
      %v3558 = vpop.f32.mrb[0].mxu0
      %v3559 = vpop.f32.mrb[0].mxu0
      %3560 = vdwg.mxu0
      %v3569 = vunpack.c.l.b16 %v629
      %v3570 = vunpack.c.l.b16 %v630
      %v3571 = vunpack.c.l.b16 %v631
      %v3572 = vunpack.c.l.b16 %v632
      %v3573 = vunpack.c.l.b16 %v633
      %v3574 = vunpack.c.l.b16 %v634
      %v3575 = vunpack.c.l.b16 %v635
      %v3576 = vunpack.c.l.b16 %v636
      %v3577 = vpack.c.b16 %v3570, %v3569
      %v3578 = vpack.c.b16 %v3572, %v3571
      %v3579 = vpack.c.b16 %v3574, %v3573
      %v3580 = vpack.c.b16 %v3576, %v3575
      %v3586 = vsel %vm837, %v278, 0
      %3588 = vmatprep.subr.bf16.mxu0 0
      %3589 = vmatpush1.bf16.msra.mxu0 %v3577
      %3590 = vmatprep.subr.bf16.mxu0 0
      %3591 = vmatpush1.bf16.msra.mxu0 %v3578
      %3592 = vmatprep.subr.bf16.mxu0 0
      %3593 = vmatpush1.bf16.msra.mxu0 %v3579
      %3594 = vmatprep.subr.bf16.mxu0 0
      %3595 = vmatpush1.bf16.msra.mxu0 %v3580
      %3596 = vmatprep.subr.bf16.mxu0 0
      %3597 = vmatpush1.bf16.msra.mxu0 0
      %3598 = vmatprep.subr.bf16.mxu0 0
      %3599 = vmatpush1.bf16.msra.mxu0 0
      %3600 = vmatprep.subr.bf16.mxu0 0
      %3601 = vmatpush1.bf16.msra.mxu0 0
      %3602 = vmatprep.subr.bf16.mxu0 0
      %3603 = vmatpush1.bf16.msra.mxu0 0
      %3604 = vmatprep.subr.bf16.mxu0 0
      %3605 = vmatpush1.bf16.msra.mxu0 0
      %3606 = vmatprep.subr.bf16.mxu0 0
      %3607 = vmatpush1.bf16.msra.mxu0 0
      %3608 = vmatprep.subr.bf16.mxu0 0
      %3609 = vmatpush1.bf16.msra.mxu0 0
      %3610 = vmatprep.subr.bf16.mxu0 0
      %3611 = vmatpush1.bf16.msra.mxu0 0
      %3612 = vmatprep.subr.bf16.mxu0 0
      %3613 = vmatpush1.bf16.msra.mxu0 0
      %3614 = vmatprep.subr.bf16.mxu0 0
      %3615 = vmatpush1.bf16.msra.mxu0 0
      %3616 = vmatprep.subr.bf16.mxu0 0
      %3617 = vmatpush1.bf16.msra.mxu0 0
      %3618 = vmatprep.subr.bf16.mxu0 0
      %3619 = vmatpush1.bf16.msra.mxu0 0
      %3620 = vmatprep.mubr.bf16.mxu0 0
      %3621 = vmatmul.mubr.bf16.gmra.mrb[0].mxu0 %v3586
      %v3622 = vpop.f32.mrb[0].mxu0
      %v3623 = vadd.f32 0.0, %v3622
      %v3624 = vpop.f32.mrb[0].mxu0
      %v3625 = vpop.f32.mrb[0].mxu0
      %v3626 = vpop.f32.mrb[0].mxu0
      %3627 = vdwg.mxu0
      %v3636 = vunpack.c.l.b16 %v637
      %v3637 = vunpack.c.l.b16 %v638
      %v3638 = vunpack.c.l.b16 %v639
      %v3639 = vunpack.c.l.b16 %v640
      %v3640 = vunpack.c.l.b16 %v641
      %v3641 = vunpack.c.l.b16 %v642
      %v3642 = vunpack.c.l.b16 %v643
      %v3643 = vunpack.c.l.b16 %v644
      %v3644 = vpack.c.b16 %v3637, %v3636
      %v3645 = vpack.c.b16 %v3639, %v3638
      %v3646 = vpack.c.b16 %v3641, %v3640
      %v3647 = vpack.c.b16 %v3643, %v3642
      %v3653 = vsel %vm837, %v279, 0
      %3655 = vmatprep.subr.bf16.mxu0 0
      %3656 = vmatpush1.bf16.msra.mxu0 %v3644
      %3657 = vmatprep.subr.bf16.mxu0 0
      %3658 = vmatpush1.bf16.msra.mxu0 %v3645
      %3659 = vmatprep.subr.bf16.mxu0 0
      %3660 = vmatpush1.bf16.msra.mxu0 %v3646
      %3661 = vmatprep.subr.bf16.mxu0 0
      %3662 = vmatpush1.bf16.msra.mxu0 %v3647
      %3663 = vmatprep.subr.bf16.mxu0 0
      %3664 = vmatpush1.bf16.msra.mxu0 0
      %3665 = vmatprep.subr.bf16.mxu0 0
      %3666 = vmatpush1.bf16.msra.mxu0 0
      %3667 = vmatprep.subr.bf16.mxu0 0
      %3668 = vmatpush1.bf16.msra.mxu0 0
      %3669 = vmatprep.subr.bf16.mxu0 0
      %3670 = vmatpush1.bf16.msra.mxu0 0
      %3671 = vmatprep.subr.bf16.mxu0 0
      %3672 = vmatpush1.bf16.msra.mxu0 0
      %3673 = vmatprep.subr.bf16.mxu0 0
      %3674 = vmatpush1.bf16.msra.mxu0 0
      %3675 = vmatprep.subr.bf16.mxu0 0
      %3676 = vmatpush1.bf16.msra.mxu0 0
      %3677 = vmatprep.subr.bf16.mxu0 0
      %3678 = vmatpush1.bf16.msra.mxu0 0
      %3679 = vmatprep.subr.bf16.mxu0 0
      %3680 = vmatpush1.bf16.msra.mxu0 0
      %3681 = vmatprep.subr.bf16.mxu0 0
      %3682 = vmatpush1.bf16.msra.mxu0 0
      %3683 = vmatprep.subr.bf16.mxu0 0
      %3684 = vmatpush1.bf16.msra.mxu0 0
      %3685 = vmatprep.subr.bf16.mxu0 0
      %3686 = vmatpush1.bf16.msra.mxu0 0
      %3687 = vmatprep.mubr.bf16.mxu0 0
      %3688 = vmatmul.mubr.bf16.gmra.mrb[0].mxu0 %v3653
      %v3689 = vpop.f32.mrb[0].mxu0
      %v3690 = vadd.f32 0.0, %v3689
      %v3691 = vpop.f32.mrb[0].mxu0
      %v3692 = vpop.f32.mrb[0].mxu0
      %v3693 = vpop.f32.mrb[0].mxu0
      %3694 = vdwg.mxu0
      %v3703 = vunpack.c.l.b16 %v645
      %v3704 = vunpack.c.l.b16 %v646
      %v3705 = vunpack.c.l.b16 %v647
      %v3706 = vunpack.c.l.b16 %v648
      %v3707 = vunpack.c.l.b16 %v649
      %v3708 = vunpack.c.l.b16 %v650
      %v3709 = vunpack.c.l.b16 %v651
      %v3710 = vunpack.c.l.b16 %v652
      %v3711 = vpack.c.b16 %v3704, %v3703
      %v3712 = vpack.c.b16 %v3706, %v3705
      %v3713 = vpack.c.b16 %v3708, %v3707
      %v3714 = vpack.c.b16 %v3710, %v3709
      %v3720 = vsel %vm837, %v280, 0
      %3722 = vmatprep.subr.bf16.mxu0 0
      %3723 = vmatpush1.bf16.msra.mxu0 %v3711
      %3724 = vmatprep.subr.bf16.mxu0 0
      %3725 = vmatpush1.bf16.msra.mxu0 %v3712
      %3726 = vmatprep.subr.bf16.mxu0 0
      %3727 = vmatpush1.bf16.msra.mxu0 %v3713
      %3728 = vmatprep.subr.bf16.mxu0 0
      %3729 = vmatpush1.bf16.msra.mxu0 %v3714
      %3730 = vmatprep.subr.bf16.mxu0 0
      %3731 = vmatpush1.bf16.msra.mxu0 0
      %3732 = vmatprep.subr.bf16.mxu0 0
      %3733 = vmatpush1.bf16.msra.mxu0 0
      %3734 = vmatprep.subr.bf16.mxu0 0
      %3735 = vmatpush1.bf16.msra.mxu0 0
      %3736 = vmatprep.subr.bf16.mxu0 0
      %3737 = vmatpush1.bf16.msra.mxu0 0
      %3738 = vmatprep.subr.bf16.mxu0 0
      %3739 = vmatpush1.bf16.msra.mxu0 0
      %3740 = vmatprep.subr.bf16.mxu0 0
      %3741 = vmatpush1.bf16.msra.mxu0 0
      %3742 = vmatprep.subr.bf16.mxu0 0
      %3743 = vmatpush1.bf16.msra.mxu0 0
      %3744 = vmatprep.subr.bf16.mxu0 0
      %3745 = vmatpush1.bf16.msra.mxu0 0
      %3746 = vmatprep.subr.bf16.mxu0 0
      %3747 = vmatpush1.bf16.msra.mxu0 0
      %3748 = vmatprep.subr.bf16.mxu0 0
      %3749 = vmatpush1.bf16.msra.mxu0 0
      %3750 = vmatprep.subr.bf16.mxu0 0
      %3751 = vmatpush1.bf16.msra.mxu0 0
      %3752 = vmatprep.subr.bf16.mxu0 0
      %3753 = vmatpush1.bf16.msra.mxu0 0
      %3754 = vmatprep.mubr.bf16.mxu0 0
      %3755 = vmatmul.mubr.bf16.gmra.mrb[0].mxu0 %v3720
      %v3756 = vpop.f32.mrb[0].mxu0
      %v3757 = vadd.f32 0.0, %v3756
      %v3758 = vpop.f32.mrb[0].mxu0
      %v3759 = vpop.f32.mrb[0].mxu0
      %v3760 = vpop.f32.mrb[0].mxu0
      %3761 = vdwg.mxu0
      %v3770 = vunpack.c.l.b16 %v653
      %v3771 = vunpack.c.l.b16 %v654
      %v3772 = vunpack.c.l.b16 %v655
      %v3773 = vunpack.c.l.b16 %v656
      %v3774 = vunpack.c.l.b16 %v657
      %v3775 = vunpack.c.l.b16 %v658
      %v3776 = vunpack.c.l.b16 %v659
      %v3777 = vunpack.c.l.b16 %v660
      %v3778 = vpack.c.b16 %v3771, %v3770
      %v3779 = vpack.c.b16 %v3773, %v3772
      %v3780 = vpack.c.b16 %v3775, %v3774
      %v3781 = vpack.c.b16 %v3777, %v3776
      %v3787 = vsel %vm837, %v281, 0
      %3789 = vmatprep.subr.bf16.mxu0 0
      %3790 = vmatpush1.bf16.msra.mxu0 %v3778
      %3791 = vmatprep.subr.bf16.mxu0 0
      %3792 = vmatpush1.bf16.msra.mxu0 %v3779
      %3793 = vmatprep.subr.bf16.mxu0 0
      %3794 = vmatpush1.bf16.msra.mxu0 %v3780
      %3795 = vmatprep.subr.bf16.mxu0 0
      %3796 = vmatpush1.bf16.msra.mxu0 %v3781
      %3797 = vmatprep.subr.bf16.mxu0 0
      %3798 = vmatpush1.bf16.msra.mxu0 0
      %3799 = vmatprep.subr.bf16.mxu0 0
      %3800 = vmatpush1.bf16.msra.mxu0 0
      %3801 = vmatprep.subr.bf16.mxu0 0
      %3802 = vmatpush1.bf16.msra.mxu0 0
      %3803 = vmatprep.subr.bf16.mxu0 0
      %3804 = vmatpush1.bf16.msra.mxu0 0
      %3805 = vmatprep.subr.bf16.mxu0 0
      %3806 = vmatpush1.bf16.msra.mxu0 0
      %3807 = vmatprep.subr.bf16.mxu0 0
      %3808 = vmatpush1.bf16.msra.mxu0 0
      %3809 = vmatprep.subr.bf16.mxu0 0
      %3810 = vmatpush1.bf16.msra.mxu0 0
      %3811 = vmatprep.subr.bf16.mxu0 0
      %3812 = vmatpush1.bf16.msra.mxu0 0
      %3813 = vmatprep.subr.bf16.mxu0 0
      %3814 = vmatpush1.bf16.msra.mxu0 0
      %3815 = vmatprep.subr.bf16.mxu0 0
      %3816 = vmatpush1.bf16.msra.mxu0 0
      %3817 = vmatprep.subr.bf16.mxu0 0
      %3818 = vmatpush1.bf16.msra.mxu0 0
      %3819 = vmatprep.subr.bf16.mxu0 0
      %3820 = vmatpush1.bf16.msra.mxu0 0
      %3821 = vmatprep.mubr.bf16.mxu0 0
      %3822 = vmatmul.mubr.bf16.gmra.mrb[0].mxu0 %v3787
      %v3823 = vpop.f32.mrb[0].mxu0
      %v3824 = vadd.f32 0.0, %v3823
      %v3825 = vpop.f32.mrb[0].mxu0
      %v3826 = vpop.f32.mrb[0].mxu0
      %v3827 = vpop.f32.mrb[0].mxu0
      %3828 = vdwg.mxu0
      %v3837 = vunpack.c.l.b16 %v661
      %v3838 = vunpack.c.l.b16 %v662
      %v3839 = vunpack.c.l.b16 %v663
      %v3840 = vunpack.c.l.b16 %v664
      %v3841 = vunpack.c.l.b16 %v665
      %v3842 = vunpack.c.l.b16 %v666
      %v3843 = vunpack.c.l.b16 %v667
      %v3844 = vunpack.c.l.b16 %v668
      %v3845 = vpack.c.b16 %v3838, %v3837
      %v3846 = vpack.c.b16 %v3840, %v3839
      %v3847 = vpack.c.b16 %v3842, %v3841
      %v3848 = vpack.c.b16 %v3844, %v3843
      %v3854 = vsel %vm837, %v282, 0
      %3856 = vmatprep.subr.bf16.mxu0 0
      %3857 = vmatpush1.bf16.msra.mxu0 %v3845
      %3858 = vmatprep.subr.bf16.mxu0 0
      %3859 = vmatpush1.bf16.msra.mxu0 %v3846
      %3860 = vmatprep.subr.bf16.mxu0 0
      %3861 = vmatpush1.bf16.msra.mxu0 %v3847
      %3862 = vmatprep.subr.bf16.mxu0 0
      %3863 = vmatpush1.bf16.msra.mxu0 %v3848
      %3864 = vmatprep.subr.bf16.mxu0 0
      %3865 = vmatpush1.bf16.msra.mxu0 0
      %3866 = vmatprep.subr.bf16.mxu0 0
      %3867 = vmatpush1.bf16.msra.mxu0 0
      %3868 = vmatprep.subr.bf16.mxu0 0
      %3869 = vmatpush1.bf16.msra.mxu0 0
      %3870 = vmatprep.subr.bf16.mxu0 0
      %3871 = vmatpush1.bf16.msra.mxu0 0
      %3872 = vmatprep.subr.bf16.mxu0 0
      %3873 = vmatpush1.bf16.msra.mxu0 0
      %3874 = vmatprep.subr.bf16.mxu0 0
      %3875 = vmatpush1.bf16.msra.mxu0 0
      %3876 = vmatprep.subr.bf16.mxu0 0
      %3877 = vmatpush1.bf16.msra.mxu0 0
      %3878 = vmatprep.subr.bf16.mxu0 0
      %3879 = vmatpush1.bf16.msra.mxu0 0
      %3880 = vmatprep.subr.bf16.mxu0 0
      %3881 = vmatpush1.bf16.msra.mxu0 0
      %3882 = vmatprep.subr.bf16.mxu0 0
      %3883 = vmatpush1.bf16.msra.mxu0 0
      %3884 = vmatprep.subr.bf16.mxu0 0
      %3885 = vmatpush1.bf16.msra.mxu0 0
      %3886 = vmatprep.subr.bf16.mxu0 0
      %3887 = vmatpush1.bf16.msra.mxu0 0
      %3888 = vmatprep.mubr.bf16.mxu0 0
      %3889 = vmatmul.mubr.bf16.gmra.mrb[0].mxu0 %v3854
      %v3890 = vpop.f32.mrb[0].mxu0
      %v3891 = vadd.f32 0.0, %v3890
      %v3892 = vpop.f32.mrb[0].mxu0
      %v3893 = vpop.f32.mrb[0].mxu0
      %v3894 = vpop.f32.mrb[0].mxu0
      %3895 = vdwg.mxu0
      %v3904 = vunpack.c.l.b16 %v669
      %v3905 = vunpack.c.l.b16 %v670
      %v3906 = vunpack.c.l.b16 %v671
      %v3907 = vunpack.c.l.b16 %v672
      %v3908 = vunpack.c.l.b16 %v673
      %v3909 = vunpack.c.l.b16 %v674
      %v3910 = vunpack.c.l.b16 %v675
      %v3911 = vunpack.c.l.b16 %v676
      %v3912 = vpack.c.b16 %v3905, %v3904
      %v3913 = vpack.c.b16 %v3907, %v3906
      %v3914 = vpack.c.b16 %v3909, %v3908
      %v3915 = vpack.c.b16 %v3911, %v3910
      %v3921 = vsel %vm837, %v283, 0
      %3923 = vmatprep.subr.bf16.mxu0 0
      %3924 = vmatpush1.bf16.msra.mxu0 %v3912
      %3925 = vmatprep.subr.bf16.mxu0 0
      %3926 = vmatpush1.bf16.msra.mxu0 %v3913
      %3927 = vmatprep.subr.bf16.mxu0 0
      %3928 = vmatpush1.bf16.msra.mxu0 %v3914
      %3929 = vmatprep.subr.bf16.mxu0 0
      %3930 = vmatpush1.bf16.msra.mxu0 %v3915
      %3931 = vmatprep.subr.bf16.mxu0 0
      %3932 = vmatpush1.bf16.msra.mxu0 0
      %3933 = vmatprep.subr.bf16.mxu0 0
      %3934 = vmatpush1.bf16.msra.mxu0 0
      %3935 = vmatprep.subr.bf16.mxu0 0
      %3936 = vmatpush1.bf16.msra.mxu0 0
      %3937 = vmatprep.subr.bf16.mxu0 0
      %3938 = vmatpush1.bf16.msra.mxu0 0
      %3939 = vmatprep.subr.bf16.mxu0 0
      %3940 = vmatpush1.bf16.msra.mxu0 0
      %3941 = vmatprep.subr.bf16.mxu0 0
      %3942 = vmatpush1.bf16.msra.mxu0 0
      %3943 = vmatprep.subr.bf16.mxu0 0
      %3944 = vmatpush1.bf16.msra.mxu0 0
      %3945 = vmatprep.subr.bf16.mxu0 0
      %3946 = vmatpush1.bf16.msra.mxu0 0
      %3947 = vmatprep.subr.bf16.mxu0 0
      %3948 = vmatpush1.bf16.msra.mxu0 0
      %3949 = vmatprep.subr.bf16.mxu0 0
      %3950 = vmatpush1.bf16.msra.mxu0 0
      %3951 = vmatprep.subr.bf16.mxu0 0
      %3952 = vmatpush1.bf16.msra.mxu0 0
      %3953 = vmatprep.subr.bf16.mxu0 0
      %3954 = vmatpush1.bf16.msra.mxu0 0
      %3955 = vmatprep.mubr.bf16.mxu0 0
      %3956 = vmatmul.mubr.bf16.gmra.mrb[0].mxu0 %v3921
      %v3957 = vpop.f32.mrb[0].mxu0
      %v3958 = vadd.f32 0.0, %v3957
      %v3959 = vpop.f32.mrb[0].mxu0
      %v3960 = vpop.f32.mrb[0].mxu0
      %v3961 = vpop.f32.mrb[0].mxu0
      %3962 = vdwg.mxu0
      %v3971 = vunpack.c.l.b16 %v677
      %v3972 = vunpack.c.l.b16 %v678
      %v3973 = vunpack.c.l.b16 %v679
      %v3974 = vunpack.c.l.b16 %v680
      %v3975 = vunpack.c.l.b16 %v681
      %v3976 = vunpack.c.l.b16 %v682
      %v3977 = vunpack.c.l.b16 %v683
      %v3978 = vunpack.c.l.b16 %v684
      %v3979 = vpack.c.b16 %v3972, %v3971
      %v3980 = vpack.c.b16 %v3974, %v3973
      %v3981 = vpack.c.b16 %v3976, %v3975
      %v3982 = vpack.c.b16 %v3978, %v3977
      %v3988 = vsel %vm837, %v284, 0
      %3990 = vmatprep.subr.bf16.mxu0 0
      %3991 = vmatpush1.bf16.msra.mxu0 %v3979
      %3992 = vmatprep.subr.bf16.mxu0 0
      %3993 = vmatpush1.bf16.msra.mxu0 %v3980
      %3994 = vmatprep.subr.bf16.mxu0 0
      %3995 = vmatpush1.bf16.msra.mxu0 %v3981
      %3996 = vmatprep.subr.bf16.mxu0 0
      %3997 = vmatpush1.bf16.msra.mxu0 %v3982
      %3998 = vmatprep.subr.bf16.mxu0 0
      %3999 = vmatpush1.bf16.msra.mxu0 0
      %4000 = vmatprep.subr.bf16.mxu0 0
      %4001 = vmatpush1.bf16.msra.mxu0 0
      %4002 = vmatprep.subr.bf16.mxu0 0
      %4003 = vmatpush1.bf16.msra.mxu0 0
      %4004 = vmatprep.subr.bf16.mxu0 0
      %4005 = vmatpush1.bf16.msra.mxu0 0
      %4006 = vmatprep.subr.bf16.mxu0 0
      %4007 = vmatpush1.bf16.msra.mxu0 0
      %4008 = vmatprep.subr.bf16.mxu0 0
      %4009 = vmatpush1.bf16.msra.mxu0 0
      %4010 = vmatprep.subr.bf16.mxu0 0
      %4011 = vmatpush1.bf16.msra.mxu0 0
      %4012 = vmatprep.subr.bf16.mxu0 0
      %4013 = vmatpush1.bf16.msra.mxu0 0
      %4014 = vmatprep.subr.bf16.mxu0 0
      %4015 = vmatpush1.bf16.msra.mxu0 0
      %4016 = vmatprep.subr.bf16.mxu0 0
      %4017 = vmatpush1.bf16.msra.mxu0 0
      %4018 = vmatprep.subr.bf16.mxu0 0
      %4019 = vmatpush1.bf16.msra.mxu0 0
      %4020 = vmatprep.subr.bf16.mxu0 0
      %4021 = vmatpush1.bf16.msra.mxu0 0
      %4022 = vmatprep.mubr.bf16.mxu0 0
      %4023 = vmatmul.mubr.bf16.gmra.mrb[0].mxu0 %v3988
      %v4024 = vpop.f32.mrb[0].mxu0
      %v4025 = vadd.f32 0.0, %v4024
      %v4026 = vpop.f32.mrb[0].mxu0
      %v4027 = vpop.f32.mrb[0].mxu0
      %v4028 = vpop.f32.mrb[0].mxu0
      %4029 = vdwg.mxu0
      %v4038 = vunpack.c.l.b16 %v685
      %v4039 = vunpack.c.l.b16 %v686
      %v4040 = vunpack.c.l.b16 %v687
      %v4041 = vunpack.c.l.b16 %v688
      %v4042 = vunpack.c.l.b16 %v689
      %v4043 = vunpack.c.l.b16 %v690
      %v4044 = vunpack.c.l.b16 %v691
      %v4045 = vunpack.c.l.b16 %v692
      %v4046 = vpack.c.b16 %v4039, %v4038
      %v4047 = vpack.c.b16 %v4041, %v4040
      %v4048 = vpack.c.b16 %v4043, %v4042
      %v4049 = vpack.c.b16 %v4045, %v4044
      %v4055 = vsel %vm837, %v285, 0
      %4057 = vmatprep.subr.bf16.mxu0 0
      %4058 = vmatpush1.bf16.msra.mxu0 %v4046
      %4059 = vmatprep.subr.bf16.mxu0 0
      %4060 = vmatpush1.bf16.msra.mxu0 %v4047
      %4061 = vmatprep.subr.bf16.mxu0 0
      %4062 = vmatpush1.bf16.msra.mxu0 %v4048
      %4063 = vmatprep.subr.bf16.mxu0 0
      %4064 = vmatpush1.bf16.msra.mxu0 %v4049
      %4065 = vmatprep.subr.bf16.mxu0 0
      %4066 = vmatpush1.bf16.msra.mxu0 0
      %4067 = vmatprep.subr.bf16.mxu0 0
      %4068 = vmatpush1.bf16.msra.mxu0 0
      %4069 = vmatprep.subr.bf16.mxu0 0
      %4070 = vmatpush1.bf16.msra.mxu0 0
      %4071 = vmatprep.subr.bf16.mxu0 0
      %4072 = vmatpush1.bf16.msra.mxu0 0
      %4073 = vmatprep.subr.bf16.mxu0 0
      %4074 = vmatpush1.bf16.msra.mxu0 0
      %4075 = vmatprep.subr.bf16.mxu0 0
      %4076 = vmatpush1.bf16.msra.mxu0 0
      %4077 = vmatprep.subr.bf16.mxu0 0
      %4078 = vmatpush1.bf16.msra.mxu0 0
      %4079 = vmatprep.subr.bf16.mxu0 0
      %4080 = vmatpush1.bf16.msra.mxu0 0
      %4081 = vmatprep.subr.bf16.mxu0 0
      %4082 = vmatpush1.bf16.msra.mxu0 0
      %4083 = vmatprep.subr.bf16.mxu0 0
      %4084 = vmatpush1.bf16.msra.mxu0 0
      %4085 = vmatprep.subr.bf16.mxu0 0
      %4086 = vmatpush1.bf16.msra.mxu0 0
      %4087 = vmatprep.subr.bf16.mxu0 0
      %4088 = vmatpush1.bf16.msra.mxu0 0
      %4089 = vmatprep.mubr.bf16.mxu0 0
      %4090 = vmatmul.mubr.bf16.gmra.mrb[0].mxu0 %v4055
      %v4091 = vpop.f32.mrb[0].mxu0
      %v4092 = vadd.f32 0.0, %v4091
      %v4093 = vpop.f32.mrb[0].mxu0
      %v4094 = vpop.f32.mrb[0].mxu0
      %v4095 = vpop.f32.mrb[0].mxu0
      %4096 = vdwg.mxu0
      %v4105 = vunpack.c.l.b16 %v693
      %v4106 = vunpack.c.l.b16 %v694
      %v4107 = vunpack.c.l.b16 %v695
      %v4108 = vunpack.c.l.b16 %v696
      %v4109 = vunpack.c.l.b16 %v697
      %v4110 = vunpack.c.l.b16 %v698
      %v4111 = vunpack.c.l.b16 %v699
      %v4112 = vunpack.c.l.b16 %v700
      %v4113 = vpack.c.b16 %v4106, %v4105
      %v4114 = vpack.c.b16 %v4108, %v4107
      %v4115 = vpack.c.b16 %v4110, %v4109
      %v4116 = vpack.c.b16 %v4112, %v4111
      %v4122 = vsel %vm837, %v286, 0
      %4124 = vmatprep.subr.bf16.mxu0 0
      %4125 = vmatpush1.bf16.msra.mxu0 %v4113
      %4126 = vmatprep.subr.bf16.mxu0 0
      %4127 = vmatpush1.bf16.msra.mxu0 %v4114
      %4128 = vmatprep.subr.bf16.mxu0 0
      %4129 = vmatpush1.bf16.msra.mxu0 %v4115
      %4130 = vmatprep.subr.bf16.mxu0 0
      %4131 = vmatpush1.bf16.msra.mxu0 %v4116
      %4132 = vmatprep.subr.bf16.mxu0 0
      %4133 = vmatpush1.bf16.msra.mxu0 0
      %4134 = vmatprep.subr.bf16.mxu0 0
      %4135 = vmatpush1.bf16.msra.mxu0 0
      %4136 = vmatprep.subr.bf16.mxu0 0
      %4137 = vmatpush1.bf16.msra.mxu0 0
      %4138 = vmatprep.subr.bf16.mxu0 0
      %4139 = vmatpush1.bf16.msra.mxu0 0
      %4140 = vmatprep.subr.bf16.mxu0 0
      %4141 = vmatpush1.bf16.msra.mxu0 0
      %4142 = vmatprep.subr.bf16.mxu0 0
      %4143 = vmatpush1.bf16.msra.mxu0 0
      %4144 = vmatprep.subr.bf16.mxu0 0
      %4145 = vmatpush1.bf16.msra.mxu0 0
      %4146 = vmatprep.subr.bf16.mxu0 0
      %4147 = vmatpush1.bf16.msra.mxu0 0
      %4148 = vmatprep.subr.bf16.mxu0 0
      %4149 = vmatpush1.bf16.msra.mxu0 0
      %4150 = vmatprep.subr.bf16.mxu0 0
      %4151 = vmatpush1.bf16.msra.mxu0 0
      %4152 = vmatprep.subr.bf16.mxu0 0
      %4153 = vmatpush1.bf16.msra.mxu0 0
      %4154 = vmatprep.subr.bf16.mxu0 0
      %4155 = vmatpush1.bf16.msra.mxu0 0
      %4156 = vmatprep.mubr.bf16.mxu0 0
      %4157 = vmatmul.mubr.bf16.gmra.mrb[0].mxu0 %v4122
      %v4158 = vpop.f32.mrb[0].mxu0
      %v4159 = vadd.f32 0.0, %v4158
      %v4160 = vpop.f32.mrb[0].mxu0
      %v4161 = vpop.f32.mrb[0].mxu0
      %v4162 = vpop.f32.mrb[0].mxu0
      %4163 = vdwg.mxu0
      %v4172 = vunpack.c.l.b16 %v701
      %v4173 = vunpack.c.l.b16 %v702
      %v4174 = vunpack.c.l.b16 %v703
      %v4175 = vunpack.c.l.b16 %v704
      %v4176 = vunpack.c.l.b16 %v705
      %v4177 = vunpack.c.l.b16 %v706
      %v4178 = vunpack.c.l.b16 %v707
      %v4179 = vunpack.c.l.b16 %v708
      %v4180 = vpack.c.b16 %v4173, %v4172
      %v4181 = vpack.c.b16 %v4175, %v4174
      %v4182 = vpack.c.b16 %v4177, %v4176
      %v4183 = vpack.c.b16 %v4179, %v4178
      %v4189 = vsel %vm837, %v287, 0
      %4191 = vmatprep.subr.bf16.mxu0 0
      %4192 = vmatpush1.bf16.msra.mxu0 %v4180
      %4193 = vmatprep.subr.bf16.mxu0 0
      %4194 = vmatpush1.bf16.msra.mxu0 %v4181
      %4195 = vmatprep.subr.bf16.mxu0 0
      %4196 = vmatpush1.bf16.msra.mxu0 %v4182
      %4197 = vmatprep.subr.bf16.mxu0 0
      %4198 = vmatpush1.bf16.msra.mxu0 %v4183
      %4199 = vmatprep.subr.bf16.mxu0 0
      %4200 = vmatpush1.bf16.msra.mxu0 0
      %4201 = vmatprep.subr.bf16.mxu0 0
      %4202 = vmatpush1.bf16.msra.mxu0 0
      %4203 = vmatprep.subr.bf16.mxu0 0
      %4204 = vmatpush1.bf16.msra.mxu0 0
      %4205 = vmatprep.subr.bf16.mxu0 0
      %4206 = vmatpush1.bf16.msra.mxu0 0
      %4207 = vmatprep.subr.bf16.mxu0 0
      %4208 = vmatpush1.bf16.msra.mxu0 0
      %4209 = vmatprep.subr.bf16.mxu0 0
      %4210 = vmatpush1.bf16.msra.mxu0 0
      %4211 = vmatprep.subr.bf16.mxu0 0
      %4212 = vmatpush1.bf16.msra.mxu0 0
      %4213 = vmatprep.subr.bf16.mxu0 0
      %4214 = vmatpush1.bf16.msra.mxu0 0
      %4215 = vmatprep.subr.bf16.mxu0 0
      %4216 = vmatpush1.bf16.msra.mxu0 0
      %4217 = vmatprep.subr.bf16.mxu0 0
      %4218 = vmatpush1.bf16.msra.mxu0 0
      %4219 = vmatprep.subr.bf16.mxu0 0
      %4220 = vmatpush1.bf16.msra.mxu0 0
      %4221 = vmatprep.subr.bf16.mxu0 0
      %4222 = vmatpush1.bf16.msra.mxu0 0
      %4223 = vmatprep.mubr.bf16.mxu0 0
      %4224 = vmatmul.mubr.bf16.gmra.mrb[0].mxu0 %v4189
      %v4225 = vpop.f32.mrb[0].mxu0
      %v4226 = vadd.f32 0.0, %v4225
      %v4227 = vpop.f32.mrb[0].mxu0
      %v4228 = vpop.f32.mrb[0].mxu0
      %v4229 = vpop.f32.mrb[0].mxu0
      %4230 = vdwg.mxu0
      %v4239 = vunpack.c.l.b16 %v709
      %v4240 = vunpack.c.l.b16 %v710
      %v4241 = vunpack.c.l.b16 %v711
      %v4242 = vunpack.c.l.b16 %v712
      %v4243 = vunpack.c.l.b16 %v713
      %v4244 = vunpack.c.l.b16 %v714
      %v4245 = vunpack.c.l.b16 %v715
      %v4246 = vunpack.c.l.b16 %v716
      %v4247 = vpack.c.b16 %v4240, %v4239
      %v4248 = vpack.c.b16 %v4242, %v4241
      %v4249 = vpack.c.b16 %v4244, %v4243
      %v4250 = vpack.c.b16 %v4246, %v4245
      %v4256 = vsel %vm837, %v288, 0
      %4258 = vmatprep.subr.bf16.mxu0 0
      %4259 = vmatpush1.bf16.msra.mxu0 %v4247
      %4260 = vmatprep.subr.bf16.mxu0 0
      %4261 = vmatpush1.bf16.msra.mxu0 %v4248
      %4262 = vmatprep.subr.bf16.mxu0 0
      %4263 = vmatpush1.bf16.msra.mxu0 %v4249
      %4264 = vmatprep.subr.bf16.mxu0 0
      %4265 = vmatpush1.bf16.msra.mxu0 %v4250
      %4266 = vmatprep.subr.bf16.mxu0 0
      %4267 = vmatpush1.bf16.msra.mxu0 0
      %4268 = vmatprep.subr.bf16.mxu0 0
      %4269 = vmatpush1.bf16.msra.mxu0 0
      %4270 = vmatprep.subr.bf16.mxu0 0
      %4271 = vmatpush1.bf16.msra.mxu0 0
      %4272 = vmatprep.subr.bf16.mxu0 0
      %4273 = vmatpush1.bf16.msra.mxu0 0
      %4274 = vmatprep.subr.bf16.mxu0 0
      %4275 = vmatpush1.bf16.msra.mxu0 0
      %4276 = vmatprep.subr.bf16.mxu0 0
      %4277 = vmatpush1.bf16.msra.mxu0 0
      %4278 = vmatprep.subr.bf16.mxu0 0
      %4279 = vmatpush1.bf16.msra.mxu0 0
      %4280 = vmatprep.subr.bf16.mxu0 0
      %4281 = vmatpush1.bf16.msra.mxu0 0
      %4282 = vmatprep.subr.bf16.mxu0 0
      %4283 = vmatpush1.bf16.msra.mxu0 0
      %4284 = vmatprep.subr.bf16.mxu0 0
      %4285 = vmatpush1.bf16.msra.mxu0 0
      %4286 = vmatprep.subr.bf16.mxu0 0
      %4287 = vmatpush1.bf16.msra.mxu0 0
      %4288 = vmatprep.subr.bf16.mxu0 0
      %4289 = vmatpush1.bf16.msra.mxu0 0
      %4290 = vmatprep.mubr.bf16.mxu0 0
      %4291 = vmatmul.mubr.bf16.gmra.mrb[0].mxu0 %v4256
      %v4292 = vpop.f32.mrb[0].mxu0
      %v4293 = vadd.f32 0.0, %v4292
      %v4294 = vpop.f32.mrb[0].mxu0
      %v4295 = vpop.f32.mrb[0].mxu0
      %v4296 = vpop.f32.mrb[0].mxu0
      %4297 = vdwg.mxu0
      %v4306 = vunpack.c.l.b16 %v717
      %v4307 = vunpack.c.l.b16 %v718
      %v4308 = vunpack.c.l.b16 %v719
      %v4309 = vunpack.c.l.b16 %v720
      %v4310 = vunpack.c.l.b16 %v721
      %v4311 = vunpack.c.l.b16 %v722
      %v4312 = vunpack.c.l.b16 %v723
      %v4313 = vunpack.c.l.b16 %v724
      %v4314 = vpack.c.b16 %v4307, %v4306
      %v4315 = vpack.c.b16 %v4309, %v4308
      %v4316 = vpack.c.b16 %v4311, %v4310
      %v4317 = vpack.c.b16 %v4313, %v4312
      %v4323 = vsel %vm837, %v289, 0
      %4325 = vmatprep.subr.bf16.mxu0 0
      %4326 = vmatpush1.bf16.msra.mxu0 %v4314
      %4327 = vmatprep.subr.bf16.mxu0 0
      %4328 = vmatpush1.bf16.msra.mxu0 %v4315
      %4329 = vmatprep.subr.bf16.mxu0 0
      %4330 = vmatpush1.bf16.msra.mxu0 %v4316
      %4331 = vmatprep.subr.bf16.mxu0 0
      %4332 = vmatpush1.bf16.msra.mxu0 %v4317
      %4333 = vmatprep.subr.bf16.mxu0 0
      %4334 = vmatpush1.bf16.msra.mxu0 0
      %4335 = vmatprep.subr.bf16.mxu0 0
      %4336 = vmatpush1.bf16.msra.mxu0 0
      %4337 = vmatprep.subr.bf16.mxu0 0
      %4338 = vmatpush1.bf16.msra.mxu0 0
      %4339 = vmatprep.subr.bf16.mxu0 0
      %4340 = vmatpush1.bf16.msra.mxu0 0
      %4341 = vmatprep.subr.bf16.mxu0 0
      %4342 = vmatpush1.bf16.msra.mxu0 0
      %4343 = vmatprep.subr.bf16.mxu0 0
      %4344 = vmatpush1.bf16.msra.mxu0 0
      %4345 = vmatprep.subr.bf16.mxu0 0
      %4346 = vmatpush1.bf16.msra.mxu0 0
      %4347 = vmatprep.subr.bf16.mxu0 0
      %4348 = vmatpush1.bf16.msra.mxu0 0
      %4349 = vmatprep.subr.bf16.mxu0 0
      %4350 = vmatpush1.bf16.msra.mxu0 0
      %4351 = vmatprep.subr.bf16.mxu0 0
      %4352 = vmatpush1.bf16.msra.mxu0 0
      %4353 = vmatprep.subr.bf16.mxu0 0
      %4354 = vmatpush1.bf16.msra.mxu0 0
      %4355 = vmatprep.subr.bf16.mxu0 0
      %4356 = vmatpush1.bf16.msra.mxu0 0
      %4357 = vmatprep.mubr.bf16.mxu0 0
      %4358 = vmatmul.mubr.bf16.gmra.mrb[0].mxu0 %v4323
      %v4359 = vpop.f32.mrb[0].mxu0
      %v4360 = vadd.f32 0.0, %v4359
      %v4361 = vpop.f32.mrb[0].mxu0
      %v4362 = vpop.f32.mrb[0].mxu0
      %v4363 = vpop.f32.mrb[0].mxu0
      %4364 = vdwg.mxu0
      %v4373 = vunpack.c.l.b16 %v725
      %v4374 = vunpack.c.l.b16 %v726
      %v4375 = vunpack.c.l.b16 %v727
      %v4376 = vunpack.c.l.b16 %v728
      %v4377 = vunpack.c.l.b16 %v729
      %v4378 = vunpack.c.l.b16 %v730
      %v4379 = vunpack.c.l.b16 %v731
      %v4380 = vunpack.c.l.b16 %v732
      %v4381 = vpack.c.b16 %v4374, %v4373
      %v4382 = vpack.c.b16 %v4376, %v4375
      %v4383 = vpack.c.b16 %v4378, %v4377
      %v4384 = vpack.c.b16 %v4380, %v4379
      %v4390 = vsel %vm837, %v290, 0
      %4392 = vmatprep.subr.bf16.mxu0 0
      %4393 = vmatpush1.bf16.msra.mxu0 %v4381
      %4394 = vmatprep.subr.bf16.mxu0 0
      %4395 = vmatpush1.bf16.msra.mxu0 %v4382
      %4396 = vmatprep.subr.bf16.mxu0 0
      %4397 = vmatpush1.bf16.msra.mxu0 %v4383
      %4398 = vmatprep.subr.bf16.mxu0 0
      %4399 = vmatpush1.bf16.msra.mxu0 %v4384
      %4400 = vmatprep.subr.bf16.mxu0 0
      %4401 = vmatpush1.bf16.msra.mxu0 0
      %4402 = vmatprep.subr.bf16.mxu0 0
      %4403 = vmatpush1.bf16.msra.mxu0 0
      %4404 = vmatprep.subr.bf16.mxu0 0
      %4405 = vmatpush1.bf16.msra.mxu0 0
      %4406 = vmatprep.subr.bf16.mxu0 0
      %4407 = vmatpush1.bf16.msra.mxu0 0
      %4408 = vmatprep.subr.bf16.mxu0 0
      %4409 = vmatpush1.bf16.msra.mxu0 0
      %4410 = vmatprep.subr.bf16.mxu0 0
      %4411 = vmatpush1.bf16.msra.mxu0 0
      %4412 = vmatprep.subr.bf16.mxu0 0
      %4413 = vmatpush1.bf16.msra.mxu0 0
      %4414 = vmatprep.subr.bf16.mxu0 0
      %4415 = vmatpush1.bf16.msra.mxu0 0
      %4416 = vmatprep.subr.bf16.mxu0 0
      %4417 = vmatpush1.bf16.msra.mxu0 0
      %4418 = vmatprep.subr.bf16.mxu0 0
      %4419 = vmatpush1.bf16.msra.mxu0 0
      %4420 = vmatprep.subr.bf16.mxu0 0
      %4421 = vmatpush1.bf16.msra.mxu0 0
      %4422 = vmatprep.subr.bf16.mxu0 0
      %4423 = vmatpush1.bf16.msra.mxu0 0
      %4424 = vmatprep.mubr.bf16.mxu0 0
      %4425 = vmatmul.mubr.bf16.gmra.mrb[0].mxu0 %v4390
      %v4426 = vpop.f32.mrb[0].mxu0
      %v4427 = vadd.f32 0.0, %v4426
      %v4428 = vpop.f32.mrb[0].mxu0
      %v4429 = vpop.f32.mrb[0].mxu0
      %v4430 = vpop.f32.mrb[0].mxu0
      %4431 = vdwg.mxu0
      %v4440 = vunpack.c.l.b16 %v733
      %v4441 = vunpack.c.l.b16 %v734
      %v4442 = vunpack.c.l.b16 %v735
      %v4443 = vunpack.c.l.b16 %v736
      %v4444 = vunpack.c.l.b16 %v737
      %v4445 = vunpack.c.l.b16 %v738
      %v4446 = vunpack.c.l.b16 %v739
      %v4447 = vunpack.c.l.b16 %v740
      %v4448 = vpack.c.b16 %v4441, %v4440
      %v4449 = vpack.c.b16 %v4443, %v4442
      %v4450 = vpack.c.b16 %v4445, %v4444
      %v4451 = vpack.c.b16 %v4447, %v4446
      %v4457 = vsel %vm837, %v291, 0
      %4459 = vmatprep.subr.bf16.mxu0 0
      %4460 = vmatpush1.bf16.msra.mxu0 %v4448
      %4461 = vmatprep.subr.bf16.mxu0 0
      %4462 = vmatpush1.bf16.msra.mxu0 %v4449
      %4463 = vmatprep.subr.bf16.mxu0 0
      %4464 = vmatpush1.bf16.msra.mxu0 %v4450
      %4465 = vmatprep.subr.bf16.mxu0 0
      %4466 = vmatpush1.bf16.msra.mxu0 %v4451
      %4467 = vmatprep.subr.bf16.mxu0 0
      %4468 = vmatpush1.bf16.msra.mxu0 0
      %4469 = vmatprep.subr.bf16.mxu0 0
      %4470 = vmatpush1.bf16.msra.mxu0 0
      %4471 = vmatprep.subr.bf16.mxu0 0
      %4472 = vmatpush1.bf16.msra.mxu0 0
      %4473 = vmatprep.subr.bf16.mxu0 0
      %4474 = vmatpush1.bf16.msra.mxu0 0
      %4475 = vmatprep.subr.bf16.mxu0 0
      %4476 = vmatpush1.bf16.msra.mxu0 0
      %4477 = vmatprep.subr.bf16.mxu0 0
      %4478 = vmatpush1.bf16.msra.mxu0 0
      %4479 = vmatprep.subr.bf16.mxu0 0
      %4480 = vmatpush1.bf16.msra.mxu0 0
      %4481 = vmatprep.subr.bf16.mxu0 0
      %4482 = vmatpush1.bf16.msra.mxu0 0
      %4483 = vmatprep.subr.bf16.mxu0 0
      %4484 = vmatpush1.bf16.msra.mxu0 0
      %4485 = vmatprep.subr.bf16.mxu0 0
      %4486 = vmatpush1.bf16.msra.mxu0 0
      %4487 = vmatprep.subr.bf16.mxu0 0
      %4488 = vmatpush1.bf16.msra.mxu0 0
      %4489 = vmatprep.subr.bf16.mxu0 0
      %4490 = vmatpush1.bf16.msra.mxu0 0
      %4491 = vmatprep.mubr.bf16.mxu0 0
      %4492 = vmatmul.mubr.bf16.gmra.mrb[0].mxu0 %v4457
      %v4493 = vpop.f32.mrb[0].mxu0
      %v4494 = vadd.f32 0.0, %v4493
      %v4495 = vpop.f32.mrb[0].mxu0
      %v4496 = vpop.f32.mrb[0].mxu0
      %v4497 = vpop.f32.mrb[0].mxu0
      %4498 = vdwg.mxu0
      %v4507 = vunpack.c.l.b16 %v741
      %v4508 = vunpack.c.l.b16 %v742
      %v4509 = vunpack.c.l.b16 %v743
      %v4510 = vunpack.c.l.b16 %v744
      %v4511 = vunpack.c.l.b16 %v745
      %v4512 = vunpack.c.l.b16 %v746
      %v4513 = vunpack.c.l.b16 %v747
      %v4514 = vunpack.c.l.b16 %v748
      %v4515 = vpack.c.b16 %v4508, %v4507
      %v4516 = vpack.c.b16 %v4510, %v4509
      %v4517 = vpack.c.b16 %v4512, %v4511
      %v4518 = vpack.c.b16 %v4514, %v4513
      %v4524 = vsel %vm837, %v292, 0
      %4526 = vmatprep.subr.bf16.mxu0 0
      %4527 = vmatpush1.bf16.msra.mxu0 %v4515
      %4528 = vmatprep.subr.bf16.mxu0 0
      %4529 = vmatpush1.bf16.msra.mxu0 %v4516
      %4530 = vmatprep.subr.bf16.mxu0 0
      %4531 = vmatpush1.bf16.msra.mxu0 %v4517
      %4532 = vmatprep.subr.bf16.mxu0 0
      %4533 = vmatpush1.bf16.msra.mxu0 %v4518
      %4534 = vmatprep.subr.bf16.mxu0 0
      %4535 = vmatpush1.bf16.msra.mxu0 0
      %4536 = vmatprep.subr.bf16.mxu0 0
      %4537 = vmatpush1.bf16.msra.mxu0 0
      %4538 = vmatprep.subr.bf16.mxu0 0
      %4539 = vmatpush1.bf16.msra.mxu0 0
      %4540 = vmatprep.subr.bf16.mxu0 0
      %4541 = vmatpush1.bf16.msra.mxu0 0
      %4542 = vmatprep.subr.bf16.mxu0 0
      %4543 = vmatpush1.bf16.msra.mxu0 0
      %4544 = vmatprep.subr.bf16.mxu0 0
      %4545 = vmatpush1.bf16.msra.mxu0 0
      %4546 = vmatprep.subr.bf16.mxu0 0
      %4547 = vmatpush1.bf16.msra.mxu0 0
      %4548 = vmatprep.subr.bf16.mxu0 0
      %4549 = vmatpush1.bf16.msra.mxu0 0
      %4550 = vmatprep.subr.bf16.mxu0 0
      %4551 = vmatpush1.bf16.msra.mxu0 0
      %4552 = vmatprep.subr.bf16.mxu0 0
      %4553 = vmatpush1.bf16.msra.mxu0 0
      %4554 = vmatprep.subr.bf16.mxu0 0
      %4555 = vmatpush1.bf16.msra.mxu0 0
      %4556 = vmatprep.subr.bf16.mxu0 0
      %4557 = vmatpush1.bf16.msra.mxu0 0
      %4558 = vmatprep.mubr.bf16.mxu0 0
      %4559 = vmatmul.mubr.bf16.gmra.mrb[0].mxu0 %v4524
      %v4560 = vpop.f32.mrb[0].mxu0
      %v4561 = vadd.f32 0.0, %v4560
      %v4562 = vpop.f32.mrb[0].mxu0
      %v4563 = vpop.f32.mrb[0].mxu0
      %v4564 = vpop.f32.mrb[0].mxu0
      %4565 = vdwg.mxu0
      %v4574 = vunpack.c.l.b16 %v749
      %v4575 = vunpack.c.l.b16 %v750
      %v4576 = vunpack.c.l.b16 %v751
      %v4577 = vunpack.c.l.b16 %v752
      %v4578 = vunpack.c.l.b16 %v753
      %v4579 = vunpack.c.l.b16 %v754
      %v4580 = vunpack.c.l.b16 %v755
      %v4581 = vunpack.c.l.b16 %v756
      %v4582 = vpack.c.b16 %v4575, %v4574
      %v4583 = vpack.c.b16 %v4577, %v4576
      %v4584 = vpack.c.b16 %v4579, %v4578
      %v4585 = vpack.c.b16 %v4581, %v4580
      %v4591 = vsel %vm837, %v293, 0
      %4593 = vmatprep.subr.bf16.mxu0 0
      %4594 = vmatpush1.bf16.msra.mxu0 %v4582
      %4595 = vmatprep.subr.bf16.mxu0 0
      %4596 = vmatpush1.bf16.msra.mxu0 %v4583
      %4597 = vmatprep.subr.bf16.mxu0 0
      %4598 = vmatpush1.bf16.msra.mxu0 %v4584
      %4599 = vmatprep.subr.bf16.mxu0 0
      %4600 = vmatpush1.bf16.msra.mxu0 %v4585
      %4601 = vmatprep.subr.bf16.mxu0 0
      %4602 = vmatpush1.bf16.msra.mxu0 0
      %4603 = vmatprep.subr.bf16.mxu0 0
      %4604 = vmatpush1.bf16.msra.mxu0 0
      %4605 = vmatprep.subr.bf16.mxu0 0
      %4606 = vmatpush1.bf16.msra.mxu0 0
      %4607 = vmatprep.subr.bf16.mxu0 0
      %4608 = vmatpush1.bf16.msra.mxu0 0
      %4609 = vmatprep.subr.bf16.mxu0 0
      %4610 = vmatpush1.bf16.msra.mxu0 0
      %4611 = vmatprep.subr.bf16.mxu0 0
      %4612 = vmatpush1.bf16.msra.mxu0 0
      %4613 = vmatprep.subr.bf16.mxu0 0
      %4614 = vmatpush1.bf16.msra.mxu0 0
      %4615 = vmatprep.subr.bf16.mxu0 0
      %4616 = vmatpush1.bf16.msra.mxu0 0
      %4617 = vmatprep.subr.bf16.mxu0 0
      %4618 = vmatpush1.bf16.msra.mxu0 0
      %4619 = vmatprep.subr.bf16.mxu0 0
      %4620 = vmatpush1.bf16.msra.mxu0 0
      %4621 = vmatprep.subr.bf16.mxu0 0
      %4622 = vmatpush1.bf16.msra.mxu0 0
      %4623 = vmatprep.subr.bf16.mxu0 0
      %4624 = vmatpush1.bf16.msra.mxu0 0
      %4625 = vmatprep.mubr.bf16.mxu0 0
      %4626 = vmatmul.mubr.bf16.gmra.mrb[0].mxu0 %v4591
      %v4627 = vpop.f32.mrb[0].mxu0
      %v4628 = vadd.f32 0.0, %v4627
      %v4629 = vpop.f32.mrb[0].mxu0
      %v4630 = vpop.f32.mrb[0].mxu0
      %v4631 = vpop.f32.mrb[0].mxu0
      %4632 = vdwg.mxu0
      %v4641 = vunpack.c.l.b16 %v757
      %v4642 = vunpack.c.l.b16 %v758
      %v4643 = vunpack.c.l.b16 %v759
      %v4644 = vunpack.c.l.b16 %v760
      %v4645 = vunpack.c.l.b16 %v761
      %v4646 = vunpack.c.l.b16 %v762
      %v4647 = vunpack.c.l.b16 %v763
      %v4648 = vunpack.c.l.b16 %v764
      %v4649 = vpack.c.b16 %v4642, %v4641
      %v4650 = vpack.c.b16 %v4644, %v4643
      %v4651 = vpack.c.b16 %v4646, %v4645
      %v4652 = vpack.c.b16 %v4648, %v4647
      %v4658 = vsel %vm837, %v294, 0
      %4660 = vmatprep.subr.bf16.mxu0 0
      %4661 = vmatpush1.bf16.msra.mxu0 %v4649
      %4662 = vmatprep.subr.bf16.mxu0 0
      %4663 = vmatpush1.bf16.msra.mxu0 %v4650
      %4664 = vmatprep.subr.bf16.mxu0 0
      %4665 = vmatpush1.bf16.msra.mxu0 %v4651
      %4666 = vmatprep.subr.bf16.mxu0 0
      %4667 = vmatpush1.bf16.msra.mxu0 %v4652
      %4668 = vmatprep.subr.bf16.mxu0 0
      %4669 = vmatpush1.bf16.msra.mxu0 0
      %4670 = vmatprep.subr.bf16.mxu0 0
      %4671 = vmatpush1.bf16.msra.mxu0 0
      %4672 = vmatprep.subr.bf16.mxu0 0
      %4673 = vmatpush1.bf16.msra.mxu0 0
      %4674 = vmatprep.subr.bf16.mxu0 0
      %4675 = vmatpush1.bf16.msra.mxu0 0
      %4676 = vmatprep.subr.bf16.mxu0 0
      %4677 = vmatpush1.bf16.msra.mxu0 0
      %4678 = vmatprep.subr.bf16.mxu0 0
      %4679 = vmatpush1.bf16.msra.mxu0 0
      %4680 = vmatprep.subr.bf16.mxu0 0
      %4681 = vmatpush1.bf16.msra.mxu0 0
      %4682 = vmatprep.subr.bf16.mxu0 0
      %4683 = vmatpush1.bf16.msra.mxu0 0
      %4684 = vmatprep.subr.bf16.mxu0 0
      %4685 = vmatpush1.bf16.msra.mxu0 0
      %4686 = vmatprep.subr.bf16.mxu0 0
      %4687 = vmatpush1.bf16.msra.mxu0 0
      %4688 = vmatprep.subr.bf16.mxu0 0
      %4689 = vmatpush1.bf16.msra.mxu0 0
      %4690 = vmatprep.subr.bf16.mxu0 0
      %4691 = vmatpush1.bf16.msra.mxu0 0
      %4692 = vmatprep.mubr.bf16.mxu0 0
      %4693 = vmatmul.mubr.bf16.gmra.mrb[0].mxu0 %v4658
      %v4694 = vpop.f32.mrb[0].mxu0
      %v4695 = vadd.f32 0.0, %v4694
      %v4696 = vpop.f32.mrb[0].mxu0
      %v4697 = vpop.f32.mrb[0].mxu0
      %v4698 = vpop.f32.mrb[0].mxu0
      %4699 = vdwg.mxu0
      %v4708 = vunpack.c.l.b16 %v765
      %v4709 = vunpack.c.l.b16 %v766
      %v4710 = vunpack.c.l.b16 %v767
      %v4711 = vunpack.c.l.b16 %v768
      %v4712 = vunpack.c.l.b16 %v769
      %v4713 = vunpack.c.l.b16 %v770
      %v4714 = vunpack.c.l.b16 %v771
      %v4715 = vunpack.c.l.b16 %v772
      %v4716 = vpack.c.b16 %v4709, %v4708
      %v4717 = vpack.c.b16 %v4711, %v4710
      %v4718 = vpack.c.b16 %v4713, %v4712
      %v4719 = vpack.c.b16 %v4715, %v4714
      %v4725 = vsel %vm837, %v295, 0
      %4727 = vmatprep.subr.bf16.mxu0 0
      %4728 = vmatpush1.bf16.msra.mxu0 %v4716
      %4729 = vmatprep.subr.bf16.mxu0 0
      %4730 = vmatpush1.bf16.msra.mxu0 %v4717
      %4731 = vmatprep.subr.bf16.mxu0 0
      %4732 = vmatpush1.bf16.msra.mxu0 %v4718
      %4733 = vmatprep.subr.bf16.mxu0 0
      %4734 = vmatpush1.bf16.msra.mxu0 %v4719
      %4735 = vmatprep.subr.bf16.mxu0 0
      %4736 = vmatpush1.bf16.msra.mxu0 0
      %4737 = vmatprep.subr.bf16.mxu0 0
      %4738 = vmatpush1.bf16.msra.mxu0 0
      %4739 = vmatprep.subr.bf16.mxu0 0
      %4740 = vmatpush1.bf16.msra.mxu0 0
      %4741 = vmatprep.subr.bf16.mxu0 0
      %4742 = vmatpush1.bf16.msra.mxu0 0
      %4743 = vmatprep.subr.bf16.mxu0 0
      %4744 = vmatpush1.bf16.msra.mxu0 0
      %4745 = vmatprep.subr.bf16.mxu0 0
      %4746 = vmatpush1.bf16.msra.mxu0 0
      %4747 = vmatprep.subr.bf16.mxu0 0
      %4748 = vmatpush1.bf16.msra.mxu0 0
      %4749 = vmatprep.subr.bf16.mxu0 0
      %4750 = vmatpush1.bf16.msra.mxu0 0
      %4751 = vmatprep.subr.bf16.mxu0 0
      %4752 = vmatpush1.bf16.msra.mxu0 0
      %4753 = vmatprep.subr.bf16.mxu0 0
      %4754 = vmatpush1.bf16.msra.mxu0 0
      %4755 = vmatprep.subr.bf16.mxu0 0
      %4756 = vmatpush1.bf16.msra.mxu0 0
      %4757 = vmatprep.subr.bf16.mxu0 0
      %4758 = vmatpush1.bf16.msra.mxu0 0
      %4759 = vmatprep.mubr.bf16.mxu0 0
      %4760 = vmatmul.mubr.bf16.gmra.mrb[0].mxu0 %v4725
      %v4761 = vpop.f32.mrb[0].mxu0
      %v4762 = vadd.f32 0.0, %v4761
      %v4763 = vpop.f32.mrb[0].mxu0
      %v4764 = vpop.f32.mrb[0].mxu0
      %v4765 = vpop.f32.mrb[0].mxu0
      %4766 = vdwg.mxu0
      %v4775 = vunpack.c.l.b16 %v773
      %v4776 = vunpack.c.l.b16 %v774
      %v4777 = vunpack.c.l.b16 %v775
      %v4778 = vunpack.c.l.b16 %v776
      %v4779 = vunpack.c.l.b16 %v777
      %v4780 = vunpack.c.l.b16 %v778
      %v4781 = vunpack.c.l.b16 %v779
      %v4782 = vunpack.c.l.b16 %v780
      %v4783 = vpack.c.b16 %v4776, %v4775
      %v4784 = vpack.c.b16 %v4778, %v4777
      %v4785 = vpack.c.b16 %v4780, %v4779
      %v4786 = vpack.c.b16 %v4782, %v4781
      %v4792 = vsel %vm837, %v296, 0
      %4794 = vmatprep.subr.bf16.mxu0 0
      %4795 = vmatpush1.bf16.msra.mxu0 %v4783
      %4796 = vmatprep.subr.bf16.mxu0 0
      %4797 = vmatpush1.bf16.msra.mxu0 %v4784
      %4798 = vmatprep.subr.bf16.mxu0 0
      %4799 = vmatpush1.bf16.msra.mxu0 %v4785
      %4800 = vmatprep.subr.bf16.mxu0 0
      %4801 = vmatpush1.bf16.msra.mxu0 %v4786
      %4802 = vmatprep.subr.bf16.mxu0 0
      %4803 = vmatpush1.bf16.msra.mxu0 0
      %4804 = vmatprep.subr.bf16.mxu0 0
      %4805 = vmatpush1.bf16.msra.mxu0 0
      %4806 = vmatprep.subr.bf16.mxu0 0
      %4807 = vmatpush1.bf16.msra.mxu0 0
      %4808 = vmatprep.subr.bf16.mxu0 0
      %4809 = vmatpush1.bf16.msra.mxu0 0
      %4810 = vmatprep.subr.bf16.mxu0 0
      %4811 = vmatpush1.bf16.msra.mxu0 0
      %4812 = vmatprep.subr.bf16.mxu0 0
      %4813 = vmatpush1.bf16.msra.mxu0 0
      %4814 = vmatprep.subr.bf16.mxu0 0
      %4815 = vmatpush1.bf16.msra.mxu0 0
      %4816 = vmatprep.subr.bf16.mxu0 0
      %4817 = vmatpush1.bf16.msra.mxu0 0
      %4818 = vmatprep.subr.bf16.mxu0 0
      %4819 = vmatpush1.bf16.msra.mxu0 0
      %4820 = vmatprep.subr.bf16.mxu0 0
      %4821 = vmatpush1.bf16.msra.mxu0 0
      %4822 = vmatprep.subr.bf16.mxu0 0
      %4823 = vmatpush1.bf16.msra.mxu0 0
      %4824 = vmatprep.subr.bf16.mxu0 0
      %4825 = vmatpush1.bf16.msra.mxu0 0
      %4826 = vmatprep.mubr.bf16.mxu0 0
      %4827 = vmatmul.mubr.bf16.gmra.mrb[0].mxu0 %v4792
      %v4828 = vpop.f32.mrb[0].mxu0
      %v4829 = vadd.f32 0.0, %v4828
      %v4830 = vpop.f32.mrb[0].mxu0
      %v4831 = vpop.f32.mrb[0].mxu0
      %v4832 = vpop.f32.mrb[0].mxu0
      %4833 = vdwg.mxu0
      %v4842 = vunpack.c.l.b16 %v781
      %v4843 = vunpack.c.l.b16 %v782
      %v4844 = vunpack.c.l.b16 %v783
      %v4845 = vunpack.c.l.b16 %v784
      %v4846 = vunpack.c.l.b16 %v785
      %v4847 = vunpack.c.l.b16 %v786
      %v4848 = vunpack.c.l.b16 %v787
      %v4849 = vunpack.c.l.b16 %v788
      %v4850 = vpack.c.b16 %v4843, %v4842
      %v4851 = vpack.c.b16 %v4845, %v4844
      %v4852 = vpack.c.b16 %v4847, %v4846
      %v4853 = vpack.c.b16 %v4849, %v4848
      %v4859 = vsel %vm837, %v297, 0
      %4861 = vmatprep.subr.bf16.mxu0 0
      %4862 = vmatpush1.bf16.msra.mxu0 %v4850
      %4863 = vmatprep.subr.bf16.mxu0 0
      %4864 = vmatpush1.bf16.msra.mxu0 %v4851
      %4865 = vmatprep.subr.bf16.mxu0 0
      %4866 = vmatpush1.bf16.msra.mxu0 %v4852
      %4867 = vmatprep.subr.bf16.mxu0 0
      %4868 = vmatpush1.bf16.msra.mxu0 %v4853
      %4869 = vmatprep.subr.bf16.mxu0 0
      %4870 = vmatpush1.bf16.msra.mxu0 0
      %4871 = vmatprep.subr.bf16.mxu0 0
      %4872 = vmatpush1.bf16.msra.mxu0 0
      %4873 = vmatprep.subr.bf16.mxu0 0
      %4874 = vmatpush1.bf16.msra.mxu0 0
      %4875 = vmatprep.subr.bf16.mxu0 0
      %4876 = vmatpush1.bf16.msra.mxu0 0
      %4877 = vmatprep.subr.bf16.mxu0 0
      %4878 = vmatpush1.bf16.msra.mxu0 0
      %4879 = vmatprep.subr.bf16.mxu0 0
      %4880 = vmatpush1.bf16.msra.mxu0 0
      %4881 = vmatprep.subr.bf16.mxu0 0
      %4882 = vmatpush1.bf16.msra.mxu0 0
      %4883 = vmatprep.subr.bf16.mxu0 0
      %4884 = vmatpush1.bf16.msra.mxu0 0
      %4885 = vmatprep.subr.bf16.mxu0 0
      %4886 = vmatpush1.bf16.msra.mxu0 0
      %4887 = vmatprep.subr.bf16.mxu0 0
      %4888 = vmatpush1.bf16.msra.mxu0 0
      %4889 = vmatprep.subr.bf16.mxu0 0
      %4890 = vmatpush1.bf16.msra.mxu0 0
      %4891 = vmatprep.subr.bf16.mxu0 0
      %4892 = vmatpush1.bf16.msra.mxu0 0
      %4893 = vmatprep.mubr.bf16.mxu0 0
      %4894 = vmatmul.mubr.bf16.gmra.mrb[0].mxu0 %v4859
      %v4895 = vpop.f32.mrb[0].mxu0
      %v4896 = vadd.f32 0.0, %v4895
      %v4897 = vpop.f32.mrb[0].mxu0
      %v4898 = vpop.f32.mrb[0].mxu0
      %v4899 = vpop.f32.mrb[0].mxu0
      %4900 = vdwg.mxu0
      %v4909 = vunpack.c.l.b16 %v789
      %v4910 = vunpack.c.l.b16 %v790
      %v4911 = vunpack.c.l.b16 %v791
      %v4912 = vunpack.c.l.b16 %v792
      %v4913 = vunpack.c.l.b16 %v793
      %v4914 = vunpack.c.l.b16 %v794
      %v4915 = vunpack.c.l.b16 %v795
      %v4916 = vunpack.c.l.b16 %v796
      %v4917 = vpack.c.b16 %v4910, %v4909
      %v4918 = vpack.c.b16 %v4912, %v4911
      %v4919 = vpack.c.b16 %v4914, %v4913
      %v4920 = vpack.c.b16 %v4916, %v4915
      %v4926 = vsel %vm837, %v298, 0
      %4928 = vmatprep.subr.bf16.mxu0 0
      %4929 = vmatpush1.bf16.msra.mxu0 %v4917
      %4930 = vmatprep.subr.bf16.mxu0 0
      %4931 = vmatpush1.bf16.msra.mxu0 %v4918
      %4932 = vmatprep.subr.bf16.mxu0 0
      %4933 = vmatpush1.bf16.msra.mxu0 %v4919
      %4934 = vmatprep.subr.bf16.mxu0 0
      %4935 = vmatpush1.bf16.msra.mxu0 %v4920
      %4936 = vmatprep.subr.bf16.mxu0 0
      %4937 = vmatpush1.bf16.msra.mxu0 0
      %4938 = vmatprep.subr.bf16.mxu0 0
      %4939 = vmatpush1.bf16.msra.mxu0 0
      %4940 = vmatprep.subr.bf16.mxu0 0
      %4941 = vmatpush1.bf16.msra.mxu0 0
      %4942 = vmatprep.subr.bf16.mxu0 0
      %4943 = vmatpush1.bf16.msra.mxu0 0
      %4944 = vmatprep.subr.bf16.mxu0 0
      %4945 = vmatpush1.bf16.msra.mxu0 0
      %4946 = vmatprep.subr.bf16.mxu0 0
      %4947 = vmatpush1.bf16.msra.mxu0 0
      %4948 = vmatprep.subr.bf16.mxu0 0
      %4949 = vmatpush1.bf16.msra.mxu0 0
      %4950 = vmatprep.subr.bf16.mxu0 0
      %4951 = vmatpush1.bf16.msra.mxu0 0
      %4952 = vmatprep.subr.bf16.mxu0 0
      %4953 = vmatpush1.bf16.msra.mxu0 0
      %4954 = vmatprep.subr.bf16.mxu0 0
      %4955 = vmatpush1.bf16.msra.mxu0 0
      %4956 = vmatprep.subr.bf16.mxu0 0
      %4957 = vmatpush1.bf16.msra.mxu0 0
      %4958 = vmatprep.subr.bf16.mxu0 0
      %4959 = vmatpush1.bf16.msra.mxu0 0
      %4960 = vmatprep.mubr.bf16.mxu0 0
      %4961 = vmatmul.mubr.bf16.gmra.mrb[0].mxu0 %v4926
      %v4962 = vpop.f32.mrb[0].mxu0
      %v4963 = vadd.f32 0.0, %v4962
      %v4964 = vpop.f32.mrb[0].mxu0
      %v4965 = vpop.f32.mrb[0].mxu0
      %v4966 = vpop.f32.mrb[0].mxu0
      %4967 = vdwg.mxu0
      %v4976 = vunpack.c.l.b16 %v797
      %v4977 = vunpack.c.l.b16 %v798
      %v4978 = vunpack.c.l.b16 %v799
      %v4979 = vunpack.c.l.b16 %v800
      %v4980 = vunpack.c.l.b16 %v801
      %v4981 = vunpack.c.l.b16 %v802
      %v4982 = vunpack.c.l.b16 %v803
      %v4983 = vunpack.c.l.b16 %v804
      %v4984 = vpack.c.b16 %v4977, %v4976
      %v4985 = vpack.c.b16 %v4979, %v4978
      %v4986 = vpack.c.b16 %v4981, %v4980
      %v4987 = vpack.c.b16 %v4983, %v4982
      %v4993 = vsel %vm837, %v299, 0
      %4995 = vmatprep.subr.bf16.mxu0 0
      %4996 = vmatpush1.bf16.msra.mxu0 %v4984
      %4997 = vmatprep.subr.bf16.mxu0 0
      %4998 = vmatpush1.bf16.msra.mxu0 %v4985
      %4999 = vmatprep.subr.bf16.mxu0 0
      %5000 = vmatpush1.bf16.msra.mxu0 %v4986
      %5001 = vmatprep.subr.bf16.mxu0 0
      %5002 = vmatpush1.bf16.msra.mxu0 %v4987
      %5003 = vmatprep.subr.bf16.mxu0 0
      %5004 = vmatpush1.bf16.msra.mxu0 0
      %5005 = vmatprep.subr.bf16.mxu0 0
      %5006 = vmatpush1.bf16.msra.mxu0 0
      %5007 = vmatprep.subr.bf16.mxu0 0
      %5008 = vmatpush1.bf16.msra.mxu0 0
      %5009 = vmatprep.subr.bf16.mxu0 0
      %5010 = vmatpush1.bf16.msra.mxu0 0
      %5011 = vmatprep.subr.bf16.mxu0 0
      %5012 = vmatpush1.bf16.msra.mxu0 0
      %5013 = vmatprep.subr.bf16.mxu0 0
      %5014 = vmatpush1.bf16.msra.mxu0 0
      %5015 = vmatprep.subr.bf16.mxu0 0
      %5016 = vmatpush1.bf16.msra.mxu0 0
      %5017 = vmatprep.subr.bf16.mxu0 0
      %5018 = vmatpush1.bf16.msra.mxu0 0
      %5019 = vmatprep.subr.bf16.mxu0 0
      %5020 = vmatpush1.bf16.msra.mxu0 0
      %5021 = vmatprep.subr.bf16.mxu0 0
      %5022 = vmatpush1.bf16.msra.mxu0 0
      %5023 = vmatprep.subr.bf16.mxu0 0
      %5024 = vmatpush1.bf16.msra.mxu0 0
      %5025 = vmatprep.subr.bf16.mxu0 0
      %5026 = vmatpush1.bf16.msra.mxu0 0
      %5027 = vmatprep.mubr.bf16.mxu0 0
      %5028 = vmatmul.mubr.bf16.gmra.mrb[0].mxu0 %v4993
      %v5029 = vpop.f32.mrb[0].mxu0
      %v5030 = vadd.f32 0.0, %v5029
      %v5031 = vpop.f32.mrb[0].mxu0
      %v5032 = vpop.f32.mrb[0].mxu0
      %v5033 = vpop.f32.mrb[0].mxu0
      %5034 = vdwg.mxu0
      %v5043 = vunpack.c.l.b16 %v805
      %v5044 = vunpack.c.l.b16 %v806
      %v5045 = vunpack.c.l.b16 %v807
      %v5046 = vunpack.c.l.b16 %v808
      %v5047 = vunpack.c.l.b16 %v809
      %v5048 = vunpack.c.l.b16 %v810
      %v5049 = vunpack.c.l.b16 %v811
      %v5050 = vunpack.c.l.b16 %v812
      %v5051 = vpack.c.b16 %v5044, %v5043
      %v5052 = vpack.c.b16 %v5046, %v5045
      %v5053 = vpack.c.b16 %v5048, %v5047
      %v5054 = vpack.c.b16 %v5050, %v5049
      %v5060 = vsel %vm837, %v300, 0
      %5062 = vmatprep.subr.bf16.mxu0 0
      %5063 = vmatpush1.bf16.msra.mxu0 %v5051
      %5064 = vmatprep.subr.bf16.mxu0 0
      %5065 = vmatpush1.bf16.msra.mxu0 %v5052
      %5066 = vmatprep.subr.bf16.mxu0 0
      %5067 = vmatpush1.bf16.msra.mxu0 %v5053
      %5068 = vmatprep.subr.bf16.mxu0 0
      %5069 = vmatpush1.bf16.msra.mxu0 %v5054
      %5070 = vmatprep.subr.bf16.mxu0 0
      %5071 = vmatpush1.bf16.msra.mxu0 0
      %5072 = vmatprep.subr.bf16.mxu0 0
      %5073 = vmatpush1.bf16.msra.mxu0 0
      %5074 = vmatprep.subr.bf16.mxu0 0
      %5075 = vmatpush1.bf16.msra.mxu0 0
      %5076 = vmatprep.subr.bf16.mxu0 0
      %5077 = vmatpush1.bf16.msra.mxu0 0
      %5078 = vmatprep.subr.bf16.mxu0 0
      %5079 = vmatpush1.bf16.msra.mxu0 0
      %5080 = vmatprep.subr.bf16.mxu0 0
      %5081 = vmatpush1.bf16.msra.mxu0 0
      %5082 = vmatprep.subr.bf16.mxu0 0
      %5083 = vmatpush1.bf16.msra.mxu0 0
      %5084 = vmatprep.subr.bf16.mxu0 0
      %5085 = vmatpush1.bf16.msra.mxu0 0
      %5086 = vmatprep.subr.bf16.mxu0 0
      %5087 = vmatpush1.bf16.msra.mxu0 0
      %5088 = vmatprep.subr.bf16.mxu0 0
      %5089 = vmatpush1.bf16.msra.mxu0 0
      %5090 = vmatprep.subr.bf16.mxu0 0
      %5091 = vmatpush1.bf16.msra.mxu0 0
      %5092 = vmatprep.subr.bf16.mxu0 0
      %5093 = vmatpush1.bf16.msra.mxu0 0
      %5094 = vmatprep.mubr.bf16.mxu0 0
      %5095 = vmatmul.mubr.bf16.gmra.mrb[0].mxu0 %v5060
      %v5096 = vpop.f32.mrb[0].mxu0
      %v5097 = vadd.f32 0.0, %v5096
      %v5098 = vpop.f32.mrb[0].mxu0
      %v5099 = vpop.f32.mrb[0].mxu0
      %v5100 = vpop.f32.mrb[0].mxu0
      %5101 = vdwg.mxu0
      %vm5102 = vcmask 517120
      %5103 = vst.msk [vmem:[%s170] sm:$0x3] %vm5102, %v876
      %5104 = vst.msk [vmem:[%s170 + $0x2] sm:$0x3] %vm5102, %v943
      %5105 = vst.msk [vmem:[%s170 + $0x4] sm:$0x3] %vm5102, %v1010
      %5106 = vst.msk [vmem:[%s170 + $0x6] sm:$0x3] %vm5102, %v1077
      %5107 = vst.msk [vmem:[%s170 + $0x8] sm:$0x3] %vm5102, %v1144
      %5108 = vst.msk [vmem:[%s170 + $0xa] sm:$0x3] %vm5102, %v1211
      %5109 = vst.msk [vmem:[%s170 + $0xc] sm:$0x3] %vm5102, %v1278
      %5110 = vst.msk [vmem:[%s170 + $0xe] sm:$0x3] %vm5102, %v1345
      %5111 = vst.msk [vmem:[%s170 + $0x10] sm:$0x3] %vm5102, %v1412
      %5112 = vst.msk [vmem:[%s170 + $0x12] sm:$0x3] %vm5102, %v1479
      %5113 = vst.msk [vmem:[%s170 + $0x14] sm:$0x3] %vm5102, %v1546
      %5114 = vst.msk [vmem:[%s170 + $0x16] sm:$0x3] %vm5102, %v1613
      %5115 = vst.msk [vmem:[%s170 + $0x18] sm:$0x3] %vm5102, %v1680
      %5116 = vst.msk [vmem:[%s170 + $0x1a] sm:$0x3] %vm5102, %v1747
      %5117 = vst.msk [vmem:[%s170 + $0x1c] sm:$0x3] %vm5102, %v1814
      %5118 = vst.msk [vmem:[%s170 + $0x1e] sm:$0x3] %vm5102, %v1881
      %5119 = vst.msk [vmem:[%s170 + $0x20] sm:$0x3] %vm5102, %v1948
      %5120 = vst.msk [vmem:[%s170 + $0x22] sm:$0x3] %vm5102, %v2015
      %5121 = vst.msk [vmem:[%s170 + $0x24] sm:$0x3] %vm5102, %v2082
      %5122 = vst.msk [vmem:[%s170 + $0x26] sm:$0x3] %vm5102, %v2149
      %5123 = vst.msk [vmem:[%s170 + $0x28] sm:$0x3] %vm5102, %v2216
      %5124 = vst.msk [vmem:[%s170 + $0x2a] sm:$0x3] %vm5102, %v2283
      %5125 = vst.msk [vmem:[%s170 + $0x2c] sm:$0x3] %vm5102, %v2350
      %5126 = vst.msk [vmem:[%s170 + $0x2e] sm:$0x3] %vm5102, %v2417
      %5127 = vst.msk [vmem:[%s170 + $0x30] sm:$0x3] %vm5102, %v2484
      %5128 = vst.msk [vmem:[%s170 + $0x32] sm:$0x3] %vm5102, %v2551
      %5129 = vst.msk [vmem:[%s170 + $0x34] sm:$0x3] %vm5102, %v2618
      %5130 = vst.msk [vmem:[%s170 + $0x36] sm:$0x3] %vm5102, %v2685
      %5131 = vst.msk [vmem:[%s170 + $0x38] sm:$0x3] %vm5102, %v2752
      %5132 = vst.msk [vmem:[%s170 + $0x3a] sm:$0x3] %vm5102, %v2819
      %5133 = vst.msk [vmem:[%s170 + $0x3c] sm:$0x3] %vm5102, %v2886
      %5134 = vst.msk [vmem:[%s170 + $0x3e] sm:$0x3] %vm5102, %v2953
      %5135 = vst.msk [vmem:[%s170 + $0x40] sm:$0x3] %vm5102, %v3020
      %5136 = vst.msk [vmem:[%s170 + $0x42] sm:$0x3] %vm5102, %v3087
      %5137 = vst.msk [vmem:[%s170 + $0x44] sm:$0x3] %vm5102, %v3154
      %5138 = vst.msk [vmem:[%s170 + $0x46] sm:$0x3] %vm5102, %v3221
      %5139 = vst.msk [vmem:[%s170 + $0x48] sm:$0x3] %vm5102, %v3288
      %5140 = vst.msk [vmem:[%s170 + $0x4a] sm:$0x3] %vm5102, %v3355
      %5141 = vst.msk [vmem:[%s170 + $0x4c] sm:$0x3] %vm5102, %v3422
      %5142 = vst.msk [vmem:[%s170 + $0x4e] sm:$0x3] %vm5102, %v3489
      %5143 = vst.msk [vmem:[%s170 + $0x50] sm:$0x3] %vm5102, %v3556
      %5144 = vst.msk [vmem:[%s170 + $0x52] sm:$0x3] %vm5102, %v3623
      %5145 = vst.msk [vmem:[%s170 + $0x54] sm:$0x3] %vm5102, %v3690
      %5146 = vst.msk [vmem:[%s170 + $0x56] sm:$0x3] %vm5102, %v3757
      %5147 = vst.msk [vmem:[%s170 + $0x58] sm:$0x3] %vm5102, %v3824
      %5148 = vst.msk [vmem:[%s170 + $0x5a] sm:$0x3] %vm5102, %v3891
      %5149 = vst.msk [vmem:[%s170 + $0x5c] sm:$0x3] %vm5102, %v3958
      %5150 = vst.msk [vmem:[%s170 + $0x5e] sm:$0x3] %vm5102, %v4025
      %5151 = vst.msk [vmem:[%s170 + $0x60] sm:$0x3] %vm5102, %v4092
      %5152 = vst.msk [vmem:[%s170 + $0x62] sm:$0x3] %vm5102, %v4159
      %5153 = vst.msk [vmem:[%s170 + $0x64] sm:$0x3] %vm5102, %v4226
      %5154 = vst.msk [vmem:[%s170 + $0x66] sm:$0x3] %vm5102, %v4293
      %5155 = vst.msk [vmem:[%s170 + $0x68] sm:$0x3] %vm5102, %v4360
      %5156 = vst.msk [vmem:[%s170 + $0x6a] sm:$0x3] %vm5102, %v4427
      %5157 = vst.msk [vmem:[%s170 + $0x6c] sm:$0x3] %vm5102, %v4494
      %5158 = vst.msk [vmem:[%s170 + $0x6e] sm:$0x3] %vm5102, %v4561
      %5159 = vst.msk [vmem:[%s170 + $0x70] sm:$0x3] %vm5102, %v4628
      %5160 = vst.msk [vmem:[%s170 + $0x72] sm:$0x3] %vm5102, %v4695
      %5161 = vst.msk [vmem:[%s170 + $0x74] sm:$0x3] %vm5102, %v4762
      %5162 = vst.msk [vmem:[%s170 + $0x76] sm:$0x3] %vm5102, %v4829
      %5163 = vst.msk [vmem:[%s170 + $0x78] sm:$0x3] %vm5102, %v4896
      %5164 = vst.msk [vmem:[%s170 + $0x7a] sm:$0x3] %vm5102, %v4963
      %5165 = vst.msk [vmem:[%s170 + $0x7c] sm:$0x3] %vm5102, %v5030
      %5166 = vst.msk [vmem:[%s170 + $0x7e] sm:$0x3] %vm5102, %v5097
      %s5167 = smul.u32 64, %s13
      %p5168 = scmp.lt.s32.totalorder %s5167, 127
      %s5169 = scalar_select %p5168, %s5167, 127
      %s5170 = smul.addr %s5169, 2
      %s5171 = scalar_lea.vmem %s2, %s5170
      // Predicated region
      $region29: #{tfno_forward.11} parent=27 // pred_check
        %p5172 = pneg %p83
      $region30: #{tfno_forward.11} parent=27 // pred_check_branch
        %5174 = sbr.rel (%p5172) target = $region32
      $region31: #{tfno_forward.11} parent=27 // pred_region
        %s5175 = smul.u32 64, %s13
      $region32: #{tfno_forward.11} parent=27 // pred_fallthru
        _
    $region28: #{tfno_forward.11} parent=5 // pred_fallthru
      _
    %p5176 = scmp.le.s32.totalorder 2, %s8
    // Predicated region
    $region33: #{tfno_forward.11} parent=5 // pred_check
      %p5177 = pneg %p5176
    $region34: #{tfno_forward.11} parent=5 // pred_check_branch
      %5179 = sbr.rel (%p5177) target = $region36
    $region35: #{tfno_forward.11} parent=5 // pred_region
      %s5180 = ssub.s32 %s8, 2
      // Predicated region
      $region37: #{tfno_forward.11} parent=35 // pred_check
        %p5181 = pneg %p89
      $region38: #{tfno_forward.11} parent=35 // pred_check_branch
        %5183 = sbr.rel (%p5181) target = $region40
      $region39: #{tfno_forward.11} parent=35 // pred_region
        %s5184 = smul.u32 64, %s14
        %p5185 = scmp.lt.s32.totalorder %s5184, 127
        %s5186 = scalar_select %p5185, %s5184, 127
        %s5187 = smul.addr %s5186, 2
        %s5188 = scalar_lea.vmem %s2, %s5187
      $region40: #{tfno_forward.11} parent=35 // pred_fallthru
        _
    $region36: #{tfno_forward.11} parent=5 // pred_fallthru
      _
  $region6: #{tfno_forward.11} parent=0 // loop_footer
    %s12 = sadd.s32 1, %s8
  $region7: #{tfno_forward.11} parent=0 // loop_footer_branch
    %7 = sbr.rel target = $region3
  $region8: #{tfno_forward.11} parent=0 // loop_exit
    _

// kernel: tfno_forward.12
$region0: #{tfno_forward.12}
  #allocation0 [shape = 'u32[]', space=smem, size = 0x4, offset = 0x4, fixed_abs, tag = 'smem constant byte address 0x4 - core index']
  #allocation1 [shape = 'u32[144,128]{1,0:T(1,128)}', space=vmem, size = 0x12000, scoped, tag = 'internal scratch']
  %s0 = inlined_call_operand.vmem [shape: f32[128,128], index: 0, kind: input, shape index: {}]
  %s1 = inlined_call_operand.vmem [shape: bf16[128,128], index: 1, kind: input, shape index: {}]
  %s2 = inlined_call_operand.vmem [shape: f32[1,128], index: 2, kind: input, shape index: {}]
  %s3 = inlined_call_operand.vmem [shape: f32[128,128], index: 3, kind: input, shape index: {}]
  %s4 = inlined_call_operand.vmem [shape: f32[128,128], index: 4, kind: output, shape index: {}]
  %s5 = sld [smem:[#allocation0]]
  $region49: #{tfno_forward.12} parent=0
    _
  %s7 = ssub.s32 1, %s5
  %s8 = scalar_select 0, %s7, %s5
  loop: start=0, step=1, limit=4
  $region2: #{tfno_forward.12} parent=0 // loop_pre_header
    _
  $region3: #{tfno_forward.12} parent=0 // loop_header
    %s10 = sphi 0, %s14
    %p11 = scmp.ge.s32.totalorder %s10, 4
    %s20 = sphi 0, %s22
    %s23 = sphi 0, %s20
    %s24 = sphi 0, %s23
    %s40 = sphi 0, %s24
    %s44 = sphi 0, %s44
    %s46 = sphi 0, %s44
    %s47 = sphi 0, %s46
    %s61 = sphi 0, %s47
    %s65 = sphi 0, %s65
    %s67 = sphi 0, %s65
    %s68 = sphi 0, %s67
    %s82 = sphi 0, %s68
    %s88 = sphi 0, %s90
    %s91 = sphi 0, %s88
    %s92 = sphi 0, %s91
    %s108 = sphi 0, %s92
    %s114 = sphi 0, %s116
    %s117 = sphi 0, %s114
    %s118 = sphi 0, %s117
    %s134 = sphi 0, %s118
  $region4: #{tfno_forward.12} parent=0 // loop_header_branch
    %13 = sbr.rel (%p11) target = $region8
  $region5: #{tfno_forward.12} parent=0 // loop_body
    %s15 = ssub.s32 %s10, 1
    %s16 = ssub.s32 %s10, 2
    %s17 = sadd.s32 %s10, 1
    %s18 = ssub.s32 %s10, %s17
    %p19 = scmp.eq.s32.totalorder %s18, 0
    %s21 = sadd.s32 %s20, 1
    %s22 = scalar_select %p19, %s20, %s21
    %p25 = pneg %p19
    %p26 = scmp.eq.s32.totalorder %s10, 1
    %p27 = por %p25, %p26
    %p28 = scmp.ne.s32.totalorder %s20, %s23
    %p29 = scmp.eq.s32.totalorder %s10, 0
    %p30 = por %p28, %p29
    %p31 = scmp.ne.s32.totalorder %s20, %s23
    %p32 = scmp.eq.s32.totalorder %s15, 1
    %p33 = por %p31, %p32
    %p34 = scmp.ne.s32.totalorder %s23, %s24
    %p35 = scmp.eq.s32.totalorder %s15, 0
    %p36 = por %p34, %p35
    %p37 = scmp.ne.s32.totalorder %s23, %s24
    %p38 = scmp.eq.s32.totalorder %s16, 1
    %p39 = por %p37, %p38
    %p41 = scmp.ne.s32.totalorder %s24, %s40
    %p42 = scmp.eq.s32.totalorder %s16, 0
    %p43 = por %p41, %p42
    %s45 = sadd.s32 %s44, 1
    %p48 = scmp.eq.s32.totalorder %s10, 1
    %p49 = scmp.ne.s32.totalorder %s44, %s46
    %p50 = scmp.eq.s32.totalorder %s10, 0
    %p51 = por %p49, %p50
    %p52 = scmp.ne.s32.totalorder %s44, %s46
    %p53 = scmp.eq.s32.totalorder %s15, 1
    %p54 = por %p52, %p53
    %p55 = scmp.ne.s32.totalorder %s46, %s47
    %p56 = scmp.eq.s32.totalorder %s15, 0
    %p57 = por %p55, %p56
    %p58 = scmp.ne.s32.totalorder %s46, %s47
    %p59 = scmp.eq.s32.totalorder %s16, 1
    %p60 = por %p58, %p59
    %p62 = scmp.ne.s32.totalorder %s47, %s61
    %p63 = scmp.eq.s32.totalorder %s16, 0
    %p64 = por %p62, %p63
    %s66 = sadd.s32 %s65, 1
    %p69 = scmp.eq.s32.totalorder %s10, 1
    %p70 = scmp.ne.s32.totalorder %s65, %s67
    %p71 = scmp.eq.s32.totalorder %s10, 0
    %p72 = por %p70, %p71
    %p73 = scmp.ne.s32.totalorder %s65, %s67
    %p74 = scmp.eq.s32.totalorder %s15, 1
    %p75 = por %p73, %p74
    %p76 = scmp.ne.s32.totalorder %s67, %s68
    %p77 = scmp.eq.s32.totalorder %s15, 0
    %p78 = por %p76, %p77
    %p79 = scmp.ne.s32.totalorder %s67, %s68
    %p80 = scmp.eq.s32.totalorder %s16, 1
    %p81 = por %p79, %p80
    %p83 = scmp.ne.s32.totalorder %s68, %s82
    %p84 = scmp.eq.s32.totalorder %s16, 0
    %p85 = por %p83, %p84
    %s86 = ssub.s32 %s10, %s17
    %p87 = scmp.eq.s32.totalorder %s86, 0
    %s89 = sadd.s32 %s88, 1
    %s90 = scalar_select %p87, %s88, %s89
    %p93 = pneg %p87
    %p94 = scmp.eq.s32.totalorder %s10, 1
    %p95 = por %p93, %p94
    %p96 = scmp.ne.s32.totalorder %s88, %s91
    %p97 = scmp.eq.s32.totalorder %s10, 0
    %p98 = por %p96, %p97
    %p99 = scmp.ne.s32.totalorder %s88, %s91
    %p100 = scmp.eq.s32.totalorder %s15, 1
    %p101 = por %p99, %p100
    %p102 = scmp.ne.s32.totalorder %s91, %s92
    %p103 = scmp.eq.s32.totalorder %s15, 0
    %p104 = por %p102, %p103
    %p105 = scmp.ne.s32.totalorder %s91, %s92
    %p106 = scmp.eq.s32.totalorder %s16, 1
    %p107 = por %p105, %p106
    %p109 = scmp.ne.s32.totalorder %s92, %s108
    %p110 = scmp.eq.s32.totalorder %s16, 0
    %p111 = por %p109, %p110
    %s112 = ssub.s32 %s10, %s17
    %p113 = scmp.eq.s32.totalorder %s112, 0
    %s115 = sadd.s32 %s114, 1
    %s116 = scalar_select %p113, %s114, %s115
    %p119 = pneg %p113
    %p120 = scmp.eq.s32.totalorder %s10, 1
    %p121 = por %p119, %p120
    %p122 = scmp.ne.s32.totalorder %s114, %s117
    %p123 = scmp.eq.s32.totalorder %s10, 0
    %p124 = por %p122, %p123
    %p125 = scmp.ne.s32.totalorder %s114, %s117
    %p126 = scmp.eq.s32.totalorder %s15, 1
    %p127 = por %p125, %p126
    %p128 = scmp.ne.s32.totalorder %s117, %s118
    %p129 = scmp.eq.s32.totalorder %s15, 0
    %p130 = por %p128, %p129
    %p131 = scmp.ne.s32.totalorder %s117, %s118
    %p132 = scmp.eq.s32.totalorder %s16, 1
    %p133 = por %p131, %p132
    %p135 = scmp.ne.s32.totalorder %s118, %s134
    %p136 = scmp.eq.s32.totalorder %s16, 0
    %p137 = por %p135, %p136
    %p138 = scmp.le.s32.totalorder 1, %s10
    %p139 = scmp.lt.s32.totalorder %s10, 3
    %p140 = pnand %p138, %p139
    %p141 = pneg %p140
    // Predicated region
    $region9: #{tfno_forward.12} parent=5 // pred_check
      _
    $region10: #{tfno_forward.12} parent=5 // pred_check_branch
      %143 = sbr.rel (%p140) target = $region12
    $region11: #{tfno_forward.12} parent=5 // pred_region
      %s144 = ssub.s32 %s10, 1
      // Predicated region
      $region13: #{tfno_forward.12} parent=11 // pred_check
        %p145 = pneg %p57
      $region14: #{tfno_forward.12} parent=11 // pred_check_branch
        %147 = sbr.rel (%p145) target = $region16
      $region15: #{tfno_forward.12} parent=11 // pred_region
        _
      $region16: #{tfno_forward.12} parent=11 // pred_fallthru
        _
      // Predicated region
      $region17: #{tfno_forward.12} parent=11 // pred_check
        %p148 = pneg %p78
      $region18: #{tfno_forward.12} parent=11 // pred_check_branch
        %150 = sbr.rel (%p148) target = $region20
      $region19: #{tfno_forward.12} parent=11 // pred_region
        _
      $region20: #{tfno_forward.12} parent=11 // pred_fallthru
        _
    $region12: #{tfno_forward.12} parent=5 // pred_fallthru
      _
    %p151 = scmp.lt.s32.totalorder %s10, 2
    // Predicated region
    $region21: #{tfno_forward.12} parent=5 // pred_check
      %p152 = pneg %p151
    $region22: #{tfno_forward.12} parent=5 // pred_check_branch
      %154 = sbr.rel (%p152) target = $region24
    $region23: #{tfno_forward.12} parent=5 // pred_region
      // Predicated region
      $region25: #{tfno_forward.12} parent=23 // pred_check
        %p155 = pneg %p30
      $region26: #{tfno_forward.12} parent=23 // pred_check_branch
        %157 = sbr.rel (%p155) target = $region28
      $region27: #{tfno_forward.12} parent=23 // pred_region
        %s158 = smul.u32 8, %s10
        %p159 = scmp.lt.s32.totalorder %s158, 15
        %s160 = scalar_select %p159, %s158, 15
        %s161 = smul.addr %s160, 8
        %s162 = scalar_lea.vmem %s0, %s161
        %s163 = smul.u32 8, %s10
      $region28: #{tfno_forward.12} parent=23 // pred_fallthru
        _
      // Predicated region
      $region29: #{tfno_forward.12} parent=23 // pred_check
        %p164 = pneg %p98
      $region30: #{tfno_forward.12} parent=23 // pred_check_branch
        %166 = sbr.rel (%p164) target = $region32
      $region31: #{tfno_forward.12} parent=23 // pred_region
        %s167 = smul.u32 8, %s10
        %p168 = scmp.lt.s32.totalorder %s167, 15
        %s169 = scalar_select %p168, %s167, 15
        %s170 = smul.addr %s169, 8
        %s171 = scalar_lea.vmem %s3, %s170
        %s172 = smul.u32 8, %s10
      $region32: #{tfno_forward.12} parent=23 // pred_fallthru
        _
    $region24: #{tfno_forward.12} parent=5 // pred_fallthru
      _
    %p173 = scmp.le.s32.totalorder 1, %s10
    %p174 = scmp.lt.s32.totalorder %s10, 3
    %p175 = pnand %p173, %p174
    %p176 = pneg %p175
    // Predicated region
    $region33: #{tfno_forward.12} parent=5 // pred_check
      _
    $region34: #{tfno_forward.12} parent=5 // pred_check_branch
      %178 = sbr.rel (%p175) target = $region36
    $region35: #{tfno_forward.12} parent=5 // pred_region
      %s179 = ssub.s32 %s10, 1
      %s180 = smul.u32 8, %s15
      %p181 = scmp.lt.s32.totalorder %s180, 15
      %s182 = scalar_select %p181, %s180, 15
      %s183 = smul.addr %s182, 8
      %s184 = scalar_lea.vmem %s0, %s183
      %p185 = pneg %p36
      %p186 = pneg %p33
      %p187 = pneg %p57
      %p188 = pneg %p54
      %p189 = pneg %p78
      %p190 = pneg %p75
      %s191 = smul.u32 8, %s15
      %p192 = scmp.lt.s32.totalorder %s191, 15
      %s193 = scalar_select %p192, %s191, 15
      %s194 = smul.addr %s193, 8
      %s195 = scalar_lea.vmem %s3, %s194
      %p196 = pneg %p104
      %p197 = pneg %p101
      %p198 = pneg %p130
      %p199 = pneg %p127
      %s200 = smul.u32 8, %s15
      %p201 = scmp.lt.s32.totalorder %s200, 15
      %s202 = scalar_select %p201, %s200, 15
      %s203 = smul.addr %s202, 8
      %s204 = scalar_lea.vmem %s4, %s203
      %s205 = smul.u32 8, %s15
      %p206 = scmp.lt.s32.totalorder %s205, 15
      %s207 = scalar_select %p206, %s205, 15
      %s208 = smul.addr %s207, 8
      %s209 = scalar_lea.vmem %s0, %s208
      %s210 = smul.u32 8, %s15
      %s211 = smul.u32 8, %s15
      %p212 = scmp.lt.s32.totalorder %s211, 15
      %s213 = scalar_select %p212, %s211, 15
      %s214 = smul.addr %s213, 8
      %s215 = scalar_lea.vmem %s3, %s214
      %s216 = smul.u32 8, %s15
      %s217 = smul.u32 8, %s15
      %p218 = scmp.lt.s32.totalorder %s217, 15
      %s219 = scalar_select %p218, %s217, 15
      %s220 = smul.addr %s219, 8
      %s221 = scalar_lea.vmem %s4, %s220
      %s222 = smul.u32 8, %s15
      %v224 = vld [vmem:[%s209] sm:$0xff]
      %v225 = vld [vmem:[%s209 + $0x8] sm:$0xff]
      %v226 = vld [vmem:[%s209 + $0x10] sm:$0xff]
      %v227 = vld [vmem:[%s209 + $0x18] sm:$0xff]
      %v228 = vld [vmem:[%s209 + $0x20] sm:$0xff]
      %v229 = vld [vmem:[%s209 + $0x28] sm:$0xff]
      %v230 = vld [vmem:[%s209 + $0x30] sm:$0xff]
      %v231 = vld [vmem:[%s209 + $0x38] sm:$0xff]
      %v232 = vpack.c.bf16 %v225, %v224
      %v233 = vpack.c.bf16 %v227, %v226
      %v234 = vpack.c.bf16 %v229, %v228
      %v235 = vpack.c.bf16 %v231, %v230
      %v236 = vld [vmem:[%s1] sm:$0xf]
      %v237 = vld [vmem:[%s1 + $0x4] sm:$0xf]
      %v238 = vld [vmem:[%s1 + $0x8] sm:$0xf]
      %v239 = vld [vmem:[%s1 + $0xc] sm:$0xf]
      %v240 = vld [vmem:[%s1 + $0x10] sm:$0xf]
      %v241 = vld [vmem:[%s1 + $0x14] sm:$0xf]
      %v242 = vld [vmem:[%s1 + $0x18] sm:$0xf]
      %v243 = vld [vmem:[%s1 + $0x1c] sm:$0xf]
      %v244 = vld [vmem:[%s1 + $0x20] sm:$0xf]
      %v245 = vld [vmem:[%s1 + $0x24] sm:$0xf]
      %v246 = vld [vmem:[%s1 + $0x28] sm:$0xf]
      %v247 = vld [vmem:[%s1 + $0x2c] sm:$0xf]
      %v248 = vld [vmem:[%s1 + $0x30] sm:$0xf]
      %v249 = vld [vmem:[%s1 + $0x34] sm:$0xf]
      %v250 = vld [vmem:[%s1 + $0x38] sm:$0xf]
      %v251 = vld [vmem:[%s1 + $0x3c] sm:$0xf]
      %v252 = vld [vmem:[%s2] sm:$0x1]
      %v254 = vlaneseq
      %v255 = vshrl.u32 %v254, 7
      %v256 = vsub.s32 0, %v255
      %v257 = vrot.slane %v252, %v256
      %v275 = vunpack.c.l.b16 %v236
      %v276 = vunpack.c.l.b16 %v237
      %v277 = vunpack.c.l.b16 %v238
      %v278 = vunpack.c.l.b16 %v239
      %v279 = vunpack.c.l.b16 %v240
      %v280 = vunpack.c.l.b16 %v241
      %v281 = vunpack.c.l.b16 %v242
      %v282 = vunpack.c.l.b16 %v243
      %v283 = vunpack.c.l.b16 %v244
      %v284 = vunpack.c.l.b16 %v245
      %v285 = vunpack.c.l.b16 %v246
      %v286 = vunpack.c.l.b16 %v247
      %v287 = vunpack.c.l.b16 %v248
      %v288 = vunpack.c.l.b16 %v249
      %v289 = vunpack.c.l.b16 %v250
      %v290 = vunpack.c.l.b16 %v251
      %v291 = vpack.c.b16 %v276, %v275
      %v292 = vpack.c.b16 %v278, %v277
      %v293 = vpack.c.b16 %v280, %v279
      %v294 = vpack.c.b16 %v282, %v281
      %v295 = vpack.c.b16 %v284, %v283
      %v296 = vpack.c.b16 %v286, %v285
      %v297 = vpack.c.b16 %v288, %v287
      %v298 = vpack.c.b16 %v290, %v289
      %307 = vmatprep.subr.bf16.mxu0 0
      %308 = vmatpush1.bf16.msra.mxu0 %v291
      %309 = vmatprep.subr.bf16.mxu0 0
      %310 = vmatpush1.bf16.msra.mxu0 %v292
      %311 = vmatprep.subr.bf16.mxu0 0
      %312 = vmatpush1.bf16.msra.mxu0 %v293
      %313 = vmatprep.subr.bf16.mxu0 0
      %314 = vmatpush1.bf16.msra.mxu0 %v294
      %315 = vmatprep.subr.bf16.mxu0 0
      %316 = vmatpush1.bf16.msra.mxu0 %v295
      %317 = vmatprep.subr.bf16.mxu0 0
      %318 = vmatpush1.bf16.msra.mxu0 %v296
      %319 = vmatprep.subr.bf16.mxu0 0
      %320 = vmatpush1.bf16.msra.mxu0 %v297
      %321 = vmatprep.subr.bf16.mxu0 0
      %322 = vmatpush1.bf16.msra.mxu0 %v298
      %323 = vmatprep.subr.bf16.mxu0 0
      %324 = vmatpush1.bf16.msra.mxu0 0
      %325 = vmatprep.subr.bf16.mxu0 0
      %326 = vmatpush1.bf16.msra.mxu0 0
      %327 = vmatprep.subr.bf16.mxu0 0
      %328 = vmatpush1.bf16.msra.mxu0 0
      %329 = vmatprep.subr.bf16.mxu0 0
      %330 = vmatpush1.bf16.msra.mxu0 0
      %331 = vmatprep.subr.bf16.mxu0 0
      %332 = vmatpush1.bf16.msra.mxu0 0
      %333 = vmatprep.subr.bf16.mxu0 0
      %334 = vmatpush1.bf16.msra.mxu0 0
      %335 = vmatprep.subr.bf16.mxu0 0
      %336 = vmatpush1.bf16.msra.mxu0 0
      %337 = vmatprep.subr.bf16.mxu0 0
      %338 = vmatpush1.bf16.msra.mxu0 0
      %339 = vmatprep.mubr.bf16.mxu0 0
      %340 = vmatmul.mubr.bf16.gmra.mrb[0].mxu0 %v232
      %v341 = vpop.f32.mrb[0].mxu0
      %v342 = vadd.f32 %v257, %v341
      %v343 = vpop.f32.mrb[0].mxu0
      %v344 = vpop.f32.mrb[0].mxu0
      %v345 = vadd.f32 %v257, %v344
      %v346 = vpop.f32.mrb[0].mxu0
      %347 = vmatprep.mubr.bf16.mxu0 0
      %348 = vmatmul.mubr.bf16.gmra.mrb[0].mxu0 %v233
      %v349 = vpop.f32.mrb[0].mxu0
      %v350 = vadd.f32 %v257, %v349
      %v351 = vpop.f32.mrb[0].mxu0
      %v352 = vpop.f32.mrb[0].mxu0
      %v353 = vadd.f32 %v257, %v352
      %v354 = vpop.f32.mrb[0].mxu0
      %355 = vmatprep.mubr.bf16.mxu0 0
      %356 = vmatmul.mubr.bf16.gmra.mrb[0].mxu0 %v234
      %v357 = vpop.f32.mrb[0].mxu0
      %v358 = vadd.f32 %v257, %v357
      %v359 = vpop.f32.mrb[0].mxu0
      %v360 = vpop.f32.mrb[0].mxu0
      %v361 = vadd.f32 %v257, %v360
      %v362 = vpop.f32.mrb[0].mxu0
      %363 = vmatprep.mubr.bf16.mxu0 0
      %364 = vmatmul.mubr.bf16.gmra.mrb[0].mxu0 %v235
      %v365 = vpop.f32.mrb[0].mxu0
      %v366 = vadd.f32 %v257, %v365
      %v367 = vpop.f32.mrb[0].mxu0
      %v368 = vpop.f32.mrb[0].mxu0
      %v369 = vadd.f32 %v257, %v368
      %v370 = vpop.f32.mrb[0].mxu0
      %371 = vdwg.mxu0
      %v372 = vld [vmem:[%s215] sm:$0xff]
      %v373 = vld [vmem:[%s215 + $0x8] sm:$0xff]
      %v374 = vld [vmem:[%s215 + $0x10] sm:$0xff]
      %v375 = vld [vmem:[%s215 + $0x18] sm:$0xff]
      %v376 = vld [vmem:[%s215 + $0x20] sm:$0xff]
      %v377 = vld [vmem:[%s215 + $0x28] sm:$0xff]
      %v378 = vld [vmem:[%s215 + $0x30] sm:$0xff]
      %v379 = vld [vmem:[%s215 + $0x38] sm:$0xff]
      %v380 = vadd.f32 %v342, %v372
      %v381 = vadd.f32 %v345, %v373
      %v382 = vadd.f32 %v350, %v374
      %v383 = vadd.f32 %v353, %v375
      %v384 = vadd.f32 %v358, %v376
      %v385 = vadd.f32 %v361, %v377
      %v386 = vadd.f32 %v366, %v378
      %v387 = vadd.f32 %v369, %v379
      %v388 = vmul.f32 %v380, %v380
      %v389 = vmul.f32 %v381, %v381
      %v390 = vmul.f32 %v382, %v382
      %v391 = vmul.f32 %v383, %v383
      %v392 = vmul.f32 %v384, %v384
      %v393 = vmul.f32 %v385, %v385
      %v394 = vmul.f32 %v386, %v386
      %v395 = vmul.f32 %v387, %v387
      %v396 = vmul.f32 %v380, %v388
      %v397 = vmul.f32 %v381, %v389
      %v398 = vmul.f32 %v382, %v390
      %v399 = vmul.f32 %v383, %v391
      %v400 = vmul.f32 %v384, %v392
      %v401 = vmul.f32 %v385, %v393
      %v402 = vmul.f32 %v386, %v394
      %v403 = vmul.f32 %v387, %v395
      %v404 = vmul.f32 %v396, 0.044715
      %v405 = vmul.f32 %v397, 0.044715
      %v406 = vmul.f32 %v398, 0.044715
      %v407 = vmul.f32 %v399, 0.044715
      %v408 = vmul.f32 %v400, 0.044715
      %v409 = vmul.f32 %v401, 0.044715
      %v410 = vmul.f32 %v402, 0.044715
      %v411 = vmul.f32 %v403, 0.044715
      %v412 = vadd.f32 %v380, %v404
      %v413 = vadd.f32 %v381, %v405
      %v414 = vadd.f32 %v382, %v406
      %v415 = vadd.f32 %v383, %v407
      %v416 = vadd.f32 %v384, %v408
      %v417 = vadd.f32 %v385, %v409
      %v418 = vadd.f32 %v386, %v410
      %v419 = vadd.f32 %v387, %v411
      %v420 = vmul.f32 %v412, 0.7978846
      %v421 = vmul.f32 %v413, 0.7978846
      %v422 = vmul.f32 %v414, 0.7978846
      %v423 = vmul.f32 %v415, 0.7978846
      %v424 = vmul.f32 %v416, 0.7978846
      %v425 = vmul.f32 %v417, 0.7978846
      %v426 = vmul.f32 %v418, 0.7978846
      %v427 = vmul.f32 %v419, 0.7978846
      %v428 = vtanh.pop %v420
      %v429 = vtanh.pop %v421
      %v430 = vtanh.pop %v422
      %v431 = vtanh.pop %v423
      %v432 = vtanh.pop %v424
      %v433 = vtanh.pop %v425
      %v434 = vtanh.pop %v426
      %v435 = vtanh.pop %v427
      %v436 = vadd.f32 %v428, 1.0
      %v437 = vadd.f32 %v429, 1.0
      %v438 = vadd.f32 %v430, 1.0
      %v439 = vadd.f32 %v431, 1.0
      %v440 = vadd.f32 %v432, 1.0
      %v441 = vadd.f32 %v433, 1.0
      %v442 = vadd.f32 %v434, 1.0
      %v443 = vadd.f32 %v435, 1.0
      %v444 = vmul.f32 %v436, 0.5
      %v445 = vmul.f32 %v437, 0.5
      %v446 = vmul.f32 %v438, 0.5
      %v447 = vmul.f32 %v439, 0.5
      %v448 = vmul.f32 %v440, 0.5
      %v449 = vmul.f32 %v441, 0.5
      %v450 = vmul.f32 %v442, 0.5
      %v451 = vmul.f32 %v443, 0.5
      %v452 = vmul.f32 %v380, %v444
      %v453 = vmul.f32 %v381, %v445
      %v454 = vmul.f32 %v382, %v446
      %v455 = vmul.f32 %v383, %v447
      %v456 = vmul.f32 %v384, %v448
      %v457 = vmul.f32 %v385, %v449
      %v458 = vmul.f32 %v386, %v450
      %v459 = vmul.f32 %v387, %v451
      %460 = vst [vmem:[%s221] sm:$0xff] %v452
      %461 = vst [vmem:[%s221 + $0x8] sm:$0xff] %v453
      %462 = vst [vmem:[%s221 + $0x10] sm:$0xff] %v454
      %463 = vst [vmem:[%s221 + $0x18] sm:$0xff] %v455
      %464 = vst [vmem:[%s221 + $0x20] sm:$0xff] %v456
      %465 = vst [vmem:[%s221 + $0x28] sm:$0xff] %v457
      %466 = vst [vmem:[%s221 + $0x30] sm:$0xff] %v458
      %467 = vst [vmem:[%s221 + $0x38] sm:$0xff] %v459
      %s468 = smul.u32 8, %s15
      %p469 = scmp.lt.s32.totalorder %s468, 15
      %s470 = scalar_select %p469, %s468, 15
      %s471 = smul.addr %s470, 8
      %s472 = scalar_lea.vmem %s4, %s471
      // Predicated region
      $region37: #{tfno_forward.12} parent=35 // pred_check
        %p473 = pneg %p127
      $region38: #{tfno_forward.12} parent=35 // pred_check_branch
        %475 = sbr.rel (%p473) target = $region40
      $region39: #{tfno_forward.12} parent=35 // pred_region
        %s476 = smul.u32 8, %s15
      $region40: #{tfno_forward.12} parent=35 // pred_fallthru
        _
    $region36: #{tfno_forward.12} parent=5 // pred_fallthru
      _
    %p477 = scmp.le.s32.totalorder 2, %s10
    // Predicated region
    $region41: #{tfno_forward.12} parent=5 // pred_check
      %p478 = pneg %p477
    $region42: #{tfno_forward.12} parent=5 // pred_check_branch
      %480 = sbr.rel (%p478) target = $region44
    $region43: #{tfno_forward.12} parent=5 // pred_region
      %s481 = ssub.s32 %s10, 2
      // Predicated region
      $region45: #{tfno_forward.12} parent=43 // pred_check
        %p482 = pneg %p133
      $region46: #{tfno_forward.12} parent=43 // pred_check_branch
        %484 = sbr.rel (%p482) target = $region48
      $region47: #{tfno_forward.12} parent=43 // pred_region
        %s485 = smul.u32 8, %s16
        %p486 = scmp.lt.s32.totalorder %s485, 15
        %s487 = scalar_select %p486, %s485, 15
        %s488 = smul.addr %s487, 8
        %s489 = scalar_lea.vmem %s4, %s488
      $region48: #{tfno_forward.12} parent=43 // pred_fallthru
        _
    $region44: #{tfno_forward.12} parent=5 // pred_fallthru
      _
  $region6: #{tfno_forward.12} parent=0 // loop_footer
    %s14 = sadd.s32 1, %s10
  $region7: #{tfno_forward.12} parent=0 // loop_footer_branch
    %9 = sbr.rel target = $region3
  $region8: #{tfno_forward.12} parent=0 // loop_exit
    _

// kernel: tfno_forward.18
$region0: #{tfno_forward.18}
  #allocation0 [shape = 'u32[]', space=smem, size = 0x4, offset = 0x4, fixed_abs, tag = 'smem constant byte address 0x4 - core index']
  #allocation1 [shape = 'u32[144,128]{1,0:T(1,128)}', space=vmem, size = 0x12000, scoped, tag = 'internal scratch']
  %s0 = inlined_call_operand.vmem [shape: f32[128,128], index: 0, kind: input, shape index: {}]
  %s1 = inlined_call_operand.vmem [shape: bf16[128,128], index: 1, kind: input, shape index: {}]
  %s2 = inlined_call_operand.vmem [shape: f32[1,128], index: 2, kind: input, shape index: {}]
  %s3 = inlined_call_operand.vmem [shape: f32[128,128], index: 3, kind: input, shape index: {}]
  %s4 = inlined_call_operand.vmem [shape: f32[128,128], index: 4, kind: output, shape index: {}]
  %s5 = sld [smem:[#allocation0]]
  $region49: #{tfno_forward.18} parent=0
    _
  %s7 = ssub.s32 1, %s5
  %s8 = scalar_select 0, %s7, %s5
  loop: start=0, step=1, limit=4
  $region2: #{tfno_forward.18} parent=0 // loop_pre_header
    _
  $region3: #{tfno_forward.18} parent=0 // loop_header
    %s10 = sphi 0, %s14
    %p11 = scmp.ge.s32.totalorder %s10, 4
    %s20 = sphi 0, %s22
    %s23 = sphi 0, %s20
    %s24 = sphi 0, %s23
    %s40 = sphi 0, %s24
    %s44 = sphi 0, %s44
    %s46 = sphi 0, %s44
    %s47 = sphi 0, %s46
    %s61 = sphi 0, %s47
    %s65 = sphi 0, %s65
    %s67 = sphi 0, %s65
    %s68 = sphi 0, %s67
    %s82 = sphi 0, %s68
    %s88 = sphi 0, %s90
    %s91 = sphi 0, %s88
    %s92 = sphi 0, %s91
    %s108 = sphi 0, %s92
    %s114 = sphi 0, %s116
    %s117 = sphi 0, %s114
    %s118 = sphi 0, %s117
    %s134 = sphi 0, %s118
  $region4: #{tfno_forward.18} parent=0 // loop_header_branch
    %13 = sbr.rel (%p11) target = $region8
  $region5: #{tfno_forward.18} parent=0 // loop_body
    %s15 = ssub.s32 %s10, 1
    %s16 = ssub.s32 %s10, 2
    %s17 = sadd.s32 %s10, 1
    %s18 = ssub.s32 %s10, %s17
    %p19 = scmp.eq.s32.totalorder %s18, 0
    %s21 = sadd.s32 %s20, 1
    %s22 = scalar_select %p19, %s20, %s21
    %p25 = pneg %p19
    %p26 = scmp.eq.s32.totalorder %s10, 1
    %p27 = por %p25, %p26
    %p28 = scmp.ne.s32.totalorder %s20, %s23
    %p29 = scmp.eq.s32.totalorder %s10, 0
    %p30 = por %p28, %p29
    %p31 = scmp.ne.s32.totalorder %s20, %s23
    %p32 = scmp.eq.s32.totalorder %s15, 1
    %p33 = por %p31, %p32
    %p34 = scmp.ne.s32.totalorder %s23, %s24
    %p35 = scmp.eq.s32.totalorder %s15, 0
    %p36 = por %p34, %p35
    %p37 = scmp.ne.s32.totalorder %s23, %s24
    %p38 = scmp.eq.s32.totalorder %s16, 1
    %p39 = por %p37, %p38
    %p41 = scmp.ne.s32.totalorder %s24, %s40
    %p42 = scmp.eq.s32.totalorder %s16, 0
    %p43 = por %p41, %p42
    %s45 = sadd.s32 %s44, 1
    %p48 = scmp.eq.s32.totalorder %s10, 1
    %p49 = scmp.ne.s32.totalorder %s44, %s46
    %p50 = scmp.eq.s32.totalorder %s10, 0
    %p51 = por %p49, %p50
    %p52 = scmp.ne.s32.totalorder %s44, %s46
    %p53 = scmp.eq.s32.totalorder %s15, 1
    %p54 = por %p52, %p53
    %p55 = scmp.ne.s32.totalorder %s46, %s47
    %p56 = scmp.eq.s32.totalorder %s15, 0
    %p57 = por %p55, %p56
    %p58 = scmp.ne.s32.totalorder %s46, %s47
    %p59 = scmp.eq.s32.totalorder %s16, 1
    %p60 = por %p58, %p59
    %p62 = scmp.ne.s32.totalorder %s47, %s61
    %p63 = scmp.eq.s32.totalorder %s16, 0
    %p64 = por %p62, %p63
    %s66 = sadd.s32 %s65, 1
    %p69 = scmp.eq.s32.totalorder %s10, 1
    %p70 = scmp.ne.s32.totalorder %s65, %s67
    %p71 = scmp.eq.s32.totalorder %s10, 0
    %p72 = por %p70, %p71
    %p73 = scmp.ne.s32.totalorder %s65, %s67
    %p74 = scmp.eq.s32.totalorder %s15, 1
    %p75 = por %p73, %p74
    %p76 = scmp.ne.s32.totalorder %s67, %s68
    %p77 = scmp.eq.s32.totalorder %s15, 0
    %p78 = por %p76, %p77
    %p79 = scmp.ne.s32.totalorder %s67, %s68
    %p80 = scmp.eq.s32.totalorder %s16, 1
    %p81 = por %p79, %p80
    %p83 = scmp.ne.s32.totalorder %s68, %s82
    %p84 = scmp.eq.s32.totalorder %s16, 0
    %p85 = por %p83, %p84
    %s86 = ssub.s32 %s10, %s17
    %p87 = scmp.eq.s32.totalorder %s86, 0
    %s89 = sadd.s32 %s88, 1
    %s90 = scalar_select %p87, %s88, %s89
    %p93 = pneg %p87
    %p94 = scmp.eq.s32.totalorder %s10, 1
    %p95 = por %p93, %p94
    %p96 = scmp.ne.s32.totalorder %s88, %s91
    %p97 = scmp.eq.s32.totalorder %s10, 0
    %p98 = por %p96, %p97
    %p99 = scmp.ne.s32.totalorder %s88, %s91
    %p100 = scmp.eq.s32.totalorder %s15, 1
    %p101 = por %p99, %p100
    %p102 = scmp.ne.s32.totalorder %s91, %s92
    %p103 = scmp.eq.s32.totalorder %s15, 0
    %p104 = por %p102, %p103
    %p105 = scmp.ne.s32.totalorder %s91, %s92
    %p106 = scmp.eq.s32.totalorder %s16, 1
    %p107 = por %p105, %p106
    %p109 = scmp.ne.s32.totalorder %s92, %s108
    %p110 = scmp.eq.s32.totalorder %s16, 0
    %p111 = por %p109, %p110
    %s112 = ssub.s32 %s10, %s17
    %p113 = scmp.eq.s32.totalorder %s112, 0
    %s115 = sadd.s32 %s114, 1
    %s116 = scalar_select %p113, %s114, %s115
    %p119 = pneg %p113
    %p120 = scmp.eq.s32.totalorder %s10, 1
    %p121 = por %p119, %p120
    %p122 = scmp.ne.s32.totalorder %s114, %s117
    %p123 = scmp.eq.s32.totalorder %s10, 0
    %p124 = por %p122, %p123
    %p125 = scmp.ne.s32.totalorder %s114, %s117
    %p126 = scmp.eq.s32.totalorder %s15, 1
    %p127 = por %p125, %p126
    %p128 = scmp.ne.s32.totalorder %s117, %s118
    %p129 = scmp.eq.s32.totalorder %s15, 0
    %p130 = por %p128, %p129
    %p131 = scmp.ne.s32.totalorder %s117, %s118
    %p132 = scmp.eq.s32.totalorder %s16, 1
    %p133 = por %p131, %p132
    %p135 = scmp.ne.s32.totalorder %s118, %s134
    %p136 = scmp.eq.s32.totalorder %s16, 0
    %p137 = por %p135, %p136
    %p138 = scmp.le.s32.totalorder 1, %s10
    %p139 = scmp.lt.s32.totalorder %s10, 3
    %p140 = pnand %p138, %p139
    %p141 = pneg %p140
    // Predicated region
    $region9: #{tfno_forward.18} parent=5 // pred_check
      _
    $region10: #{tfno_forward.18} parent=5 // pred_check_branch
      %143 = sbr.rel (%p140) target = $region12
    $region11: #{tfno_forward.18} parent=5 // pred_region
      %s144 = ssub.s32 %s10, 1
      // Predicated region
      $region13: #{tfno_forward.18} parent=11 // pred_check
        %p145 = pneg %p57
      $region14: #{tfno_forward.18} parent=11 // pred_check_branch
        %147 = sbr.rel (%p145) target = $region16
      $region15: #{tfno_forward.18} parent=11 // pred_region
        _
      $region16: #{tfno_forward.18} parent=11 // pred_fallthru
        _
      // Predicated region
      $region17: #{tfno_forward.18} parent=11 // pred_check
        %p148 = pneg %p78
      $region18: #{tfno_forward.18} parent=11 // pred_check_branch
        %150 = sbr.rel (%p148) target = $region20
      $region19: #{tfno_forward.18} parent=11 // pred_region
        _
      $region20: #{tfno_forward.18} parent=11 // pred_fallthru
        _
    $region12: #{tfno_forward.18} parent=5 // pred_fallthru
      _
    %p151 = scmp.lt.s32.totalorder %s10, 2
    // Predicated region
    $region21: #{tfno_forward.18} parent=5 // pred_check
      %p152 = pneg %p151
    $region22: #{tfno_forward.18} parent=5 // pred_check_branch
      %154 = sbr.rel (%p152) target = $region24
    $region23: #{tfno_forward.18} parent=5 // pred_region
      // Predicated region
      $region25: #{tfno_forward.18} parent=23 // pred_check
        %p155 = pneg %p30
      $region26: #{tfno_forward.18} parent=23 // pred_check_branch
        %157 = sbr.rel (%p155) target = $region28
      $region27: #{tfno_forward.18} parent=23 // pred_region
        %s158 = smul.u32 8, %s10
        %p159 = scmp.lt.s32.totalorder %s158, 15
        %s160 = scalar_select %p159, %s158, 15
        %s161 = smul.addr %s160, 8
        %s162 = scalar_lea.vmem %s0, %s161
        %s163 = smul.u32 8, %s10
      $region28: #{tfno_forward.18} parent=23 // pred_fallthru
        _
      // Predicated region
      $region29: #{tfno_forward.18} parent=23 // pred_check
        %p164 = pneg %p98
      $region30: #{tfno_forward.18} parent=23 // pred_check_branch
        %166 = sbr.rel (%p164) target = $region32
      $region31: #{tfno_forward.18} parent=23 // pred_region
        %s167 = smul.u32 8, %s10
        %p168 = scmp.lt.s32.totalorder %s167, 15
        %s169 = scalar_select %p168, %s167, 15
        %s170 = smul.addr %s169, 8
        %s171 = scalar_lea.vmem %s3, %s170
        %s172 = smul.u32 8, %s10
      $region32: #{tfno_forward.18} parent=23 // pred_fallthru
        _
    $region24: #{tfno_forward.18} parent=5 // pred_fallthru
      _
    %p173 = scmp.le.s32.totalorder 1, %s10
    %p174 = scmp.lt.s32.totalorder %s10, 3
    %p175 = pnand %p173, %p174
    %p176 = pneg %p175
    // Predicated region
    $region33: #{tfno_forward.18} parent=5 // pred_check
      _
    $region34: #{tfno_forward.18} parent=5 // pred_check_branch
      %178 = sbr.rel (%p175) target = $region36
    $region35: #{tfno_forward.18} parent=5 // pred_region
      %s179 = ssub.s32 %s10, 1
      %s180 = smul.u32 8, %s15
      %p181 = scmp.lt.s32.totalorder %s180, 15
      %s182 = scalar_select %p181, %s180, 15
      %s183 = smul.addr %s182, 8
      %s184 = scalar_lea.vmem %s0, %s183
      %p185 = pneg %p36
      %p186 = pneg %p33
      %p187 = pneg %p57
      %p188 = pneg %p54
      %p189 = pneg %p78
      %p190 = pneg %p75
      %s191 = smul.u32 8, %s15
      %p192 = scmp.lt.s32.totalorder %s191, 15
      %s193 = scalar_select %p192, %s191, 15
      %s194 = smul.addr %s193, 8
      %s195 = scalar_lea.vmem %s3, %s194
      %p196 = pneg %p104
      %p197 = pneg %p101
      %p198 = pneg %p130
      %p199 = pneg %p127
      %s200 = smul.u32 8, %s15
      %p201 = scmp.lt.s32.totalorder %s200, 15
      %s202 = scalar_select %p201, %s200, 15
      %s203 = smul.addr %s202, 8
      %s204 = scalar_lea.vmem %s4, %s203
      %s205 = smul.u32 8, %s15
      %p206 = scmp.lt.s32.totalorder %s205, 15
      %s207 = scalar_select %p206, %s205, 15
      %s208 = smul.addr %s207, 8
      %s209 = scalar_lea.vmem %s0, %s208
      %s210 = smul.u32 8, %s15
      %s211 = smul.u32 8, %s15
      %p212 = scmp.lt.s32.totalorder %s211, 15
      %s213 = scalar_select %p212, %s211, 15
      %s214 = smul.addr %s213, 8
      %s215 = scalar_lea.vmem %s3, %s214
      %s216 = smul.u32 8, %s15
      %s217 = smul.u32 8, %s15
      %p218 = scmp.lt.s32.totalorder %s217, 15
      %s219 = scalar_select %p218, %s217, 15
      %s220 = smul.addr %s219, 8
      %s221 = scalar_lea.vmem %s4, %s220
      %s222 = smul.u32 8, %s15
      %v224 = vld [vmem:[%s209] sm:$0xff]
      %v225 = vld [vmem:[%s209 + $0x8] sm:$0xff]
      %v226 = vld [vmem:[%s209 + $0x10] sm:$0xff]
      %v227 = vld [vmem:[%s209 + $0x18] sm:$0xff]
      %v228 = vld [vmem:[%s209 + $0x20] sm:$0xff]
      %v229 = vld [vmem:[%s209 + $0x28] sm:$0xff]
      %v230 = vld [vmem:[%s209 + $0x30] sm:$0xff]
      %v231 = vld [vmem:[%s209 + $0x38] sm:$0xff]
      %v232 = vpack.c.bf16 %v225, %v224
      %v233 = vpack.c.bf16 %v227, %v226
      %v234 = vpack.c.bf16 %v229, %v228
      %v235 = vpack.c.bf16 %v231, %v230
      %v236 = vld [vmem:[%s1] sm:$0xf]
      %v237 = vld [vmem:[%s1 + $0x4] sm:$0xf]
      %v238 = vld [vmem:[%s1 + $0x8] sm:$0xf]
      %v239 = vld [vmem:[%s1 + $0xc] sm:$0xf]
      %v240 = vld [vmem:[%s1 + $0x10] sm:$0xf]
      %v241 = vld [vmem:[%s1 + $0x14] sm:$0xf]
      %v242 = vld [vmem:[%s1 + $0x18] sm:$0xf]
      %v243 = vld [vmem:[%s1 + $0x1c] sm:$0xf]
      %v244 = vld [vmem:[%s1 + $0x20] sm:$0xf]
      %v245 = vld [vmem:[%s1 + $0x24] sm:$0xf]
      %v246 = vld [vmem:[%s1 + $0x28] sm:$0xf]
      %v247 = vld [vmem:[%s1 + $0x2c] sm:$0xf]
      %v248 = vld [vmem:[%s1 + $0x30] sm:$0xf]
      %v249 = vld [vmem:[%s1 + $0x34] sm:$0xf]
      %v250 = vld [vmem:[%s1 + $0x38] sm:$0xf]
      %v251 = vld [vmem:[%s1 + $0x3c] sm:$0xf]
      %v252 = vld [vmem:[%s2] sm:$0x1]
      %v254 = vlaneseq
      %v255 = vshrl.u32 %v254, 7
      %v256 = vsub.s32 0, %v255
      %v257 = vrot.slane %v252, %v256
      %v275 = vunpack.c.l.b16 %v236
      %v276 = vunpack.c.l.b16 %v237
      %v277 = vunpack.c.l.b16 %v238
      %v278 = vunpack.c.l.b16 %v239
      %v279 = vunpack.c.l.b16 %v240
      %v280 = vunpack.c.l.b16 %v241
      %v281 = vunpack.c.l.b16 %v242
      %v282 = vunpack.c.l.b16 %v243
      %v283 = vunpack.c.l.b16 %v244
      %v284 = vunpack.c.l.b16 %v245
      %v285 = vunpack.c.l.b16 %v246
      %v286 = vunpack.c.l.b16 %v247
      %v287 = vunpack.c.l.b16 %v248
      %v288 = vunpack.c.l.b16 %v249
      %v289 = vunpack.c.l.b16 %v250
      %v290 = vunpack.c.l.b16 %v251
      %v291 = vpack.c.b16 %v276, %v275
      %v292 = vpack.c.b16 %v278, %v277
      %v293 = vpack.c.b16 %v280, %v279
      %v294 = vpack.c.b16 %v282, %v281
      %v295 = vpack.c.b16 %v284, %v283
      %v296 = vpack.c.b16 %v286, %v285
      %v297 = vpack.c.b16 %v288, %v287
      %v298 = vpack.c.b16 %v290, %v289
      %307 = vmatprep.subr.bf16.mxu0 0
      %308 = vmatpush1.bf16.msra.mxu0 %v291
      %309 = vmatprep.subr.bf16.mxu0 0
      %310 = vmatpush1.bf16.msra.mxu0 %v292
      %311 = vmatprep.subr.bf16.mxu0 0
      %312 = vmatpush1.bf16.msra.mxu0 %v293
      %313 = vmatprep.subr.bf16.mxu0 0
      %314 = vmatpush1.bf16.msra.mxu0 %v294
      %315 = vmatprep.subr.bf16.mxu0 0
      %316 = vmatpush1.bf16.msra.mxu0 %v295
      %317 = vmatprep.subr.bf16.mxu0 0
      %318 = vmatpush1.bf16.msra.mxu0 %v296
      %319 = vmatprep.subr.bf16.mxu0 0
      %320 = vmatpush1.bf16.msra.mxu0 %v297
      %321 = vmatprep.subr.bf16.mxu0 0
      %322 = vmatpush1.bf16.msra.mxu0 %v298
      %323 = vmatprep.subr.bf16.mxu0 0
      %324 = vmatpush1.bf16.msra.mxu0 0
      %325 = vmatprep.subr.bf16.mxu0 0
      %326 = vmatpush1.bf16.msra.mxu0 0
      %327 = vmatprep.subr.bf16.mxu0 0
      %328 = vmatpush1.bf16.msra.mxu0 0
      %329 = vmatprep.subr.bf16.mxu0 0
      %330 = vmatpush1.bf16.msra.mxu0 0
      %331 = vmatprep.subr.bf16.mxu0 0
      %332 = vmatpush1.bf16.msra.mxu0 0
      %333 = vmatprep.subr.bf16.mxu0 0
      %334 = vmatpush1.bf16.msra.mxu0 0
      %335 = vmatprep.subr.bf16.mxu0 0
      %336 = vmatpush1.bf16.msra.mxu0 0
      %337 = vmatprep.subr.bf16.mxu0 0
      %338 = vmatpush1.bf16.msra.mxu0 0
      %339 = vmatprep.mubr.bf16.mxu0 0
      %340 = vmatmul.mubr.bf16.gmra.mrb[0].mxu0 %v232
      %v341 = vpop.f32.mrb[0].mxu0
      %v342 = vadd.f32 %v257, %v341
      %v343 = vpop.f32.mrb[0].mxu0
      %v344 = vpop.f32.mrb[0].mxu0
      %v345 = vadd.f32 %v257, %v344
      %v346 = vpop.f32.mrb[0].mxu0
      %347 = vmatprep.mubr.bf16.mxu0 0
      %348 = vmatmul.mubr.bf16.gmra.mrb[0].mxu0 %v233
      %v349 = vpop.f32.mrb[0].mxu0
      %v350 = vadd.f32 %v257, %v349
      %v351 = vpop.f32.mrb[0].mxu0
      %v352 = vpop.f32.mrb[0].mxu0
      %v353 = vadd.f32 %v257, %v352
      %v354 = vpop.f32.mrb[0].mxu0
      %355 = vmatprep.mubr.bf16.mxu0 0
      %356 = vmatmul.mubr.bf16.gmra.mrb[0].mxu0 %v234
      %v357 = vpop.f32.mrb[0].mxu0
      %v358 = vadd.f32 %v257, %v357
      %v359 = vpop.f32.mrb[0].mxu0
      %v360 = vpop.f32.mrb[0].mxu0
      %v361 = vadd.f32 %v257, %v360
      %v362 = vpop.f32.mrb[0].mxu0
      %363 = vmatprep.mubr.bf16.mxu0 0
      %364 = vmatmul.mubr.bf16.gmra.mrb[0].mxu0 %v235
      %v365 = vpop.f32.mrb[0].mxu0
      %v366 = vadd.f32 %v257, %v365
      %v367 = vpop.f32.mrb[0].mxu0
      %v368 = vpop.f32.mrb[0].mxu0
      %v369 = vadd.f32 %v257, %v368
      %v370 = vpop.f32.mrb[0].mxu0
      %371 = vdwg.mxu0
      %v372 = vld [vmem:[%s215] sm:$0xff]
      %v373 = vld [vmem:[%s215 + $0x8] sm:$0xff]
      %v374 = vld [vmem:[%s215 + $0x10] sm:$0xff]
      %v375 = vld [vmem:[%s215 + $0x18] sm:$0xff]
      %v376 = vld [vmem:[%s215 + $0x20] sm:$0xff]
      %v377 = vld [vmem:[%s215 + $0x28] sm:$0xff]
      %v378 = vld [vmem:[%s215 + $0x30] sm:$0xff]
      %v379 = vld [vmem:[%s215 + $0x38] sm:$0xff]
      %v380 = vadd.f32 %v342, %v372
      %v381 = vadd.f32 %v345, %v373
      %v382 = vadd.f32 %v350, %v374
      %v383 = vadd.f32 %v353, %v375
      %v384 = vadd.f32 %v358, %v376
      %v385 = vadd.f32 %v361, %v377
      %v386 = vadd.f32 %v366, %v378
      %v387 = vadd.f32 %v369, %v379
      %388 = vst [vmem:[%s221] sm:$0xff] %v380
      %389 = vst [vmem:[%s221 + $0x8] sm:$0xff] %v381
      %390 = vst [vmem:[%s221 + $0x10] sm:$0xff] %v382
      %391 = vst [vmem:[%s221 + $0x18] sm:$0xff] %v383
      %392 = vst [vmem:[%s221 + $0x20] sm:$0xff] %v384
      %393 = vst [vmem:[%s221 + $0x28] sm:$0xff] %v385
      %394 = vst [vmem:[%s221 + $0x30] sm:$0xff] %v386
      %395 = vst [vmem:[%s221 + $0x38] sm:$0xff] %v387
      %s396 = smul.u32 8, %s15
      %p397 = scmp.lt.s32.totalorder %s396, 15
      %s398 = scalar_select %p397, %s396, 15
      %s399 = smul.addr %s398, 8
      %s400 = scalar_lea.vmem %s4, %s399
      // Predicated region
      $region37: #{tfno_forward.18} parent=35 // pred_check
        %p401 = pneg %p127
      $region38: #{tfno_forward.18} parent=35 // pred_check_branch
        %403 = sbr.rel (%p401) target = $region40
      $region39: #{tfno_forward.18} parent=35 // pred_region
        %s404 = smul.u32 8, %s15
      $region40: #{tfno_forward.18} parent=35 // pred_fallthru
        _
    $region36: #{tfno_forward.18} parent=5 // pred_fallthru
      _
    %p405 = scmp.le.s32.totalorder 2, %s10
    // Predicated region
    $region41: #{tfno_forward.18} parent=5 // pred_check
      %p406 = pneg %p405
    $region42: #{tfno_forward.18} parent=5 // pred_check_branch
      %408 = sbr.rel (%p406) target = $region44
    $region43: #{tfno_forward.18} parent=5 // pred_region
      %s409 = ssub.s32 %s10, 2
      // Predicated region
      $region45: #{tfno_forward.18} parent=43 // pred_check
        %p410 = pneg %p133
      $region46: #{tfno_forward.18} parent=43 // pred_check_branch
        %412 = sbr.rel (%p410) target = $region48
      $region47: #{tfno_forward.18} parent=43 // pred_region
        %s413 = smul.u32 8, %s16
        %p414 = scmp.lt.s32.totalorder %s413, 15
        %s415 = scalar_select %p414, %s413, 15
        %s416 = smul.addr %s415, 8
        %s417 = scalar_lea.vmem %s4, %s416
      $region48: #{tfno_forward.18} parent=43 // pred_fallthru
        _
    $region44: #{tfno_forward.18} parent=5 // pred_fallthru
      _
  $region6: #{tfno_forward.18} parent=0 // loop_footer
    %s14 = sadd.s32 1, %s10
  $region7: #{tfno_forward.18} parent=0 // loop_footer_branch
    %9 = sbr.rel target = $region3
  $region8: #{tfno_forward.18} parent=0 // loop_exit
    _

// kernel: tfno_forward.19
$region0: #{tfno_forward.19}
  #allocation0 [shape = 'u32[]', space=smem, size = 0x4, offset = 0x4, fixed_abs, tag = 'smem constant byte address 0x4 - core index']
  #allocation1 [shape = 'u32[144,128]{1,0:T(1,128)}', space=vmem, size = 0x12000, scoped, tag = 'internal scratch']
  %s0 = inlined_call_operand.vmem [shape: f32[128,128], index: 0, kind: input, shape index: {}]
  %s1 = inlined_call_operand.vmem [shape: bf16[128,128], index: 1, kind: input, shape index: {}]
  %s2 = inlined_call_operand.vmem [shape: f32[1,128], index: 2, kind: input, shape index: {}]
  %s3 = inlined_call_operand.vmem [shape: bf16[128,128], index: 3, kind: input, shape index: {}]
  %s4 = inlined_call_operand.vmem [shape: f32[1,128], index: 4, kind: input, shape index: {}]
  %s5 = inlined_call_operand.vmem [shape: f32[128,128], index: 5, kind: output, shape index: {}]
  %s6 = sld [smem:[#allocation0]]
  $region53: #{tfno_forward.19} parent=0
    _
  %s8 = ssub.s32 1, %s6
  %s9 = scalar_select 0, %s8, %s6
  loop: start=0, step=1, limit=4
  $region2: #{tfno_forward.19} parent=0 // loop_pre_header
    _
  $region3: #{tfno_forward.19} parent=0 // loop_header
    %s11 = sphi 0, %s15
    %p12 = scmp.ge.s32.totalorder %s11, 4
    %s21 = sphi 0, %s23
    %s24 = sphi 0, %s21
    %s25 = sphi 0, %s24
    %s41 = sphi 0, %s25
    %s45 = sphi 0, %s45
    %s47 = sphi 0, %s45
    %s48 = sphi 0, %s47
    %s62 = sphi 0, %s48
    %s66 = sphi 0, %s66
    %s68 = sphi 0, %s66
    %s69 = sphi 0, %s68
    %s83 = sphi 0, %s69
    %s87 = sphi 0, %s87
    %s89 = sphi 0, %s87
    %s90 = sphi 0, %s89
    %s104 = sphi 0, %s90
    %s108 = sphi 0, %s108
    %s110 = sphi 0, %s108
    %s111 = sphi 0, %s110
    %s125 = sphi 0, %s111
    %s131 = sphi 0, %s133
    %s134 = sphi 0, %s131
    %s135 = sphi 0, %s134
    %s151 = sphi 0, %s135
  $region4: #{tfno_forward.19} parent=0 // loop_header_branch
    %14 = sbr.rel (%p12) target = $region8
  $region5: #{tfno_forward.19} parent=0 // loop_body
    %s16 = ssub.s32 %s11, 1
    %s17 = ssub.s32 %s11, 2
    %s18 = sadd.s32 %s11, 1
    %s19 = ssub.s32 %s11, %s18
    %p20 = scmp.eq.s32.totalorder %s19, 0
    %s22 = sadd.s32 %s21, 1
    %s23 = scalar_select %p20, %s21, %s22
    %p26 = pneg %p20
    %p27 = scmp.eq.s32.totalorder %s11, 1
    %p28 = por %p26, %p27
    %p29 = scmp.ne.s32.totalorder %s21, %s24
    %p30 = scmp.eq.s32.totalorder %s11, 0
    %p31 = por %p29, %p30
    %p32 = scmp.ne.s32.totalorder %s21, %s24
    %p33 = scmp.eq.s32.totalorder %s16, 1
    %p34 = por %p32, %p33
    %p35 = scmp.ne.s32.totalorder %s24, %s25
    %p36 = scmp.eq.s32.totalorder %s16, 0
    %p37 = por %p35, %p36
    %p38 = scmp.ne.s32.totalorder %s24, %s25
    %p39 = scmp.eq.s32.totalorder %s17, 1
    %p40 = por %p38, %p39
    %p42 = scmp.ne.s32.totalorder %s25, %s41
    %p43 = scmp.eq.s32.totalorder %s17, 0
    %p44 = por %p42, %p43
    %s46 = sadd.s32 %s45, 1
    %p49 = scmp.eq.s32.totalorder %s11, 1
    %p50 = scmp.ne.s32.totalorder %s45, %s47
    %p51 = scmp.eq.s32.totalorder %s11, 0
    %p52 = por %p50, %p51
    %p53 = scmp.ne.s32.totalorder %s45, %s47
    %p54 = scmp.eq.s32.totalorder %s16, 1
    %p55 = por %p53, %p54
    %p56 = scmp.ne.s32.totalorder %s47, %s48
    %p57 = scmp.eq.s32.totalorder %s16, 0
    %p58 = por %p56, %p57
    %p59 = scmp.ne.s32.totalorder %s47, %s48
    %p60 = scmp.eq.s32.totalorder %s17, 1
    %p61 = por %p59, %p60
    %p63 = scmp.ne.s32.totalorder %s48, %s62
    %p64 = scmp.eq.s32.totalorder %s17, 0
    %p65 = por %p63, %p64
    %s67 = sadd.s32 %s66, 1
    %p70 = scmp.eq.s32.totalorder %s11, 1
    %p71 = scmp.ne.s32.totalorder %s66, %s68
    %p72 = scmp.eq.s32.totalorder %s11, 0
    %p73 = por %p71, %p72
    %p74 = scmp.ne.s32.totalorder %s66, %s68
    %p75 = scmp.eq.s32.totalorder %s16, 1
    %p76 = por %p74, %p75
    %p77 = scmp.ne.s32.totalorder %s68, %s69
    %p78 = scmp.eq.s32.totalorder %s16, 0
    %p79 = por %p77, %p78
    %p80 = scmp.ne.s32.totalorder %s68, %s69
    %p81 = scmp.eq.s32.totalorder %s17, 1
    %p82 = por %p80, %p81
    %p84 = scmp.ne.s32.totalorder %s69, %s83
    %p85 = scmp.eq.s32.totalorder %s17, 0
    %p86 = por %p84, %p85
    %s88 = sadd.s32 %s87, 1
    %p91 = scmp.eq.s32.totalorder %s11, 1
    %p92 = scmp.ne.s32.totalorder %s87, %s89
    %p93 = scmp.eq.s32.totalorder %s11, 0
    %p94 = por %p92, %p93
    %p95 = scmp.ne.s32.totalorder %s87, %s89
    %p96 = scmp.eq.s32.totalorder %s16, 1
    %p97 = por %p95, %p96
    %p98 = scmp.ne.s32.totalorder %s89, %s90
    %p99 = scmp.eq.s32.totalorder %s16, 0
    %p100 = por %p98, %p99
    %p101 = scmp.ne.s32.totalorder %s89, %s90
    %p102 = scmp.eq.s32.totalorder %s17, 1
    %p103 = por %p101, %p102
    %p105 = scmp.ne.s32.totalorder %s90, %s104
    %p106 = scmp.eq.s32.totalorder %s17, 0
    %p107 = por %p105, %p106
    %s109 = sadd.s32 %s108, 1
    %p112 = scmp.eq.s32.totalorder %s11, 1
    %p113 = scmp.ne.s32.totalorder %s108, %s110
    %p114 = scmp.eq.s32.totalorder %s11, 0
    %p115 = por %p113, %p114
    %p116 = scmp.ne.s32.totalorder %s108, %s110
    %p117 = scmp.eq.s32.totalorder %s16, 1
    %p118 = por %p116, %p117
    %p119 = scmp.ne.s32.totalorder %s110, %s111
    %p120 = scmp.eq.s32.totalorder %s16, 0
    %p121 = por %p119, %p120
    %p122 = scmp.ne.s32.totalorder %s110, %s111
    %p123 = scmp.eq.s32.totalorder %s17, 1
    %p124 = por %p122, %p123
    %p126 = scmp.ne.s32.totalorder %s111, %s125
    %p127 = scmp.eq.s32.totalorder %s17, 0
    %p128 = por %p126, %p127
    %s129 = ssub.s32 %s11, %s18
    %p130 = scmp.eq.s32.totalorder %s129, 0
    %s132 = sadd.s32 %s131, 1
    %s133 = scalar_select %p130, %s131, %s132
    %p136 = pneg %p130
    %p137 = scmp.eq.s32.totalorder %s11, 1
    %p138 = por %p136, %p137
    %p139 = scmp.ne.s32.totalorder %s131, %s134
    %p140 = scmp.eq.s32.totalorder %s11, 0
    %p141 = por %p139, %p140
    %p142 = scmp.ne.s32.totalorder %s131, %s134
    %p143 = scmp.eq.s32.totalorder %s16, 1
    %p144 = por %p142, %p143
    %p145 = scmp.ne.s32.totalorder %s134, %s135
    %p146 = scmp.eq.s32.totalorder %s16, 0
    %p147 = por %p145, %p146
    %p148 = scmp.ne.s32.totalorder %s134, %s135
    %p149 = scmp.eq.s32.totalorder %s17, 1
    %p150 = por %p148, %p149
    %p152 = scmp.ne.s32.totalorder %s135, %s151
    %p153 = scmp.eq.s32.totalorder %s17, 0
    %p154 = por %p152, %p153
    %p155 = scmp.le.s32.totalorder 1, %s11
    %p156 = scmp.lt.s32.totalorder %s11, 3
    %p157 = pnand %p155, %p156
    %p158 = pneg %p157
    // Predicated region
    $region9: #{tfno_forward.19} parent=5 // pred_check
      _
    $region10: #{tfno_forward.19} parent=5 // pred_check_branch
      %160 = sbr.rel (%p157) target = $region12
    $region11: #{tfno_forward.19} parent=5 // pred_region
      %s161 = ssub.s32 %s11, 1
      // Predicated region
      $region13: #{tfno_forward.19} parent=11 // pred_check
        %p162 = pneg %p58
      $region14: #{tfno_forward.19} parent=11 // pred_check_branch
        %164 = sbr.rel (%p162) target = $region16
      $region15: #{tfno_forward.19} parent=11 // pred_region
        _
      $region16: #{tfno_forward.19} parent=11 // pred_fallthru
        _
      // Predicated region
      $region17: #{tfno_forward.19} parent=11 // pred_check
        %p165 = pneg %p79
      $region18: #{tfno_forward.19} parent=11 // pred_check_branch
        %167 = sbr.rel (%p165) target = $region20
      $region19: #{tfno_forward.19} parent=11 // pred_region
        _
      $region20: #{tfno_forward.19} parent=11 // pred_fallthru
        _
      // Predicated region
      $region21: #{tfno_forward.19} parent=11 // pred_check
        %p168 = pneg %p100
      $region22: #{tfno_forward.19} parent=11 // pred_check_branch
        %170 = sbr.rel (%p168) target = $region24
      $region23: #{tfno_forward.19} parent=11 // pred_region
        _
      $region24: #{tfno_forward.19} parent=11 // pred_fallthru
        _
      // Predicated region
      $region25: #{tfno_forward.19} parent=11 // pred_check
        %p171 = pneg %p121
      $region26: #{tfno_forward.19} parent=11 // pred_check_branch
        %173 = sbr.rel (%p171) target = $region28
      $region27: #{tfno_forward.19} parent=11 // pred_region
        _
      $region28: #{tfno_forward.19} parent=11 // pred_fallthru
        _
    $region12: #{tfno_forward.19} parent=5 // pred_fallthru
      _
    %p174 = scmp.lt.s32.totalorder %s11, 2
    // Predicated region
    $region29: #{tfno_forward.19} parent=5 // pred_check
      %p175 = pneg %p174
    $region30: #{tfno_forward.19} parent=5 // pred_check_branch
      %177 = sbr.rel (%p175) target = $region32
    $region31: #{tfno_forward.19} parent=5 // pred_region
      // Predicated region
      $region33: #{tfno_forward.19} parent=31 // pred_check
        %p178 = pneg %p31
      $region34: #{tfno_forward.19} parent=31 // pred_check_branch
        %180 = sbr.rel (%p178) target = $region36
      $region35: #{tfno_forward.19} parent=31 // pred_region
        %s181 = smul.u32 8, %s11
        %p182 = scmp.lt.s32.totalorder %s181, 15
        %s183 = scalar_select %p182, %s181, 15
        %s184 = smul.addr %s183, 8
        %s185 = scalar_lea.vmem %s0, %s184
        %s186 = smul.u32 8, %s11
      $region36: #{tfno_forward.19} parent=31 // pred_fallthru
        _
    $region32: #{tfno_forward.19} parent=5 // pred_fallthru
      _
    %p187 = scmp.le.s32.totalorder 1, %s11
    %p188 = scmp.lt.s32.totalorder %s11, 3
    %p189 = pnand %p187, %p188
    %p190 = pneg %p189
    // Predicated region
    $region37: #{tfno_forward.19} parent=5 // pred_check
      _
    $region38: #{tfno_forward.19} parent=5 // pred_check_branch
      %192 = sbr.rel (%p189) target = $region40
    $region39: #{tfno_forward.19} parent=5 // pred_region
      %s193 = ssub.s32 %s11, 1
      %s194 = smul.u32 8, %s16
      %p195 = scmp.lt.s32.totalorder %s194, 15
      %s196 = scalar_select %p195, %s194, 15
      %s197 = smul.addr %s196, 8
      %s198 = scalar_lea.vmem %s0, %s197
      %p199 = pneg %p37
      %p200 = pneg %p34
      %p201 = pneg %p58
      %p202 = pneg %p55
      %p203 = pneg %p79
      %p204 = pneg %p76
      %p205 = pneg %p100
      %p206 = pneg %p97
      %p207 = pneg %p121
      %p208 = pneg %p118
      %p209 = pneg %p147
      %p210 = pneg %p144
      %s211 = smul.u32 8, %s16
      %p212 = scmp.lt.s32.totalorder %s211, 15
      %s213 = scalar_select %p212, %s211, 15
      %s214 = smul.addr %s213, 8
      %s215 = scalar_lea.vmem %s5, %s214
      %s216 = smul.u32 8, %s16
      %p217 = scmp.lt.s32.totalorder %s216, 15
      %s218 = scalar_select %p217, %s216, 15
      %s219 = smul.addr %s218, 8
      %s220 = scalar_lea.vmem %s0, %s219
      %s221 = smul.u32 8, %s16
      %s222 = smul.u32 8, %s16
      %p223 = scmp.lt.s32.totalorder %s222, 15
      %s224 = scalar_select %p223, %s222, 15
      %s225 = smul.addr %s224, 8
      %s226 = scalar_lea.vmem %s5, %s225
      %s227 = smul.u32 8, %s16
      %v229 = vld [vmem:[%s220] sm:$0xff]
      %v230 = vld [vmem:[%s220 + $0x8] sm:$0xff]
      %v231 = vld [vmem:[%s220 + $0x10] sm:$0xff]
      %v232 = vld [vmem:[%s220 + $0x18] sm:$0xff]
      %v233 = vld [vmem:[%s220 + $0x20] sm:$0xff]
      %v234 = vld [vmem:[%s220 + $0x28] sm:$0xff]
      %v235 = vld [vmem:[%s220 + $0x30] sm:$0xff]
      %v236 = vld [vmem:[%s220 + $0x38] sm:$0xff]
      %v237 = vpack.c.bf16 %v230, %v229
      %v238 = vpack.c.bf16 %v232, %v231
      %v239 = vpack.c.bf16 %v234, %v233
      %v240 = vpack.c.bf16 %v236, %v235
      %v241 = vld [vmem:[%s1] sm:$0xf]
      %v242 = vld [vmem:[%s1 + $0x4] sm:$0xf]
      %v243 = vld [vmem:[%s1 + $0x8] sm:$0xf]
      %v244 = vld [vmem:[%s1 + $0xc] sm:$0xf]
      %v245 = vld [vmem:[%s1 + $0x10] sm:$0xf]
      %v246 = vld [vmem:[%s1 + $0x14] sm:$0xf]
      %v247 = vld [vmem:[%s1 + $0x18] sm:$0xf]
      %v248 = vld [vmem:[%s1 + $0x1c] sm:$0xf]
      %v249 = vld [vmem:[%s1 + $0x20] sm:$0xf]
      %v250 = vld [vmem:[%s1 + $0x24] sm:$0xf]
      %v251 = vld [vmem:[%s1 + $0x28] sm:$0xf]
      %v252 = vld [vmem:[%s1 + $0x2c] sm:$0xf]
      %v253 = vld [vmem:[%s1 + $0x30] sm:$0xf]
      %v254 = vld [vmem:[%s1 + $0x34] sm:$0xf]
      %v255 = vld [vmem:[%s1 + $0x38] sm:$0xf]
      %v256 = vld [vmem:[%s1 + $0x3c] sm:$0xf]
      %v257 = vld [vmem:[%s2] sm:$0x1]
      %v259 = vlaneseq
      %v260 = vshrl.u32 %v259, 7
      %v261 = vsub.s32 0, %v260
      %v262 = vrot.slane %v257, %v261
      %v280 = vunpack.c.l.b16 %v241
      %v281 = vunpack.c.l.b16 %v242
      %v282 = vunpack.c.l.b16 %v243
      %v283 = vunpack.c.l.b16 %v244
      %v284 = vunpack.c.l.b16 %v245
      %v285 = vunpack.c.l.b16 %v246
      %v286 = vunpack.c.l.b16 %v247
      %v287 = vunpack.c.l.b16 %v248
      %v288 = vunpack.c.l.b16 %v249
      %v289 = vunpack.c.l.b16 %v250
      %v290 = vunpack.c.l.b16 %v251
      %v291 = vunpack.c.l.b16 %v252
      %v292 = vunpack.c.l.b16 %v253
      %v293 = vunpack.c.l.b16 %v254
      %v294 = vunpack.c.l.b16 %v255
      %v295 = vunpack.c.l.b16 %v256
      %v296 = vpack.c.b16 %v281, %v280
      %v297 = vpack.c.b16 %v283, %v282
      %v298 = vpack.c.b16 %v285, %v284
      %v299 = vpack.c.b16 %v287, %v286
      %v300 = vpack.c.b16 %v289, %v288
      %v301 = vpack.c.b16 %v291, %v290
      %v302 = vpack.c.b16 %v293, %v292
      %v303 = vpack.c.b16 %v295, %v294
      %312 = vmatprep.subr.bf16.mxu0 0
      %313 = vmatpush1.bf16.msra.mxu0 %v296
      %314 = vmatprep.subr.bf16.mxu0 0
      %315 = vmatpush1.bf16.msra.mxu0 %v297
      %316 = vmatprep.subr.bf16.mxu0 0
      %317 = vmatpush1.bf16.msra.mxu0 %v298
      %318 = vmatprep.subr.bf16.mxu0 0
      %319 = vmatpush1.bf16.msra.mxu0 %v299
      %320 = vmatprep.subr.bf16.mxu0 0
      %321 = vmatpush1.bf16.msra.mxu0 %v300
      %322 = vmatprep.subr.bf16.mxu0 0
      %323 = vmatpush1.bf16.msra.mxu0 %v301
      %324 = vmatprep.subr.bf16.mxu0 0
      %325 = vmatpush1.bf16.msra.mxu0 %v302
      %326 = vmatprep.subr.bf16.mxu0 0
      %327 = vmatpush1.bf16.msra.mxu0 %v303
      %328 = vmatprep.subr.bf16.mxu0 0
      %329 = vmatpush1.bf16.msra.mxu0 0
      %330 = vmatprep.subr.bf16.mxu0 0
      %331 = vmatpush1.bf16.msra.mxu0 0
      %332 = vmatprep.subr.bf16.mxu0 0
      %333 = vmatpush1.bf16.msra.mxu0 0
      %334 = vmatprep.subr.bf16.mxu0 0
      %335 = vmatpush1.bf16.msra.mxu0 0
      %336 = vmatprep.subr.bf16.mxu0 0
      %337 = vmatpush1.bf16.msra.mxu0 0
      %338 = vmatprep.subr.bf16.mxu0 0
      %339 = vmatpush1.bf16.msra.mxu0 0
      %340 = vmatprep.subr.bf16.mxu0 0
      %341 = vmatpush1.bf16.msra.mxu0 0
      %342 = vmatprep.subr.bf16.mxu0 0
      %343 = vmatpush1.bf16.msra.mxu0 0
      %344 = vmatprep.mubr.bf16.mxu0 0
      %345 = vmatmul.mubr.bf16.gmra.mrb[0].mxu0 %v237
      %v346 = vpop.f32.mrb[0].mxu0
      %v347 = vadd.f32 %v262, %v346
      %v348 = vpop.f32.mrb[0].mxu0
      %v349 = vpop.f32.mrb[0].mxu0
      %v350 = vadd.f32 %v262, %v349
      %v351 = vpop.f32.mrb[0].mxu0
      %352 = vmatprep.mubr.bf16.mxu0 0
      %353 = vmatmul.mubr.bf16.gmra.mrb[0].mxu0 %v238
      %v354 = vpop.f32.mrb[0].mxu0
      %v355 = vadd.f32 %v262, %v354
      %v356 = vpop.f32.mrb[0].mxu0
      %v357 = vpop.f32.mrb[0].mxu0
      %v358 = vadd.f32 %v262, %v357
      %v359 = vpop.f32.mrb[0].mxu0
      %360 = vmatprep.mubr.bf16.mxu0 0
      %361 = vmatmul.mubr.bf16.gmra.mrb[0].mxu0 %v239
      %v362 = vpop.f32.mrb[0].mxu0
      %v363 = vadd.f32 %v262, %v362
      %v364 = vpop.f32.mrb[0].mxu0
      %v365 = vpop.f32.mrb[0].mxu0
      %v366 = vadd.f32 %v262, %v365
      %v367 = vpop.f32.mrb[0].mxu0
      %368 = vmatprep.mubr.bf16.mxu0 0
      %369 = vmatmul.mubr.bf16.gmra.mrb[0].mxu0 %v240
      %v370 = vpop.f32.mrb[0].mxu0
      %v371 = vadd.f32 %v262, %v370
      %v372 = vpop.f32.mrb[0].mxu0
      %v373 = vpop.f32.mrb[0].mxu0
      %v374 = vadd.f32 %v262, %v373
      %v375 = vpop.f32.mrb[0].mxu0
      %376 = vdwg.mxu0
      %v377 = vmul.f32 %v347, %v347
      %v378 = vmul.f32 %v350, %v350
      %v379 = vmul.f32 %v355, %v355
      %v380 = vmul.f32 %v358, %v358
      %v381 = vmul.f32 %v363, %v363
      %v382 = vmul.f32 %v366, %v366
      %v383 = vmul.f32 %v371, %v371
      %v384 = vmul.f32 %v374, %v374
      %v385 = vmul.f32 %v347, %v377
      %v386 = vmul.f32 %v350, %v378
      %v387 = vmul.f32 %v355, %v379
      %v388 = vmul.f32 %v358, %v380
      %v389 = vmul.f32 %v363, %v381
      %v390 = vmul.f32 %v366, %v382
      %v391 = vmul.f32 %v371, %v383
      %v392 = vmul.f32 %v374, %v384
      %v393 = vmul.f32 %v385, 0.044715
      %v394 = vmul.f32 %v386, 0.044715
      %v395 = vmul.f32 %v387, 0.044715
      %v396 = vmul.f32 %v388, 0.044715
      %v397 = vmul.f32 %v389, 0.044715
      %v398 = vmul.f32 %v390, 0.044715
      %v399 = vmul.f32 %v391, 0.044715
      %v400 = vmul.f32 %v392, 0.044715
      %v401 = vadd.f32 %v347, %v393
      %v402 = vadd.f32 %v350, %v394
      %v403 = vadd.f32 %v355, %v395
      %v404 = vadd.f32 %v358, %v396
      %v405 = vadd.f32 %v363, %v397
      %v406 = vadd.f32 %v366, %v398
      %v407 = vadd.f32 %v371, %v399
      %v408 = vadd.f32 %v374, %v400
      %v409 = vmul.f32 %v401, 0.7978846
      %v410 = vmul.f32 %v402, 0.7978846
      %v411 = vmul.f32 %v403, 0.7978846
      %v412 = vmul.f32 %v404, 0.7978846
      %v413 = vmul.f32 %v405, 0.7978846
      %v414 = vmul.f32 %v406, 0.7978846
      %v415 = vmul.f32 %v407, 0.7978846
      %v416 = vmul.f32 %v408, 0.7978846
      %v417 = vtanh.pop %v409
      %v418 = vtanh.pop %v410
      %v419 = vtanh.pop %v411
      %v420 = vtanh.pop %v412
      %v421 = vtanh.pop %v413
      %v422 = vtanh.pop %v414
      %v423 = vtanh.pop %v415
      %v424 = vtanh.pop %v416
      %v425 = vadd.f32 %v417, 1.0
      %v426 = vadd.f32 %v418, 1.0
      %v427 = vadd.f32 %v419, 1.0
      %v428 = vadd.f32 %v420, 1.0
      %v429 = vadd.f32 %v421, 1.0
      %v430 = vadd.f32 %v422, 1.0
      %v431 = vadd.f32 %v423, 1.0
      %v432 = vadd.f32 %v424, 1.0
      %v433 = vmul.f32 %v425, 0.5
      %v434 = vmul.f32 %v426, 0.5
      %v435 = vmul.f32 %v427, 0.5
      %v436 = vmul.f32 %v428, 0.5
      %v437 = vmul.f32 %v429, 0.5
      %v438 = vmul.f32 %v430, 0.5
      %v439 = vmul.f32 %v431, 0.5
      %v440 = vmul.f32 %v432, 0.5
      %v441 = vmul.f32 %v347, %v433
      %v442 = vmul.f32 %v350, %v434
      %v443 = vmul.f32 %v355, %v435
      %v444 = vmul.f32 %v358, %v436
      %v445 = vmul.f32 %v363, %v437
      %v446 = vmul.f32 %v366, %v438
      %v447 = vmul.f32 %v371, %v439
      %v448 = vmul.f32 %v374, %v440
      %v449 = vpack.c.bf16 %v442, %v441
      %v450 = vpack.c.bf16 %v444, %v443
      %v451 = vpack.c.bf16 %v446, %v445
      %v452 = vpack.c.bf16 %v448, %v447
      %v453 = vld [vmem:[%s3] sm:$0xf]
      %v454 = vld [vmem:[%s3 + $0x4] sm:$0xf]
      %v455 = vld [vmem:[%s3 + $0x8] sm:$0xf]
      %v456 = vld [vmem:[%s3 + $0xc] sm:$0xf]
      %v457 = vld [vmem:[%s3 + $0x10] sm:$0xf]
      %v458 = vld [vmem:[%s3 + $0x14] sm:$0xf]
      %v459 = vld [vmem:[%s3 + $0x18] sm:$0xf]
      %v460 = vld [vmem:[%s3 + $0x1c] sm:$0xf]
      %v461 = vld [vmem:[%s3 + $0x20] sm:$0xf]
      %v462 = vld [vmem:[%s3 + $0x24] sm:$0xf]
      %v463 = vld [vmem:[%s3 + $0x28] sm:$0xf]
      %v464 = vld [vmem:[%s3 + $0x2c] sm:$0xf]
      %v465 = vld [vmem:[%s3 + $0x30] sm:$0xf]
      %v466 = vld [vmem:[%s3 + $0x34] sm:$0xf]
      %v467 = vld [vmem:[%s3 + $0x38] sm:$0xf]
      %v468 = vld [vmem:[%s3 + $0x3c] sm:$0xf]
      %v469 = vld [vmem:[%s4] sm:$0x1]
      %v471 = vlaneseq
      %v472 = vshrl.u32 %v471, 7
      %v473 = vsub.s32 0, %v472
      %v474 = vrot.slane %v469, %v473
      %v492 = vunpack.c.l.b16 %v453
      %v493 = vunpack.c.l.b16 %v454
      %v494 = vunpack.c.l.b16 %v455
      %v495 = vunpack.c.l.b16 %v456
      %v496 = vunpack.c.l.b16 %v457
      %v497 = vunpack.c.l.b16 %v458
      %v498 = vunpack.c.l.b16 %v459
      %v499 = vunpack.c.l.b16 %v460
      %v500 = vunpack.c.l.b16 %v461
      %v501 = vunpack.c.l.b16 %v462
      %v502 = vunpack.c.l.b16 %v463
      %v503 = vunpack.c.l.b16 %v464
      %v504 = vunpack.c.l.b16 %v465
      %v505 = vunpack.c.l.b16 %v466
      %v506 = vunpack.c.l.b16 %v467
      %v507 = vunpack.c.l.b16 %v468
      %v508 = vpack.c.b16 %v493, %v492
      %v509 = vpack.c.b16 %v495, %v494
      %v510 = vpack.c.b16 %v497, %v496
      %v511 = vpack.c.b16 %v499, %v498
      %v512 = vpack.c.b16 %v501, %v500
      %v513 = vpack.c.b16 %v503, %v502
      %v514 = vpack.c.b16 %v505, %v504
      %v515 = vpack.c.b16 %v507, %v506
      %524 = vmatprep.subr.bf16.mxu0 0
      %525 = vmatpush1.bf16.msra.mxu0 %v508
      %526 = vmatprep.subr.bf16.mxu0 0
      %527 = vmatpush1.bf16.msra.mxu0 %v509
      %528 = vmatprep.subr.bf16.mxu0 0
      %529 = vmatpush1.bf16.msra.mxu0 %v510
      %530 = vmatprep.subr.bf16.mxu0 0
      %531 = vmatpush1.bf16.msra.mxu0 %v511
      %532 = vmatprep.subr.bf16.mxu0 0
      %533 = vmatpush1.bf16.msra.mxu0 %v512
      %534 = vmatprep.subr.bf16.mxu0 0
      %535 = vmatpush1.bf16.msra.mxu0 %v513
      %536 = vmatprep.subr.bf16.mxu0 0
      %537 = vmatpush1.bf16.msra.mxu0 %v514
      %538 = vmatprep.subr.bf16.mxu0 0
      %539 = vmatpush1.bf16.msra.mxu0 %v515
      %540 = vmatprep.subr.bf16.mxu0 0
      %541 = vmatpush1.bf16.msra.mxu0 0
      %542 = vmatprep.subr.bf16.mxu0 0
      %543 = vmatpush1.bf16.msra.mxu0 0
      %544 = vmatprep.subr.bf16.mxu0 0
      %545 = vmatpush1.bf16.msra.mxu0 0
      %546 = vmatprep.subr.bf16.mxu0 0
      %547 = vmatpush1.bf16.msra.mxu0 0
      %548 = vmatprep.subr.bf16.mxu0 0
      %549 = vmatpush1.bf16.msra.mxu0 0
      %550 = vmatprep.subr.bf16.mxu0 0
      %551 = vmatpush1.bf16.msra.mxu0 0
      %552 = vmatprep.subr.bf16.mxu0 0
      %553 = vmatpush1.bf16.msra.mxu0 0
      %554 = vmatprep.subr.bf16.mxu0 0
      %555 = vmatpush1.bf16.msra.mxu0 0
      %556 = vmatprep.mubr.bf16.mxu0 0
      %557 = vmatmul.mubr.bf16.gmra.mrb[0].mxu0 %v449
      %v558 = vpop.f32.mrb[0].mxu0
      %v559 = vadd.f32 %v474, %v558
      %v560 = vpop.f32.mrb[0].mxu0
      %v561 = vpop.f32.mrb[0].mxu0
      %v562 = vadd.f32 %v474, %v561
      %v563 = vpop.f32.mrb[0].mxu0
      %564 = vmatprep.mubr.bf16.mxu0 0
      %565 = vmatmul.mubr.bf16.gmra.mrb[0].mxu0 %v450
      %v566 = vpop.f32.mrb[0].mxu0
      %v567 = vadd.f32 %v474, %v566
      %v568 = vpop.f32.mrb[0].mxu0
      %v569 = vpop.f32.mrb[0].mxu0
      %v570 = vadd.f32 %v474, %v569
      %v571 = vpop.f32.mrb[0].mxu0
      %572 = vmatprep.mubr.bf16.mxu0 0
      %573 = vmatmul.mubr.bf16.gmra.mrb[0].mxu0 %v451
      %v574 = vpop.f32.mrb[0].mxu0
      %v575 = vadd.f32 %v474, %v574
      %v576 = vpop.f32.mrb[0].mxu0
      %v577 = vpop.f32.mrb[0].mxu0
      %v578 = vadd.f32 %v474, %v577
      %v579 = vpop.f32.mrb[0].mxu0
      %580 = vmatprep.mubr.bf16.mxu0 0
      %581 = vmatmul.mubr.bf16.gmra.mrb[0].mxu0 %v452
      %v582 = vpop.f32.mrb[0].mxu0
      %v583 = vadd.f32 %v474, %v582
      %v584 = vpop.f32.mrb[0].mxu0
      %v585 = vpop.f32.mrb[0].mxu0
      %v586 = vadd.f32 %v474, %v585
      %v587 = vpop.f32.mrb[0].mxu0
      %588 = vdwg.mxu0
      %589 = vst [vmem:[%s226] sm:$0xff] %v559
      %590 = vst [vmem:[%s226 + $0x8] sm:$0xff] %v562
      %591 = vst [vmem:[%s226 + $0x10] sm:$0xff] %v567
      %592 = vst [vmem:[%s226 + $0x18] sm:$0xff] %v570
      %593 = vst [vmem:[%s226 + $0x20] sm:$0xff] %v575
      %594 = vst [vmem:[%s226 + $0x28] sm:$0xff] %v578
      %595 = vst [vmem:[%s226 + $0x30] sm:$0xff] %v583
      %596 = vst [vmem:[%s226 + $0x38] sm:$0xff] %v586
      %s597 = smul.u32 8, %s16
      %p598 = scmp.lt.s32.totalorder %s597, 15
      %s599 = scalar_select %p598, %s597, 15
      %s600 = smul.addr %s599, 8
      %s601 = scalar_lea.vmem %s5, %s600
      // Predicated region
      $region41: #{tfno_forward.19} parent=39 // pred_check
        %p602 = pneg %p144
      $region42: #{tfno_forward.19} parent=39 // pred_check_branch
        %604 = sbr.rel (%p602) target = $region44
      $region43: #{tfno_forward.19} parent=39 // pred_region
        %s605 = smul.u32 8, %s16
      $region44: #{tfno_forward.19} parent=39 // pred_fallthru
        _
    $region40: #{tfno_forward.19} parent=5 // pred_fallthru
      _
    %p606 = scmp.le.s32.totalorder 2, %s11
    // Predicated region
    $region45: #{tfno_forward.19} parent=5 // pred_check
      %p607 = pneg %p606
    $region46: #{tfno_forward.19} parent=5 // pred_check_branch
      %609 = sbr.rel (%p607) target = $region48
    $region47: #{tfno_forward.19} parent=5 // pred_region
      %s610 = ssub.s32 %s11, 2
      // Predicated region
      $region49: #{tfno_forward.19} parent=47 // pred_check
        %p611 = pneg %p150
      $region50: #{tfno_forward.19} parent=47 // pred_check_branch
        %613 = sbr.rel (%p611) target = $region52
      $region51: #{tfno_forward.19} parent=47 // pred_region
        %s614 = smul.u32 8, %s17
        %p615 = scmp.lt.s32.totalorder %s614, 15
        %s616 = scalar_select %p615, %s614, 15
        %s617 = smul.addr %s616, 8
        %s618 = scalar_lea.vmem %s5, %s617
      $region52: #{tfno_forward.19} parent=47 // pred_fallthru
        _
    $region48: #{tfno_forward.19} parent=5 // pred_fallthru
      _
  $region6: #{tfno_forward.19} parent=0 // loop_footer
    %s15 = sadd.s32 1, %s11
  $region7: #{tfno_forward.19} parent=0 // loop_footer_branch
    %10 = sbr.rel target = $region3
  $region8: #{tfno_forward.19} parent=0 // loop_exit
    _

</llo_original>
